<compile_context>
chip_gen: v7x
topology: tpu7x:2x2x1
jax: 0.10.0
libtpu: 0.0.40
codegen_flags: <defaults>
</compile_context>

<pallas_src>
import jax
import jax.numpy as jnp
from jax.experimental import pallas as pl
from jax.experimental.pallas import tpu as pltpu


# ----------------------------------------------------------------------------
# helpers
# ----------------------------------------------------------------------------
def _full_spec(shape):
    # grid=(1,): a single invocation sees the full array as one VMEM block.
    return pl.BlockSpec(shape, lambda *_: (0,) * len(shape))


def _sigmoid(x):
    return 1.0 / (1.0 + jnp.exp(-x))


def _softplus(x):
    # numerically stable softplus with only elementwise ops
    return jnp.maximum(x, 0.0) + jnp.log(1.0 + jnp.exp(-jnp.abs(x)))


# ----------------------------------------------------------------------------
# fused kernel: 4 GRU directions + mean-pool + both Gaussian heads
# ----------------------------------------------------------------------------
def _make_fused_kernel(T, B, H, Z, ty_valid):
    H3 = 3 * H

    def kernel(xf_ref, yf_ref, xlen_ref, ylen_ref,
               wihx_ref, bihx_ref, wihy_ref, bihy_ref,
               whh_ref, bhh_ref, wxy_ref, bxy_ref, wx_ref, bx_ref,
               xy_ref, heads_ref):
        # ---- phase 1: hoisted input projections (one big MXU matmul each) ----
        # columns [0:3H] = forward direction gates, [3H:6H] = backward direction
        gix = jnp.dot(xf_ref[...], wihx_ref[...],
                      preferred_element_type=jnp.float32) + bihx_ref[...]
        giy = jnp.dot(yf_ref[...], wihy_ref[...],
                      preferred_element_type=jnp.float32) + bihy_ref[...]

        xlen = xlen_ref[...]   # (B, 1) int32
        ylen = ylen_ref[...]   # (B, 1) int32

        # hidden states / time-sum accumulators of all 4 directions packed
        # lane-dense: [src_fwd | src_bwd | trg_fwd | trg_bwd]  -> (B, 4H)
        h_all = jnp.zeros((B, 4 * H), jnp.float32)
        acc = jnp.zeros((B, 4 * H), jnp.float32)

        # ---- phase 2: recurrence, fully unrolled (T is a small constant) ----
        for i in range(T):
            tr = T - 1 - i

            gx_t = gix[i * B:(i + 1) * B, :]     # (B, 6H)
            gx_r = gix[tr * B:(tr + 1) * B, :]
            gy_t = giy[i * B:(i + 1) * B, :]
            gy_r = giy[tr * B:(tr + 1) * B, :]

            # masks generated in-kernel from the lengths (packed semantics)
            xm_t = (i < xlen).astype(jnp.float32)     # (B, 1)
            xm_r = (tr < xlen).astype(jnp.float32)
            ym_t = (i < ylen).astype(jnp.float32)
            ym_r = (tr < ylen).astype(jnp.float32)
            # trg GRU is NOT packed: it updates at every step of the original
            # padded length ty_valid (static), outputs masked by y-length mask.
            yu_t = 1.0 if i < ty_valid else 0.0
            yu_r = 1.0 if tr < ty_valid else 0.0

            gi_list = (gx_t[:, :H3], gx_r[:, H3:], gy_t[:, :H3], gy_r[:, H3:])
            upd_m = (xm_t, xm_r, yu_t, yu_r)          # hidden-state update gate
            out_m = (xm_t, xm_r, ym_t, ym_r)          # output mask

            h_next, outs = [], []
            for d in range(4):                         # 4 independent dots -> ILP
                h_d = h_all[:, d * H:(d + 1) * H]
                gh = jnp.dot(h_d, whh_ref[d],
                             preferred_element_type=jnp.float32) + bhh_ref[d]
                gi = gi_list[d]
                r = _sigmoid(gi[:, 0:H] + gh[:, 0:H])
                z = _sigmoid(gi[:, H:2 * H] + gh[:, H:2 * H])
                n = jnp.tanh(gi[:, 2 * H:] + r * gh[:, 2 * H:])
                h_new = (1.0 - z) * n + z * h_d
                m_u = upd_m[d]
                h_next.append(m_u * h_new + (1.0 - m_u) * h_d)
                outs.append(out_m[d] * h_new)
            h_all = jnp.concatenate(h_next, axis=1)    # (B, 4H) lane-dense
            acc = acc + jnp.concatenate(outs, axis=1)

        # ---- phase 3: finalize — mean-pool + concat + both Gaussian heads ----
        xlen_f = xlen.astype(jnp.float32)
        ylen_f = ylen.astype(jnp.float32)
        X = acc[:, :2 * H] / xlen_f                    # (B, 2H)
        Y = acc[:, 2 * H:] / ylen_f                    # (B, 2H)
        XY = jnp.concatenate([X, Y], axis=1)           # (B, 4H) lane-dense store
        xy_ref[...] = XY

        # fused [mu | sigma] weights -> one matmul per head
        hxy = jnp.dot(XY, wxy_ref[...],
                      preferred_element_type=jnp.float32) + bxy_ref[...]
        hx = jnp.dot(X, wx_ref[...],
                     preferred_element_type=jnp.float32) + bx_ref[...]
        heads_ref[...] = jnp.concatenate(
            [hxy[:, :Z], _softplus(hxy[:, Z:]),
             hx[:, :Z], _softplus(hx[:, Z:])], axis=1)  # (B, 4Z) single store

    return kernel


def _fused_forward(params, x_flat, y_flat, xlen, ylen, *, T, B, H, Z, ty_valid):
    kernel = _make_fused_kernel(T, B, H, Z, ty_valid)
    ins = (x_flat, y_flat, xlen, ylen,
           params["wih_x"], params["bih_x"], params["wih_y"], params["bih_y"],
           params["whh"], params["bhh"],
           params["w_xy"], params["b_xy"], params["w_x"], params["b_x"])
    out_shape = (jax.ShapeDtypeStruct((B, 4 * H), jnp.float32),
                 jax.ShapeDtypeStruct((B, 4 * Z), jnp.float32))
    return pl.pallas_call(
        kernel,
        out_shape=out_shape,
        grid=(1,),
        in_specs=[_full_spec(a.shape) for a in ins],
        out_specs=(_full_spec((B, 4 * H)), _full_spec((B, 4 * Z))),
        compiler_params=pltpu.CompilerParams(
            dimension_semantics=("arbitrary",)),
    )(*ins)


# ----------------------------------------------------------------------------
# Parameter init (deterministic, synthetic) — stored pre-packed for the kernel
# ----------------------------------------------------------------------------
def init_params(key, src_size, trg_size, hidden_size, latent_size):
    H, Z = hidden_size, latent_size

    def gru_dir(k, in_size):
        k1, k2, k3, k4 = jax.random.split(k, 4)
        s = 1.0 / jnp.sqrt(H)
        return (jax.random.uniform(k1, (in_size, 3 * H), jnp.float32, -s, s),  # W_ih^T
                jax.random.uniform(k2, (H, 3 * H), jnp.float32, -s, s),        # W_hh^T
                jax.random.uniform(k3, (1, 3 * H), jnp.float32, -s, s),        # b_ih
                jax.random.uniform(k4, (1, 3 * H), jnp.float32, -s, s))        # b_hh

    def dist_head(k, in_size):
        k1, k2, k3, k4 = jax.random.split(k, 4)
        s = 1.0 / jnp.sqrt(in_size)
        wm = jax.random.uniform(k1, (in_size, Z), jnp.float32, -s, s)
        bm = jax.random.uniform(k2, (1, Z), jnp.float32, -s, s)
        ws = jax.random.uniform(k3, (in_size, Z), jnp.float32, -s, s)
        bs = jax.random.uniform(k4, (1, Z), jnp.float32, -s, s)
        return jnp.concatenate([wm, ws], axis=1), jnp.concatenate([bm, bs], axis=1)

    ks = jax.random.split(key, 6)
    sf = gru_dir(ks[0], src_size)
    sb = gru_dir(ks[1], src_size)
    tf = gru_dir(ks[2], trg_size)
    tb = gru_dir(ks[3], trg_size)
    w_xy, b_xy = dist_head(ks[4], 4 * H)
    w_x, b_x = dist_head(ks[5], 2 * H)
    return {
        "wih_x": jnp.concatenate([sf[0], sb[0]], axis=1),   # (Dx, 6H)  [fwd|bwd]
        "bih_x": jnp.concatenate([sf[2], sb[2]], axis=1),   # (1, 6H)
        "wih_y": jnp.concatenate([tf[0], tb[0]], axis=1),   # (Dy, 6H)
        "bih_y": jnp.concatenate([tf[2], tb[2]], axis=1),   # (1, 6H)
        "whh": jnp.stack([sf[1], sb[1], tf[1], tb[1]]),     # (4, H, 3H)
        "bhh": jnp.stack([sf[3], sb[3], tf[3], tb[3]]),     # (4, 1, 3H)
        "w_xy": w_xy, "b_xy": b_xy,                          # (4H, 2Z), (1, 2Z)
        "w_x": w_x, "b_x": b_x,                              # (2H, 2Z), (1, 2Z)
    }


# ----------------------------------------------------------------------------
# forward (matches SourceTargetInferenceNetwork.forward, use_avg=True,
# pad_pack_x=True, pad_pack_y=False, num_layers=1, share_params=False)
# ----------------------------------------------------------------------------
@jax.jit
def source_target_inference_forward(params, x, x_mask, x_lengths,
                                    y, y_mask, y_lengths):
    B, Tx, Dx = x.shape
    _, Ty, Dy = y.shape
    T = max(Tx, Ty)
    H = params["whh"].shape[1]
    Z = params["w_xy"].shape[1] // 2

    # time-major, padded to a common T, flattened to (T*B, D) so the kernel can
    # hoist the whole input projection into a single MXU matmul per sequence.
    x_tm = jnp.transpose(x, (1, 0, 2)).astype(jnp.float32)
    y_tm = jnp.transpose(y, (1, 0, 2)).astype(jnp.float32)
    if Tx < T:
        x_tm = jnp.pad(x_tm, ((0, T - Tx), (0, 0), (0, 0)))
    if Ty < T:
        y_tm = jnp.pad(y_tm, ((0, T - Ty), (0, 0), (0, 0)))
    x_flat = x_tm.reshape(T * B, Dx)
    y_flat = y_tm.reshape(T * B, Dy)

    xlen = x_lengths.astype(jnp.int32).reshape(B, 1)
    ylen = y_lengths.astype(jnp.int32).reshape(B, 1)

    # TODO(synk): x_mask is unused by the PyTorch forward when pad_pack_x=True;
    # y_mask is assumed to equal the standard (t < y_lengths) padding mask and is
    # regenerated inside the kernel from y_lengths (avoids shipping 1-lane-wide
    # (T,B,1) mask tensors through VMEM, per the performance review).
    del x_mask, y_mask

    xy, heads = _fused_forward(params, x_flat, y_flat, xlen, ylen,
                               T=T, B=B, H=H, Z=Z, ty_valid=Ty)
    mu_xy = heads[:, 0 * Z:1 * Z]
    sig_xy = heads[:, 1 * Z:2 * Z]
    mu_x = heads[:, 2 * Z:3 * Z]
    sig_x = heads[:, 3 * Z:4 * Z]
    return mu_xy, sig_xy, mu_x, sig_x, xy


# ----------------------------------------------------------------------------
# pure-JAX reference of the same math (for self-check only)
# ----------------------------------------------------------------------------
def _reference_forward(params, x, x_lengths, y, y_mask, y_lengths):
    B, Tx, _ = x.shape
    _, Ty, _ = y.shape
    H = params["whh"].shape[1]
    Z = params["w_xy"].shape[1] // 2
    H3 = 3 * H

    def run_dir(seq, upd, outm, wih, bih, whh, bhh, reverse):
        Tn = seq.shape[1]
        h = jnp.zeros((B, H), jnp.float32)
        s = jnp.zeros((B, H), jnp.float32)
        order = range(Tn - 1, -1, -1) if reverse else range(Tn)
        for t in order:
            gi = seq[:, t, :] @ wih + bih
            gh = h @ whh + bhh
            r = _sigmoid(gi[:, :H] + gh[:, :H])
            z = _sigmoid(gi[:, H:2 * H] + gh[:, H:2 * H])
            n = jnp.tanh(gi[:, 2 * H:] + r * gh[:, 2 * H:])
            h_new = (1.0 - z) * n + z * h
            m_u = upd[:, t:t + 1]
            m_o = outm[:, t:t + 1]
            h = m_u * h_new + (1.0 - m_u) * h
            s = s + m_o * h_new
        return s

    xm = (jnp.arange(Tx)[None, :] < x_lengths[:, None]).astype(jnp.float32)
    yu = jnp.ones((B, Ty), jnp.float32)
    ym = y_mask.astype(jnp.float32)

    xf = run_dir(x, xm, xm, params["wih_x"][:, :H3], params["bih_x"][:, :H3],
                 params["whh"][0], params["bhh"][0], False)
    xb = run_dir(x, xm, xm, params["wih_x"][:, H3:], params["bih_x"][:, H3:],
                 params["whh"][1], params["bhh"][1], True)
    yf = run_dir(y, yu, ym, params["wih_y"][:, :H3], params["bih_y"][:, :H3],
                 params["whh"][2], params["bhh"][2], False)
    yb = run_dir(y, yu, ym, params["wih_y"][:, H3:], params["bih_y"][:, H3:],
                 params["whh"][3], params["bhh"][3], True)

    X = jnp.concatenate([xf, xb], axis=1) / x_lengths.astype(jnp.float32)[:, None]
    Y = jnp.concatenate([yf, yb], axis=1) / y_lengths.astype(jnp.float32)[:, None]
    XY = jnp.concatenate([X, Y], axis=1)
    hxy = XY @ params["w_xy"] + params["b_xy"]
    hx = X @ params["w_x"] + params["b_x"]
    return (hxy[:, :Z], _softplus(hxy[:, Z:]),
            hx[:, :Z], _softplus(hx[:, Z:]), XY)


# ----------------------------------------------------------------------------
if __name__ == "__main__":
    B = 2
    Tx = 8
    Ty = 8
    SRC = 16
    TRG = 16
    HID = 32
    LATENT = 16

    key = jax.random.PRNGKey(0)
    kp, kx, ky = jax.random.split(key, 3)

    params = init_params(kp, SRC, TRG, HID, LATENT)

    x = jax.random.normal(kx, (B, Tx, SRC), jnp.float32)
    y = jax.random.normal(ky, (B, Ty, TRG), jnp.float32)
    x_lengths = jnp.array([8, 5], dtype=jnp.int32)   # sorted by length desc, as required
    y_lengths = jnp.array([8, 6], dtype=jnp.int32)
    x_mask = (jnp.arange(Tx)[None, :] < x_lengths[:, None]).astype(jnp.float32)
    y_mask = (jnp.arange(Ty)[None, :] < y_lengths[:, None]).astype(jnp.float32)

    outs = source_target_inference_forward(
        params, x, x_mask, x_lengths, y, y_mask, y_lengths)
    mu_xy, sig_xy, mu_x, sig_x, XY = jax.block_until_ready(outs)

    assert mu_xy.shape == (B, LATENT) and sig_xy.shape == (B, LATENT)
    assert mu_x.shape == (B, LATENT) and sig_x.shape == (B, LATENT)
    assert XY.shape == (B, 4 * HID)

    # self-check against a pure-JAX reference of the same math
    ref = _reference_forward(params, x, x_lengths, y, y_mask, y_lengths)
    for got, want in zip((mu_xy, sig_xy, mu_x, sig_x, XY), ref):
        err = float(jnp.max(jnp.abs(got - want)))
        assert err < 5e-2, f"mismatch vs reference: max abs err {err}"

    print("KERNEL_OK")
</pallas_src>

<mosaic_0001>
module attributes {stable_mosaic.version = 11 : i64} {
  func.func @kernel(%arg0: i32, %arg1: memref<16x16xf32, #tpu.memory_space<vmem>>, %arg2: memref<16x16xf32, #tpu.memory_space<vmem>>, %arg3: memref<2x1xi32, #tpu.memory_space<vmem>>, %arg4: memref<2x1xi32, #tpu.memory_space<vmem>>, %arg5: memref<16x192xf32, #tpu.memory_space<vmem>>, %arg6: memref<1x192xf32, #tpu.memory_space<vmem>>, %arg7: memref<16x192xf32, #tpu.memory_space<vmem>>, %arg8: memref<1x192xf32, #tpu.memory_space<vmem>>, %arg9: memref<4x32x96xf32, #tpu.memory_space<vmem>>, %arg10: memref<4x1x96xf32, #tpu.memory_space<vmem>>, %arg11: memref<128x32xf32, #tpu.memory_space<vmem>>, %arg12: memref<1x32xf32, #tpu.memory_space<vmem>>, %arg13: memref<64x32xf32, #tpu.memory_space<vmem>>, %arg14: memref<1x32xf32, #tpu.memory_space<vmem>>, %arg15: memref<2x128xf32, #tpu.memory_space<vmem>>, %arg16: memref<2x64xf32, #tpu.memory_space<vmem>>) attributes {dimension_semantics = [#tpu.dimension_semantics<arbitrary>], iteration_bounds = array<i64: 1>, scalar_prefetch = 0 : i64, scratch_operands = 0 : i64, tpu.core_type = #tpu.core_type<tc>, window_params = [{pipeline_mode = #tpu.pipeline_mode<synchronous>, transform_indices = @transform_0, window_bounds = array<i64: 16, 16>}, {pipeline_mode = #tpu.pipeline_mode<synchronous>, transform_indices = @transform_1, window_bounds = array<i64: 16, 16>}, {pipeline_mode = #tpu.pipeline_mode<synchronous>, transform_indices = @transform_2, window_bounds = array<i64: 2, 1>}, {pipeline_mode = #tpu.pipeline_mode<synchronous>, transform_indices = @transform_3, window_bounds = array<i64: 2, 1>}, {pipeline_mode = #tpu.pipeline_mode<synchronous>, transform_indices = @transform_4, window_bounds = array<i64: 16, 192>}, {pipeline_mode = #tpu.pipeline_mode<synchronous>, transform_indices = @transform_5, window_bounds = array<i64: 1, 192>}, {pipeline_mode = #tpu.pipeline_mode<synchronous>, transform_indices = @transform_6, window_bounds = array<i64: 16, 192>}, {pipeline_mode = #tpu.pipeline_mode<synchronous>, transform_indices = @transform_7, window_bounds = array<i64: 1, 192>}, {pipeline_mode = #tpu.pipeline_mode<synchronous>, transform_indices = @transform_8, window_bounds = array<i64: 4, 32, 96>}, {pipeline_mode = #tpu.pipeline_mode<synchronous>, transform_indices = @transform_9, window_bounds = array<i64: 4, 1, 96>}, {pipeline_mode = #tpu.pipeline_mode<synchronous>, transform_indices = @transform_10, window_bounds = array<i64: 128, 32>}, {pipeline_mode = #tpu.pipeline_mode<synchronous>, transform_indices = @transform_11, window_bounds = array<i64: 1, 32>}, {pipeline_mode = #tpu.pipeline_mode<synchronous>, transform_indices = @transform_12, window_bounds = array<i64: 64, 32>}, {pipeline_mode = #tpu.pipeline_mode<synchronous>, transform_indices = @transform_13, window_bounds = array<i64: 1, 32>}, {pipeline_mode = #tpu.pipeline_mode<synchronous>, transform_indices = @transform_14, window_bounds = array<i64: 2, 128>}, {pipeline_mode = #tpu.pipeline_mode<synchronous>, transform_indices = @transform_15, window_bounds = array<i64: 2, 64>}]} {
    %c0 = arith.constant 0 : index
    %c0_0 = arith.constant 0 : index
    %0 = vector.load %arg1[%c0, %c0_0] : memref<16x16xf32, #tpu.memory_space<vmem>>, vector<16x16xf32>
    %c0_1 = arith.constant 0 : index
    %c0_2 = arith.constant 0 : index
    %1 = vector.load %arg5[%c0_1, %c0_2] : memref<16x192xf32, #tpu.memory_space<vmem>>, vector<16x192xf32>
    %cst = arith.constant dense<0.000000e+00> : vector<16x192xf32>
    %2 = tpu.matmul %0, %1, %cst {dimension_numbers = #tpu.dot_dimension_numbers<[1], [0], [0], [1], [0, 0, 1, 1], [], []>} : vector<16x16xf32>, vector<16x192xf32>, vector<16x192xf32> -> vector<16x192xf32>
    %c0_3 = arith.constant 0 : index
    %c0_4 = arith.constant 0 : index
    %3 = vector.load %arg6[%c0_3, %c0_4] : memref<1x192xf32, #tpu.memory_space<vmem>>, vector<1x192xf32>
    %4 = vector.broadcast %3 : vector<1x192xf32> to vector<16x192xf32>
    %5 = arith.addf %2, %4 : vector<16x192xf32>
    %c0_5 = arith.constant 0 : index
    %c0_6 = arith.constant 0 : index
    %6 = vector.load %arg2[%c0_5, %c0_6] : memref<16x16xf32, #tpu.memory_space<vmem>>, vector<16x16xf32>
    %c0_7 = arith.constant 0 : index
    %c0_8 = arith.constant 0 : index
    %7 = vector.load %arg7[%c0_7, %c0_8] : memref<16x192xf32, #tpu.memory_space<vmem>>, vector<16x192xf32>
    %cst_9 = arith.constant dense<0.000000e+00> : vector<16x192xf32>
    %8 = tpu.matmul %6, %7, %cst_9 {dimension_numbers = #tpu.dot_dimension_numbers<[1], [0], [0], [1], [0, 0, 1, 1], [], []>} : vector<16x16xf32>, vector<16x192xf32>, vector<16x192xf32> -> vector<16x192xf32>
    %c0_10 = arith.constant 0 : index
    %c0_11 = arith.constant 0 : index
    %9 = vector.load %arg8[%c0_10, %c0_11] : memref<1x192xf32, #tpu.memory_space<vmem>>, vector<1x192xf32>
    %10 = vector.broadcast %9 : vector<1x192xf32> to vector<16x192xf32>
    %11 = arith.addf %8, %10 : vector<16x192xf32>
    %c0_12 = arith.constant 0 : index
    %c0_13 = arith.constant 0 : index
    %12 = vector.load %arg3[%c0_12, %c0_13] : memref<2x1xi32, #tpu.memory_space<vmem>>, vector<2x1xi32>
    %c0_14 = arith.constant 0 : index
    %c0_15 = arith.constant 0 : index
    %13 = vector.load %arg4[%c0_14, %c0_15] : memref<2x1xi32, #tpu.memory_space<vmem>>, vector<2x1xi32>
    %cst_16 = arith.constant 0.000000e+00 : f32
    %14 = vector.broadcast %cst_16 : f32 to vector<2x128xf32>
    %cst_17 = arith.constant 0.000000e+00 : f32
    %15 = vector.broadcast %cst_17 : f32 to vector<2x128xf32>
    %16 = vector.extract_strided_slice %5 {offsets = [0, 0], sizes = [2, 192], strides = [1, 1]} : vector<16x192xf32> to vector<2x192xf32>
    %17 = vector.extract_strided_slice %5 {offsets = [14, 0], sizes = [2, 192], strides = [1, 1]} : vector<16x192xf32> to vector<2x192xf32>
    %18 = vector.extract_strided_slice %11 {offsets = [0, 0], sizes = [2, 192], strides = [1, 1]} : vector<16x192xf32> to vector<2x192xf32>
    %19 = vector.extract_strided_slice %11 {offsets = [14, 0], sizes = [2, 192], strides = [1, 1]} : vector<16x192xf32> to vector<2x192xf32>
    %c0_i32 = arith.constant 0 : i32
    %20 = vector.broadcast %c0_i32 : i32 to vector<2x1xi32>
    %21 = arith.cmpi sgt, %12, %20 : vector<2x1xi32>
    %22 = arith.extui %21 : vector<2x1xi1> to vector<2x1xi32>
    %23 = arith.sitofp %22 : vector<2x1xi32> to vector<2x1xf32>
    %c7_i32 = arith.constant 7 : i32
    %24 = vector.broadcast %c7_i32 : i32 to vector<2x1xi32>
    %25 = arith.cmpi sgt, %12, %24 : vector<2x1xi32>
    %26 = arith.extui %25 : vector<2x1xi1> to vector<2x1xi32>
    %27 = arith.sitofp %26 : vector<2x1xi32> to vector<2x1xf32>
    %c0_i32_18 = arith.constant 0 : i32
    %28 = vector.broadcast %c0_i32_18 : i32 to vector<2x1xi32>
    %29 = arith.cmpi sgt, %13, %28 : vector<2x1xi32>
    %30 = arith.extui %29 : vector<2x1xi1> to vector<2x1xi32>
    %31 = arith.sitofp %30 : vector<2x1xi32> to vector<2x1xf32>
    %c7_i32_19 = arith.constant 7 : i32
    %32 = vector.broadcast %c7_i32_19 : i32 to vector<2x1xi32>
    %33 = arith.cmpi sgt, %13, %32 : vector<2x1xi32>
    %34 = arith.extui %33 : vector<2x1xi1> to vector<2x1xi32>
    %35 = arith.sitofp %34 : vector<2x1xi32> to vector<2x1xf32>
    %36 = vector.extract_strided_slice %16 {offsets = [0, 0], sizes = [2, 96], strides = [1, 1]} : vector<2x192xf32> to vector<2x96xf32>
    %37 = vector.extract_strided_slice %17 {offsets = [0, 96], sizes = [2, 96], strides = [1, 1]} : vector<2x192xf32> to vector<2x96xf32>
    %38 = vector.extract_strided_slice %18 {offsets = [0, 0], sizes = [2, 96], strides = [1, 1]} : vector<2x192xf32> to vector<2x96xf32>
    %39 = vector.extract_strided_slice %19 {offsets = [0, 96], sizes = [2, 96], strides = [1, 1]} : vector<2x192xf32> to vector<2x96xf32>
    %40 = vector.extract_strided_slice %14 {offsets = [0, 0], sizes = [2, 32], strides = [1, 1]} : vector<2x128xf32> to vector<2x32xf32>
    %c0_20 = arith.constant 0 : index
    %c0_21 = arith.constant 0 : index
    %c0_22 = arith.constant 0 : index
    %41 = vector.load %arg9[%c0_20, %c0_21, %c0_22] : memref<4x32x96xf32, #tpu.memory_space<vmem>>, vector<1x32x96xf32>
    %42 = vector.shape_cast %41 : vector<1x32x96xf32> to vector<32x96xf32>
    %cst_23 = arith.constant dense<0.000000e+00> : vector<2x96xf32>
    %43 = tpu.matmul %40, %42, %cst_23 {dimension_numbers = #tpu.dot_dimension_numbers<[1], [0], [0], [1], [0, 0, 1, 1], [], []>} : vector<2x32xf32>, vector<32x96xf32>, vector<2x96xf32> -> vector<2x96xf32>
    %c0_24 = arith.constant 0 : index
    %c0_25 = arith.constant 0 : index
    %c0_26 = arith.constant 0 : index
    %44 = vector.load %arg10[%c0_24, %c0_25, %c0_26] : memref<4x1x96xf32, #tpu.memory_space<vmem>>, vector<1x1x96xf32>
    %45 = vector.shape_cast %44 : vector<1x1x96xf32> to vector<1x96xf32>
    %46 = vector.broadcast %45 : vector<1x96xf32> to vector<2x96xf32>
    %47 = arith.addf %43, %46 : vector<2x96xf32>
    %48 = vector.extract_strided_slice %36 {offsets = [0, 0], sizes = [2, 32], strides = [1, 1]} : vector<2x96xf32> to vector<2x32xf32>
    %49 = vector.extract_strided_slice %47 {offsets = [0, 0], sizes = [2, 32], strides = [1, 1]} : vector<2x96xf32> to vector<2x32xf32>
    %50 = arith.addf %48, %49 : vector<2x32xf32>
    %cst_27 = arith.constant 0.000000e+00 : f32
    %51 = vector.broadcast %cst_27 : f32 to vector<2x32xf32>
    %52 = arith.subf %51, %50 : vector<2x32xf32>
    %53 = math.exp %52 : vector<2x32xf32>
    %cst_28 = arith.constant 1.000000e+00 : f32
    %54 = vector.broadcast %cst_28 : f32 to vector<2x32xf32>
    %55 = arith.addf %54, %53 : vector<2x32xf32>
    %cst_29 = arith.constant 1.000000e+00 : f32
    %56 = vector.broadcast %cst_29 : f32 to vector<2x32xf32>
    %57 = arith.divf %56, %55 : vector<2x32xf32>
    %58 = vector.extract_strided_slice %36 {offsets = [0, 32], sizes = [2, 32], strides = [1, 1]} : vector<2x96xf32> to vector<2x32xf32>
    %59 = vector.extract_strided_slice %47 {offsets = [0, 32], sizes = [2, 32], strides = [1, 1]} : vector<2x96xf32> to vector<2x32xf32>
    %60 = arith.addf %58, %59 : vector<2x32xf32>
    %cst_30 = arith.constant 0.000000e+00 : f32
    %61 = vector.broadcast %cst_30 : f32 to vector<2x32xf32>
    %62 = arith.subf %61, %60 : vector<2x32xf32>
    %63 = math.exp %62 : vector<2x32xf32>
    %cst_31 = arith.constant 1.000000e+00 : f32
    %64 = vector.broadcast %cst_31 : f32 to vector<2x32xf32>
    %65 = arith.addf %64, %63 : vector<2x32xf32>
    %cst_32 = arith.constant 1.000000e+00 : f32
    %66 = vector.broadcast %cst_32 : f32 to vector<2x32xf32>
    %67 = arith.divf %66, %65 : vector<2x32xf32>
    %68 = vector.extract_strided_slice %36 {offsets = [0, 64], sizes = [2, 32], strides = [1, 1]} : vector<2x96xf32> to vector<2x32xf32>
    %69 = vector.extract_strided_slice %47 {offsets = [0, 64], sizes = [2, 32], strides = [1, 1]} : vector<2x96xf32> to vector<2x32xf32>
    %70 = arith.mulf %57, %69 : vector<2x32xf32>
    %71 = arith.addf %68, %70 : vector<2x32xf32>
    %72 = math.tanh %71 : vector<2x32xf32>
    %cst_33 = arith.constant 1.000000e+00 : f32
    %73 = vector.broadcast %cst_33 : f32 to vector<2x32xf32>
    %74 = arith.subf %73, %67 : vector<2x32xf32>
    %75 = arith.mulf %74, %72 : vector<2x32xf32>
    %76 = arith.mulf %67, %40 : vector<2x32xf32>
    %77 = arith.addf %75, %76 : vector<2x32xf32>
    %78 = vector.broadcast %23 : vector<2x1xf32> to vector<2x32xf32>
    %79 = arith.mulf %78, %77 : vector<2x32xf32>
    %cst_34 = arith.constant 1.000000e+00 : f32
    %80 = vector.broadcast %cst_34 : f32 to vector<2x1xf32>
    %81 = arith.subf %80, %23 : vector<2x1xf32>
    %82 = vector.broadcast %81 : vector<2x1xf32> to vector<2x32xf32>
    %83 = arith.mulf %82, %40 : vector<2x32xf32>
    %84 = arith.addf %79, %83 : vector<2x32xf32>
    %85 = vector.broadcast %23 : vector<2x1xf32> to vector<2x32xf32>
    %86 = arith.mulf %85, %77 : vector<2x32xf32>
    %87 = vector.extract_strided_slice %14 {offsets = [0, 32], sizes = [2, 32], strides = [1, 1]} : vector<2x128xf32> to vector<2x32xf32>
    %c1 = arith.constant 1 : index
    %c0_35 = arith.constant 0 : index
    %c0_36 = arith.constant 0 : index
    %88 = vector.load %arg9[%c1, %c0_35, %c0_36] : memref<4x32x96xf32, #tpu.memory_space<vmem>>, vector<1x32x96xf32>
    %89 = vector.shape_cast %88 : vector<1x32x96xf32> to vector<32x96xf32>
    %cst_37 = arith.constant dense<0.000000e+00> : vector<2x96xf32>
    %90 = tpu.matmul %87, %89, %cst_37 {dimension_numbers = #tpu.dot_dimension_numbers<[1], [0], [0], [1], [0, 0, 1, 1], [], []>} : vector<2x32xf32>, vector<32x96xf32>, vector<2x96xf32> -> vector<2x96xf32>
    %c1_38 = arith.constant 1 : index
    %c0_39 = arith.constant 0 : index
    %c0_40 = arith.constant 0 : index
    %91 = vector.load %arg10[%c1_38, %c0_39, %c0_40] : memref<4x1x96xf32, #tpu.memory_space<vmem>>, vector<1x1x96xf32>
    %92 = vector.shape_cast %91 : vector<1x1x96xf32> to vector<1x96xf32>
    %93 = vector.broadcast %92 : vector<1x96xf32> to vector<2x96xf32>
    %94 = arith.addf %90, %93 : vector<2x96xf32>
    %95 = vector.extract_strided_slice %37 {offsets = [0, 0], sizes = [2, 32], strides = [1, 1]} : vector<2x96xf32> to vector<2x32xf32>
    %96 = vector.extract_strided_slice %94 {offsets = [0, 0], sizes = [2, 32], strides = [1, 1]} : vector<2x96xf32> to vector<2x32xf32>
    %97 = arith.addf %95, %96 : vector<2x32xf32>
    %cst_41 = arith.constant 0.000000e+00 : f32
    %98 = vector.broadcast %cst_41 : f32 to vector<2x32xf32>
    %99 = arith.subf %98, %97 : vector<2x32xf32>
    %100 = math.exp %99 : vector<2x32xf32>
    %cst_42 = arith.constant 1.000000e+00 : f32
    %101 = vector.broadcast %cst_42 : f32 to vector<2x32xf32>
    %102 = arith.addf %101, %100 : vector<2x32xf32>
    %cst_43 = arith.constant 1.000000e+00 : f32
    %103 = vector.broadcast %cst_43 : f32 to vector<2x32xf32>
    %104 = arith.divf %103, %102 : vector<2x32xf32>
    %105 = vector.extract_strided_slice %37 {offsets = [0, 32], sizes = [2, 32], strides = [1, 1]} : vector<2x96xf32> to vector<2x32xf32>
    %106 = vector.extract_strided_slice %94 {offsets = [0, 32], sizes = [2, 32], strides = [1, 1]} : vector<2x96xf32> to vector<2x32xf32>
    %107 = arith.addf %105, %106 : vector<2x32xf32>
    %cst_44 = arith.constant 0.000000e+00 : f32
    %108 = vector.broadcast %cst_44 : f32 to vector<2x32xf32>
    %109 = arith.subf %108, %107 : vector<2x32xf32>
    %110 = math.exp %109 : vector<2x32xf32>
    %cst_45 = arith.constant 1.000000e+00 : f32
    %111 = vector.broadcast %cst_45 : f32 to vector<2x32xf32>
    %112 = arith.addf %111, %110 : vector<2x32xf32>
    %cst_46 = arith.constant 1.000000e+00 : f32
    %113 = vector.broadcast %cst_46 : f32 to vector<2x32xf32>
    %114 = arith.divf %113, %112 : vector<2x32xf32>
    %115 = vector.extract_strided_slice %37 {offsets = [0, 64], sizes = [2, 32], strides = [1, 1]} : vector<2x96xf32> to vector<2x32xf32>
    %116 = vector.extract_strided_slice %94 {offsets = [0, 64], sizes = [2, 32], strides = [1, 1]} : vector<2x96xf32> to vector<2x32xf32>
    %117 = arith.mulf %104, %116 : vector<2x32xf32>
    %118 = arith.addf %115, %117 : vector<2x32xf32>
    %119 = math.tanh %118 : vector<2x32xf32>
    %cst_47 = arith.constant 1.000000e+00 : f32
    %120 = vector.broadcast %cst_47 : f32 to vector<2x32xf32>
    %121 = arith.subf %120, %114 : vector<2x32xf32>
    %122 = arith.mulf %121, %119 : vector<2x32xf32>
    %123 = arith.mulf %114, %87 : vector<2x32xf32>
    %124 = arith.addf %122, %123 : vector<2x32xf32>
    %125 = vector.broadcast %27 : vector<2x1xf32> to vector<2x32xf32>
    %126 = arith.mulf %125, %124 : vector<2x32xf32>
    %cst_48 = arith.constant 1.000000e+00 : f32
    %127 = vector.broadcast %cst_48 : f32 to vector<2x1xf32>
    %128 = arith.subf %127, %27 : vector<2x1xf32>
    %129 = vector.broadcast %128 : vector<2x1xf32> to vector<2x32xf32>
    %130 = arith.mulf %129, %87 : vector<2x32xf32>
    %131 = arith.addf %126, %130 : vector<2x32xf32>
    %132 = vector.broadcast %27 : vector<2x1xf32> to vector<2x32xf32>
    %133 = arith.mulf %132, %124 : vector<2x32xf32>
    %134 = vector.extract_strided_slice %14 {offsets = [0, 64], sizes = [2, 32], strides = [1, 1]} : vector<2x128xf32> to vector<2x32xf32>
    %c2 = arith.constant 2 : index
    %c0_49 = arith.constant 0 : index
    %c0_50 = arith.constant 0 : index
    %135 = vector.load %arg9[%c2, %c0_49, %c0_50] : memref<4x32x96xf32, #tpu.memory_space<vmem>>, vector<1x32x96xf32>
    %136 = vector.shape_cast %135 : vector<1x32x96xf32> to vector<32x96xf32>
    %cst_51 = arith.constant dense<0.000000e+00> : vector<2x96xf32>
    %137 = tpu.matmul %134, %136, %cst_51 {dimension_numbers = #tpu.dot_dimension_numbers<[1], [0], [0], [1], [0, 0, 1, 1], [], []>} : vector<2x32xf32>, vector<32x96xf32>, vector<2x96xf32> -> vector<2x96xf32>
    %c2_52 = arith.constant 2 : index
    %c0_53 = arith.constant 0 : index
    %c0_54 = arith.constant 0 : index
    %138 = vector.load %arg10[%c2_52, %c0_53, %c0_54] : memref<4x1x96xf32, #tpu.memory_space<vmem>>, vector<1x1x96xf32>
    %139 = vector.shape_cast %138 : vector<1x1x96xf32> to vector<1x96xf32>
    %140 = vector.broadcast %139 : vector<1x96xf32> to vector<2x96xf32>
    %141 = arith.addf %137, %140 : vector<2x96xf32>
    %142 = vector.extract_strided_slice %38 {offsets = [0, 0], sizes = [2, 32], strides = [1, 1]} : vector<2x96xf32> to vector<2x32xf32>
    %143 = vector.extract_strided_slice %141 {offsets = [0, 0], sizes = [2, 32], strides = [1, 1]} : vector<2x96xf32> to vector<2x32xf32>
    %144 = arith.addf %142, %143 : vector<2x32xf32>
    %cst_55 = arith.constant 0.000000e+00 : f32
    %145 = vector.broadcast %cst_55 : f32 to vector<2x32xf32>
    %146 = arith.subf %145, %144 : vector<2x32xf32>
    %147 = math.exp %146 : vector<2x32xf32>
    %cst_56 = arith.constant 1.000000e+00 : f32
    %148 = vector.broadcast %cst_56 : f32 to vector<2x32xf32>
    %149 = arith.addf %148, %147 : vector<2x32xf32>
    %cst_57 = arith.constant 1.000000e+00 : f32
    %150 = vector.broadcast %cst_57 : f32 to vector<2x32xf32>
    %151 = arith.divf %150, %149 : vector<2x32xf32>
    %152 = vector.extract_strided_slice %38 {offsets = [0, 32], sizes = [2, 32], strides = [1, 1]} : vector<2x96xf32> to vector<2x32xf32>
    %153 = vector.extract_strided_slice %141 {offsets = [0, 32], sizes = [2, 32], strides = [1, 1]} : vector<2x96xf32> to vector<2x32xf32>
    %154 = arith.addf %152, %153 : vector<2x32xf32>
    %cst_58 = arith.constant 0.000000e+00 : f32
    %155 = vector.broadcast %cst_58 : f32 to vector<2x32xf32>
    %156 = arith.subf %155, %154 : vector<2x32xf32>
    %157 = math.exp %156 : vector<2x32xf32>
    %cst_59 = arith.constant 1.000000e+00 : f32
    %158 = vector.broadcast %cst_59 : f32 to vector<2x32xf32>
    %159 = arith.addf %158, %157 : vector<2x32xf32>
    %cst_60 = arith.constant 1.000000e+00 : f32
    %160 = vector.broadcast %cst_60 : f32 to vector<2x32xf32>
    %161 = arith.divf %160, %159 : vector<2x32xf32>
    %162 = vector.extract_strided_slice %38 {offsets = [0, 64], sizes = [2, 32], strides = [1, 1]} : vector<2x96xf32> to vector<2x32xf32>
    %163 = vector.extract_strided_slice %141 {offsets = [0, 64], sizes = [2, 32], strides = [1, 1]} : vector<2x96xf32> to vector<2x32xf32>
    %164 = arith.mulf %151, %163 : vector<2x32xf32>
    %165 = arith.addf %162, %164 : vector<2x32xf32>
    %166 = math.tanh %165 : vector<2x32xf32>
    %cst_61 = arith.constant 1.000000e+00 : f32
    %167 = vector.broadcast %cst_61 : f32 to vector<2x32xf32>
    %168 = arith.subf %167, %161 : vector<2x32xf32>
    %169 = arith.mulf %168, %166 : vector<2x32xf32>
    %170 = arith.mulf %161, %134 : vector<2x32xf32>
    %171 = arith.addf %169, %170 : vector<2x32xf32>
    %cst_62 = arith.constant 1.000000e+00 : f32
    %172 = vector.broadcast %cst_62 : f32 to vector<2x32xf32>
    %173 = arith.mulf %172, %171 : vector<2x32xf32>
    %cst_63 = arith.constant 0.000000e+00 : f32
    %174 = vector.broadcast %cst_63 : f32 to vector<2x32xf32>
    %175 = arith.mulf %174, %134 : vector<2x32xf32>
    %176 = arith.addf %173, %175 : vector<2x32xf32>
    %177 = vector.broadcast %31 : vector<2x1xf32> to vector<2x32xf32>
    %178 = arith.mulf %177, %171 : vector<2x32xf32>
    %179 = vector.extract_strided_slice %14 {offsets = [0, 96], sizes = [2, 32], strides = [1, 1]} : vector<2x128xf32> to vector<2x32xf32>
    %c3 = arith.constant 3 : index
    %c0_64 = arith.constant 0 : index
    %c0_65 = arith.constant 0 : index
    %180 = vector.load %arg9[%c3, %c0_64, %c0_65] : memref<4x32x96xf32, #tpu.memory_space<vmem>>, vector<1x32x96xf32>
    %181 = vector.shape_cast %180 : vector<1x32x96xf32> to vector<32x96xf32>
    %cst_66 = arith.constant dense<0.000000e+00> : vector<2x96xf32>
    %182 = tpu.matmul %179, %181, %cst_66 {dimension_numbers = #tpu.dot_dimension_numbers<[1], [0], [0], [1], [0, 0, 1, 1], [], []>} : vector<2x32xf32>, vector<32x96xf32>, vector<2x96xf32> -> vector<2x96xf32>
    %c3_67 = arith.constant 3 : index
    %c0_68 = arith.constant 0 : index
    %c0_69 = arith.constant 0 : index
    %183 = vector.load %arg10[%c3_67, %c0_68, %c0_69] : memref<4x1x96xf32, #tpu.memory_space<vmem>>, vector<1x1x96xf32>
    %184 = vector.shape_cast %183 : vector<1x1x96xf32> to vector<1x96xf32>
    %185 = vector.broadcast %184 : vector<1x96xf32> to vector<2x96xf32>
    %186 = arith.addf %182, %185 : vector<2x96xf32>
    %187 = vector.extract_strided_slice %39 {offsets = [0, 0], sizes = [2, 32], strides = [1, 1]} : vector<2x96xf32> to vector<2x32xf32>
    %188 = vector.extract_strided_slice %186 {offsets = [0, 0], sizes = [2, 32], strides = [1, 1]} : vector<2x96xf32> to vector<2x32xf32>
    %189 = arith.addf %187, %188 : vector<2x32xf32>
    %cst_70 = arith.constant 0.000000e+00 : f32
    %190 = vector.broadcast %cst_70 : f32 to vector<2x32xf32>
    %191 = arith.subf %190, %189 : vector<2x32xf32>
    %192 = math.exp %191 : vector<2x32xf32>
    %cst_71 = arith.constant 1.000000e+00 : f32
    %193 = vector.broadcast %cst_71 : f32 to vector<2x32xf32>
    %194 = arith.addf %193, %192 : vector<2x32xf32>
    %cst_72 = arith.constant 1.000000e+00 : f32
    %195 = vector.broadcast %cst_72 : f32 to vector<2x32xf32>
    %196 = arith.divf %195, %194 : vector<2x32xf32>
    %197 = vector.extract_strided_slice %39 {offsets = [0, 32], sizes = [2, 32], strides = [1, 1]} : vector<2x96xf32> to vector<2x32xf32>
    %198 = vector.extract_strided_slice %186 {offsets = [0, 32], sizes = [2, 32], strides = [1, 1]} : vector<2x96xf32> to vector<2x32xf32>
    %199 = arith.addf %197, %198 : vector<2x32xf32>
    %cst_73 = arith.constant 0.000000e+00 : f32
    %200 = vector.broadcast %cst_73 : f32 to vector<2x32xf32>
    %201 = arith.subf %200, %199 : vector<2x32xf32>
    %202 = math.exp %201 : vector<2x32xf32>
    %cst_74 = arith.constant 1.000000e+00 : f32
    %203 = vector.broadcast %cst_74 : f32 to vector<2x32xf32>
    %204 = arith.addf %203, %202 : vector<2x32xf32>
    %cst_75 = arith.constant 1.000000e+00 : f32
    %205 = vector.broadcast %cst_75 : f32 to vector<2x32xf32>
    %206 = arith.divf %205, %204 : vector<2x32xf32>
    %207 = vector.extract_strided_slice %39 {offsets = [0, 64], sizes = [2, 32], strides = [1, 1]} : vector<2x96xf32> to vector<2x32xf32>
    %208 = vector.extract_strided_slice %186 {offsets = [0, 64], sizes = [2, 32], strides = [1, 1]} : vector<2x96xf32> to vector<2x32xf32>
    %209 = arith.mulf %196, %208 : vector<2x32xf32>
    %210 = arith.addf %207, %209 : vector<2x32xf32>
    %211 = math.tanh %210 : vector<2x32xf32>
    %cst_76 = arith.constant 1.000000e+00 : f32
    %212 = vector.broadcast %cst_76 : f32 to vector<2x32xf32>
    %213 = arith.subf %212, %206 : vector<2x32xf32>
    %214 = arith.mulf %213, %211 : vector<2x32xf32>
    %215 = arith.mulf %206, %179 : vector<2x32xf32>
    %216 = arith.addf %214, %215 : vector<2x32xf32>
    %cst_77 = arith.constant 1.000000e+00 : f32
    %217 = vector.broadcast %cst_77 : f32 to vector<2x32xf32>
    %218 = arith.mulf %217, %216 : vector<2x32xf32>
    %cst_78 = arith.constant 0.000000e+00 : f32
    %219 = vector.broadcast %cst_78 : f32 to vector<2x32xf32>
    %220 = arith.mulf %219, %179 : vector<2x32xf32>
    %221 = arith.addf %218, %220 : vector<2x32xf32>
    %222 = vector.broadcast %35 : vector<2x1xf32> to vector<2x32xf32>
    %223 = arith.mulf %222, %216 : vector<2x32xf32>
    %224 = tpu.concatenate %84, %131, %176, %221 in 1 : vector<2x32xf32>, vector<2x32xf32>, vector<2x32xf32>, vector<2x32xf32> -> vector<2x128xf32>
    %225 = tpu.concatenate %86, %133, %178, %223 in 1 : vector<2x32xf32>, vector<2x32xf32>, vector<2x32xf32>, vector<2x32xf32> -> vector<2x128xf32>
    %226 = arith.addf %15, %225 : vector<2x128xf32>
    %227 = vector.extract_strided_slice %5 {offsets = [2, 0], sizes = [2, 192], strides = [1, 1]} : vector<16x192xf32> to vector<2x192xf32>
    %228 = vector.extract_strided_slice %5 {offsets = [12, 0], sizes = [2, 192], strides = [1, 1]} : vector<16x192xf32> to vector<2x192xf32>
    %229 = vector.extract_strided_slice %11 {offsets = [2, 0], sizes = [2, 192], strides = [1, 1]} : vector<16x192xf32> to vector<2x192xf32>
    %230 = vector.extract_strided_slice %11 {offsets = [12, 0], sizes = [2, 192], strides = [1, 1]} : vector<16x192xf32> to vector<2x192xf32>
    %c1_i32 = arith.constant 1 : i32
    %231 = vector.broadcast %c1_i32 : i32 to vector<2x1xi32>
    %232 = arith.cmpi sgt, %12, %231 : vector<2x1xi32>
    %233 = arith.extui %232 : vector<2x1xi1> to vector<2x1xi32>
    %234 = arith.sitofp %233 : vector<2x1xi32> to vector<2x1xf32>
    %c6_i32 = arith.constant 6 : i32
    %235 = vector.broadcast %c6_i32 : i32 to vector<2x1xi32>
    %236 = arith.cmpi sgt, %12, %235 : vector<2x1xi32>
    %237 = arith.extui %236 : vector<2x1xi1> to vector<2x1xi32>
    %238 = arith.sitofp %237 : vector<2x1xi32> to vector<2x1xf32>
    %c1_i32_79 = arith.constant 1 : i32
    %239 = vector.broadcast %c1_i32_79 : i32 to vector<2x1xi32>
    %240 = arith.cmpi sgt, %13, %239 : vector<2x1xi32>
    %241 = arith.extui %240 : vector<2x1xi1> to vector<2x1xi32>
    %242 = arith.sitofp %241 : vector<2x1xi32> to vector<2x1xf32>
    %c6_i32_80 = arith.constant 6 : i32
    %243 = vector.broadcast %c6_i32_80 : i32 to vector<2x1xi32>
    %244 = arith.cmpi sgt, %13, %243 : vector<2x1xi32>
    %245 = arith.extui %244 : vector<2x1xi1> to vector<2x1xi32>
    %246 = arith.sitofp %245 : vector<2x1xi32> to vector<2x1xf32>
    %247 = vector.extract_strided_slice %227 {offsets = [0, 0], sizes = [2, 96], strides = [1, 1]} : vector<2x192xf32> to vector<2x96xf32>
    %248 = vector.extract_strided_slice %228 {offsets = [0, 96], sizes = [2, 96], strides = [1, 1]} : vector<2x192xf32> to vector<2x96xf32>
    %249 = vector.extract_strided_slice %229 {offsets = [0, 0], sizes = [2, 96], strides = [1, 1]} : vector<2x192xf32> to vector<2x96xf32>
    %250 = vector.extract_strided_slice %230 {offsets = [0, 96], sizes = [2, 96], strides = [1, 1]} : vector<2x192xf32> to vector<2x96xf32>
    %251 = vector.extract_strided_slice %224 {offsets = [0, 0], sizes = [2, 32], strides = [1, 1]} : vector<2x128xf32> to vector<2x32xf32>
    %c0_81 = arith.constant 0 : index
    %c0_82 = arith.constant 0 : index
    %c0_83 = arith.constant 0 : index
    %252 = vector.load %arg9[%c0_81, %c0_82, %c0_83] : memref<4x32x96xf32, #tpu.memory_space<vmem>>, vector<1x32x96xf32>
    %253 = vector.shape_cast %252 : vector<1x32x96xf32> to vector<32x96xf32>
    %cst_84 = arith.constant dense<0.000000e+00> : vector<2x96xf32>
    %254 = tpu.matmul %251, %253, %cst_84 {dimension_numbers = #tpu.dot_dimension_numbers<[1], [0], [0], [1], [0, 0, 1, 1], [], []>} : vector<2x32xf32>, vector<32x96xf32>, vector<2x96xf32> -> vector<2x96xf32>
    %c0_85 = arith.constant 0 : index
    %c0_86 = arith.constant 0 : index
    %c0_87 = arith.constant 0 : index
    %255 = vector.load %arg10[%c0_85, %c0_86, %c0_87] : memref<4x1x96xf32, #tpu.memory_space<vmem>>, vector<1x1x96xf32>
    %256 = vector.shape_cast %255 : vector<1x1x96xf32> to vector<1x96xf32>
    %257 = vector.broadcast %256 : vector<1x96xf32> to vector<2x96xf32>
    %258 = arith.addf %254, %257 : vector<2x96xf32>
    %259 = vector.extract_strided_slice %247 {offsets = [0, 0], sizes = [2, 32], strides = [1, 1]} : vector<2x96xf32> to vector<2x32xf32>
    %260 = vector.extract_strided_slice %258 {offsets = [0, 0], sizes = [2, 32], strides = [1, 1]} : vector<2x96xf32> to vector<2x32xf32>
    %261 = arith.addf %259, %260 : vector<2x32xf32>
    %cst_88 = arith.constant 0.000000e+00 : f32
    %262 = vector.broadcast %cst_88 : f32 to vector<2x32xf32>
    %263 = arith.subf %262, %261 : vector<2x32xf32>
    %264 = math.exp %263 : vector<2x32xf32>
    %cst_89 = arith.constant 1.000000e+00 : f32
    %265 = vector.broadcast %cst_89 : f32 to vector<2x32xf32>
    %266 = arith.addf %265, %264 : vector<2x32xf32>
    %cst_90 = arith.constant 1.000000e+00 : f32
    %267 = vector.broadcast %cst_90 : f32 to vector<2x32xf32>
    %268 = arith.divf %267, %266 : vector<2x32xf32>
    %269 = vector.extract_strided_slice %247 {offsets = [0, 32], sizes = [2, 32], strides = [1, 1]} : vector<2x96xf32> to vector<2x32xf32>
    %270 = vector.extract_strided_slice %258 {offsets = [0, 32], sizes = [2, 32], strides = [1, 1]} : vector<2x96xf32> to vector<2x32xf32>
    %271 = arith.addf %269, %270 : vector<2x32xf32>
    %cst_91 = arith.constant 0.000000e+00 : f32
    %272 = vector.broadcast %cst_91 : f32 to vector<2x32xf32>
    %273 = arith.subf %272, %271 : vector<2x32xf32>
    %274 = math.exp %273 : vector<2x32xf32>
    %cst_92 = arith.constant 1.000000e+00 : f32
    %275 = vector.broadcast %cst_92 : f32 to vector<2x32xf32>
    %276 = arith.addf %275, %274 : vector<2x32xf32>
    %cst_93 = arith.constant 1.000000e+00 : f32
    %277 = vector.broadcast %cst_93 : f32 to vector<2x32xf32>
    %278 = arith.divf %277, %276 : vector<2x32xf32>
    %279 = vector.extract_strided_slice %247 {offsets = [0, 64], sizes = [2, 32], strides = [1, 1]} : vector<2x96xf32> to vector<2x32xf32>
    %280 = vector.extract_strided_slice %258 {offsets = [0, 64], sizes = [2, 32], strides = [1, 1]} : vector<2x96xf32> to vector<2x32xf32>
    %281 = arith.mulf %268, %280 : vector<2x32xf32>
    %282 = arith.addf %279, %281 : vector<2x32xf32>
    %283 = math.tanh %282 : vector<2x32xf32>
    %cst_94 = arith.constant 1.000000e+00 : f32
    %284 = vector.broadcast %cst_94 : f32 to vector<2x32xf32>
    %285 = arith.subf %284, %278 : vector<2x32xf32>
    %286 = arith.mulf %285, %283 : vector<2x32xf32>
    %287 = arith.mulf %278, %251 : vector<2x32xf32>
    %288 = arith.addf %286, %287 : vector<2x32xf32>
    %289 = vector.broadcast %234 : vector<2x1xf32> to vector<2x32xf32>
    %290 = arith.mulf %289, %288 : vector<2x32xf32>
    %cst_95 = arith.constant 1.000000e+00 : f32
    %291 = vector.broadcast %cst_95 : f32 to vector<2x1xf32>
    %292 = arith.subf %291, %234 : vector<2x1xf32>
    %293 = vector.broadcast %292 : vector<2x1xf32> to vector<2x32xf32>
    %294 = arith.mulf %293, %251 : vector<2x32xf32>
    %295 = arith.addf %290, %294 : vector<2x32xf32>
    %296 = vector.broadcast %234 : vector<2x1xf32> to vector<2x32xf32>
    %297 = arith.mulf %296, %288 : vector<2x32xf32>
    %298 = vector.extract_strided_slice %224 {offsets = [0, 32], sizes = [2, 32], strides = [1, 1]} : vector<2x128xf32> to vector<2x32xf32>
    %c1_96 = arith.constant 1 : index
    %c0_97 = arith.constant 0 : index
    %c0_98 = arith.constant 0 : index
    %299 = vector.load %arg9[%c1_96, %c0_97, %c0_98] : memref<4x32x96xf32, #tpu.memory_space<vmem>>, vector<1x32x96xf32>
    %300 = vector.shape_cast %299 : vector<1x32x96xf32> to vector<32x96xf32>
    %cst_99 = arith.constant dense<0.000000e+00> : vector<2x96xf32>
    %301 = tpu.matmul %298, %300, %cst_99 {dimension_numbers = #tpu.dot_dimension_numbers<[1], [0], [0], [1], [0, 0, 1, 1], [], []>} : vector<2x32xf32>, vector<32x96xf32>, vector<2x96xf32> -> vector<2x96xf32>
    %c1_100 = arith.constant 1 : index
    %c0_101 = arith.constant 0 : index
    %c0_102 = arith.constant 0 : index
    %302 = vector.load %arg10[%c1_100, %c0_101, %c0_102] : memref<4x1x96xf32, #tpu.memory_space<vmem>>, vector<1x1x96xf32>
    %303 = vector.shape_cast %302 : vector<1x1x96xf32> to vector<1x96xf32>
    %304 = vector.broadcast %303 : vector<1x96xf32> to vector<2x96xf32>
    %305 = arith.addf %301, %304 : vector<2x96xf32>
    %306 = vector.extract_strided_slice %248 {offsets = [0, 0], sizes = [2, 32], strides = [1, 1]} : vector<2x96xf32> to vector<2x32xf32>
    %307 = vector.extract_strided_slice %305 {offsets = [0, 0], sizes = [2, 32], strides = [1, 1]} : vector<2x96xf32> to vector<2x32xf32>
    %308 = arith.addf %306, %307 : vector<2x32xf32>
    %cst_103 = arith.constant 0.000000e+00 : f32
    %309 = vector.broadcast %cst_103 : f32 to vector<2x32xf32>
    %310 = arith.subf %309, %308 : vector<2x32xf32>
    %311 = math.exp %310 : vector<2x32xf32>
    %cst_104 = arith.constant 1.000000e+00 : f32
    %312 = vector.broadcast %cst_104 : f32 to vector<2x32xf32>
    %313 = arith.addf %312, %311 : vector<2x32xf32>
    %cst_105 = arith.constant 1.000000e+00 : f32
    %314 = vector.broadcast %cst_105 : f32 to vector<2x32xf32>
    %315 = arith.divf %314, %313 : vector<2x32xf32>
    %316 = vector.extract_strided_slice %248 {offsets = [0, 32], sizes = [2, 32], strides = [1, 1]} : vector<2x96xf32> to vector<2x32xf32>
    %317 = vector.extract_strided_slice %305 {offsets = [0, 32], sizes = [2, 32], strides = [1, 1]} : vector<2x96xf32> to vector<2x32xf32>
    %318 = arith.addf %316, %317 : vector<2x32xf32>
    %cst_106 = arith.constant 0.000000e+00 : f32
    %319 = vector.broadcast %cst_106 : f32 to vector<2x32xf32>
    %320 = arith.subf %319, %318 : vector<2x32xf32>
    %321 = math.exp %320 : vector<2x32xf32>
    %cst_107 = arith.constant 1.000000e+00 : f32
    %322 = vector.broadcast %cst_107 : f32 to vector<2x32xf32>
    %323 = arith.addf %322, %321 : vector<2x32xf32>
    %cst_108 = arith.constant 1.000000e+00 : f32
    %324 = vector.broadcast %cst_108 : f32 to vector<2x32xf32>
    %325 = arith.divf %324, %323 : vector<2x32xf32>
    %326 = vector.extract_strided_slice %248 {offsets = [0, 64], sizes = [2, 32], strides = [1, 1]} : vector<2x96xf32> to vector<2x32xf32>
    %327 = vector.extract_strided_slice %305 {offsets = [0, 64], sizes = [2, 32], strides = [1, 1]} : vector<2x96xf32> to vector<2x32xf32>
    %328 = arith.mulf %315, %327 : vector<2x32xf32>
    %329 = arith.addf %326, %328 : vector<2x32xf32>
    %330 = math.tanh %329 : vector<2x32xf32>
    %cst_109 = arith.constant 1.000000e+00 : f32
    %331 = vector.broadcast %cst_109 : f32 to vector<2x32xf32>
    %332 = arith.subf %331, %325 : vector<2x32xf32>
    %333 = arith.mulf %332, %330 : vector<2x32xf32>
    %334 = arith.mulf %325, %298 : vector<2x32xf32>
    %335 = arith.addf %333, %334 : vector<2x32xf32>
    %336 = vector.broadcast %238 : vector<2x1xf32> to vector<2x32xf32>
    %337 = arith.mulf %336, %335 : vector<2x32xf32>
    %cst_110 = arith.constant 1.000000e+00 : f32
    %338 = vector.broadcast %cst_110 : f32 to vector<2x1xf32>
    %339 = arith.subf %338, %238 : vector<2x1xf32>
    %340 = vector.broadcast %339 : vector<2x1xf32> to vector<2x32xf32>
    %341 = arith.mulf %340, %298 : vector<2x32xf32>
    %342 = arith.addf %337, %341 : vector<2x32xf32>
    %343 = vector.broadcast %238 : vector<2x1xf32> to vector<2x32xf32>
    %344 = arith.mulf %343, %335 : vector<2x32xf32>
    %345 = vector.extract_strided_slice %224 {offsets = [0, 64], sizes = [2, 32], strides = [1, 1]} : vector<2x128xf32> to vector<2x32xf32>
    %c2_111 = arith.constant 2 : index
    %c0_112 = arith.constant 0 : index
    %c0_113 = arith.constant 0 : index
    %346 = vector.load %arg9[%c2_111, %c0_112, %c0_113] : memref<4x32x96xf32, #tpu.memory_space<vmem>>, vector<1x32x96xf32>
    %347 = vector.shape_cast %346 : vector<1x32x96xf32> to vector<32x96xf32>
    %cst_114 = arith.constant dense<0.000000e+00> : vector<2x96xf32>
    %348 = tpu.matmul %345, %347, %cst_114 {dimension_numbers = #tpu.dot_dimension_numbers<[1], [0], [0], [1], [0, 0, 1, 1], [], []>} : vector<2x32xf32>, vector<32x96xf32>, vector<2x96xf32> -> vector<2x96xf32>
    %c2_115 = arith.constant 2 : index
    %c0_116 = arith.constant 0 : index
    %c0_117 = arith.constant 0 : index
    %349 = vector.load %arg10[%c2_115, %c0_116, %c0_117] : memref<4x1x96xf32, #tpu.memory_space<vmem>>, vector<1x1x96xf32>
    %350 = vector.shape_cast %349 : vector<1x1x96xf32> to vector<1x96xf32>
    %351 = vector.broadcast %350 : vector<1x96xf32> to vector<2x96xf32>
    %352 = arith.addf %348, %351 : vector<2x96xf32>
    %353 = vector.extract_strided_slice %249 {offsets = [0, 0], sizes = [2, 32], strides = [1, 1]} : vector<2x96xf32> to vector<2x32xf32>
    %354 = vector.extract_strided_slice %352 {offsets = [0, 0], sizes = [2, 32], strides = [1, 1]} : vector<2x96xf32> to vector<2x32xf32>
    %355 = arith.addf %353, %354 : vector<2x32xf32>
    %cst_118 = arith.constant 0.000000e+00 : f32
    %356 = vector.broadcast %cst_118 : f32 to vector<2x32xf32>
    %357 = arith.subf %356, %355 : vector<2x32xf32>
    %358 = math.exp %357 : vector<2x32xf32>
    %cst_119 = arith.constant 1.000000e+00 : f32
    %359 = vector.broadcast %cst_119 : f32 to vector<2x32xf32>
    %360 = arith.addf %359, %358 : vector<2x32xf32>
    %cst_120 = arith.constant 1.000000e+00 : f32
    %361 = vector.broadcast %cst_120 : f32 to vector<2x32xf32>
    %362 = arith.divf %361, %360 : vector<2x32xf32>
    %363 = vector.extract_strided_slice %249 {offsets = [0, 32], sizes = [2, 32], strides = [1, 1]} : vector<2x96xf32> to vector<2x32xf32>
    %364 = vector.extract_strided_slice %352 {offsets = [0, 32], sizes = [2, 32], strides = [1, 1]} : vector<2x96xf32> to vector<2x32xf32>
    %365 = arith.addf %363, %364 : vector<2x32xf32>
    %cst_121 = arith.constant 0.000000e+00 : f32
    %366 = vector.broadcast %cst_121 : f32 to vector<2x32xf32>
    %367 = arith.subf %366, %365 : vector<2x32xf32>
    %368 = math.exp %367 : vector<2x32xf32>
    %cst_122 = arith.constant 1.000000e+00 : f32
    %369 = vector.broadcast %cst_122 : f32 to vector<2x32xf32>
    %370 = arith.addf %369, %368 : vector<2x32xf32>
    %cst_123 = arith.constant 1.000000e+00 : f32
    %371 = vector.broadcast %cst_123 : f32 to vector<2x32xf32>
    %372 = arith.divf %371, %370 : vector<2x32xf32>
    %373 = vector.extract_strided_slice %249 {offsets = [0, 64], sizes = [2, 32], strides = [1, 1]} : vector<2x96xf32> to vector<2x32xf32>
    %374 = vector.extract_strided_slice %352 {offsets = [0, 64], sizes = [2, 32], strides = [1, 1]} : vector<2x96xf32> to vector<2x32xf32>
    %375 = arith.mulf %362, %374 : vector<2x32xf32>
    %376 = arith.addf %373, %375 : vector<2x32xf32>
    %377 = math.tanh %376 : vector<2x32xf32>
    %cst_124 = arith.constant 1.000000e+00 : f32
    %378 = vector.broadcast %cst_124 : f32 to vector<2x32xf32>
    %379 = arith.subf %378, %372 : vector<2x32xf32>
    %380 = arith.mulf %379, %377 : vector<2x32xf32>
    %381 = arith.mulf %372, %345 : vector<2x32xf32>
    %382 = arith.addf %380, %381 : vector<2x32xf32>
    %cst_125 = arith.constant 1.000000e+00 : f32
    %383 = vector.broadcast %cst_125 : f32 to vector<2x32xf32>
    %384 = arith.mulf %383, %382 : vector<2x32xf32>
    %cst_126 = arith.constant 0.000000e+00 : f32
    %385 = vector.broadcast %cst_126 : f32 to vector<2x32xf32>
    %386 = arith.mulf %385, %345 : vector<2x32xf32>
    %387 = arith.addf %384, %386 : vector<2x32xf32>
    %388 = vector.broadcast %242 : vector<2x1xf32> to vector<2x32xf32>
    %389 = arith.mulf %388, %382 : vector<2x32xf32>
    %390 = vector.extract_strided_slice %224 {offsets = [0, 96], sizes = [2, 32], strides = [1, 1]} : vector<2x128xf32> to vector<2x32xf32>
    %c3_127 = arith.constant 3 : index
    %c0_128 = arith.constant 0 : index
    %c0_129 = arith.constant 0 : index
    %391 = vector.load %arg9[%c3_127, %c0_128, %c0_129] : memref<4x32x96xf32, #tpu.memory_space<vmem>>, vector<1x32x96xf32>
    %392 = vector.shape_cast %391 : vector<1x32x96xf32> to vector<32x96xf32>
    %cst_130 = arith.constant dense<0.000000e+00> : vector<2x96xf32>
    %393 = tpu.matmul %390, %392, %cst_130 {dimension_numbers = #tpu.dot_dimension_numbers<[1], [0], [0], [1], [0, 0, 1, 1], [], []>} : vector<2x32xf32>, vector<32x96xf32>, vector<2x96xf32> -> vector<2x96xf32>
    %c3_131 = arith.constant 3 : index
    %c0_132 = arith.constant 0 : index
    %c0_133 = arith.constant 0 : index
    %394 = vector.load %arg10[%c3_131, %c0_132, %c0_133] : memref<4x1x96xf32, #tpu.memory_space<vmem>>, vector<1x1x96xf32>
    %395 = vector.shape_cast %394 : vector<1x1x96xf32> to vector<1x96xf32>
    %396 = vector.broadcast %395 : vector<1x96xf32> to vector<2x96xf32>
    %397 = arith.addf %393, %396 : vector<2x96xf32>
    %398 = vector.extract_strided_slice %250 {offsets = [0, 0], sizes = [2, 32], strides = [1, 1]} : vector<2x96xf32> to vector<2x32xf32>
    %399 = vector.extract_strided_slice %397 {offsets = [0, 0], sizes = [2, 32], strides = [1, 1]} : vector<2x96xf32> to vector<2x32xf32>
    %400 = arith.addf %398, %399 : vector<2x32xf32>
    %cst_134 = arith.constant 0.000000e+00 : f32
    %401 = vector.broadcast %cst_134 : f32 to vector<2x32xf32>
    %402 = arith.subf %401, %400 : vector<2x32xf32>
    %403 = math.exp %402 : vector<2x32xf32>
    %cst_135 = arith.constant 1.000000e+00 : f32
    %404 = vector.broadcast %cst_135 : f32 to vector<2x32xf32>
    %405 = arith.addf %404, %403 : vector<2x32xf32>
    %cst_136 = arith.constant 1.000000e+00 : f32
    %406 = vector.broadcast %cst_136 : f32 to vector<2x32xf32>
    %407 = arith.divf %406, %405 : vector<2x32xf32>
    %408 = vector.extract_strided_slice %250 {offsets = [0, 32], sizes = [2, 32], strides = [1, 1]} : vector<2x96xf32> to vector<2x32xf32>
    %409 = vector.extract_strided_slice %397 {offsets = [0, 32], sizes = [2, 32], strides = [1, 1]} : vector<2x96xf32> to vector<2x32xf32>
    %410 = arith.addf %408, %409 : vector<2x32xf32>
    %cst_137 = arith.constant 0.000000e+00 : f32
    %411 = vector.broadcast %cst_137 : f32 to vector<2x32xf32>
    %412 = arith.subf %411, %410 : vector<2x32xf32>
    %413 = math.exp %412 : vector<2x32xf32>
    %cst_138 = arith.constant 1.000000e+00 : f32
    %414 = vector.broadcast %cst_138 : f32 to vector<2x32xf32>
    %415 = arith.addf %414, %413 : vector<2x32xf32>
    %cst_139 = arith.constant 1.000000e+00 : f32
    %416 = vector.broadcast %cst_139 : f32 to vector<2x32xf32>
    %417 = arith.divf %416, %415 : vector<2x32xf32>
    %418 = vector.extract_strided_slice %250 {offsets = [0, 64], sizes = [2, 32], strides = [1, 1]} : vector<2x96xf32> to vector<2x32xf32>
    %419 = vector.extract_strided_slice %397 {offsets = [0, 64], sizes = [2, 32], strides = [1, 1]} : vector<2x96xf32> to vector<2x32xf32>
    %420 = arith.mulf %407, %419 : vector<2x32xf32>
    %421 = arith.addf %418, %420 : vector<2x32xf32>
    %422 = math.tanh %421 : vector<2x32xf32>
    %cst_140 = arith.constant 1.000000e+00 : f32
    %423 = vector.broadcast %cst_140 : f32 to vector<2x32xf32>
    %424 = arith.subf %423, %417 : vector<2x32xf32>
    %425 = arith.mulf %424, %422 : vector<2x32xf32>
    %426 = arith.mulf %417, %390 : vector<2x32xf32>
    %427 = arith.addf %425, %426 : vector<2x32xf32>
    %cst_141 = arith.constant 1.000000e+00 : f32
    %428 = vector.broadcast %cst_141 : f32 to vector<2x32xf32>
    %429 = arith.mulf %428, %427 : vector<2x32xf32>
    %cst_142 = arith.constant 0.000000e+00 : f32
    %430 = vector.broadcast %cst_142 : f32 to vector<2x32xf32>
    %431 = arith.mulf %430, %390 : vector<2x32xf32>
    %432 = arith.addf %429, %431 : vector<2x32xf32>
    %433 = vector.broadcast %246 : vector<2x1xf32> to vector<2x32xf32>
    %434 = arith.mulf %433, %427 : vector<2x32xf32>
    %435 = tpu.concatenate %295, %342, %387, %432 in 1 : vector<2x32xf32>, vector<2x32xf32>, vector<2x32xf32>, vector<2x32xf32> -> vector<2x128xf32>
    %436 = tpu.concatenate %297, %344, %389, %434 in 1 : vector<2x32xf32>, vector<2x32xf32>, vector<2x32xf32>, vector<2x32xf32> -> vector<2x128xf32>
    %437 = arith.addf %226, %436 : vector<2x128xf32>
    %438 = vector.extract_strided_slice %5 {offsets = [4, 0], sizes = [2, 192], strides = [1, 1]} : vector<16x192xf32> to vector<2x192xf32>
    %439 = vector.extract_strided_slice %5 {offsets = [10, 0], sizes = [2, 192], strides = [1, 1]} : vector<16x192xf32> to vector<2x192xf32>
    %440 = vector.extract_strided_slice %11 {offsets = [4, 0], sizes = [2, 192], strides = [1, 1]} : vector<16x192xf32> to vector<2x192xf32>
    %441 = vector.extract_strided_slice %11 {offsets = [10, 0], sizes = [2, 192], strides = [1, 1]} : vector<16x192xf32> to vector<2x192xf32>
    %c2_i32 = arith.constant 2 : i32
    %442 = vector.broadcast %c2_i32 : i32 to vector<2x1xi32>
    %443 = arith.cmpi sgt, %12, %442 : vector<2x1xi32>
    %444 = arith.extui %443 : vector<2x1xi1> to vector<2x1xi32>
    %445 = arith.sitofp %444 : vector<2x1xi32> to vector<2x1xf32>
    %c5_i32 = arith.constant 5 : i32
    %446 = vector.broadcast %c5_i32 : i32 to vector<2x1xi32>
    %447 = arith.cmpi sgt, %12, %446 : vector<2x1xi32>
    %448 = arith.extui %447 : vector<2x1xi1> to vector<2x1xi32>
    %449 = arith.sitofp %448 : vector<2x1xi32> to vector<2x1xf32>
    %c2_i32_143 = arith.constant 2 : i32
    %450 = vector.broadcast %c2_i32_143 : i32 to vector<2x1xi32>
    %451 = arith.cmpi sgt, %13, %450 : vector<2x1xi32>
    %452 = arith.extui %451 : vector<2x1xi1> to vector<2x1xi32>
    %453 = arith.sitofp %452 : vector<2x1xi32> to vector<2x1xf32>
    %c5_i32_144 = arith.constant 5 : i32
    %454 = vector.broadcast %c5_i32_144 : i32 to vector<2x1xi32>
    %455 = arith.cmpi sgt, %13, %454 : vector<2x1xi32>
    %456 = arith.extui %455 : vector<2x1xi1> to vector<2x1xi32>
    %457 = arith.sitofp %456 : vector<2x1xi32> to vector<2x1xf32>
    %458 = vector.extract_strided_slice %438 {offsets = [0, 0], sizes = [2, 96], strides = [1, 1]} : vector<2x192xf32> to vector<2x96xf32>
    %459 = vector.extract_strided_slice %439 {offsets = [0, 96], sizes = [2, 96], strides = [1, 1]} : vector<2x192xf32> to vector<2x96xf32>
    %460 = vector.extract_strided_slice %440 {offsets = [0, 0], sizes = [2, 96], strides = [1, 1]} : vector<2x192xf32> to vector<2x96xf32>
    %461 = vector.extract_strided_slice %441 {offsets = [0, 96], sizes = [2, 96], strides = [1, 1]} : vector<2x192xf32> to vector<2x96xf32>
    %462 = vector.extract_strided_slice %435 {offsets = [0, 0], sizes = [2, 32], strides = [1, 1]} : vector<2x128xf32> to vector<2x32xf32>
    %c0_145 = arith.constant 0 : index
    %c0_146 = arith.constant 0 : index
    %c0_147 = arith.constant 0 : index
    %463 = vector.load %arg9[%c0_145, %c0_146, %c0_147] : memref<4x32x96xf32, #tpu.memory_space<vmem>>, vector<1x32x96xf32>
    %464 = vector.shape_cast %463 : vector<1x32x96xf32> to vector<32x96xf32>
    %cst_148 = arith.constant dense<0.000000e+00> : vector<2x96xf32>
    %465 = tpu.matmul %462, %464, %cst_148 {dimension_numbers = #tpu.dot_dimension_numbers<[1], [0], [0], [1], [0, 0, 1, 1], [], []>} : vector<2x32xf32>, vector<32x96xf32>, vector<2x96xf32> -> vector<2x96xf32>
    %c0_149 = arith.constant 0 : index
    %c0_150 = arith.constant 0 : index
    %c0_151 = arith.constant 0 : index
    %466 = vector.load %arg10[%c0_149, %c0_150, %c0_151] : memref<4x1x96xf32, #tpu.memory_space<vmem>>, vector<1x1x96xf32>
    %467 = vector.shape_cast %466 : vector<1x1x96xf32> to vector<1x96xf32>
    %468 = vector.broadcast %467 : vector<1x96xf32> to vector<2x96xf32>
    %469 = arith.addf %465, %468 : vector<2x96xf32>
    %470 = vector.extract_strided_slice %458 {offsets = [0, 0], sizes = [2, 32], strides = [1, 1]} : vector<2x96xf32> to vector<2x32xf32>
    %471 = vector.extract_strided_slice %469 {offsets = [0, 0], sizes = [2, 32], strides = [1, 1]} : vector<2x96xf32> to vector<2x32xf32>
    %472 = arith.addf %470, %471 : vector<2x32xf32>
    %cst_152 = arith.constant 0.000000e+00 : f32
    %473 = vector.broadcast %cst_152 : f32 to vector<2x32xf32>
    %474 = arith.subf %473, %472 : vector<2x32xf32>
    %475 = math.exp %474 : vector<2x32xf32>
    %cst_153 = arith.constant 1.000000e+00 : f32
    %476 = vector.broadcast %cst_153 : f32 to vector<2x32xf32>
    %477 = arith.addf %476, %475 : vector<2x32xf32>
    %cst_154 = arith.constant 1.000000e+00 : f32
    %478 = vector.broadcast %cst_154 : f32 to vector<2x32xf32>
    %479 = arith.divf %478, %477 : vector<2x32xf32>
    %480 = vector.extract_strided_slice %458 {offsets = [0, 32], sizes = [2, 32], strides = [1, 1]} : vector<2x96xf32> to vector<2x32xf32>
    %481 = vector.extract_strided_slice %469 {offsets = [0, 32], sizes = [2, 32], strides = [1, 1]} : vector<2x96xf32> to vector<2x32xf32>
    %482 = arith.addf %480, %481 : vector<2x32xf32>
    %cst_155 = arith.constant 0.000000e+00 : f32
    %483 = vector.broadcast %cst_155 : f32 to vector<2x32xf32>
    %484 = arith.subf %483, %482 : vector<2x32xf32>
    %485 = math.exp %484 : vector<2x32xf32>
    %cst_156 = arith.constant 1.000000e+00 : f32
    %486 = vector.broadcast %cst_156 : f32 to vector<2x32xf32>
    %487 = arith.addf %486, %485 : vector<2x32xf32>
    %cst_157 = arith.constant 1.000000e+00 : f32
    %488 = vector.broadcast %cst_157 : f32 to vector<2x32xf32>
    %489 = arith.divf %488, %487 : vector<2x32xf32>
    %490 = vector.extract_strided_slice %458 {offsets = [0, 64], sizes = [2, 32], strides = [1, 1]} : vector<2x96xf32> to vector<2x32xf32>
    %491 = vector.extract_strided_slice %469 {offsets = [0, 64], sizes = [2, 32], strides = [1, 1]} : vector<2x96xf32> to vector<2x32xf32>
    %492 = arith.mulf %479, %491 : vector<2x32xf32>
    %493 = arith.addf %490, %492 : vector<2x32xf32>
    %494 = math.tanh %493 : vector<2x32xf32>
    %cst_158 = arith.constant 1.000000e+00 : f32
    %495 = vector.broadcast %cst_158 : f32 to vector<2x32xf32>
    %496 = arith.subf %495, %489 : vector<2x32xf32>
    %497 = arith.mulf %496, %494 : vector<2x32xf32>
    %498 = arith.mulf %489, %462 : vector<2x32xf32>
    %499 = arith.addf %497, %498 : vector<2x32xf32>
    %500 = vector.broadcast %445 : vector<2x1xf32> to vector<2x32xf32>
    %501 = arith.mulf %500, %499 : vector<2x32xf32>
    %cst_159 = arith.constant 1.000000e+00 : f32
    %502 = vector.broadcast %cst_159 : f32 to vector<2x1xf32>
    %503 = arith.subf %502, %445 : vector<2x1xf32>
    %504 = vector.broadcast %503 : vector<2x1xf32> to vector<2x32xf32>
    %505 = arith.mulf %504, %462 : vector<2x32xf32>
    %506 = arith.addf %501, %505 : vector<2x32xf32>
    %507 = vector.broadcast %445 : vector<2x1xf32> to vector<2x32xf32>
    %508 = arith.mulf %507, %499 : vector<2x32xf32>
    %509 = vector.extract_strided_slice %435 {offsets = [0, 32], sizes = [2, 32], strides = [1, 1]} : vector<2x128xf32> to vector<2x32xf32>
    %c1_160 = arith.constant 1 : index
    %c0_161 = arith.constant 0 : index
    %c0_162 = arith.constant 0 : index
    %510 = vector.load %arg9[%c1_160, %c0_161, %c0_162] : memref<4x32x96xf32, #tpu.memory_space<vmem>>, vector<1x32x96xf32>
    %511 = vector.shape_cast %510 : vector<1x32x96xf32> to vector<32x96xf32>
    %cst_163 = arith.constant dense<0.000000e+00> : vector<2x96xf32>
    %512 = tpu.matmul %509, %511, %cst_163 {dimension_numbers = #tpu.dot_dimension_numbers<[1], [0], [0], [1], [0, 0, 1, 1], [], []>} : vector<2x32xf32>, vector<32x96xf32>, vector<2x96xf32> -> vector<2x96xf32>
    %c1_164 = arith.constant 1 : index
    %c0_165 = arith.constant 0 : index
    %c0_166 = arith.constant 0 : index
    %513 = vector.load %arg10[%c1_164, %c0_165, %c0_166] : memref<4x1x96xf32, #tpu.memory_space<vmem>>, vector<1x1x96xf32>
    %514 = vector.shape_cast %513 : vector<1x1x96xf32> to vector<1x96xf32>
    %515 = vector.broadcast %514 : vector<1x96xf32> to vector<2x96xf32>
    %516 = arith.addf %512, %515 : vector<2x96xf32>
    %517 = vector.extract_strided_slice %459 {offsets = [0, 0], sizes = [2, 32], strides = [1, 1]} : vector<2x96xf32> to vector<2x32xf32>
    %518 = vector.extract_strided_slice %516 {offsets = [0, 0], sizes = [2, 32], strides = [1, 1]} : vector<2x96xf32> to vector<2x32xf32>
    %519 = arith.addf %517, %518 : vector<2x32xf32>
    %cst_167 = arith.constant 0.000000e+00 : f32
    %520 = vector.broadcast %cst_167 : f32 to vector<2x32xf32>
    %521 = arith.subf %520, %519 : vector<2x32xf32>
    %522 = math.exp %521 : vector<2x32xf32>
    %cst_168 = arith.constant 1.000000e+00 : f32
    %523 = vector.broadcast %cst_168 : f32 to vector<2x32xf32>
    %524 = arith.addf %523, %522 : vector<2x32xf32>
    %cst_169 = arith.constant 1.000000e+00 : f32
    %525 = vector.broadcast %cst_169 : f32 to vector<2x32xf32>
    %526 = arith.divf %525, %524 : vector<2x32xf32>
    %527 = vector.extract_strided_slice %459 {offsets = [0, 32], sizes = [2, 32], strides = [1, 1]} : vector<2x96xf32> to vector<2x32xf32>
    %528 = vector.extract_strided_slice %516 {offsets = [0, 32], sizes = [2, 32], strides = [1, 1]} : vector<2x96xf32> to vector<2x32xf32>
    %529 = arith.addf %527, %528 : vector<2x32xf32>
    %cst_170 = arith.constant 0.000000e+00 : f32
    %530 = vector.broadcast %cst_170 : f32 to vector<2x32xf32>
    %531 = arith.subf %530, %529 : vector<2x32xf32>
    %532 = math.exp %531 : vector<2x32xf32>
    %cst_171 = arith.constant 1.000000e+00 : f32
    %533 = vector.broadcast %cst_171 : f32 to vector<2x32xf32>
    %534 = arith.addf %533, %532 : vector<2x32xf32>
    %cst_172 = arith.constant 1.000000e+00 : f32
    %535 = vector.broadcast %cst_172 : f32 to vector<2x32xf32>
    %536 = arith.divf %535, %534 : vector<2x32xf32>
    %537 = vector.extract_strided_slice %459 {offsets = [0, 64], sizes = [2, 32], strides = [1, 1]} : vector<2x96xf32> to vector<2x32xf32>
    %538 = vector.extract_strided_slice %516 {offsets = [0, 64], sizes = [2, 32], strides = [1, 1]} : vector<2x96xf32> to vector<2x32xf32>
    %539 = arith.mulf %526, %538 : vector<2x32xf32>
    %540 = arith.addf %537, %539 : vector<2x32xf32>
    %541 = math.tanh %540 : vector<2x32xf32>
    %cst_173 = arith.constant 1.000000e+00 : f32
    %542 = vector.broadcast %cst_173 : f32 to vector<2x32xf32>
    %543 = arith.subf %542, %536 : vector<2x32xf32>
    %544 = arith.mulf %543, %541 : vector<2x32xf32>
    %545 = arith.mulf %536, %509 : vector<2x32xf32>
    %546 = arith.addf %544, %545 : vector<2x32xf32>
    %547 = vector.broadcast %449 : vector<2x1xf32> to vector<2x32xf32>
    %548 = arith.mulf %547, %546 : vector<2x32xf32>
    %cst_174 = arith.constant 1.000000e+00 : f32
    %549 = vector.broadcast %cst_174 : f32 to vector<2x1xf32>
    %550 = arith.subf %549, %449 : vector<2x1xf32>
    %551 = vector.broadcast %550 : vector<2x1xf32> to vector<2x32xf32>
    %552 = arith.mulf %551, %509 : vector<2x32xf32>
    %553 = arith.addf %548, %552 : vector<2x32xf32>
    %554 = vector.broadcast %449 : vector<2x1xf32> to vector<2x32xf32>
    %555 = arith.mulf %554, %546 : vector<2x32xf32>
    %556 = vector.extract_strided_slice %435 {offsets = [0, 64], sizes = [2, 32], strides = [1, 1]} : vector<2x128xf32> to vector<2x32xf32>
    %c2_175 = arith.constant 2 : index
    %c0_176 = arith.constant 0 : index
    %c0_177 = arith.constant 0 : index
    %557 = vector.load %arg9[%c2_175, %c0_176, %c0_177] : memref<4x32x96xf32, #tpu.memory_space<vmem>>, vector<1x32x96xf32>
    %558 = vector.shape_cast %557 : vector<1x32x96xf32> to vector<32x96xf32>
    %cst_178 = arith.constant dense<0.000000e+00> : vector<2x96xf32>
    %559 = tpu.matmul %556, %558, %cst_178 {dimension_numbers = #tpu.dot_dimension_numbers<[1], [0], [0], [1], [0, 0, 1, 1], [], []>} : vector<2x32xf32>, vector<32x96xf32>, vector<2x96xf32> -> vector<2x96xf32>
    %c2_179 = arith.constant 2 : index
    %c0_180 = arith.constant 0 : index
    %c0_181 = arith.constant 0 : index
    %560 = vector.load %arg10[%c2_179, %c0_180, %c0_181] : memref<4x1x96xf32, #tpu.memory_space<vmem>>, vector<1x1x96xf32>
    %561 = vector.shape_cast %560 : vector<1x1x96xf32> to vector<1x96xf32>
    %562 = vector.broadcast %561 : vector<1x96xf32> to vector<2x96xf32>
    %563 = arith.addf %559, %562 : vector<2x96xf32>
    %564 = vector.extract_strided_slice %460 {offsets = [0, 0], sizes = [2, 32], strides = [1, 1]} : vector<2x96xf32> to vector<2x32xf32>
    %565 = vector.extract_strided_slice %563 {offsets = [0, 0], sizes = [2, 32], strides = [1, 1]} : vector<2x96xf32> to vector<2x32xf32>
    %566 = arith.addf %564, %565 : vector<2x32xf32>
    %cst_182 = arith.constant 0.000000e+00 : f32
    %567 = vector.broadcast %cst_182 : f32 to vector<2x32xf32>
    %568 = arith.subf %567, %566 : vector<2x32xf32>
    %569 = math.exp %568 : vector<2x32xf32>
    %cst_183 = arith.constant 1.000000e+00 : f32
    %570 = vector.broadcast %cst_183 : f32 to vector<2x32xf32>
    %571 = arith.addf %570, %569 : vector<2x32xf32>
    %cst_184 = arith.constant 1.000000e+00 : f32
    %572 = vector.broadcast %cst_184 : f32 to vector<2x32xf32>
    %573 = arith.divf %572, %571 : vector<2x32xf32>
    %574 = vector.extract_strided_slice %460 {offsets = [0, 32], sizes = [2, 32], strides = [1, 1]} : vector<2x96xf32> to vector<2x32xf32>
    %575 = vector.extract_strided_slice %563 {offsets = [0, 32], sizes = [2, 32], strides = [1, 1]} : vector<2x96xf32> to vector<2x32xf32>
    %576 = arith.addf %574, %575 : vector<2x32xf32>
    %cst_185 = arith.constant 0.000000e+00 : f32
    %577 = vector.broadcast %cst_185 : f32 to vector<2x32xf32>
    %578 = arith.subf %577, %576 : vector<2x32xf32>
    %579 = math.exp %578 : vector<2x32xf32>
    %cst_186 = arith.constant 1.000000e+00 : f32
    %580 = vector.broadcast %cst_186 : f32 to vector<2x32xf32>
    %581 = arith.addf %580, %579 : vector<2x32xf32>
    %cst_187 = arith.constant 1.000000e+00 : f32
    %582 = vector.broadcast %cst_187 : f32 to vector<2x32xf32>
    %583 = arith.divf %582, %581 : vector<2x32xf32>
    %584 = vector.extract_strided_slice %460 {offsets = [0, 64], sizes = [2, 32], strides = [1, 1]} : vector<2x96xf32> to vector<2x32xf32>
    %585 = vector.extract_strided_slice %563 {offsets = [0, 64], sizes = [2, 32], strides = [1, 1]} : vector<2x96xf32> to vector<2x32xf32>
    %586 = arith.mulf %573, %585 : vector<2x32xf32>
    %587 = arith.addf %584, %586 : vector<2x32xf32>
    %588 = math.tanh %587 : vector<2x32xf32>
    %cst_188 = arith.constant 1.000000e+00 : f32
    %589 = vector.broadcast %cst_188 : f32 to vector<2x32xf32>
    %590 = arith.subf %589, %583 : vector<2x32xf32>
    %591 = arith.mulf %590, %588 : vector<2x32xf32>
    %592 = arith.mulf %583, %556 : vector<2x32xf32>
    %593 = arith.addf %591, %592 : vector<2x32xf32>
    %cst_189 = arith.constant 1.000000e+00 : f32
    %594 = vector.broadcast %cst_189 : f32 to vector<2x32xf32>
    %595 = arith.mulf %594, %593 : vector<2x32xf32>
    %cst_190 = arith.constant 0.000000e+00 : f32
    %596 = vector.broadcast %cst_190 : f32 to vector<2x32xf32>
    %597 = arith.mulf %596, %556 : vector<2x32xf32>
    %598 = arith.addf %595, %597 : vector<2x32xf32>
    %599 = vector.broadcast %453 : vector<2x1xf32> to vector<2x32xf32>
    %600 = arith.mulf %599, %593 : vector<2x32xf32>
    %601 = vector.extract_strided_slice %435 {offsets = [0, 96], sizes = [2, 32], strides = [1, 1]} : vector<2x128xf32> to vector<2x32xf32>
    %c3_191 = arith.constant 3 : index
    %c0_192 = arith.constant 0 : index
    %c0_193 = arith.constant 0 : index
    %602 = vector.load %arg9[%c3_191, %c0_192, %c0_193] : memref<4x32x96xf32, #tpu.memory_space<vmem>>, vector<1x32x96xf32>
    %603 = vector.shape_cast %602 : vector<1x32x96xf32> to vector<32x96xf32>
    %cst_194 = arith.constant dense<0.000000e+00> : vector<2x96xf32>
    %604 = tpu.matmul %601, %603, %cst_194 {dimension_numbers = #tpu.dot_dimension_numbers<[1], [0], [0], [1], [0, 0, 1, 1], [], []>} : vector<2x32xf32>, vector<32x96xf32>, vector<2x96xf32> -> vector<2x96xf32>
    %c3_195 = arith.constant 3 : index
    %c0_196 = arith.constant 0 : index
    %c0_197 = arith.constant 0 : index
    %605 = vector.load %arg10[%c3_195, %c0_196, %c0_197] : memref<4x1x96xf32, #tpu.memory_space<vmem>>, vector<1x1x96xf32>
    %606 = vector.shape_cast %605 : vector<1x1x96xf32> to vector<1x96xf32>
    %607 = vector.broadcast %606 : vector<1x96xf32> to vector<2x96xf32>
    %608 = arith.addf %604, %607 : vector<2x96xf32>
    %609 = vector.extract_strided_slice %461 {offsets = [0, 0], sizes = [2, 32], strides = [1, 1]} : vector<2x96xf32> to vector<2x32xf32>
    %610 = vector.extract_strided_slice %608 {offsets = [0, 0], sizes = [2, 32], strides = [1, 1]} : vector<2x96xf32> to vector<2x32xf32>
    %611 = arith.addf %609, %610 : vector<2x32xf32>
    %cst_198 = arith.constant 0.000000e+00 : f32
    %612 = vector.broadcast %cst_198 : f32 to vector<2x32xf32>
    %613 = arith.subf %612, %611 : vector<2x32xf32>
    %614 = math.exp %613 : vector<2x32xf32>
    %cst_199 = arith.constant 1.000000e+00 : f32
    %615 = vector.broadcast %cst_199 : f32 to vector<2x32xf32>
    %616 = arith.addf %615, %614 : vector<2x32xf32>
    %cst_200 = arith.constant 1.000000e+00 : f32
    %617 = vector.broadcast %cst_200 : f32 to vector<2x32xf32>
    %618 = arith.divf %617, %616 : vector<2x32xf32>
    %619 = vector.extract_strided_slice %461 {offsets = [0, 32], sizes = [2, 32], strides = [1, 1]} : vector<2x96xf32> to vector<2x32xf32>
    %620 = vector.extract_strided_slice %608 {offsets = [0, 32], sizes = [2, 32], strides = [1, 1]} : vector<2x96xf32> to vector<2x32xf32>
    %621 = arith.addf %619, %620 : vector<2x32xf32>
    %cst_201 = arith.constant 0.000000e+00 : f32
    %622 = vector.broadcast %cst_201 : f32 to vector<2x32xf32>
    %623 = arith.subf %622, %621 : vector<2x32xf32>
    %624 = math.exp %623 : vector<2x32xf32>
    %cst_202 = arith.constant 1.000000e+00 : f32
    %625 = vector.broadcast %cst_202 : f32 to vector<2x32xf32>
    %626 = arith.addf %625, %624 : vector<2x32xf32>
    %cst_203 = arith.constant 1.000000e+00 : f32
    %627 = vector.broadcast %cst_203 : f32 to vector<2x32xf32>
    %628 = arith.divf %627, %626 : vector<2x32xf32>
    %629 = vector.extract_strided_slice %461 {offsets = [0, 64], sizes = [2, 32], strides = [1, 1]} : vector<2x96xf32> to vector<2x32xf32>
    %630 = vector.extract_strided_slice %608 {offsets = [0, 64], sizes = [2, 32], strides = [1, 1]} : vector<2x96xf32> to vector<2x32xf32>
    %631 = arith.mulf %618, %630 : vector<2x32xf32>
    %632 = arith.addf %629, %631 : vector<2x32xf32>
    %633 = math.tanh %632 : vector<2x32xf32>
    %cst_204 = arith.constant 1.000000e+00 : f32
    %634 = vector.broadcast %cst_204 : f32 to vector<2x32xf32>
    %635 = arith.subf %634, %628 : vector<2x32xf32>
    %636 = arith.mulf %635, %633 : vector<2x32xf32>
    %637 = arith.mulf %628, %601 : vector<2x32xf32>
    %638 = arith.addf %636, %637 : vector<2x32xf32>
    %cst_205 = arith.constant 1.000000e+00 : f32
    %639 = vector.broadcast %cst_205 : f32 to vector<2x32xf32>
    %640 = arith.mulf %639, %638 : vector<2x32xf32>
    %cst_206 = arith.constant 0.000000e+00 : f32
    %641 = vector.broadcast %cst_206 : f32 to vector<2x32xf32>
    %642 = arith.mulf %641, %601 : vector<2x32xf32>
    %643 = arith.addf %640, %642 : vector<2x32xf32>
    %644 = vector.broadcast %457 : vector<2x1xf32> to vector<2x32xf32>
    %645 = arith.mulf %644, %638 : vector<2x32xf32>
    %646 = tpu.concatenate %506, %553, %598, %643 in 1 : vector<2x32xf32>, vector<2x32xf32>, vector<2x32xf32>, vector<2x32xf32> -> vector<2x128xf32>
    %647 = tpu.concatenate %508, %555, %600, %645 in 1 : vector<2x32xf32>, vector<2x32xf32>, vector<2x32xf32>, vector<2x32xf32> -> vector<2x128xf32>
    %648 = arith.addf %437, %647 : vector<2x128xf32>
    %649 = vector.extract_strided_slice %5 {offsets = [6, 0], sizes = [2, 192], strides = [1, 1]} : vector<16x192xf32> to vector<2x192xf32>
    %650 = vector.extract_strided_slice %5 {offsets = [8, 0], sizes = [2, 192], strides = [1, 1]} : vector<16x192xf32> to vector<2x192xf32>
    %651 = vector.extract_strided_slice %11 {offsets = [6, 0], sizes = [2, 192], strides = [1, 1]} : vector<16x192xf32> to vector<2x192xf32>
    %652 = vector.extract_strided_slice %11 {offsets = [8, 0], sizes = [2, 192], strides = [1, 1]} : vector<16x192xf32> to vector<2x192xf32>
    %c3_i32 = arith.constant 3 : i32
    %653 = vector.broadcast %c3_i32 : i32 to vector<2x1xi32>
    %654 = arith.cmpi sgt, %12, %653 : vector<2x1xi32>
    %655 = arith.extui %654 : vector<2x1xi1> to vector<2x1xi32>
    %656 = arith.sitofp %655 : vector<2x1xi32> to vector<2x1xf32>
    %c4_i32 = arith.constant 4 : i32
    %657 = vector.broadcast %c4_i32 : i32 to vector<2x1xi32>
    %658 = arith.cmpi sgt, %12, %657 : vector<2x1xi32>
    %659 = arith.extui %658 : vector<2x1xi1> to vector<2x1xi32>
    %660 = arith.sitofp %659 : vector<2x1xi32> to vector<2x1xf32>
    %c3_i32_207 = arith.constant 3 : i32
    %661 = vector.broadcast %c3_i32_207 : i32 to vector<2x1xi32>
    %662 = arith.cmpi sgt, %13, %661 : vector<2x1xi32>
    %663 = arith.extui %662 : vector<2x1xi1> to vector<2x1xi32>
    %664 = arith.sitofp %663 : vector<2x1xi32> to vector<2x1xf32>
    %c4_i32_208 = arith.constant 4 : i32
    %665 = vector.broadcast %c4_i32_208 : i32 to vector<2x1xi32>
    %666 = arith.cmpi sgt, %13, %665 : vector<2x1xi32>
    %667 = arith.extui %666 : vector<2x1xi1> to vector<2x1xi32>
    %668 = arith.sitofp %667 : vector<2x1xi32> to vector<2x1xf32>
    %669 = vector.extract_strided_slice %649 {offsets = [0, 0], sizes = [2, 96], strides = [1, 1]} : vector<2x192xf32> to vector<2x96xf32>
    %670 = vector.extract_strided_slice %650 {offsets = [0, 96], sizes = [2, 96], strides = [1, 1]} : vector<2x192xf32> to vector<2x96xf32>
    %671 = vector.extract_strided_slice %651 {offsets = [0, 0], sizes = [2, 96], strides = [1, 1]} : vector<2x192xf32> to vector<2x96xf32>
    %672 = vector.extract_strided_slice %652 {offsets = [0, 96], sizes = [2, 96], strides = [1, 1]} : vector<2x192xf32> to vector<2x96xf32>
    %673 = vector.extract_strided_slice %646 {offsets = [0, 0], sizes = [2, 32], strides = [1, 1]} : vector<2x128xf32> to vector<2x32xf32>
    %c0_209 = arith.constant 0 : index
    %c0_210 = arith.constant 0 : index
    %c0_211 = arith.constant 0 : index
    %674 = vector.load %arg9[%c0_209, %c0_210, %c0_211] : memref<4x32x96xf32, #tpu.memory_space<vmem>>, vector<1x32x96xf32>
    %675 = vector.shape_cast %674 : vector<1x32x96xf32> to vector<32x96xf32>
    %cst_212 = arith.constant dense<0.000000e+00> : vector<2x96xf32>
    %676 = tpu.matmul %673, %675, %cst_212 {dimension_numbers = #tpu.dot_dimension_numbers<[1], [0], [0], [1], [0, 0, 1, 1], [], []>} : vector<2x32xf32>, vector<32x96xf32>, vector<2x96xf32> -> vector<2x96xf32>
    %c0_213 = arith.constant 0 : index
    %c0_214 = arith.constant 0 : index
    %c0_215 = arith.constant 0 : index
    %677 = vector.load %arg10[%c0_213, %c0_214, %c0_215] : memref<4x1x96xf32, #tpu.memory_space<vmem>>, vector<1x1x96xf32>
    %678 = vector.shape_cast %677 : vector<1x1x96xf32> to vector<1x96xf32>
    %679 = vector.broadcast %678 : vector<1x96xf32> to vector<2x96xf32>
    %680 = arith.addf %676, %679 : vector<2x96xf32>
    %681 = vector.extract_strided_slice %669 {offsets = [0, 0], sizes = [2, 32], strides = [1, 1]} : vector<2x96xf32> to vector<2x32xf32>
    %682 = vector.extract_strided_slice %680 {offsets = [0, 0], sizes = [2, 32], strides = [1, 1]} : vector<2x96xf32> to vector<2x32xf32>
    %683 = arith.addf %681, %682 : vector<2x32xf32>
    %cst_216 = arith.constant 0.000000e+00 : f32
    %684 = vector.broadcast %cst_216 : f32 to vector<2x32xf32>
    %685 = arith.subf %684, %683 : vector<2x32xf32>
    %686 = math.exp %685 : vector<2x32xf32>
    %cst_217 = arith.constant 1.000000e+00 : f32
    %687 = vector.broadcast %cst_217 : f32 to vector<2x32xf32>
    %688 = arith.addf %687, %686 : vector<2x32xf32>
    %cst_218 = arith.constant 1.000000e+00 : f32
    %689 = vector.broadcast %cst_218 : f32 to vector<2x32xf32>
    %690 = arith.divf %689, %688 : vector<2x32xf32>
    %691 = vector.extract_strided_slice %669 {offsets = [0, 32], sizes = [2, 32], strides = [1, 1]} : vector<2x96xf32> to vector<2x32xf32>
    %692 = vector.extract_strided_slice %680 {offsets = [0, 32], sizes = [2, 32], strides = [1, 1]} : vector<2x96xf32> to vector<2x32xf32>
    %693 = arith.addf %691, %692 : vector<2x32xf32>
    %cst_219 = arith.constant 0.000000e+00 : f32
    %694 = vector.broadcast %cst_219 : f32 to vector<2x32xf32>
    %695 = arith.subf %694, %693 : vector<2x32xf32>
    %696 = math.exp %695 : vector<2x32xf32>
    %cst_220 = arith.constant 1.000000e+00 : f32
    %697 = vector.broadcast %cst_220 : f32 to vector<2x32xf32>
    %698 = arith.addf %697, %696 : vector<2x32xf32>
    %cst_221 = arith.constant 1.000000e+00 : f32
    %699 = vector.broadcast %cst_221 : f32 to vector<2x32xf32>
    %700 = arith.divf %699, %698 : vector<2x32xf32>
    %701 = vector.extract_strided_slice %669 {offsets = [0, 64], sizes = [2, 32], strides = [1, 1]} : vector<2x96xf32> to vector<2x32xf32>
    %702 = vector.extract_strided_slice %680 {offsets = [0, 64], sizes = [2, 32], strides = [1, 1]} : vector<2x96xf32> to vector<2x32xf32>
    %703 = arith.mulf %690, %702 : vector<2x32xf32>
    %704 = arith.addf %701, %703 : vector<2x32xf32>
    %705 = math.tanh %704 : vector<2x32xf32>
    %cst_222 = arith.constant 1.000000e+00 : f32
    %706 = vector.broadcast %cst_222 : f32 to vector<2x32xf32>
    %707 = arith.subf %706, %700 : vector<2x32xf32>
    %708 = arith.mulf %707, %705 : vector<2x32xf32>
    %709 = arith.mulf %700, %673 : vector<2x32xf32>
    %710 = arith.addf %708, %709 : vector<2x32xf32>
    %711 = vector.broadcast %656 : vector<2x1xf32> to vector<2x32xf32>
    %712 = arith.mulf %711, %710 : vector<2x32xf32>
    %cst_223 = arith.constant 1.000000e+00 : f32
    %713 = vector.broadcast %cst_223 : f32 to vector<2x1xf32>
    %714 = arith.subf %713, %656 : vector<2x1xf32>
    %715 = vector.broadcast %714 : vector<2x1xf32> to vector<2x32xf32>
    %716 = arith.mulf %715, %673 : vector<2x32xf32>
    %717 = arith.addf %712, %716 : vector<2x32xf32>
    %718 = vector.broadcast %656 : vector<2x1xf32> to vector<2x32xf32>
    %719 = arith.mulf %718, %710 : vector<2x32xf32>
    %720 = vector.extract_strided_slice %646 {offsets = [0, 32], sizes = [2, 32], strides = [1, 1]} : vector<2x128xf32> to vector<2x32xf32>
    %c1_224 = arith.constant 1 : index
    %c0_225 = arith.constant 0 : index
    %c0_226 = arith.constant 0 : index
    %721 = vector.load %arg9[%c1_224, %c0_225, %c0_226] : memref<4x32x96xf32, #tpu.memory_space<vmem>>, vector<1x32x96xf32>
    %722 = vector.shape_cast %721 : vector<1x32x96xf32> to vector<32x96xf32>
    %cst_227 = arith.constant dense<0.000000e+00> : vector<2x96xf32>
    %723 = tpu.matmul %720, %722, %cst_227 {dimension_numbers = #tpu.dot_dimension_numbers<[1], [0], [0], [1], [0, 0, 1, 1], [], []>} : vector<2x32xf32>, vector<32x96xf32>, vector<2x96xf32> -> vector<2x96xf32>
    %c1_228 = arith.constant 1 : index
    %c0_229 = arith.constant 0 : index
    %c0_230 = arith.constant 0 : index
    %724 = vector.load %arg10[%c1_228, %c0_229, %c0_230] : memref<4x1x96xf32, #tpu.memory_space<vmem>>, vector<1x1x96xf32>
    %725 = vector.shape_cast %724 : vector<1x1x96xf32> to vector<1x96xf32>
    %726 = vector.broadcast %725 : vector<1x96xf32> to vector<2x96xf32>
    %727 = arith.addf %723, %726 : vector<2x96xf32>
    %728 = vector.extract_strided_slice %670 {offsets = [0, 0], sizes = [2, 32], strides = [1, 1]} : vector<2x96xf32> to vector<2x32xf32>
    %729 = vector.extract_strided_slice %727 {offsets = [0, 0], sizes = [2, 32], strides = [1, 1]} : vector<2x96xf32> to vector<2x32xf32>
    %730 = arith.addf %728, %729 : vector<2x32xf32>
    %cst_231 = arith.constant 0.000000e+00 : f32
    %731 = vector.broadcast %cst_231 : f32 to vector<2x32xf32>
    %732 = arith.subf %731, %730 : vector<2x32xf32>
    %733 = math.exp %732 : vector<2x32xf32>
    %cst_232 = arith.constant 1.000000e+00 : f32
    %734 = vector.broadcast %cst_232 : f32 to vector<2x32xf32>
    %735 = arith.addf %734, %733 : vector<2x32xf32>
    %cst_233 = arith.constant 1.000000e+00 : f32
    %736 = vector.broadcast %cst_233 : f32 to vector<2x32xf32>
    %737 = arith.divf %736, %735 : vector<2x32xf32>
    %738 = vector.extract_strided_slice %670 {offsets = [0, 32], sizes = [2, 32], strides = [1, 1]} : vector<2x96xf32> to vector<2x32xf32>
    %739 = vector.extract_strided_slice %727 {offsets = [0, 32], sizes = [2, 32], strides = [1, 1]} : vector<2x96xf32> to vector<2x32xf32>
    %740 = arith.addf %738, %739 : vector<2x32xf32>
    %cst_234 = arith.constant 0.000000e+00 : f32
    %741 = vector.broadcast %cst_234 : f32 to vector<2x32xf32>
    %742 = arith.subf %741, %740 : vector<2x32xf32>
    %743 = math.exp %742 : vector<2x32xf32>
    %cst_235 = arith.constant 1.000000e+00 : f32
    %744 = vector.broadcast %cst_235 : f32 to vector<2x32xf32>
    %745 = arith.addf %744, %743 : vector<2x32xf32>
    %cst_236 = arith.constant 1.000000e+00 : f32
    %746 = vector.broadcast %cst_236 : f32 to vector<2x32xf32>
    %747 = arith.divf %746, %745 : vector<2x32xf32>
    %748 = vector.extract_strided_slice %670 {offsets = [0, 64], sizes = [2, 32], strides = [1, 1]} : vector<2x96xf32> to vector<2x32xf32>
    %749 = vector.extract_strided_slice %727 {offsets = [0, 64], sizes = [2, 32], strides = [1, 1]} : vector<2x96xf32> to vector<2x32xf32>
    %750 = arith.mulf %737, %749 : vector<2x32xf32>
    %751 = arith.addf %748, %750 : vector<2x32xf32>
    %752 = math.tanh %751 : vector<2x32xf32>
    %cst_237 = arith.constant 1.000000e+00 : f32
    %753 = vector.broadcast %cst_237 : f32 to vector<2x32xf32>
    %754 = arith.subf %753, %747 : vector<2x32xf32>
    %755 = arith.mulf %754, %752 : vector<2x32xf32>
    %756 = arith.mulf %747, %720 : vector<2x32xf32>
    %757 = arith.addf %755, %756 : vector<2x32xf32>
    %758 = vector.broadcast %660 : vector<2x1xf32> to vector<2x32xf32>
    %759 = arith.mulf %758, %757 : vector<2x32xf32>
    %cst_238 = arith.constant 1.000000e+00 : f32
    %760 = vector.broadcast %cst_238 : f32 to vector<2x1xf32>
    %761 = arith.subf %760, %660 : vector<2x1xf32>
    %762 = vector.broadcast %761 : vector<2x1xf32> to vector<2x32xf32>
    %763 = arith.mulf %762, %720 : vector<2x32xf32>
    %764 = arith.addf %759, %763 : vector<2x32xf32>
    %765 = vector.broadcast %660 : vector<2x1xf32> to vector<2x32xf32>
    %766 = arith.mulf %765, %757 : vector<2x32xf32>
    %767 = vector.extract_strided_slice %646 {offsets = [0, 64], sizes = [2, 32], strides = [1, 1]} : vector<2x128xf32> to vector<2x32xf32>
    %c2_239 = arith.constant 2 : index
    %c0_240 = arith.constant 0 : index
    %c0_241 = arith.constant 0 : index
    %768 = vector.load %arg9[%c2_239, %c0_240, %c0_241] : memref<4x32x96xf32, #tpu.memory_space<vmem>>, vector<1x32x96xf32>
    %769 = vector.shape_cast %768 : vector<1x32x96xf32> to vector<32x96xf32>
    %cst_242 = arith.constant dense<0.000000e+00> : vector<2x96xf32>
    %770 = tpu.matmul %767, %769, %cst_242 {dimension_numbers = #tpu.dot_dimension_numbers<[1], [0], [0], [1], [0, 0, 1, 1], [], []>} : vector<2x32xf32>, vector<32x96xf32>, vector<2x96xf32> -> vector<2x96xf32>
    %c2_243 = arith.constant 2 : index
    %c0_244 = arith.constant 0 : index
    %c0_245 = arith.constant 0 : index
    %771 = vector.load %arg10[%c2_243, %c0_244, %c0_245] : memref<4x1x96xf32, #tpu.memory_space<vmem>>, vector<1x1x96xf32>
    %772 = vector.shape_cast %771 : vector<1x1x96xf32> to vector<1x96xf32>
    %773 = vector.broadcast %772 : vector<1x96xf32> to vector<2x96xf32>
    %774 = arith.addf %770, %773 : vector<2x96xf32>
    %775 = vector.extract_strided_slice %671 {offsets = [0, 0], sizes = [2, 32], strides = [1, 1]} : vector<2x96xf32> to vector<2x32xf32>
    %776 = vector.extract_strided_slice %774 {offsets = [0, 0], sizes = [2, 32], strides = [1, 1]} : vector<2x96xf32> to vector<2x32xf32>
    %777 = arith.addf %775, %776 : vector<2x32xf32>
    %cst_246 = arith.constant 0.000000e+00 : f32
    %778 = vector.broadcast %cst_246 : f32 to vector<2x32xf32>
    %779 = arith.subf %778, %777 : vector<2x32xf32>
    %780 = math.exp %779 : vector<2x32xf32>
    %cst_247 = arith.constant 1.000000e+00 : f32
    %781 = vector.broadcast %cst_247 : f32 to vector<2x32xf32>
    %782 = arith.addf %781, %780 : vector<2x32xf32>
    %cst_248 = arith.constant 1.000000e+00 : f32
    %783 = vector.broadcast %cst_248 : f32 to vector<2x32xf32>
    %784 = arith.divf %783, %782 : vector<2x32xf32>
    %785 = vector.extract_strided_slice %671 {offsets = [0, 32], sizes = [2, 32], strides = [1, 1]} : vector<2x96xf32> to vector<2x32xf32>
    %786 = vector.extract_strided_slice %774 {offsets = [0, 32], sizes = [2, 32], strides = [1, 1]} : vector<2x96xf32> to vector<2x32xf32>
    %787 = arith.addf %785, %786 : vector<2x32xf32>
    %cst_249 = arith.constant 0.000000e+00 : f32
    %788 = vector.broadcast %cst_249 : f32 to vector<2x32xf32>
    %789 = arith.subf %788, %787 : vector<2x32xf32>
    %790 = math.exp %789 : vector<2x32xf32>
    %cst_250 = arith.constant 1.000000e+00 : f32
    %791 = vector.broadcast %cst_250 : f32 to vector<2x32xf32>
    %792 = arith.addf %791, %790 : vector<2x32xf32>
    %cst_251 = arith.constant 1.000000e+00 : f32
    %793 = vector.broadcast %cst_251 : f32 to vector<2x32xf32>
    %794 = arith.divf %793, %792 : vector<2x32xf32>
    %795 = vector.extract_strided_slice %671 {offsets = [0, 64], sizes = [2, 32], strides = [1, 1]} : vector<2x96xf32> to vector<2x32xf32>
    %796 = vector.extract_strided_slice %774 {offsets = [0, 64], sizes = [2, 32], strides = [1, 1]} : vector<2x96xf32> to vector<2x32xf32>
    %797 = arith.mulf %784, %796 : vector<2x32xf32>
    %798 = arith.addf %795, %797 : vector<2x32xf32>
    %799 = math.tanh %798 : vector<2x32xf32>
    %cst_252 = arith.constant 1.000000e+00 : f32
    %800 = vector.broadcast %cst_252 : f32 to vector<2x32xf32>
    %801 = arith.subf %800, %794 : vector<2x32xf32>
    %802 = arith.mulf %801, %799 : vector<2x32xf32>
    %803 = arith.mulf %794, %767 : vector<2x32xf32>
    %804 = arith.addf %802, %803 : vector<2x32xf32>
    %cst_253 = arith.constant 1.000000e+00 : f32
    %805 = vector.broadcast %cst_253 : f32 to vector<2x32xf32>
    %806 = arith.mulf %805, %804 : vector<2x32xf32>
    %cst_254 = arith.constant 0.000000e+00 : f32
    %807 = vector.broadcast %cst_254 : f32 to vector<2x32xf32>
    %808 = arith.mulf %807, %767 : vector<2x32xf32>
    %809 = arith.addf %806, %808 : vector<2x32xf32>
    %810 = vector.broadcast %664 : vector<2x1xf32> to vector<2x32xf32>
    %811 = arith.mulf %810, %804 : vector<2x32xf32>
    %812 = vector.extract_strided_slice %646 {offsets = [0, 96], sizes = [2, 32], strides = [1, 1]} : vector<2x128xf32> to vector<2x32xf32>
    %c3_255 = arith.constant 3 : index
    %c0_256 = arith.constant 0 : index
    %c0_257 = arith.constant 0 : index
    %813 = vector.load %arg9[%c3_255, %c0_256, %c0_257] : memref<4x32x96xf32, #tpu.memory_space<vmem>>, vector<1x32x96xf32>
    %814 = vector.shape_cast %813 : vector<1x32x96xf32> to vector<32x96xf32>
    %cst_258 = arith.constant dense<0.000000e+00> : vector<2x96xf32>
    %815 = tpu.matmul %812, %814, %cst_258 {dimension_numbers = #tpu.dot_dimension_numbers<[1], [0], [0], [1], [0, 0, 1, 1], [], []>} : vector<2x32xf32>, vector<32x96xf32>, vector<2x96xf32> -> vector<2x96xf32>
    %c3_259 = arith.constant 3 : index
    %c0_260 = arith.constant 0 : index
    %c0_261 = arith.constant 0 : index
    %816 = vector.load %arg10[%c3_259, %c0_260, %c0_261] : memref<4x1x96xf32, #tpu.memory_space<vmem>>, vector<1x1x96xf32>
    %817 = vector.shape_cast %816 : vector<1x1x96xf32> to vector<1x96xf32>
    %818 = vector.broadcast %817 : vector<1x96xf32> to vector<2x96xf32>
    %819 = arith.addf %815, %818 : vector<2x96xf32>
    %820 = vector.extract_strided_slice %672 {offsets = [0, 0], sizes = [2, 32], strides = [1, 1]} : vector<2x96xf32> to vector<2x32xf32>
    %821 = vector.extract_strided_slice %819 {offsets = [0, 0], sizes = [2, 32], strides = [1, 1]} : vector<2x96xf32> to vector<2x32xf32>
    %822 = arith.addf %820, %821 : vector<2x32xf32>
    %cst_262 = arith.constant 0.000000e+00 : f32
    %823 = vector.broadcast %cst_262 : f32 to vector<2x32xf32>
    %824 = arith.subf %823, %822 : vector<2x32xf32>
    %825 = math.exp %824 : vector<2x32xf32>
    %cst_263 = arith.constant 1.000000e+00 : f32
    %826 = vector.broadcast %cst_263 : f32 to vector<2x32xf32>
    %827 = arith.addf %826, %825 : vector<2x32xf32>
    %cst_264 = arith.constant 1.000000e+00 : f32
    %828 = vector.broadcast %cst_264 : f32 to vector<2x32xf32>
    %829 = arith.divf %828, %827 : vector<2x32xf32>
    %830 = vector.extract_strided_slice %672 {offsets = [0, 32], sizes = [2, 32], strides = [1, 1]} : vector<2x96xf32> to vector<2x32xf32>
    %831 = vector.extract_strided_slice %819 {offsets = [0, 32], sizes = [2, 32], strides = [1, 1]} : vector<2x96xf32> to vector<2x32xf32>
    %832 = arith.addf %830, %831 : vector<2x32xf32>
    %cst_265 = arith.constant 0.000000e+00 : f32
    %833 = vector.broadcast %cst_265 : f32 to vector<2x32xf32>
    %834 = arith.subf %833, %832 : vector<2x32xf32>
    %835 = math.exp %834 : vector<2x32xf32>
    %cst_266 = arith.constant 1.000000e+00 : f32
    %836 = vector.broadcast %cst_266 : f32 to vector<2x32xf32>
    %837 = arith.addf %836, %835 : vector<2x32xf32>
    %cst_267 = arith.constant 1.000000e+00 : f32
    %838 = vector.broadcast %cst_267 : f32 to vector<2x32xf32>
    %839 = arith.divf %838, %837 : vector<2x32xf32>
    %840 = vector.extract_strided_slice %672 {offsets = [0, 64], sizes = [2, 32], strides = [1, 1]} : vector<2x96xf32> to vector<2x32xf32>
    %841 = vector.extract_strided_slice %819 {offsets = [0, 64], sizes = [2, 32], strides = [1, 1]} : vector<2x96xf32> to vector<2x32xf32>
    %842 = arith.mulf %829, %841 : vector<2x32xf32>
    %843 = arith.addf %840, %842 : vector<2x32xf32>
    %844 = math.tanh %843 : vector<2x32xf32>
    %cst_268 = arith.constant 1.000000e+00 : f32
    %845 = vector.broadcast %cst_268 : f32 to vector<2x32xf32>
    %846 = arith.subf %845, %839 : vector<2x32xf32>
    %847 = arith.mulf %846, %844 : vector<2x32xf32>
    %848 = arith.mulf %839, %812 : vector<2x32xf32>
    %849 = arith.addf %847, %848 : vector<2x32xf32>
    %cst_269 = arith.constant 1.000000e+00 : f32
    %850 = vector.broadcast %cst_269 : f32 to vector<2x32xf32>
    %851 = arith.mulf %850, %849 : vector<2x32xf32>
    %cst_270 = arith.constant 0.000000e+00 : f32
    %852 = vector.broadcast %cst_270 : f32 to vector<2x32xf32>
    %853 = arith.mulf %852, %812 : vector<2x32xf32>
    %854 = arith.addf %851, %853 : vector<2x32xf32>
    %855 = vector.broadcast %668 : vector<2x1xf32> to vector<2x32xf32>
    %856 = arith.mulf %855, %849 : vector<2x32xf32>
    %857 = tpu.concatenate %717, %764, %809, %854 in 1 : vector<2x32xf32>, vector<2x32xf32>, vector<2x32xf32>, vector<2x32xf32> -> vector<2x128xf32>
    %858 = tpu.concatenate %719, %766, %811, %856 in 1 : vector<2x32xf32>, vector<2x32xf32>, vector<2x32xf32>, vector<2x32xf32> -> vector<2x128xf32>
    %859 = arith.addf %648, %858 : vector<2x128xf32>
    %860 = vector.extract_strided_slice %5 {offsets = [8, 0], sizes = [2, 192], strides = [1, 1]} : vector<16x192xf32> to vector<2x192xf32>
    %861 = vector.extract_strided_slice %5 {offsets = [6, 0], sizes = [2, 192], strides = [1, 1]} : vector<16x192xf32> to vector<2x192xf32>
    %862 = vector.extract_strided_slice %11 {offsets = [8, 0], sizes = [2, 192], strides = [1, 1]} : vector<16x192xf32> to vector<2x192xf32>
    %863 = vector.extract_strided_slice %11 {offsets = [6, 0], sizes = [2, 192], strides = [1, 1]} : vector<16x192xf32> to vector<2x192xf32>
    %c4_i32_271 = arith.constant 4 : i32
    %864 = vector.broadcast %c4_i32_271 : i32 to vector<2x1xi32>
    %865 = arith.cmpi sgt, %12, %864 : vector<2x1xi32>
    %866 = arith.extui %865 : vector<2x1xi1> to vector<2x1xi32>
    %867 = arith.sitofp %866 : vector<2x1xi32> to vector<2x1xf32>
    %c3_i32_272 = arith.constant 3 : i32
    %868 = vector.broadcast %c3_i32_272 : i32 to vector<2x1xi32>
    %869 = arith.cmpi sgt, %12, %868 : vector<2x1xi32>
    %870 = arith.extui %869 : vector<2x1xi1> to vector<2x1xi32>
    %871 = arith.sitofp %870 : vector<2x1xi32> to vector<2x1xf32>
    %c4_i32_273 = arith.constant 4 : i32
    %872 = vector.broadcast %c4_i32_273 : i32 to vector<2x1xi32>
    %873 = arith.cmpi sgt, %13, %872 : vector<2x1xi32>
    %874 = arith.extui %873 : vector<2x1xi1> to vector<2x1xi32>
    %875 = arith.sitofp %874 : vector<2x1xi32> to vector<2x1xf32>
    %c3_i32_274 = arith.constant 3 : i32
    %876 = vector.broadcast %c3_i32_274 : i32 to vector<2x1xi32>
    %877 = arith.cmpi sgt, %13, %876 : vector<2x1xi32>
    %878 = arith.extui %877 : vector<2x1xi1> to vector<2x1xi32>
    %879 = arith.sitofp %878 : vector<2x1xi32> to vector<2x1xf32>
    %880 = vector.extract_strided_slice %860 {offsets = [0, 0], sizes = [2, 96], strides = [1, 1]} : vector<2x192xf32> to vector<2x96xf32>
    %881 = vector.extract_strided_slice %861 {offsets = [0, 96], sizes = [2, 96], strides = [1, 1]} : vector<2x192xf32> to vector<2x96xf32>
    %882 = vector.extract_strided_slice %862 {offsets = [0, 0], sizes = [2, 96], strides = [1, 1]} : vector<2x192xf32> to vector<2x96xf32>
    %883 = vector.extract_strided_slice %863 {offsets = [0, 96], sizes = [2, 96], strides = [1, 1]} : vector<2x192xf32> to vector<2x96xf32>
    %884 = vector.extract_strided_slice %857 {offsets = [0, 0], sizes = [2, 32], strides = [1, 1]} : vector<2x128xf32> to vector<2x32xf32>
    %c0_275 = arith.constant 0 : index
    %c0_276 = arith.constant 0 : index
    %c0_277 = arith.constant 0 : index
    %885 = vector.load %arg9[%c0_275, %c0_276, %c0_277] : memref<4x32x96xf32, #tpu.memory_space<vmem>>, vector<1x32x96xf32>
    %886 = vector.shape_cast %885 : vector<1x32x96xf32> to vector<32x96xf32>
    %cst_278 = arith.constant dense<0.000000e+00> : vector<2x96xf32>
    %887 = tpu.matmul %884, %886, %cst_278 {dimension_numbers = #tpu.dot_dimension_numbers<[1], [0], [0], [1], [0, 0, 1, 1], [], []>} : vector<2x32xf32>, vector<32x96xf32>, vector<2x96xf32> -> vector<2x96xf32>
    %c0_279 = arith.constant 0 : index
    %c0_280 = arith.constant 0 : index
    %c0_281 = arith.constant 0 : index
    %888 = vector.load %arg10[%c0_279, %c0_280, %c0_281] : memref<4x1x96xf32, #tpu.memory_space<vmem>>, vector<1x1x96xf32>
    %889 = vector.shape_cast %888 : vector<1x1x96xf32> to vector<1x96xf32>
    %890 = vector.broadcast %889 : vector<1x96xf32> to vector<2x96xf32>
    %891 = arith.addf %887, %890 : vector<2x96xf32>
    %892 = vector.extract_strided_slice %880 {offsets = [0, 0], sizes = [2, 32], strides = [1, 1]} : vector<2x96xf32> to vector<2x32xf32>
    %893 = vector.extract_strided_slice %891 {offsets = [0, 0], sizes = [2, 32], strides = [1, 1]} : vector<2x96xf32> to vector<2x32xf32>
    %894 = arith.addf %892, %893 : vector<2x32xf32>
    %cst_282 = arith.constant 0.000000e+00 : f32
    %895 = vector.broadcast %cst_282 : f32 to vector<2x32xf32>
    %896 = arith.subf %895, %894 : vector<2x32xf32>
    %897 = math.exp %896 : vector<2x32xf32>
    %cst_283 = arith.constant 1.000000e+00 : f32
    %898 = vector.broadcast %cst_283 : f32 to vector<2x32xf32>
    %899 = arith.addf %898, %897 : vector<2x32xf32>
    %cst_284 = arith.constant 1.000000e+00 : f32
    %900 = vector.broadcast %cst_284 : f32 to vector<2x32xf32>
    %901 = arith.divf %900, %899 : vector<2x32xf32>
    %902 = vector.extract_strided_slice %880 {offsets = [0, 32], sizes = [2, 32], strides = [1, 1]} : vector<2x96xf32> to vector<2x32xf32>
    %903 = vector.extract_strided_slice %891 {offsets = [0, 32], sizes = [2, 32], strides = [1, 1]} : vector<2x96xf32> to vector<2x32xf32>
    %904 = arith.addf %902, %903 : vector<2x32xf32>
    %cst_285 = arith.constant 0.000000e+00 : f32
    %905 = vector.broadcast %cst_285 : f32 to vector<2x32xf32>
    %906 = arith.subf %905, %904 : vector<2x32xf32>
    %907 = math.exp %906 : vector<2x32xf32>
    %cst_286 = arith.constant 1.000000e+00 : f32
    %908 = vector.broadcast %cst_286 : f32 to vector<2x32xf32>
    %909 = arith.addf %908, %907 : vector<2x32xf32>
    %cst_287 = arith.constant 1.000000e+00 : f32
    %910 = vector.broadcast %cst_287 : f32 to vector<2x32xf32>
    %911 = arith.divf %910, %909 : vector<2x32xf32>
    %912 = vector.extract_strided_slice %880 {offsets = [0, 64], sizes = [2, 32], strides = [1, 1]} : vector<2x96xf32> to vector<2x32xf32>
    %913 = vector.extract_strided_slice %891 {offsets = [0, 64], sizes = [2, 32], strides = [1, 1]} : vector<2x96xf32> to vector<2x32xf32>
    %914 = arith.mulf %901, %913 : vector<2x32xf32>
    %915 = arith.addf %912, %914 : vector<2x32xf32>
    %916 = math.tanh %915 : vector<2x32xf32>
    %cst_288 = arith.constant 1.000000e+00 : f32
    %917 = vector.broadcast %cst_288 : f32 to vector<2x32xf32>
    %918 = arith.subf %917, %911 : vector<2x32xf32>
    %919 = arith.mulf %918, %916 : vector<2x32xf32>
    %920 = arith.mulf %911, %884 : vector<2x32xf32>
    %921 = arith.addf %919, %920 : vector<2x32xf32>
    %922 = vector.broadcast %867 : vector<2x1xf32> to vector<2x32xf32>
    %923 = arith.mulf %922, %921 : vector<2x32xf32>
    %cst_289 = arith.constant 1.000000e+00 : f32
    %924 = vector.broadcast %cst_289 : f32 to vector<2x1xf32>
    %925 = arith.subf %924, %867 : vector<2x1xf32>
    %926 = vector.broadcast %925 : vector<2x1xf32> to vector<2x32xf32>
    %927 = arith.mulf %926, %884 : vector<2x32xf32>
    %928 = arith.addf %923, %927 : vector<2x32xf32>
    %929 = vector.broadcast %867 : vector<2x1xf32> to vector<2x32xf32>
    %930 = arith.mulf %929, %921 : vector<2x32xf32>
    %931 = vector.extract_strided_slice %857 {offsets = [0, 32], sizes = [2, 32], strides = [1, 1]} : vector<2x128xf32> to vector<2x32xf32>
    %c1_290 = arith.constant 1 : index
    %c0_291 = arith.constant 0 : index
    %c0_292 = arith.constant 0 : index
    %932 = vector.load %arg9[%c1_290, %c0_291, %c0_292] : memref<4x32x96xf32, #tpu.memory_space<vmem>>, vector<1x32x96xf32>
    %933 = vector.shape_cast %932 : vector<1x32x96xf32> to vector<32x96xf32>
    %cst_293 = arith.constant dense<0.000000e+00> : vector<2x96xf32>
    %934 = tpu.matmul %931, %933, %cst_293 {dimension_numbers = #tpu.dot_dimension_numbers<[1], [0], [0], [1], [0, 0, 1, 1], [], []>} : vector<2x32xf32>, vector<32x96xf32>, vector<2x96xf32> -> vector<2x96xf32>
    %c1_294 = arith.constant 1 : index
    %c0_295 = arith.constant 0 : index
    %c0_296 = arith.constant 0 : index
    %935 = vector.load %arg10[%c1_294, %c0_295, %c0_296] : memref<4x1x96xf32, #tpu.memory_space<vmem>>, vector<1x1x96xf32>
    %936 = vector.shape_cast %935 : vector<1x1x96xf32> to vector<1x96xf32>
    %937 = vector.broadcast %936 : vector<1x96xf32> to vector<2x96xf32>
    %938 = arith.addf %934, %937 : vector<2x96xf32>
    %939 = vector.extract_strided_slice %881 {offsets = [0, 0], sizes = [2, 32], strides = [1, 1]} : vector<2x96xf32> to vector<2x32xf32>
    %940 = vector.extract_strided_slice %938 {offsets = [0, 0], sizes = [2, 32], strides = [1, 1]} : vector<2x96xf32> to vector<2x32xf32>
    %941 = arith.addf %939, %940 : vector<2x32xf32>
    %cst_297 = arith.constant 0.000000e+00 : f32
    %942 = vector.broadcast %cst_297 : f32 to vector<2x32xf32>
    %943 = arith.subf %942, %941 : vector<2x32xf32>
    %944 = math.exp %943 : vector<2x32xf32>
    %cst_298 = arith.constant 1.000000e+00 : f32
    %945 = vector.broadcast %cst_298 : f32 to vector<2x32xf32>
    %946 = arith.addf %945, %944 : vector<2x32xf32>
    %cst_299 = arith.constant 1.000000e+00 : f32
    %947 = vector.broadcast %cst_299 : f32 to vector<2x32xf32>
    %948 = arith.divf %947, %946 : vector<2x32xf32>
    %949 = vector.extract_strided_slice %881 {offsets = [0, 32], sizes = [2, 32], strides = [1, 1]} : vector<2x96xf32> to vector<2x32xf32>
    %950 = vector.extract_strided_slice %938 {offsets = [0, 32], sizes = [2, 32], strides = [1, 1]} : vector<2x96xf32> to vector<2x32xf32>
    %951 = arith.addf %949, %950 : vector<2x32xf32>
    %cst_300 = arith.constant 0.000000e+00 : f32
    %952 = vector.broadcast %cst_300 : f32 to vector<2x32xf32>
    %953 = arith.subf %952, %951 : vector<2x32xf32>
    %954 = math.exp %953 : vector<2x32xf32>
    %cst_301 = arith.constant 1.000000e+00 : f32
    %955 = vector.broadcast %cst_301 : f32 to vector<2x32xf32>
    %956 = arith.addf %955, %954 : vector<2x32xf32>
    %cst_302 = arith.constant 1.000000e+00 : f32
    %957 = vector.broadcast %cst_302 : f32 to vector<2x32xf32>
    %958 = arith.divf %957, %956 : vector<2x32xf32>
    %959 = vector.extract_strided_slice %881 {offsets = [0, 64], sizes = [2, 32], strides = [1, 1]} : vector<2x96xf32> to vector<2x32xf32>
    %960 = vector.extract_strided_slice %938 {offsets = [0, 64], sizes = [2, 32], strides = [1, 1]} : vector<2x96xf32> to vector<2x32xf32>
    %961 = arith.mulf %948, %960 : vector<2x32xf32>
    %962 = arith.addf %959, %961 : vector<2x32xf32>
    %963 = math.tanh %962 : vector<2x32xf32>
    %cst_303 = arith.constant 1.000000e+00 : f32
    %964 = vector.broadcast %cst_303 : f32 to vector<2x32xf32>
    %965 = arith.subf %964, %958 : vector<2x32xf32>
    %966 = arith.mulf %965, %963 : vector<2x32xf32>
    %967 = arith.mulf %958, %931 : vector<2x32xf32>
    %968 = arith.addf %966, %967 : vector<2x32xf32>
    %969 = vector.broadcast %871 : vector<2x1xf32> to vector<2x32xf32>
    %970 = arith.mulf %969, %968 : vector<2x32xf32>
    %cst_304 = arith.constant 1.000000e+00 : f32
    %971 = vector.broadcast %cst_304 : f32 to vector<2x1xf32>
    %972 = arith.subf %971, %871 : vector<2x1xf32>
    %973 = vector.broadcast %972 : vector<2x1xf32> to vector<2x32xf32>
    %974 = arith.mulf %973, %931 : vector<2x32xf32>
    %975 = arith.addf %970, %974 : vector<2x32xf32>
    %976 = vector.broadcast %871 : vector<2x1xf32> to vector<2x32xf32>
    %977 = arith.mulf %976, %968 : vector<2x32xf32>
    %978 = vector.extract_strided_slice %857 {offsets = [0, 64], sizes = [2, 32], strides = [1, 1]} : vector<2x128xf32> to vector<2x32xf32>
    %c2_305 = arith.constant 2 : index
    %c0_306 = arith.constant 0 : index
    %c0_307 = arith.constant 0 : index
    %979 = vector.load %arg9[%c2_305, %c0_306, %c0_307] : memref<4x32x96xf32, #tpu.memory_space<vmem>>, vector<1x32x96xf32>
    %980 = vector.shape_cast %979 : vector<1x32x96xf32> to vector<32x96xf32>
    %cst_308 = arith.constant dense<0.000000e+00> : vector<2x96xf32>
    %981 = tpu.matmul %978, %980, %cst_308 {dimension_numbers = #tpu.dot_dimension_numbers<[1], [0], [0], [1], [0, 0, 1, 1], [], []>} : vector<2x32xf32>, vector<32x96xf32>, vector<2x96xf32> -> vector<2x96xf32>
    %c2_309 = arith.constant 2 : index
    %c0_310 = arith.constant 0 : index
    %c0_311 = arith.constant 0 : index
    %982 = vector.load %arg10[%c2_309, %c0_310, %c0_311] : memref<4x1x96xf32, #tpu.memory_space<vmem>>, vector<1x1x96xf32>
    %983 = vector.shape_cast %982 : vector<1x1x96xf32> to vector<1x96xf32>
    %984 = vector.broadcast %983 : vector<1x96xf32> to vector<2x96xf32>
    %985 = arith.addf %981, %984 : vector<2x96xf32>
    %986 = vector.extract_strided_slice %882 {offsets = [0, 0], sizes = [2, 32], strides = [1, 1]} : vector<2x96xf32> to vector<2x32xf32>
    %987 = vector.extract_strided_slice %985 {offsets = [0, 0], sizes = [2, 32], strides = [1, 1]} : vector<2x96xf32> to vector<2x32xf32>
    %988 = arith.addf %986, %987 : vector<2x32xf32>
    %cst_312 = arith.constant 0.000000e+00 : f32
    %989 = vector.broadcast %cst_312 : f32 to vector<2x32xf32>
    %990 = arith.subf %989, %988 : vector<2x32xf32>
    %991 = math.exp %990 : vector<2x32xf32>
    %cst_313 = arith.constant 1.000000e+00 : f32
    %992 = vector.broadcast %cst_313 : f32 to vector<2x32xf32>
    %993 = arith.addf %992, %991 : vector<2x32xf32>
    %cst_314 = arith.constant 1.000000e+00 : f32
    %994 = vector.broadcast %cst_314 : f32 to vector<2x32xf32>
    %995 = arith.divf %994, %993 : vector<2x32xf32>
    %996 = vector.extract_strided_slice %882 {offsets = [0, 32], sizes = [2, 32], strides = [1, 1]} : vector<2x96xf32> to vector<2x32xf32>
    %997 = vector.extract_strided_slice %985 {offsets = [0, 32], sizes = [2, 32], strides = [1, 1]} : vector<2x96xf32> to vector<2x32xf32>
    %998 = arith.addf %996, %997 : vector<2x32xf32>
    %cst_315 = arith.constant 0.000000e+00 : f32
    %999 = vector.broadcast %cst_315 : f32 to vector<2x32xf32>
    %1000 = arith.subf %999, %998 : vector<2x32xf32>
    %1001 = math.exp %1000 : vector<2x32xf32>
    %cst_316 = arith.constant 1.000000e+00 : f32
    %1002 = vector.broadcast %cst_316 : f32 to vector<2x32xf32>
    %1003 = arith.addf %1002, %1001 : vector<2x32xf32>
    %cst_317 = arith.constant 1.000000e+00 : f32
    %1004 = vector.broadcast %cst_317 : f32 to vector<2x32xf32>
    %1005 = arith.divf %1004, %1003 : vector<2x32xf32>
    %1006 = vector.extract_strided_slice %882 {offsets = [0, 64], sizes = [2, 32], strides = [1, 1]} : vector<2x96xf32> to vector<2x32xf32>
    %1007 = vector.extract_strided_slice %985 {offsets = [0, 64], sizes = [2, 32], strides = [1, 1]} : vector<2x96xf32> to vector<2x32xf32>
    %1008 = arith.mulf %995, %1007 : vector<2x32xf32>
    %1009 = arith.addf %1006, %1008 : vector<2x32xf32>
    %1010 = math.tanh %1009 : vector<2x32xf32>
    %cst_318 = arith.constant 1.000000e+00 : f32
    %1011 = vector.broadcast %cst_318 : f32 to vector<2x32xf32>
    %1012 = arith.subf %1011, %1005 : vector<2x32xf32>
    %1013 = arith.mulf %1012, %1010 : vector<2x32xf32>
    %1014 = arith.mulf %1005, %978 : vector<2x32xf32>
    %1015 = arith.addf %1013, %1014 : vector<2x32xf32>
    %cst_319 = arith.constant 1.000000e+00 : f32
    %1016 = vector.broadcast %cst_319 : f32 to vector<2x32xf32>
    %1017 = arith.mulf %1016, %1015 : vector<2x32xf32>
    %cst_320 = arith.constant 0.000000e+00 : f32
    %1018 = vector.broadcast %cst_320 : f32 to vector<2x32xf32>
    %1019 = arith.mulf %1018, %978 : vector<2x32xf32>
    %1020 = arith.addf %1017, %1019 : vector<2x32xf32>
    %1021 = vector.broadcast %875 : vector<2x1xf32> to vector<2x32xf32>
    %1022 = arith.mulf %1021, %1015 : vector<2x32xf32>
    %1023 = vector.extract_strided_slice %857 {offsets = [0, 96], sizes = [2, 32], strides = [1, 1]} : vector<2x128xf32> to vector<2x32xf32>
    %c3_321 = arith.constant 3 : index
    %c0_322 = arith.constant 0 : index
    %c0_323 = arith.constant 0 : index
    %1024 = vector.load %arg9[%c3_321, %c0_322, %c0_323] : memref<4x32x96xf32, #tpu.memory_space<vmem>>, vector<1x32x96xf32>
    %1025 = vector.shape_cast %1024 : vector<1x32x96xf32> to vector<32x96xf32>
    %cst_324 = arith.constant dense<0.000000e+00> : vector<2x96xf32>
    %1026 = tpu.matmul %1023, %1025, %cst_324 {dimension_numbers = #tpu.dot_dimension_numbers<[1], [0], [0], [1], [0, 0, 1, 1], [], []>} : vector<2x32xf32>, vector<32x96xf32>, vector<2x96xf32> -> vector<2x96xf32>
    %c3_325 = arith.constant 3 : index
    %c0_326 = arith.constant 0 : index
    %c0_327 = arith.constant 0 : index
    %1027 = vector.load %arg10[%c3_325, %c0_326, %c0_327] : memref<4x1x96xf32, #tpu.memory_space<vmem>>, vector<1x1x96xf32>
    %1028 = vector.shape_cast %1027 : vector<1x1x96xf32> to vector<1x96xf32>
    %1029 = vector.broadcast %1028 : vector<1x96xf32> to vector<2x96xf32>
    %1030 = arith.addf %1026, %1029 : vector<2x96xf32>
    %1031 = vector.extract_strided_slice %883 {offsets = [0, 0], sizes = [2, 32], strides = [1, 1]} : vector<2x96xf32> to vector<2x32xf32>
    %1032 = vector.extract_strided_slice %1030 {offsets = [0, 0], sizes = [2, 32], strides = [1, 1]} : vector<2x96xf32> to vector<2x32xf32>
    %1033 = arith.addf %1031, %1032 : vector<2x32xf32>
    %cst_328 = arith.constant 0.000000e+00 : f32
    %1034 = vector.broadcast %cst_328 : f32 to vector<2x32xf32>
    %1035 = arith.subf %1034, %1033 : vector<2x32xf32>
    %1036 = math.exp %1035 : vector<2x32xf32>
    %cst_329 = arith.constant 1.000000e+00 : f32
    %1037 = vector.broadcast %cst_329 : f32 to vector<2x32xf32>
    %1038 = arith.addf %1037, %1036 : vector<2x32xf32>
    %cst_330 = arith.constant 1.000000e+00 : f32
    %1039 = vector.broadcast %cst_330 : f32 to vector<2x32xf32>
    %1040 = arith.divf %1039, %1038 : vector<2x32xf32>
    %1041 = vector.extract_strided_slice %883 {offsets = [0, 32], sizes = [2, 32], strides = [1, 1]} : vector<2x96xf32> to vector<2x32xf32>
    %1042 = vector.extract_strided_slice %1030 {offsets = [0, 32], sizes = [2, 32], strides = [1, 1]} : vector<2x96xf32> to vector<2x32xf32>
    %1043 = arith.addf %1041, %1042 : vector<2x32xf32>
    %cst_331 = arith.constant 0.000000e+00 : f32
    %1044 = vector.broadcast %cst_331 : f32 to vector<2x32xf32>
    %1045 = arith.subf %1044, %1043 : vector<2x32xf32>
    %1046 = math.exp %1045 : vector<2x32xf32>
    %cst_332 = arith.constant 1.000000e+00 : f32
    %1047 = vector.broadcast %cst_332 : f32 to vector<2x32xf32>
    %1048 = arith.addf %1047, %1046 : vector<2x32xf32>
    %cst_333 = arith.constant 1.000000e+00 : f32
    %1049 = vector.broadcast %cst_333 : f32 to vector<2x32xf32>
    %1050 = arith.divf %1049, %1048 : vector<2x32xf32>
    %1051 = vector.extract_strided_slice %883 {offsets = [0, 64], sizes = [2, 32], strides = [1, 1]} : vector<2x96xf32> to vector<2x32xf32>
    %1052 = vector.extract_strided_slice %1030 {offsets = [0, 64], sizes = [2, 32], strides = [1, 1]} : vector<2x96xf32> to vector<2x32xf32>
    %1053 = arith.mulf %1040, %1052 : vector<2x32xf32>
    %1054 = arith.addf %1051, %1053 : vector<2x32xf32>
    %1055 = math.tanh %1054 : vector<2x32xf32>
    %cst_334 = arith.constant 1.000000e+00 : f32
    %1056 = vector.broadcast %cst_334 : f32 to vector<2x32xf32>
    %1057 = arith.subf %1056, %1050 : vector<2x32xf32>
    %1058 = arith.mulf %1057, %1055 : vector<2x32xf32>
    %1059 = arith.mulf %1050, %1023 : vector<2x32xf32>
    %1060 = arith.addf %1058, %1059 : vector<2x32xf32>
    %cst_335 = arith.constant 1.000000e+00 : f32
    %1061 = vector.broadcast %cst_335 : f32 to vector<2x32xf32>
    %1062 = arith.mulf %1061, %1060 : vector<2x32xf32>
    %cst_336 = arith.constant 0.000000e+00 : f32
    %1063 = vector.broadcast %cst_336 : f32 to vector<2x32xf32>
    %1064 = arith.mulf %1063, %1023 : vector<2x32xf32>
    %1065 = arith.addf %1062, %1064 : vector<2x32xf32>
    %1066 = vector.broadcast %879 : vector<2x1xf32> to vector<2x32xf32>
    %1067 = arith.mulf %1066, %1060 : vector<2x32xf32>
    %1068 = tpu.concatenate %928, %975, %1020, %1065 in 1 : vector<2x32xf32>, vector<2x32xf32>, vector<2x32xf32>, vector<2x32xf32> -> vector<2x128xf32>
    %1069 = tpu.concatenate %930, %977, %1022, %1067 in 1 : vector<2x32xf32>, vector<2x32xf32>, vector<2x32xf32>, vector<2x32xf32> -> vector<2x128xf32>
    %1070 = arith.addf %859, %1069 : vector<2x128xf32>
    %1071 = vector.extract_strided_slice %5 {offsets = [10, 0], sizes = [2, 192], strides = [1, 1]} : vector<16x192xf32> to vector<2x192xf32>
    %1072 = vector.extract_strided_slice %5 {offsets = [4, 0], sizes = [2, 192], strides = [1, 1]} : vector<16x192xf32> to vector<2x192xf32>
    %1073 = vector.extract_strided_slice %11 {offsets = [10, 0], sizes = [2, 192], strides = [1, 1]} : vector<16x192xf32> to vector<2x192xf32>
    %1074 = vector.extract_strided_slice %11 {offsets = [4, 0], sizes = [2, 192], strides = [1, 1]} : vector<16x192xf32> to vector<2x192xf32>
    %c5_i32_337 = arith.constant 5 : i32
    %1075 = vector.broadcast %c5_i32_337 : i32 to vector<2x1xi32>
    %1076 = arith.cmpi sgt, %12, %1075 : vector<2x1xi32>
    %1077 = arith.extui %1076 : vector<2x1xi1> to vector<2x1xi32>
    %1078 = arith.sitofp %1077 : vector<2x1xi32> to vector<2x1xf32>
    %c2_i32_338 = arith.constant 2 : i32
    %1079 = vector.broadcast %c2_i32_338 : i32 to vector<2x1xi32>
    %1080 = arith.cmpi sgt, %12, %1079 : vector<2x1xi32>
    %1081 = arith.extui %1080 : vector<2x1xi1> to vector<2x1xi32>
    %1082 = arith.sitofp %1081 : vector<2x1xi32> to vector<2x1xf32>
    %c5_i32_339 = arith.constant 5 : i32
    %1083 = vector.broadcast %c5_i32_339 : i32 to vector<2x1xi32>
    %1084 = arith.cmpi sgt, %13, %1083 : vector<2x1xi32>
    %1085 = arith.extui %1084 : vector<2x1xi1> to vector<2x1xi32>
    %1086 = arith.sitofp %1085 : vector<2x1xi32> to vector<2x1xf32>
    %c2_i32_340 = arith.constant 2 : i32
    %1087 = vector.broadcast %c2_i32_340 : i32 to vector<2x1xi32>
    %1088 = arith.cmpi sgt, %13, %1087 : vector<2x1xi32>
    %1089 = arith.extui %1088 : vector<2x1xi1> to vector<2x1xi32>
    %1090 = arith.sitofp %1089 : vector<2x1xi32> to vector<2x1xf32>
    %1091 = vector.extract_strided_slice %1071 {offsets = [0, 0], sizes = [2, 96], strides = [1, 1]} : vector<2x192xf32> to vector<2x96xf32>
    %1092 = vector.extract_strided_slice %1072 {offsets = [0, 96], sizes = [2, 96], strides = [1, 1]} : vector<2x192xf32> to vector<2x96xf32>
    %1093 = vector.extract_strided_slice %1073 {offsets = [0, 0], sizes = [2, 96], strides = [1, 1]} : vector<2x192xf32> to vector<2x96xf32>
    %1094 = vector.extract_strided_slice %1074 {offsets = [0, 96], sizes = [2, 96], strides = [1, 1]} : vector<2x192xf32> to vector<2x96xf32>
    %1095 = vector.extract_strided_slice %1068 {offsets = [0, 0], sizes = [2, 32], strides = [1, 1]} : vector<2x128xf32> to vector<2x32xf32>
    %c0_341 = arith.constant 0 : index
    %c0_342 = arith.constant 0 : index
    %c0_343 = arith.constant 0 : index
    %1096 = vector.load %arg9[%c0_341, %c0_342, %c0_343] : memref<4x32x96xf32, #tpu.memory_space<vmem>>, vector<1x32x96xf32>
    %1097 = vector.shape_cast %1096 : vector<1x32x96xf32> to vector<32x96xf32>
    %cst_344 = arith.constant dense<0.000000e+00> : vector<2x96xf32>
    %1098 = tpu.matmul %1095, %1097, %cst_344 {dimension_numbers = #tpu.dot_dimension_numbers<[1], [0], [0], [1], [0, 0, 1, 1], [], []>} : vector<2x32xf32>, vector<32x96xf32>, vector<2x96xf32> -> vector<2x96xf32>
    %c0_345 = arith.constant 0 : index
    %c0_346 = arith.constant 0 : index
    %c0_347 = arith.constant 0 : index
    %1099 = vector.load %arg10[%c0_345, %c0_346, %c0_347] : memref<4x1x96xf32, #tpu.memory_space<vmem>>, vector<1x1x96xf32>
    %1100 = vector.shape_cast %1099 : vector<1x1x96xf32> to vector<1x96xf32>
    %1101 = vector.broadcast %1100 : vector<1x96xf32> to vector<2x96xf32>
    %1102 = arith.addf %1098, %1101 : vector<2x96xf32>
    %1103 = vector.extract_strided_slice %1091 {offsets = [0, 0], sizes = [2, 32], strides = [1, 1]} : vector<2x96xf32> to vector<2x32xf32>
    %1104 = vector.extract_strided_slice %1102 {offsets = [0, 0], sizes = [2, 32], strides = [1, 1]} : vector<2x96xf32> to vector<2x32xf32>
    %1105 = arith.addf %1103, %1104 : vector<2x32xf32>
    %cst_348 = arith.constant 0.000000e+00 : f32
    %1106 = vector.broadcast %cst_348 : f32 to vector<2x32xf32>
    %1107 = arith.subf %1106, %1105 : vector<2x32xf32>
    %1108 = math.exp %1107 : vector<2x32xf32>
    %cst_349 = arith.constant 1.000000e+00 : f32
    %1109 = vector.broadcast %cst_349 : f32 to vector<2x32xf32>
    %1110 = arith.addf %1109, %1108 : vector<2x32xf32>
    %cst_350 = arith.constant 1.000000e+00 : f32
    %1111 = vector.broadcast %cst_350 : f32 to vector<2x32xf32>
    %1112 = arith.divf %1111, %1110 : vector<2x32xf32>
    %1113 = vector.extract_strided_slice %1091 {offsets = [0, 32], sizes = [2, 32], strides = [1, 1]} : vector<2x96xf32> to vector<2x32xf32>
    %1114 = vector.extract_strided_slice %1102 {offsets = [0, 32], sizes = [2, 32], strides = [1, 1]} : vector<2x96xf32> to vector<2x32xf32>
    %1115 = arith.addf %1113, %1114 : vector<2x32xf32>
    %cst_351 = arith.constant 0.000000e+00 : f32
    %1116 = vector.broadcast %cst_351 : f32 to vector<2x32xf32>
    %1117 = arith.subf %1116, %1115 : vector<2x32xf32>
    %1118 = math.exp %1117 : vector<2x32xf32>
    %cst_352 = arith.constant 1.000000e+00 : f32
    %1119 = vector.broadcast %cst_352 : f32 to vector<2x32xf32>
    %1120 = arith.addf %1119, %1118 : vector<2x32xf32>
    %cst_353 = arith.constant 1.000000e+00 : f32
    %1121 = vector.broadcast %cst_353 : f32 to vector<2x32xf32>
    %1122 = arith.divf %1121, %1120 : vector<2x32xf32>
    %1123 = vector.extract_strided_slice %1091 {offsets = [0, 64], sizes = [2, 32], strides = [1, 1]} : vector<2x96xf32> to vector<2x32xf32>
    %1124 = vector.extract_strided_slice %1102 {offsets = [0, 64], sizes = [2, 32], strides = [1, 1]} : vector<2x96xf32> to vector<2x32xf32>
    %1125 = arith.mulf %1112, %1124 : vector<2x32xf32>
    %1126 = arith.addf %1123, %1125 : vector<2x32xf32>
    %1127 = math.tanh %1126 : vector<2x32xf32>
    %cst_354 = arith.constant 1.000000e+00 : f32
    %1128 = vector.broadcast %cst_354 : f32 to vector<2x32xf32>
    %1129 = arith.subf %1128, %1122 : vector<2x32xf32>
    %1130 = arith.mulf %1129, %1127 : vector<2x32xf32>
    %1131 = arith.mulf %1122, %1095 : vector<2x32xf32>
    %1132 = arith.addf %1130, %1131 : vector<2x32xf32>
    %1133 = vector.broadcast %1078 : vector<2x1xf32> to vector<2x32xf32>
    %1134 = arith.mulf %1133, %1132 : vector<2x32xf32>
    %cst_355 = arith.constant 1.000000e+00 : f32
    %1135 = vector.broadcast %cst_355 : f32 to vector<2x1xf32>
    %1136 = arith.subf %1135, %1078 : vector<2x1xf32>
    %1137 = vector.broadcast %1136 : vector<2x1xf32> to vector<2x32xf32>
    %1138 = arith.mulf %1137, %1095 : vector<2x32xf32>
    %1139 = arith.addf %1134, %1138 : vector<2x32xf32>
    %1140 = vector.broadcast %1078 : vector<2x1xf32> to vector<2x32xf32>
    %1141 = arith.mulf %1140, %1132 : vector<2x32xf32>
    %1142 = vector.extract_strided_slice %1068 {offsets = [0, 32], sizes = [2, 32], strides = [1, 1]} : vector<2x128xf32> to vector<2x32xf32>
    %c1_356 = arith.constant 1 : index
    %c0_357 = arith.constant 0 : index
    %c0_358 = arith.constant 0 : index
    %1143 = vector.load %arg9[%c1_356, %c0_357, %c0_358] : memref<4x32x96xf32, #tpu.memory_space<vmem>>, vector<1x32x96xf32>
    %1144 = vector.shape_cast %1143 : vector<1x32x96xf32> to vector<32x96xf32>
    %cst_359 = arith.constant dense<0.000000e+00> : vector<2x96xf32>
    %1145 = tpu.matmul %1142, %1144, %cst_359 {dimension_numbers = #tpu.dot_dimension_numbers<[1], [0], [0], [1], [0, 0, 1, 1], [], []>} : vector<2x32xf32>, vector<32x96xf32>, vector<2x96xf32> -> vector<2x96xf32>
    %c1_360 = arith.constant 1 : index
    %c0_361 = arith.constant 0 : index
    %c0_362 = arith.constant 0 : index
    %1146 = vector.load %arg10[%c1_360, %c0_361, %c0_362] : memref<4x1x96xf32, #tpu.memory_space<vmem>>, vector<1x1x96xf32>
    %1147 = vector.shape_cast %1146 : vector<1x1x96xf32> to vector<1x96xf32>
    %1148 = vector.broadcast %1147 : vector<1x96xf32> to vector<2x96xf32>
    %1149 = arith.addf %1145, %1148 : vector<2x96xf32>
    %1150 = vector.extract_strided_slice %1092 {offsets = [0, 0], sizes = [2, 32], strides = [1, 1]} : vector<2x96xf32> to vector<2x32xf32>
    %1151 = vector.extract_strided_slice %1149 {offsets = [0, 0], sizes = [2, 32], strides = [1, 1]} : vector<2x96xf32> to vector<2x32xf32>
    %1152 = arith.addf %1150, %1151 : vector<2x32xf32>
    %cst_363 = arith.constant 0.000000e+00 : f32
    %1153 = vector.broadcast %cst_363 : f32 to vector<2x32xf32>
    %1154 = arith.subf %1153, %1152 : vector<2x32xf32>
    %1155 = math.exp %1154 : vector<2x32xf32>
    %cst_364 = arith.constant 1.000000e+00 : f32
    %1156 = vector.broadcast %cst_364 : f32 to vector<2x32xf32>
    %1157 = arith.addf %1156, %1155 : vector<2x32xf32>
    %cst_365 = arith.constant 1.000000e+00 : f32
    %1158 = vector.broadcast %cst_365 : f32 to vector<2x32xf32>
    %1159 = arith.divf %1158, %1157 : vector<2x32xf32>
    %1160 = vector.extract_strided_slice %1092 {offsets = [0, 32], sizes = [2, 32], strides = [1, 1]} : vector<2x96xf32> to vector<2x32xf32>
    %1161 = vector.extract_strided_slice %1149 {offsets = [0, 32], sizes = [2, 32], strides = [1, 1]} : vector<2x96xf32> to vector<2x32xf32>
    %1162 = arith.addf %1160, %1161 : vector<2x32xf32>
    %cst_366 = arith.constant 0.000000e+00 : f32
    %1163 = vector.broadcast %cst_366 : f32 to vector<2x32xf32>
    %1164 = arith.subf %1163, %1162 : vector<2x32xf32>
    %1165 = math.exp %1164 : vector<2x32xf32>
    %cst_367 = arith.constant 1.000000e+00 : f32
    %1166 = vector.broadcast %cst_367 : f32 to vector<2x32xf32>
    %1167 = arith.addf %1166, %1165 : vector<2x32xf32>
    %cst_368 = arith.constant 1.000000e+00 : f32
    %1168 = vector.broadcast %cst_368 : f32 to vector<2x32xf32>
    %1169 = arith.divf %1168, %1167 : vector<2x32xf32>
    %1170 = vector.extract_strided_slice %1092 {offsets = [0, 64], sizes = [2, 32], strides = [1, 1]} : vector<2x96xf32> to vector<2x32xf32>
    %1171 = vector.extract_strided_slice %1149 {offsets = [0, 64], sizes = [2, 32], strides = [1, 1]} : vector<2x96xf32> to vector<2x32xf32>
    %1172 = arith.mulf %1159, %1171 : vector<2x32xf32>
    %1173 = arith.addf %1170, %1172 : vector<2x32xf32>
    %1174 = math.tanh %1173 : vector<2x32xf32>
    %cst_369 = arith.constant 1.000000e+00 : f32
    %1175 = vector.broadcast %cst_369 : f32 to vector<2x32xf32>
    %1176 = arith.subf %1175, %1169 : vector<2x32xf32>
    %1177 = arith.mulf %1176, %1174 : vector<2x32xf32>
    %1178 = arith.mulf %1169, %1142 : vector<2x32xf32>
    %1179 = arith.addf %1177, %1178 : vector<2x32xf32>
    %1180 = vector.broadcast %1082 : vector<2x1xf32> to vector<2x32xf32>
    %1181 = arith.mulf %1180, %1179 : vector<2x32xf32>
    %cst_370 = arith.constant 1.000000e+00 : f32
    %1182 = vector.broadcast %cst_370 : f32 to vector<2x1xf32>
    %1183 = arith.subf %1182, %1082 : vector<2x1xf32>
    %1184 = vector.broadcast %1183 : vector<2x1xf32> to vector<2x32xf32>
    %1185 = arith.mulf %1184, %1142 : vector<2x32xf32>
    %1186 = arith.addf %1181, %1185 : vector<2x32xf32>
    %1187 = vector.broadcast %1082 : vector<2x1xf32> to vector<2x32xf32>
    %1188 = arith.mulf %1187, %1179 : vector<2x32xf32>
    %1189 = vector.extract_strided_slice %1068 {offsets = [0, 64], sizes = [2, 32], strides = [1, 1]} : vector<2x128xf32> to vector<2x32xf32>
    %c2_371 = arith.constant 2 : index
    %c0_372 = arith.constant 0 : index
    %c0_373 = arith.constant 0 : index
    %1190 = vector.load %arg9[%c2_371, %c0_372, %c0_373] : memref<4x32x96xf32, #tpu.memory_space<vmem>>, vector<1x32x96xf32>
    %1191 = vector.shape_cast %1190 : vector<1x32x96xf32> to vector<32x96xf32>
    %cst_374 = arith.constant dense<0.000000e+00> : vector<2x96xf32>
    %1192 = tpu.matmul %1189, %1191, %cst_374 {dimension_numbers = #tpu.dot_dimension_numbers<[1], [0], [0], [1], [0, 0, 1, 1], [], []>} : vector<2x32xf32>, vector<32x96xf32>, vector<2x96xf32> -> vector<2x96xf32>
    %c2_375 = arith.constant 2 : index
    %c0_376 = arith.constant 0 : index
    %c0_377 = arith.constant 0 : index
    %1193 = vector.load %arg10[%c2_375, %c0_376, %c0_377] : memref<4x1x96xf32, #tpu.memory_space<vmem>>, vector<1x1x96xf32>
    %1194 = vector.shape_cast %1193 : vector<1x1x96xf32> to vector<1x96xf32>
    %1195 = vector.broadcast %1194 : vector<1x96xf32> to vector<2x96xf32>
    %1196 = arith.addf %1192, %1195 : vector<2x96xf32>
    %1197 = vector.extract_strided_slice %1093 {offsets = [0, 0], sizes = [2, 32], strides = [1, 1]} : vector<2x96xf32> to vector<2x32xf32>
    %1198 = vector.extract_strided_slice %1196 {offsets = [0, 0], sizes = [2, 32], strides = [1, 1]} : vector<2x96xf32> to vector<2x32xf32>
    %1199 = arith.addf %1197, %1198 : vector<2x32xf32>
    %cst_378 = arith.constant 0.000000e+00 : f32
    %1200 = vector.broadcast %cst_378 : f32 to vector<2x32xf32>
    %1201 = arith.subf %1200, %1199 : vector<2x32xf32>
    %1202 = math.exp %1201 : vector<2x32xf32>
    %cst_379 = arith.constant 1.000000e+00 : f32
    %1203 = vector.broadcast %cst_379 : f32 to vector<2x32xf32>
    %1204 = arith.addf %1203, %1202 : vector<2x32xf32>
    %cst_380 = arith.constant 1.000000e+00 : f32
    %1205 = vector.broadcast %cst_380 : f32 to vector<2x32xf32>
    %1206 = arith.divf %1205, %1204 : vector<2x32xf32>
    %1207 = vector.extract_strided_slice %1093 {offsets = [0, 32], sizes = [2, 32], strides = [1, 1]} : vector<2x96xf32> to vector<2x32xf32>
    %1208 = vector.extract_strided_slice %1196 {offsets = [0, 32], sizes = [2, 32], strides = [1, 1]} : vector<2x96xf32> to vector<2x32xf32>
    %1209 = arith.addf %1207, %1208 : vector<2x32xf32>
    %cst_381 = arith.constant 0.000000e+00 : f32
    %1210 = vector.broadcast %cst_381 : f32 to vector<2x32xf32>
    %1211 = arith.subf %1210, %1209 : vector<2x32xf32>
    %1212 = math.exp %1211 : vector<2x32xf32>
    %cst_382 = arith.constant 1.000000e+00 : f32
    %1213 = vector.broadcast %cst_382 : f32 to vector<2x32xf32>
    %1214 = arith.addf %1213, %1212 : vector<2x32xf32>
    %cst_383 = arith.constant 1.000000e+00 : f32
    %1215 = vector.broadcast %cst_383 : f32 to vector<2x32xf32>
    %1216 = arith.divf %1215, %1214 : vector<2x32xf32>
    %1217 = vector.extract_strided_slice %1093 {offsets = [0, 64], sizes = [2, 32], strides = [1, 1]} : vector<2x96xf32> to vector<2x32xf32>
    %1218 = vector.extract_strided_slice %1196 {offsets = [0, 64], sizes = [2, 32], strides = [1, 1]} : vector<2x96xf32> to vector<2x32xf32>
    %1219 = arith.mulf %1206, %1218 : vector<2x32xf32>
    %1220 = arith.addf %1217, %1219 : vector<2x32xf32>
    %1221 = math.tanh %1220 : vector<2x32xf32>
    %cst_384 = arith.constant 1.000000e+00 : f32
    %1222 = vector.broadcast %cst_384 : f32 to vector<2x32xf32>
    %1223 = arith.subf %1222, %1216 : vector<2x32xf32>
    %1224 = arith.mulf %1223, %1221 : vector<2x32xf32>
    %1225 = arith.mulf %1216, %1189 : vector<2x32xf32>
    %1226 = arith.addf %1224, %1225 : vector<2x32xf32>
    %cst_385 = arith.constant 1.000000e+00 : f32
    %1227 = vector.broadcast %cst_385 : f32 to vector<2x32xf32>
    %1228 = arith.mulf %1227, %1226 : vector<2x32xf32>
    %cst_386 = arith.constant 0.000000e+00 : f32
    %1229 = vector.broadcast %cst_386 : f32 to vector<2x32xf32>
    %1230 = arith.mulf %1229, %1189 : vector<2x32xf32>
    %1231 = arith.addf %1228, %1230 : vector<2x32xf32>
    %1232 = vector.broadcast %1086 : vector<2x1xf32> to vector<2x32xf32>
    %1233 = arith.mulf %1232, %1226 : vector<2x32xf32>
    %1234 = vector.extract_strided_slice %1068 {offsets = [0, 96], sizes = [2, 32], strides = [1, 1]} : vector<2x128xf32> to vector<2x32xf32>
    %c3_387 = arith.constant 3 : index
    %c0_388 = arith.constant 0 : index
    %c0_389 = arith.constant 0 : index
    %1235 = vector.load %arg9[%c3_387, %c0_388, %c0_389] : memref<4x32x96xf32, #tpu.memory_space<vmem>>, vector<1x32x96xf32>
    %1236 = vector.shape_cast %1235 : vector<1x32x96xf32> to vector<32x96xf32>
    %cst_390 = arith.constant dense<0.000000e+00> : vector<2x96xf32>
    %1237 = tpu.matmul %1234, %1236, %cst_390 {dimension_numbers = #tpu.dot_dimension_numbers<[1], [0], [0], [1], [0, 0, 1, 1], [], []>} : vector<2x32xf32>, vector<32x96xf32>, vector<2x96xf32> -> vector<2x96xf32>
    %c3_391 = arith.constant 3 : index
    %c0_392 = arith.constant 0 : index
    %c0_393 = arith.constant 0 : index
    %1238 = vector.load %arg10[%c3_391, %c0_392, %c0_393] : memref<4x1x96xf32, #tpu.memory_space<vmem>>, vector<1x1x96xf32>
    %1239 = vector.shape_cast %1238 : vector<1x1x96xf32> to vector<1x96xf32>
    %1240 = vector.broadcast %1239 : vector<1x96xf32> to vector<2x96xf32>
    %1241 = arith.addf %1237, %1240 : vector<2x96xf32>
    %1242 = vector.extract_strided_slice %1094 {offsets = [0, 0], sizes = [2, 32], strides = [1, 1]} : vector<2x96xf32> to vector<2x32xf32>
    %1243 = vector.extract_strided_slice %1241 {offsets = [0, 0], sizes = [2, 32], strides = [1, 1]} : vector<2x96xf32> to vector<2x32xf32>
    %1244 = arith.addf %1242, %1243 : vector<2x32xf32>
    %cst_394 = arith.constant 0.000000e+00 : f32
    %1245 = vector.broadcast %cst_394 : f32 to vector<2x32xf32>
    %1246 = arith.subf %1245, %1244 : vector<2x32xf32>
    %1247 = math.exp %1246 : vector<2x32xf32>
    %cst_395 = arith.constant 1.000000e+00 : f32
    %1248 = vector.broadcast %cst_395 : f32 to vector<2x32xf32>
    %1249 = arith.addf %1248, %1247 : vector<2x32xf32>
    %cst_396 = arith.constant 1.000000e+00 : f32
    %1250 = vector.broadcast %cst_396 : f32 to vector<2x32xf32>
    %1251 = arith.divf %1250, %1249 : vector<2x32xf32>
    %1252 = vector.extract_strided_slice %1094 {offsets = [0, 32], sizes = [2, 32], strides = [1, 1]} : vector<2x96xf32> to vector<2x32xf32>
    %1253 = vector.extract_strided_slice %1241 {offsets = [0, 32], sizes = [2, 32], strides = [1, 1]} : vector<2x96xf32> to vector<2x32xf32>
    %1254 = arith.addf %1252, %1253 : vector<2x32xf32>
    %cst_397 = arith.constant 0.000000e+00 : f32
    %1255 = vector.broadcast %cst_397 : f32 to vector<2x32xf32>
    %1256 = arith.subf %1255, %1254 : vector<2x32xf32>
    %1257 = math.exp %1256 : vector<2x32xf32>
    %cst_398 = arith.constant 1.000000e+00 : f32
    %1258 = vector.broadcast %cst_398 : f32 to vector<2x32xf32>
    %1259 = arith.addf %1258, %1257 : vector<2x32xf32>
    %cst_399 = arith.constant 1.000000e+00 : f32
    %1260 = vector.broadcast %cst_399 : f32 to vector<2x32xf32>
    %1261 = arith.divf %1260, %1259 : vector<2x32xf32>
    %1262 = vector.extract_strided_slice %1094 {offsets = [0, 64], sizes = [2, 32], strides = [1, 1]} : vector<2x96xf32> to vector<2x32xf32>
    %1263 = vector.extract_strided_slice %1241 {offsets = [0, 64], sizes = [2, 32], strides = [1, 1]} : vector<2x96xf32> to vector<2x32xf32>
    %1264 = arith.mulf %1251, %1263 : vector<2x32xf32>
    %1265 = arith.addf %1262, %1264 : vector<2x32xf32>
    %1266 = math.tanh %1265 : vector<2x32xf32>
    %cst_400 = arith.constant 1.000000e+00 : f32
    %1267 = vector.broadcast %cst_400 : f32 to vector<2x32xf32>
    %1268 = arith.subf %1267, %1261 : vector<2x32xf32>
    %1269 = arith.mulf %1268, %1266 : vector<2x32xf32>
    %1270 = arith.mulf %1261, %1234 : vector<2x32xf32>
    %1271 = arith.addf %1269, %1270 : vector<2x32xf32>
    %cst_401 = arith.constant 1.000000e+00 : f32
    %1272 = vector.broadcast %cst_401 : f32 to vector<2x32xf32>
    %1273 = arith.mulf %1272, %1271 : vector<2x32xf32>
    %cst_402 = arith.constant 0.000000e+00 : f32
    %1274 = vector.broadcast %cst_402 : f32 to vector<2x32xf32>
    %1275 = arith.mulf %1274, %1234 : vector<2x32xf32>
    %1276 = arith.addf %1273, %1275 : vector<2x32xf32>
    %1277 = vector.broadcast %1090 : vector<2x1xf32> to vector<2x32xf32>
    %1278 = arith.mulf %1277, %1271 : vector<2x32xf32>
    %1279 = tpu.concatenate %1139, %1186, %1231, %1276 in 1 : vector<2x32xf32>, vector<2x32xf32>, vector<2x32xf32>, vector<2x32xf32> -> vector<2x128xf32>
    %1280 = tpu.concatenate %1141, %1188, %1233, %1278 in 1 : vector<2x32xf32>, vector<2x32xf32>, vector<2x32xf32>, vector<2x32xf32> -> vector<2x128xf32>
    %1281 = arith.addf %1070, %1280 : vector<2x128xf32>
    %1282 = vector.extract_strided_slice %5 {offsets = [12, 0], sizes = [2, 192], strides = [1, 1]} : vector<16x192xf32> to vector<2x192xf32>
    %1283 = vector.extract_strided_slice %5 {offsets = [2, 0], sizes = [2, 192], strides = [1, 1]} : vector<16x192xf32> to vector<2x192xf32>
    %1284 = vector.extract_strided_slice %11 {offsets = [12, 0], sizes = [2, 192], strides = [1, 1]} : vector<16x192xf32> to vector<2x192xf32>
    %1285 = vector.extract_strided_slice %11 {offsets = [2, 0], sizes = [2, 192], strides = [1, 1]} : vector<16x192xf32> to vector<2x192xf32>
    %c6_i32_403 = arith.constant 6 : i32
    %1286 = vector.broadcast %c6_i32_403 : i32 to vector<2x1xi32>
    %1287 = arith.cmpi sgt, %12, %1286 : vector<2x1xi32>
    %1288 = arith.extui %1287 : vector<2x1xi1> to vector<2x1xi32>
    %1289 = arith.sitofp %1288 : vector<2x1xi32> to vector<2x1xf32>
    %c1_i32_404 = arith.constant 1 : i32
    %1290 = vector.broadcast %c1_i32_404 : i32 to vector<2x1xi32>
    %1291 = arith.cmpi sgt, %12, %1290 : vector<2x1xi32>
    %1292 = arith.extui %1291 : vector<2x1xi1> to vector<2x1xi32>
    %1293 = arith.sitofp %1292 : vector<2x1xi32> to vector<2x1xf32>
    %c6_i32_405 = arith.constant 6 : i32
    %1294 = vector.broadcast %c6_i32_405 : i32 to vector<2x1xi32>
    %1295 = arith.cmpi sgt, %13, %1294 : vector<2x1xi32>
    %1296 = arith.extui %1295 : vector<2x1xi1> to vector<2x1xi32>
    %1297 = arith.sitofp %1296 : vector<2x1xi32> to vector<2x1xf32>
    %c1_i32_406 = arith.constant 1 : i32
    %1298 = vector.broadcast %c1_i32_406 : i32 to vector<2x1xi32>
    %1299 = arith.cmpi sgt, %13, %1298 : vector<2x1xi32>
    %1300 = arith.extui %1299 : vector<2x1xi1> to vector<2x1xi32>
    %1301 = arith.sitofp %1300 : vector<2x1xi32> to vector<2x1xf32>
    %1302 = vector.extract_strided_slice %1282 {offsets = [0, 0], sizes = [2, 96], strides = [1, 1]} : vector<2x192xf32> to vector<2x96xf32>
    %1303 = vector.extract_strided_slice %1283 {offsets = [0, 96], sizes = [2, 96], strides = [1, 1]} : vector<2x192xf32> to vector<2x96xf32>
    %1304 = vector.extract_strided_slice %1284 {offsets = [0, 0], sizes = [2, 96], strides = [1, 1]} : vector<2x192xf32> to vector<2x96xf32>
    %1305 = vector.extract_strided_slice %1285 {offsets = [0, 96], sizes = [2, 96], strides = [1, 1]} : vector<2x192xf32> to vector<2x96xf32>
    %1306 = vector.extract_strided_slice %1279 {offsets = [0, 0], sizes = [2, 32], strides = [1, 1]} : vector<2x128xf32> to vector<2x32xf32>
    %c0_407 = arith.constant 0 : index
    %c0_408 = arith.constant 0 : index
    %c0_409 = arith.constant 0 : index
    %1307 = vector.load %arg9[%c0_407, %c0_408, %c0_409] : memref<4x32x96xf32, #tpu.memory_space<vmem>>, vector<1x32x96xf32>
    %1308 = vector.shape_cast %1307 : vector<1x32x96xf32> to vector<32x96xf32>
    %cst_410 = arith.constant dense<0.000000e+00> : vector<2x96xf32>
    %1309 = tpu.matmul %1306, %1308, %cst_410 {dimension_numbers = #tpu.dot_dimension_numbers<[1], [0], [0], [1], [0, 0, 1, 1], [], []>} : vector<2x32xf32>, vector<32x96xf32>, vector<2x96xf32> -> vector<2x96xf32>
    %c0_411 = arith.constant 0 : index
    %c0_412 = arith.constant 0 : index
    %c0_413 = arith.constant 0 : index
    %1310 = vector.load %arg10[%c0_411, %c0_412, %c0_413] : memref<4x1x96xf32, #tpu.memory_space<vmem>>, vector<1x1x96xf32>
    %1311 = vector.shape_cast %1310 : vector<1x1x96xf32> to vector<1x96xf32>
    %1312 = vector.broadcast %1311 : vector<1x96xf32> to vector<2x96xf32>
    %1313 = arith.addf %1309, %1312 : vector<2x96xf32>
    %1314 = vector.extract_strided_slice %1302 {offsets = [0, 0], sizes = [2, 32], strides = [1, 1]} : vector<2x96xf32> to vector<2x32xf32>
    %1315 = vector.extract_strided_slice %1313 {offsets = [0, 0], sizes = [2, 32], strides = [1, 1]} : vector<2x96xf32> to vector<2x32xf32>
    %1316 = arith.addf %1314, %1315 : vector<2x32xf32>
    %cst_414 = arith.constant 0.000000e+00 : f32
    %1317 = vector.broadcast %cst_414 : f32 to vector<2x32xf32>
    %1318 = arith.subf %1317, %1316 : vector<2x32xf32>
    %1319 = math.exp %1318 : vector<2x32xf32>
    %cst_415 = arith.constant 1.000000e+00 : f32
    %1320 = vector.broadcast %cst_415 : f32 to vector<2x32xf32>
    %1321 = arith.addf %1320, %1319 : vector<2x32xf32>
    %cst_416 = arith.constant 1.000000e+00 : f32
    %1322 = vector.broadcast %cst_416 : f32 to vector<2x32xf32>
    %1323 = arith.divf %1322, %1321 : vector<2x32xf32>
    %1324 = vector.extract_strided_slice %1302 {offsets = [0, 32], sizes = [2, 32], strides = [1, 1]} : vector<2x96xf32> to vector<2x32xf32>
    %1325 = vector.extract_strided_slice %1313 {offsets = [0, 32], sizes = [2, 32], strides = [1, 1]} : vector<2x96xf32> to vector<2x32xf32>
    %1326 = arith.addf %1324, %1325 : vector<2x32xf32>
    %cst_417 = arith.constant 0.000000e+00 : f32
    %1327 = vector.broadcast %cst_417 : f32 to vector<2x32xf32>
    %1328 = arith.subf %1327, %1326 : vector<2x32xf32>
    %1329 = math.exp %1328 : vector<2x32xf32>
    %cst_418 = arith.constant 1.000000e+00 : f32
    %1330 = vector.broadcast %cst_418 : f32 to vector<2x32xf32>
    %1331 = arith.addf %1330, %1329 : vector<2x32xf32>
    %cst_419 = arith.constant 1.000000e+00 : f32
    %1332 = vector.broadcast %cst_419 : f32 to vector<2x32xf32>
    %1333 = arith.divf %1332, %1331 : vector<2x32xf32>
    %1334 = vector.extract_strided_slice %1302 {offsets = [0, 64], sizes = [2, 32], strides = [1, 1]} : vector<2x96xf32> to vector<2x32xf32>
    %1335 = vector.extract_strided_slice %1313 {offsets = [0, 64], sizes = [2, 32], strides = [1, 1]} : vector<2x96xf32> to vector<2x32xf32>
    %1336 = arith.mulf %1323, %1335 : vector<2x32xf32>
    %1337 = arith.addf %1334, %1336 : vector<2x32xf32>
    %1338 = math.tanh %1337 : vector<2x32xf32>
    %cst_420 = arith.constant 1.000000e+00 : f32
    %1339 = vector.broadcast %cst_420 : f32 to vector<2x32xf32>
    %1340 = arith.subf %1339, %1333 : vector<2x32xf32>
    %1341 = arith.mulf %1340, %1338 : vector<2x32xf32>
    %1342 = arith.mulf %1333, %1306 : vector<2x32xf32>
    %1343 = arith.addf %1341, %1342 : vector<2x32xf32>
    %1344 = vector.broadcast %1289 : vector<2x1xf32> to vector<2x32xf32>
    %1345 = arith.mulf %1344, %1343 : vector<2x32xf32>
    %cst_421 = arith.constant 1.000000e+00 : f32
    %1346 = vector.broadcast %cst_421 : f32 to vector<2x1xf32>
    %1347 = arith.subf %1346, %1289 : vector<2x1xf32>
    %1348 = vector.broadcast %1347 : vector<2x1xf32> to vector<2x32xf32>
    %1349 = arith.mulf %1348, %1306 : vector<2x32xf32>
    %1350 = arith.addf %1345, %1349 : vector<2x32xf32>
    %1351 = vector.broadcast %1289 : vector<2x1xf32> to vector<2x32xf32>
    %1352 = arith.mulf %1351, %1343 : vector<2x32xf32>
    %1353 = vector.extract_strided_slice %1279 {offsets = [0, 32], sizes = [2, 32], strides = [1, 1]} : vector<2x128xf32> to vector<2x32xf32>
    %c1_422 = arith.constant 1 : index
    %c0_423 = arith.constant 0 : index
    %c0_424 = arith.constant 0 : index
    %1354 = vector.load %arg9[%c1_422, %c0_423, %c0_424] : memref<4x32x96xf32, #tpu.memory_space<vmem>>, vector<1x32x96xf32>
    %1355 = vector.shape_cast %1354 : vector<1x32x96xf32> to vector<32x96xf32>
    %cst_425 = arith.constant dense<0.000000e+00> : vector<2x96xf32>
    %1356 = tpu.matmul %1353, %1355, %cst_425 {dimension_numbers = #tpu.dot_dimension_numbers<[1], [0], [0], [1], [0, 0, 1, 1], [], []>} : vector<2x32xf32>, vector<32x96xf32>, vector<2x96xf32> -> vector<2x96xf32>
    %c1_426 = arith.constant 1 : index
    %c0_427 = arith.constant 0 : index
    %c0_428 = arith.constant 0 : index
    %1357 = vector.load %arg10[%c1_426, %c0_427, %c0_428] : memref<4x1x96xf32, #tpu.memory_space<vmem>>, vector<1x1x96xf32>
    %1358 = vector.shape_cast %1357 : vector<1x1x96xf32> to vector<1x96xf32>
    %1359 = vector.broadcast %1358 : vector<1x96xf32> to vector<2x96xf32>
    %1360 = arith.addf %1356, %1359 : vector<2x96xf32>
    %1361 = vector.extract_strided_slice %1303 {offsets = [0, 0], sizes = [2, 32], strides = [1, 1]} : vector<2x96xf32> to vector<2x32xf32>
    %1362 = vector.extract_strided_slice %1360 {offsets = [0, 0], sizes = [2, 32], strides = [1, 1]} : vector<2x96xf32> to vector<2x32xf32>
    %1363 = arith.addf %1361, %1362 : vector<2x32xf32>
    %cst_429 = arith.constant 0.000000e+00 : f32
    %1364 = vector.broadcast %cst_429 : f32 to vector<2x32xf32>
    %1365 = arith.subf %1364, %1363 : vector<2x32xf32>
    %1366 = math.exp %1365 : vector<2x32xf32>
    %cst_430 = arith.constant 1.000000e+00 : f32
    %1367 = vector.broadcast %cst_430 : f32 to vector<2x32xf32>
    %1368 = arith.addf %1367, %1366 : vector<2x32xf32>
    %cst_431 = arith.constant 1.000000e+00 : f32
    %1369 = vector.broadcast %cst_431 : f32 to vector<2x32xf32>
    %1370 = arith.divf %1369, %1368 : vector<2x32xf32>
    %1371 = vector.extract_strided_slice %1303 {offsets = [0, 32], sizes = [2, 32], strides = [1, 1]} : vector<2x96xf32> to vector<2x32xf32>
    %1372 = vector.extract_strided_slice %1360 {offsets = [0, 32], sizes = [2, 32], strides = [1, 1]} : vector<2x96xf32> to vector<2x32xf32>
    %1373 = arith.addf %1371, %1372 : vector<2x32xf32>
    %cst_432 = arith.constant 0.000000e+00 : f32
    %1374 = vector.broadcast %cst_432 : f32 to vector<2x32xf32>
    %1375 = arith.subf %1374, %1373 : vector<2x32xf32>
    %1376 = math.exp %1375 : vector<2x32xf32>
    %cst_433 = arith.constant 1.000000e+00 : f32
    %1377 = vector.broadcast %cst_433 : f32 to vector<2x32xf32>
    %1378 = arith.addf %1377, %1376 : vector<2x32xf32>
    %cst_434 = arith.constant 1.000000e+00 : f32
    %1379 = vector.broadcast %cst_434 : f32 to vector<2x32xf32>
    %1380 = arith.divf %1379, %1378 : vector<2x32xf32>
    %1381 = vector.extract_strided_slice %1303 {offsets = [0, 64], sizes = [2, 32], strides = [1, 1]} : vector<2x96xf32> to vector<2x32xf32>
    %1382 = vector.extract_strided_slice %1360 {offsets = [0, 64], sizes = [2, 32], strides = [1, 1]} : vector<2x96xf32> to vector<2x32xf32>
    %1383 = arith.mulf %1370, %1382 : vector<2x32xf32>
    %1384 = arith.addf %1381, %1383 : vector<2x32xf32>
    %1385 = math.tanh %1384 : vector<2x32xf32>
    %cst_435 = arith.constant 1.000000e+00 : f32
    %1386 = vector.broadcast %cst_435 : f32 to vector<2x32xf32>
    %1387 = arith.subf %1386, %1380 : vector<2x32xf32>
    %1388 = arith.mulf %1387, %1385 : vector<2x32xf32>
    %1389 = arith.mulf %1380, %1353 : vector<2x32xf32>
    %1390 = arith.addf %1388, %1389 : vector<2x32xf32>
    %1391 = vector.broadcast %1293 : vector<2x1xf32> to vector<2x32xf32>
    %1392 = arith.mulf %1391, %1390 : vector<2x32xf32>
    %cst_436 = arith.constant 1.000000e+00 : f32
    %1393 = vector.broadcast %cst_436 : f32 to vector<2x1xf32>
    %1394 = arith.subf %1393, %1293 : vector<2x1xf32>
    %1395 = vector.broadcast %1394 : vector<2x1xf32> to vector<2x32xf32>
    %1396 = arith.mulf %1395, %1353 : vector<2x32xf32>
    %1397 = arith.addf %1392, %1396 : vector<2x32xf32>
    %1398 = vector.broadcast %1293 : vector<2x1xf32> to vector<2x32xf32>
    %1399 = arith.mulf %1398, %1390 : vector<2x32xf32>
    %1400 = vector.extract_strided_slice %1279 {offsets = [0, 64], sizes = [2, 32], strides = [1, 1]} : vector<2x128xf32> to vector<2x32xf32>
    %c2_437 = arith.constant 2 : index
    %c0_438 = arith.constant 0 : index
    %c0_439 = arith.constant 0 : index
    %1401 = vector.load %arg9[%c2_437, %c0_438, %c0_439] : memref<4x32x96xf32, #tpu.memory_space<vmem>>, vector<1x32x96xf32>
    %1402 = vector.shape_cast %1401 : vector<1x32x96xf32> to vector<32x96xf32>
    %cst_440 = arith.constant dense<0.000000e+00> : vector<2x96xf32>
    %1403 = tpu.matmul %1400, %1402, %cst_440 {dimension_numbers = #tpu.dot_dimension_numbers<[1], [0], [0], [1], [0, 0, 1, 1], [], []>} : vector<2x32xf32>, vector<32x96xf32>, vector<2x96xf32> -> vector<2x96xf32>
    %c2_441 = arith.constant 2 : index
    %c0_442 = arith.constant 0 : index
    %c0_443 = arith.constant 0 : index
    %1404 = vector.load %arg10[%c2_441, %c0_442, %c0_443] : memref<4x1x96xf32, #tpu.memory_space<vmem>>, vector<1x1x96xf32>
    %1405 = vector.shape_cast %1404 : vector<1x1x96xf32> to vector<1x96xf32>
    %1406 = vector.broadcast %1405 : vector<1x96xf32> to vector<2x96xf32>
    %1407 = arith.addf %1403, %1406 : vector<2x96xf32>
    %1408 = vector.extract_strided_slice %1304 {offsets = [0, 0], sizes = [2, 32], strides = [1, 1]} : vector<2x96xf32> to vector<2x32xf32>
    %1409 = vector.extract_strided_slice %1407 {offsets = [0, 0], sizes = [2, 32], strides = [1, 1]} : vector<2x96xf32> to vector<2x32xf32>
    %1410 = arith.addf %1408, %1409 : vector<2x32xf32>
    %cst_444 = arith.constant 0.000000e+00 : f32
    %1411 = vector.broadcast %cst_444 : f32 to vector<2x32xf32>
    %1412 = arith.subf %1411, %1410 : vector<2x32xf32>
    %1413 = math.exp %1412 : vector<2x32xf32>
    %cst_445 = arith.constant 1.000000e+00 : f32
    %1414 = vector.broadcast %cst_445 : f32 to vector<2x32xf32>
    %1415 = arith.addf %1414, %1413 : vector<2x32xf32>
    %cst_446 = arith.constant 1.000000e+00 : f32
    %1416 = vector.broadcast %cst_446 : f32 to vector<2x32xf32>
    %1417 = arith.divf %1416, %1415 : vector<2x32xf32>
    %1418 = vector.extract_strided_slice %1304 {offsets = [0, 32], sizes = [2, 32], strides = [1, 1]} : vector<2x96xf32> to vector<2x32xf32>
    %1419 = vector.extract_strided_slice %1407 {offsets = [0, 32], sizes = [2, 32], strides = [1, 1]} : vector<2x96xf32> to vector<2x32xf32>
    %1420 = arith.addf %1418, %1419 : vector<2x32xf32>
    %cst_447 = arith.constant 0.000000e+00 : f32
    %1421 = vector.broadcast %cst_447 : f32 to vector<2x32xf32>
    %1422 = arith.subf %1421, %1420 : vector<2x32xf32>
    %1423 = math.exp %1422 : vector<2x32xf32>
    %cst_448 = arith.constant 1.000000e+00 : f32
    %1424 = vector.broadcast %cst_448 : f32 to vector<2x32xf32>
    %1425 = arith.addf %1424, %1423 : vector<2x32xf32>
    %cst_449 = arith.constant 1.000000e+00 : f32
    %1426 = vector.broadcast %cst_449 : f32 to vector<2x32xf32>
    %1427 = arith.divf %1426, %1425 : vector<2x32xf32>
    %1428 = vector.extract_strided_slice %1304 {offsets = [0, 64], sizes = [2, 32], strides = [1, 1]} : vector<2x96xf32> to vector<2x32xf32>
    %1429 = vector.extract_strided_slice %1407 {offsets = [0, 64], sizes = [2, 32], strides = [1, 1]} : vector<2x96xf32> to vector<2x32xf32>
    %1430 = arith.mulf %1417, %1429 : vector<2x32xf32>
    %1431 = arith.addf %1428, %1430 : vector<2x32xf32>
    %1432 = math.tanh %1431 : vector<2x32xf32>
    %cst_450 = arith.constant 1.000000e+00 : f32
    %1433 = vector.broadcast %cst_450 : f32 to vector<2x32xf32>
    %1434 = arith.subf %1433, %1427 : vector<2x32xf32>
    %1435 = arith.mulf %1434, %1432 : vector<2x32xf32>
    %1436 = arith.mulf %1427, %1400 : vector<2x32xf32>
    %1437 = arith.addf %1435, %1436 : vector<2x32xf32>
    %cst_451 = arith.constant 1.000000e+00 : f32
    %1438 = vector.broadcast %cst_451 : f32 to vector<2x32xf32>
    %1439 = arith.mulf %1438, %1437 : vector<2x32xf32>
    %cst_452 = arith.constant 0.000000e+00 : f32
    %1440 = vector.broadcast %cst_452 : f32 to vector<2x32xf32>
    %1441 = arith.mulf %1440, %1400 : vector<2x32xf32>
    %1442 = arith.addf %1439, %1441 : vector<2x32xf32>
    %1443 = vector.broadcast %1297 : vector<2x1xf32> to vector<2x32xf32>
    %1444 = arith.mulf %1443, %1437 : vector<2x32xf32>
    %1445 = vector.extract_strided_slice %1279 {offsets = [0, 96], sizes = [2, 32], strides = [1, 1]} : vector<2x128xf32> to vector<2x32xf32>
    %c3_453 = arith.constant 3 : index
    %c0_454 = arith.constant 0 : index
    %c0_455 = arith.constant 0 : index
    %1446 = vector.load %arg9[%c3_453, %c0_454, %c0_455] : memref<4x32x96xf32, #tpu.memory_space<vmem>>, vector<1x32x96xf32>
    %1447 = vector.shape_cast %1446 : vector<1x32x96xf32> to vector<32x96xf32>
    %cst_456 = arith.constant dense<0.000000e+00> : vector<2x96xf32>
    %1448 = tpu.matmul %1445, %1447, %cst_456 {dimension_numbers = #tpu.dot_dimension_numbers<[1], [0], [0], [1], [0, 0, 1, 1], [], []>} : vector<2x32xf32>, vector<32x96xf32>, vector<2x96xf32> -> vector<2x96xf32>
    %c3_457 = arith.constant 3 : index
    %c0_458 = arith.constant 0 : index
    %c0_459 = arith.constant 0 : index
    %1449 = vector.load %arg10[%c3_457, %c0_458, %c0_459] : memref<4x1x96xf32, #tpu.memory_space<vmem>>, vector<1x1x96xf32>
    %1450 = vector.shape_cast %1449 : vector<1x1x96xf32> to vector<1x96xf32>
    %1451 = vector.broadcast %1450 : vector<1x96xf32> to vector<2x96xf32>
    %1452 = arith.addf %1448, %1451 : vector<2x96xf32>
    %1453 = vector.extract_strided_slice %1305 {offsets = [0, 0], sizes = [2, 32], strides = [1, 1]} : vector<2x96xf32> to vector<2x32xf32>
    %1454 = vector.extract_strided_slice %1452 {offsets = [0, 0], sizes = [2, 32], strides = [1, 1]} : vector<2x96xf32> to vector<2x32xf32>
    %1455 = arith.addf %1453, %1454 : vector<2x32xf32>
    %cst_460 = arith.constant 0.000000e+00 : f32
    %1456 = vector.broadcast %cst_460 : f32 to vector<2x32xf32>
    %1457 = arith.subf %1456, %1455 : vector<2x32xf32>
    %1458 = math.exp %1457 : vector<2x32xf32>
    %cst_461 = arith.constant 1.000000e+00 : f32
    %1459 = vector.broadcast %cst_461 : f32 to vector<2x32xf32>
    %1460 = arith.addf %1459, %1458 : vector<2x32xf32>
    %cst_462 = arith.constant 1.000000e+00 : f32
    %1461 = vector.broadcast %cst_462 : f32 to vector<2x32xf32>
    %1462 = arith.divf %1461, %1460 : vector<2x32xf32>
    %1463 = vector.extract_strided_slice %1305 {offsets = [0, 32], sizes = [2, 32], strides = [1, 1]} : vector<2x96xf32> to vector<2x32xf32>
    %1464 = vector.extract_strided_slice %1452 {offsets = [0, 32], sizes = [2, 32], strides = [1, 1]} : vector<2x96xf32> to vector<2x32xf32>
    %1465 = arith.addf %1463, %1464 : vector<2x32xf32>
    %cst_463 = arith.constant 0.000000e+00 : f32
    %1466 = vector.broadcast %cst_463 : f32 to vector<2x32xf32>
    %1467 = arith.subf %1466, %1465 : vector<2x32xf32>
    %1468 = math.exp %1467 : vector<2x32xf32>
    %cst_464 = arith.constant 1.000000e+00 : f32
    %1469 = vector.broadcast %cst_464 : f32 to vector<2x32xf32>
    %1470 = arith.addf %1469, %1468 : vector<2x32xf32>
    %cst_465 = arith.constant 1.000000e+00 : f32
    %1471 = vector.broadcast %cst_465 : f32 to vector<2x32xf32>
    %1472 = arith.divf %1471, %1470 : vector<2x32xf32>
    %1473 = vector.extract_strided_slice %1305 {offsets = [0, 64], sizes = [2, 32], strides = [1, 1]} : vector<2x96xf32> to vector<2x32xf32>
    %1474 = vector.extract_strided_slice %1452 {offsets = [0, 64], sizes = [2, 32], strides = [1, 1]} : vector<2x96xf32> to vector<2x32xf32>
    %1475 = arith.mulf %1462, %1474 : vector<2x32xf32>
    %1476 = arith.addf %1473, %1475 : vector<2x32xf32>
    %1477 = math.tanh %1476 : vector<2x32xf32>
    %cst_466 = arith.constant 1.000000e+00 : f32
    %1478 = vector.broadcast %cst_466 : f32 to vector<2x32xf32>
    %1479 = arith.subf %1478, %1472 : vector<2x32xf32>
    %1480 = arith.mulf %1479, %1477 : vector<2x32xf32>
    %1481 = arith.mulf %1472, %1445 : vector<2x32xf32>
    %1482 = arith.addf %1480, %1481 : vector<2x32xf32>
    %cst_467 = arith.constant 1.000000e+00 : f32
    %1483 = vector.broadcast %cst_467 : f32 to vector<2x32xf32>
    %1484 = arith.mulf %1483, %1482 : vector<2x32xf32>
    %cst_468 = arith.constant 0.000000e+00 : f32
    %1485 = vector.broadcast %cst_468 : f32 to vector<2x32xf32>
    %1486 = arith.mulf %1485, %1445 : vector<2x32xf32>
    %1487 = arith.addf %1484, %1486 : vector<2x32xf32>
    %1488 = vector.broadcast %1301 : vector<2x1xf32> to vector<2x32xf32>
    %1489 = arith.mulf %1488, %1482 : vector<2x32xf32>
    %1490 = tpu.concatenate %1350, %1397, %1442, %1487 in 1 : vector<2x32xf32>, vector<2x32xf32>, vector<2x32xf32>, vector<2x32xf32> -> vector<2x128xf32>
    %1491 = tpu.concatenate %1352, %1399, %1444, %1489 in 1 : vector<2x32xf32>, vector<2x32xf32>, vector<2x32xf32>, vector<2x32xf32> -> vector<2x128xf32>
    %1492 = arith.addf %1281, %1491 : vector<2x128xf32>
    %1493 = vector.extract_strided_slice %5 {offsets = [14, 0], sizes = [2, 192], strides = [1, 1]} : vector<16x192xf32> to vector<2x192xf32>
    %1494 = vector.extract_strided_slice %5 {offsets = [0, 0], sizes = [2, 192], strides = [1, 1]} : vector<16x192xf32> to vector<2x192xf32>
    %1495 = vector.extract_strided_slice %11 {offsets = [14, 0], sizes = [2, 192], strides = [1, 1]} : vector<16x192xf32> to vector<2x192xf32>
    %1496 = vector.extract_strided_slice %11 {offsets = [0, 0], sizes = [2, 192], strides = [1, 1]} : vector<16x192xf32> to vector<2x192xf32>
    %c7_i32_469 = arith.constant 7 : i32
    %1497 = vector.broadcast %c7_i32_469 : i32 to vector<2x1xi32>
    %1498 = arith.cmpi sgt, %12, %1497 : vector<2x1xi32>
    %1499 = arith.extui %1498 : vector<2x1xi1> to vector<2x1xi32>
    %1500 = arith.sitofp %1499 : vector<2x1xi32> to vector<2x1xf32>
    %c0_i32_470 = arith.constant 0 : i32
    %1501 = vector.broadcast %c0_i32_470 : i32 to vector<2x1xi32>
    %1502 = arith.cmpi sgt, %12, %1501 : vector<2x1xi32>
    %1503 = arith.extui %1502 : vector<2x1xi1> to vector<2x1xi32>
    %1504 = arith.sitofp %1503 : vector<2x1xi32> to vector<2x1xf32>
    %c7_i32_471 = arith.constant 7 : i32
    %1505 = vector.broadcast %c7_i32_471 : i32 to vector<2x1xi32>
    %1506 = arith.cmpi sgt, %13, %1505 : vector<2x1xi32>
    %1507 = arith.extui %1506 : vector<2x1xi1> to vector<2x1xi32>
    %1508 = arith.sitofp %1507 : vector<2x1xi32> to vector<2x1xf32>
    %c0_i32_472 = arith.constant 0 : i32
    %1509 = vector.broadcast %c0_i32_472 : i32 to vector<2x1xi32>
    %1510 = arith.cmpi sgt, %13, %1509 : vector<2x1xi32>
    %1511 = arith.extui %1510 : vector<2x1xi1> to vector<2x1xi32>
    %1512 = arith.sitofp %1511 : vector<2x1xi32> to vector<2x1xf32>
    %1513 = vector.extract_strided_slice %1493 {offsets = [0, 0], sizes = [2, 96], strides = [1, 1]} : vector<2x192xf32> to vector<2x96xf32>
    %1514 = vector.extract_strided_slice %1494 {offsets = [0, 96], sizes = [2, 96], strides = [1, 1]} : vector<2x192xf32> to vector<2x96xf32>
    %1515 = vector.extract_strided_slice %1495 {offsets = [0, 0], sizes = [2, 96], strides = [1, 1]} : vector<2x192xf32> to vector<2x96xf32>
    %1516 = vector.extract_strided_slice %1496 {offsets = [0, 96], sizes = [2, 96], strides = [1, 1]} : vector<2x192xf32> to vector<2x96xf32>
    %1517 = vector.extract_strided_slice %1490 {offsets = [0, 0], sizes = [2, 32], strides = [1, 1]} : vector<2x128xf32> to vector<2x32xf32>
    %c0_473 = arith.constant 0 : index
    %c0_474 = arith.constant 0 : index
    %c0_475 = arith.constant 0 : index
    %1518 = vector.load %arg9[%c0_473, %c0_474, %c0_475] : memref<4x32x96xf32, #tpu.memory_space<vmem>>, vector<1x32x96xf32>
    %1519 = vector.shape_cast %1518 : vector<1x32x96xf32> to vector<32x96xf32>
    %cst_476 = arith.constant dense<0.000000e+00> : vector<2x96xf32>
    %1520 = tpu.matmul %1517, %1519, %cst_476 {dimension_numbers = #tpu.dot_dimension_numbers<[1], [0], [0], [1], [0, 0, 1, 1], [], []>} : vector<2x32xf32>, vector<32x96xf32>, vector<2x96xf32> -> vector<2x96xf32>
    %c0_477 = arith.constant 0 : index
    %c0_478 = arith.constant 0 : index
    %c0_479 = arith.constant 0 : index
    %1521 = vector.load %arg10[%c0_477, %c0_478, %c0_479] : memref<4x1x96xf32, #tpu.memory_space<vmem>>, vector<1x1x96xf32>
    %1522 = vector.shape_cast %1521 : vector<1x1x96xf32> to vector<1x96xf32>
    %1523 = vector.broadcast %1522 : vector<1x96xf32> to vector<2x96xf32>
    %1524 = arith.addf %1520, %1523 : vector<2x96xf32>
    %1525 = vector.extract_strided_slice %1513 {offsets = [0, 0], sizes = [2, 32], strides = [1, 1]} : vector<2x96xf32> to vector<2x32xf32>
    %1526 = vector.extract_strided_slice %1524 {offsets = [0, 0], sizes = [2, 32], strides = [1, 1]} : vector<2x96xf32> to vector<2x32xf32>
    %1527 = arith.addf %1525, %1526 : vector<2x32xf32>
    %cst_480 = arith.constant 0.000000e+00 : f32
    %1528 = vector.broadcast %cst_480 : f32 to vector<2x32xf32>
    %1529 = arith.subf %1528, %1527 : vector<2x32xf32>
    %1530 = math.exp %1529 : vector<2x32xf32>
    %cst_481 = arith.constant 1.000000e+00 : f32
    %1531 = vector.broadcast %cst_481 : f32 to vector<2x32xf32>
    %1532 = arith.addf %1531, %1530 : vector<2x32xf32>
    %cst_482 = arith.constant 1.000000e+00 : f32
    %1533 = vector.broadcast %cst_482 : f32 to vector<2x32xf32>
    %1534 = arith.divf %1533, %1532 : vector<2x32xf32>
    %1535 = vector.extract_strided_slice %1513 {offsets = [0, 32], sizes = [2, 32], strides = [1, 1]} : vector<2x96xf32> to vector<2x32xf32>
    %1536 = vector.extract_strided_slice %1524 {offsets = [0, 32], sizes = [2, 32], strides = [1, 1]} : vector<2x96xf32> to vector<2x32xf32>
    %1537 = arith.addf %1535, %1536 : vector<2x32xf32>
    %cst_483 = arith.constant 0.000000e+00 : f32
    %1538 = vector.broadcast %cst_483 : f32 to vector<2x32xf32>
    %1539 = arith.subf %1538, %1537 : vector<2x32xf32>
    %1540 = math.exp %1539 : vector<2x32xf32>
    %cst_484 = arith.constant 1.000000e+00 : f32
    %1541 = vector.broadcast %cst_484 : f32 to vector<2x32xf32>
    %1542 = arith.addf %1541, %1540 : vector<2x32xf32>
    %cst_485 = arith.constant 1.000000e+00 : f32
    %1543 = vector.broadcast %cst_485 : f32 to vector<2x32xf32>
    %1544 = arith.divf %1543, %1542 : vector<2x32xf32>
    %1545 = vector.extract_strided_slice %1513 {offsets = [0, 64], sizes = [2, 32], strides = [1, 1]} : vector<2x96xf32> to vector<2x32xf32>
    %1546 = vector.extract_strided_slice %1524 {offsets = [0, 64], sizes = [2, 32], strides = [1, 1]} : vector<2x96xf32> to vector<2x32xf32>
    %1547 = arith.mulf %1534, %1546 : vector<2x32xf32>
    %1548 = arith.addf %1545, %1547 : vector<2x32xf32>
    %1549 = math.tanh %1548 : vector<2x32xf32>
    %cst_486 = arith.constant 1.000000e+00 : f32
    %1550 = vector.broadcast %cst_486 : f32 to vector<2x32xf32>
    %1551 = arith.subf %1550, %1544 : vector<2x32xf32>
    %1552 = arith.mulf %1551, %1549 : vector<2x32xf32>
    %1553 = arith.mulf %1544, %1517 : vector<2x32xf32>
    %1554 = arith.addf %1552, %1553 : vector<2x32xf32>
    %1555 = vector.broadcast %1500 : vector<2x1xf32> to vector<2x32xf32>
    %1556 = arith.mulf %1555, %1554 : vector<2x32xf32>
    %1557 = vector.extract_strided_slice %1490 {offsets = [0, 32], sizes = [2, 32], strides = [1, 1]} : vector<2x128xf32> to vector<2x32xf32>
    %c1_487 = arith.constant 1 : index
    %c0_488 = arith.constant 0 : index
    %c0_489 = arith.constant 0 : index
    %1558 = vector.load %arg9[%c1_487, %c0_488, %c0_489] : memref<4x32x96xf32, #tpu.memory_space<vmem>>, vector<1x32x96xf32>
    %1559 = vector.shape_cast %1558 : vector<1x32x96xf32> to vector<32x96xf32>
    %cst_490 = arith.constant dense<0.000000e+00> : vector<2x96xf32>
    %1560 = tpu.matmul %1557, %1559, %cst_490 {dimension_numbers = #tpu.dot_dimension_numbers<[1], [0], [0], [1], [0, 0, 1, 1], [], []>} : vector<2x32xf32>, vector<32x96xf32>, vector<2x96xf32> -> vector<2x96xf32>
    %c1_491 = arith.constant 1 : index
    %c0_492 = arith.constant 0 : index
    %c0_493 = arith.constant 0 : index
    %1561 = vector.load %arg10[%c1_491, %c0_492, %c0_493] : memref<4x1x96xf32, #tpu.memory_space<vmem>>, vector<1x1x96xf32>
    %1562 = vector.shape_cast %1561 : vector<1x1x96xf32> to vector<1x96xf32>
    %1563 = vector.broadcast %1562 : vector<1x96xf32> to vector<2x96xf32>
    %1564 = arith.addf %1560, %1563 : vector<2x96xf32>
    %1565 = vector.extract_strided_slice %1514 {offsets = [0, 0], sizes = [2, 32], strides = [1, 1]} : vector<2x96xf32> to vector<2x32xf32>
    %1566 = vector.extract_strided_slice %1564 {offsets = [0, 0], sizes = [2, 32], strides = [1, 1]} : vector<2x96xf32> to vector<2x32xf32>
    %1567 = arith.addf %1565, %1566 : vector<2x32xf32>
    %cst_494 = arith.constant 0.000000e+00 : f32
    %1568 = vector.broadcast %cst_494 : f32 to vector<2x32xf32>
    %1569 = arith.subf %1568, %1567 : vector<2x32xf32>
    %1570 = math.exp %1569 : vector<2x32xf32>
    %cst_495 = arith.constant 1.000000e+00 : f32
    %1571 = vector.broadcast %cst_495 : f32 to vector<2x32xf32>
    %1572 = arith.addf %1571, %1570 : vector<2x32xf32>
    %cst_496 = arith.constant 1.000000e+00 : f32
    %1573 = vector.broadcast %cst_496 : f32 to vector<2x32xf32>
    %1574 = arith.divf %1573, %1572 : vector<2x32xf32>
    %1575 = vector.extract_strided_slice %1514 {offsets = [0, 32], sizes = [2, 32], strides = [1, 1]} : vector<2x96xf32> to vector<2x32xf32>
    %1576 = vector.extract_strided_slice %1564 {offsets = [0, 32], sizes = [2, 32], strides = [1, 1]} : vector<2x96xf32> to vector<2x32xf32>
    %1577 = arith.addf %1575, %1576 : vector<2x32xf32>
    %cst_497 = arith.constant 0.000000e+00 : f32
    %1578 = vector.broadcast %cst_497 : f32 to vector<2x32xf32>
    %1579 = arith.subf %1578, %1577 : vector<2x32xf32>
    %1580 = math.exp %1579 : vector<2x32xf32>
    %cst_498 = arith.constant 1.000000e+00 : f32
    %1581 = vector.broadcast %cst_498 : f32 to vector<2x32xf32>
    %1582 = arith.addf %1581, %1580 : vector<2x32xf32>
    %cst_499 = arith.constant 1.000000e+00 : f32
    %1583 = vector.broadcast %cst_499 : f32 to vector<2x32xf32>
    %1584 = arith.divf %1583, %1582 : vector<2x32xf32>
    %1585 = vector.extract_strided_slice %1514 {offsets = [0, 64], sizes = [2, 32], strides = [1, 1]} : vector<2x96xf32> to vector<2x32xf32>
    %1586 = vector.extract_strided_slice %1564 {offsets = [0, 64], sizes = [2, 32], strides = [1, 1]} : vector<2x96xf32> to vector<2x32xf32>
    %1587 = arith.mulf %1574, %1586 : vector<2x32xf32>
    %1588 = arith.addf %1585, %1587 : vector<2x32xf32>
    %1589 = math.tanh %1588 : vector<2x32xf32>
    %cst_500 = arith.constant 1.000000e+00 : f32
    %1590 = vector.broadcast %cst_500 : f32 to vector<2x32xf32>
    %1591 = arith.subf %1590, %1584 : vector<2x32xf32>
    %1592 = arith.mulf %1591, %1589 : vector<2x32xf32>
    %1593 = arith.mulf %1584, %1557 : vector<2x32xf32>
    %1594 = arith.addf %1592, %1593 : vector<2x32xf32>
    %1595 = vector.broadcast %1504 : vector<2x1xf32> to vector<2x32xf32>
    %1596 = arith.mulf %1595, %1594 : vector<2x32xf32>
    %1597 = vector.extract_strided_slice %1490 {offsets = [0, 64], sizes = [2, 32], strides = [1, 1]} : vector<2x128xf32> to vector<2x32xf32>
    %c2_501 = arith.constant 2 : index
    %c0_502 = arith.constant 0 : index
    %c0_503 = arith.constant 0 : index
    %1598 = vector.load %arg9[%c2_501, %c0_502, %c0_503] : memref<4x32x96xf32, #tpu.memory_space<vmem>>, vector<1x32x96xf32>
    %1599 = vector.shape_cast %1598 : vector<1x32x96xf32> to vector<32x96xf32>
    %cst_504 = arith.constant dense<0.000000e+00> : vector<2x96xf32>
    %1600 = tpu.matmul %1597, %1599, %cst_504 {dimension_numbers = #tpu.dot_dimension_numbers<[1], [0], [0], [1], [0, 0, 1, 1], [], []>} : vector<2x32xf32>, vector<32x96xf32>, vector<2x96xf32> -> vector<2x96xf32>
    %c2_505 = arith.constant 2 : index
    %c0_506 = arith.constant 0 : index
    %c0_507 = arith.constant 0 : index
    %1601 = vector.load %arg10[%c2_505, %c0_506, %c0_507] : memref<4x1x96xf32, #tpu.memory_space<vmem>>, vector<1x1x96xf32>
    %1602 = vector.shape_cast %1601 : vector<1x1x96xf32> to vector<1x96xf32>
    %1603 = vector.broadcast %1602 : vector<1x96xf32> to vector<2x96xf32>
    %1604 = arith.addf %1600, %1603 : vector<2x96xf32>
    %1605 = vector.extract_strided_slice %1515 {offsets = [0, 0], sizes = [2, 32], strides = [1, 1]} : vector<2x96xf32> to vector<2x32xf32>
    %1606 = vector.extract_strided_slice %1604 {offsets = [0, 0], sizes = [2, 32], strides = [1, 1]} : vector<2x96xf32> to vector<2x32xf32>
    %1607 = arith.addf %1605, %1606 : vector<2x32xf32>
    %cst_508 = arith.constant 0.000000e+00 : f32
    %1608 = vector.broadcast %cst_508 : f32 to vector<2x32xf32>
    %1609 = arith.subf %1608, %1607 : vector<2x32xf32>
    %1610 = math.exp %1609 : vector<2x32xf32>
    %cst_509 = arith.constant 1.000000e+00 : f32
    %1611 = vector.broadcast %cst_509 : f32 to vector<2x32xf32>
    %1612 = arith.addf %1611, %1610 : vector<2x32xf32>
    %cst_510 = arith.constant 1.000000e+00 : f32
    %1613 = vector.broadcast %cst_510 : f32 to vector<2x32xf32>
    %1614 = arith.divf %1613, %1612 : vector<2x32xf32>
    %1615 = vector.extract_strided_slice %1515 {offsets = [0, 32], sizes = [2, 32], strides = [1, 1]} : vector<2x96xf32> to vector<2x32xf32>
    %1616 = vector.extract_strided_slice %1604 {offsets = [0, 32], sizes = [2, 32], strides = [1, 1]} : vector<2x96xf32> to vector<2x32xf32>
    %1617 = arith.addf %1615, %1616 : vector<2x32xf32>
    %cst_511 = arith.constant 0.000000e+00 : f32
    %1618 = vector.broadcast %cst_511 : f32 to vector<2x32xf32>
    %1619 = arith.subf %1618, %1617 : vector<2x32xf32>
    %1620 = math.exp %1619 : vector<2x32xf32>
    %cst_512 = arith.constant 1.000000e+00 : f32
    %1621 = vector.broadcast %cst_512 : f32 to vector<2x32xf32>
    %1622 = arith.addf %1621, %1620 : vector<2x32xf32>
    %cst_513 = arith.constant 1.000000e+00 : f32
    %1623 = vector.broadcast %cst_513 : f32 to vector<2x32xf32>
    %1624 = arith.divf %1623, %1622 : vector<2x32xf32>
    %1625 = vector.extract_strided_slice %1515 {offsets = [0, 64], sizes = [2, 32], strides = [1, 1]} : vector<2x96xf32> to vector<2x32xf32>
    %1626 = vector.extract_strided_slice %1604 {offsets = [0, 64], sizes = [2, 32], strides = [1, 1]} : vector<2x96xf32> to vector<2x32xf32>
    %1627 = arith.mulf %1614, %1626 : vector<2x32xf32>
    %1628 = arith.addf %1625, %1627 : vector<2x32xf32>
    %1629 = math.tanh %1628 : vector<2x32xf32>
    %cst_514 = arith.constant 1.000000e+00 : f32
    %1630 = vector.broadcast %cst_514 : f32 to vector<2x32xf32>
    %1631 = arith.subf %1630, %1624 : vector<2x32xf32>
    %1632 = arith.mulf %1631, %1629 : vector<2x32xf32>
    %1633 = arith.mulf %1624, %1597 : vector<2x32xf32>
    %1634 = arith.addf %1632, %1633 : vector<2x32xf32>
    %1635 = vector.broadcast %1508 : vector<2x1xf32> to vector<2x32xf32>
    %1636 = arith.mulf %1635, %1634 : vector<2x32xf32>
    %1637 = vector.extract_strided_slice %1490 {offsets = [0, 96], sizes = [2, 32], strides = [1, 1]} : vector<2x128xf32> to vector<2x32xf32>
    %c3_515 = arith.constant 3 : index
    %c0_516 = arith.constant 0 : index
    %c0_517 = arith.constant 0 : index
    %1638 = vector.load %arg9[%c3_515, %c0_516, %c0_517] : memref<4x32x96xf32, #tpu.memory_space<vmem>>, vector<1x32x96xf32>
    %1639 = vector.shape_cast %1638 : vector<1x32x96xf32> to vector<32x96xf32>
    %cst_518 = arith.constant dense<0.000000e+00> : vector<2x96xf32>
    %1640 = tpu.matmul %1637, %1639, %cst_518 {dimension_numbers = #tpu.dot_dimension_numbers<[1], [0], [0], [1], [0, 0, 1, 1], [], []>} : vector<2x32xf32>, vector<32x96xf32>, vector<2x96xf32> -> vector<2x96xf32>
    %c3_519 = arith.constant 3 : index
    %c0_520 = arith.constant 0 : index
    %c0_521 = arith.constant 0 : index
    %1641 = vector.load %arg10[%c3_519, %c0_520, %c0_521] : memref<4x1x96xf32, #tpu.memory_space<vmem>>, vector<1x1x96xf32>
    %1642 = vector.shape_cast %1641 : vector<1x1x96xf32> to vector<1x96xf32>
    %1643 = vector.broadcast %1642 : vector<1x96xf32> to vector<2x96xf32>
    %1644 = arith.addf %1640, %1643 : vector<2x96xf32>
    %1645 = vector.extract_strided_slice %1516 {offsets = [0, 0], sizes = [2, 32], strides = [1, 1]} : vector<2x96xf32> to vector<2x32xf32>
    %1646 = vector.extract_strided_slice %1644 {offsets = [0, 0], sizes = [2, 32], strides = [1, 1]} : vector<2x96xf32> to vector<2x32xf32>
    %1647 = arith.addf %1645, %1646 : vector<2x32xf32>
    %cst_522 = arith.constant 0.000000e+00 : f32
    %1648 = vector.broadcast %cst_522 : f32 to vector<2x32xf32>
    %1649 = arith.subf %1648, %1647 : vector<2x32xf32>
    %1650 = math.exp %1649 : vector<2x32xf32>
    %cst_523 = arith.constant 1.000000e+00 : f32
    %1651 = vector.broadcast %cst_523 : f32 to vector<2x32xf32>
    %1652 = arith.addf %1651, %1650 : vector<2x32xf32>
    %cst_524 = arith.constant 1.000000e+00 : f32
    %1653 = vector.broadcast %cst_524 : f32 to vector<2x32xf32>
    %1654 = arith.divf %1653, %1652 : vector<2x32xf32>
    %1655 = vector.extract_strided_slice %1516 {offsets = [0, 32], sizes = [2, 32], strides = [1, 1]} : vector<2x96xf32> to vector<2x32xf32>
    %1656 = vector.extract_strided_slice %1644 {offsets = [0, 32], sizes = [2, 32], strides = [1, 1]} : vector<2x96xf32> to vector<2x32xf32>
    %1657 = arith.addf %1655, %1656 : vector<2x32xf32>
    %cst_525 = arith.constant 0.000000e+00 : f32
    %1658 = vector.broadcast %cst_525 : f32 to vector<2x32xf32>
    %1659 = arith.subf %1658, %1657 : vector<2x32xf32>
    %1660 = math.exp %1659 : vector<2x32xf32>
    %cst_526 = arith.constant 1.000000e+00 : f32
    %1661 = vector.broadcast %cst_526 : f32 to vector<2x32xf32>
    %1662 = arith.addf %1661, %1660 : vector<2x32xf32>
    %cst_527 = arith.constant 1.000000e+00 : f32
    %1663 = vector.broadcast %cst_527 : f32 to vector<2x32xf32>
    %1664 = arith.divf %1663, %1662 : vector<2x32xf32>
    %1665 = vector.extract_strided_slice %1516 {offsets = [0, 64], sizes = [2, 32], strides = [1, 1]} : vector<2x96xf32> to vector<2x32xf32>
    %1666 = vector.extract_strided_slice %1644 {offsets = [0, 64], sizes = [2, 32], strides = [1, 1]} : vector<2x96xf32> to vector<2x32xf32>
    %1667 = arith.mulf %1654, %1666 : vector<2x32xf32>
    %1668 = arith.addf %1665, %1667 : vector<2x32xf32>
    %1669 = math.tanh %1668 : vector<2x32xf32>
    %cst_528 = arith.constant 1.000000e+00 : f32
    %1670 = vector.broadcast %cst_528 : f32 to vector<2x32xf32>
    %1671 = arith.subf %1670, %1664 : vector<2x32xf32>
    %1672 = arith.mulf %1671, %1669 : vector<2x32xf32>
    %1673 = arith.mulf %1664, %1637 : vector<2x32xf32>
    %1674 = arith.addf %1672, %1673 : vector<2x32xf32>
    %1675 = vector.broadcast %1512 : vector<2x1xf32> to vector<2x32xf32>
    %1676 = arith.mulf %1675, %1674 : vector<2x32xf32>
    %1677 = tpu.concatenate %1556, %1596, %1636, %1676 in 1 : vector<2x32xf32>, vector<2x32xf32>, vector<2x32xf32>, vector<2x32xf32> -> vector<2x128xf32>
    %1678 = arith.addf %1492, %1677 : vector<2x128xf32>
    %1679 = arith.sitofp %12 : vector<2x1xi32> to vector<2x1xf32>
    %1680 = arith.sitofp %13 : vector<2x1xi32> to vector<2x1xf32>
    %1681 = vector.extract_strided_slice %1678 {offsets = [0, 0], sizes = [2, 64], strides = [1, 1]} : vector<2x128xf32> to vector<2x64xf32>
    %1682 = vector.broadcast %1679 : vector<2x1xf32> to vector<2x64xf32>
    %1683 = arith.divf %1681, %1682 : vector<2x64xf32>
    %1684 = vector.extract_strided_slice %1678 {offsets = [0, 64], sizes = [2, 64], strides = [1, 1]} : vector<2x128xf32> to vector<2x64xf32>
    %1685 = vector.broadcast %1680 : vector<2x1xf32> to vector<2x64xf32>
    %1686 = arith.divf %1684, %1685 : vector<2x64xf32>
    %1687 = tpu.concatenate %1683, %1686 in 1 : vector<2x64xf32>, vector<2x64xf32> -> vector<2x128xf32>
    %c0_529 = arith.constant 0 : index
    %c0_530 = arith.constant 0 : index
    %1688 = vector.load %arg15[%c0_529, %c0_530] : memref<2x128xf32, #tpu.memory_space<vmem>>, vector<2x128xf32>
    tpu.vector_store %arg15[%c0_529, %c0_530], %1687 {strides = array<i32>} : memref<2x128xf32, #tpu.memory_space<vmem>>, vector<2x128xf32>,
    %c0_531 = arith.constant 0 : index
    %c0_532 = arith.constant 0 : index
    %1689 = vector.load %arg11[%c0_531, %c0_532] : memref<128x32xf32, #tpu.memory_space<vmem>>, vector<128x32xf32>
    %cst_533 = arith.constant dense<0.000000e+00> : vector<2x32xf32>
    %1690 = tpu.matmul %1687, %1689, %cst_533 {dimension_numbers = #tpu.dot_dimension_numbers<[1], [0], [0], [1], [0, 0, 1, 1], [], []>} : vector<2x128xf32>, vector<128x32xf32>, vector<2x32xf32> -> vector<2x32xf32>
    %c0_534 = arith.constant 0 : index
    %c0_535 = arith.constant 0 : index
    %1691 = vector.load %arg12[%c0_534, %c0_535] : memref<1x32xf32, #tpu.memory_space<vmem>>, vector<1x32xf32>
    %1692 = vector.broadcast %1691 : vector<1x32xf32> to vector<2x32xf32>
    %1693 = arith.addf %1690, %1692 : vector<2x32xf32>
    %c0_536 = arith.constant 0 : index
    %c0_537 = arith.constant 0 : index
    %1694 = vector.load %arg13[%c0_536, %c0_537] : memref<64x32xf32, #tpu.memory_space<vmem>>, vector<64x32xf32>
    %cst_538 = arith.constant dense<0.000000e+00> : vector<2x32xf32>
    %1695 = tpu.matmul %1683, %1694, %cst_538 {dimension_numbers = #tpu.dot_dimension_numbers<[1], [0], [0], [1], [0, 0, 1, 1], [], []>} : vector<2x64xf32>, vector<64x32xf32>, vector<2x32xf32> -> vector<2x32xf32>
    %c0_539 = arith.constant 0 : index
    %c0_540 = arith.constant 0 : index
    %1696 = vector.load %arg14[%c0_539, %c0_540] : memref<1x32xf32, #tpu.memory_space<vmem>>, vector<1x32xf32>
    %1697 = vector.broadcast %1696 : vector<1x32xf32> to vector<2x32xf32>
    %1698 = arith.addf %1695, %1697 : vector<2x32xf32>
    %1699 = vector.extract_strided_slice %1693 {offsets = [0, 0], sizes = [2, 16], strides = [1, 1]} : vector<2x32xf32> to vector<2x16xf32>
    %1700 = vector.extract_strided_slice %1693 {offsets = [0, 16], sizes = [2, 16], strides = [1, 1]} : vector<2x32xf32> to vector<2x16xf32>
    %cst_541 = arith.constant 0.000000e+00 : f32
    %1701 = vector.broadcast %cst_541 : f32 to vector<2x16xf32>
    %1702 = arith.maximumf %1700, %1701 : vector<2x16xf32>
    %1703 = math.absf %1700 : vector<2x16xf32>
    %cst_542 = arith.constant 0.000000e+00 : f32
    %1704 = vector.broadcast %cst_542 : f32 to vector<2x16xf32>
    %1705 = arith.subf %1704, %1703 : vector<2x16xf32>
    %1706 = math.exp %1705 : vector<2x16xf32>
    %cst_543 = arith.constant 1.000000e+00 : f32
    %1707 = vector.broadcast %cst_543 : f32 to vector<2x16xf32>
    %1708 = arith.addf %1707, %1706 : vector<2x16xf32>
    %1709 = math.log %1708 : vector<2x16xf32>
    %1710 = arith.addf %1702, %1709 : vector<2x16xf32>
    %1711 = vector.extract_strided_slice %1698 {offsets = [0, 0], sizes = [2, 16], strides = [1, 1]} : vector<2x32xf32> to vector<2x16xf32>
    %1712 = vector.extract_strided_slice %1698 {offsets = [0, 16], sizes = [2, 16], strides = [1, 1]} : vector<2x32xf32> to vector<2x16xf32>
    %cst_544 = arith.constant 0.000000e+00 : f32
    %1713 = vector.broadcast %cst_544 : f32 to vector<2x16xf32>
    %1714 = arith.maximumf %1712, %1713 : vector<2x16xf32>
    %1715 = math.absf %1712 : vector<2x16xf32>
    %cst_545 = arith.constant 0.000000e+00 : f32
    %1716 = vector.broadcast %cst_545 : f32 to vector<2x16xf32>
    %1717 = arith.subf %1716, %1715 : vector<2x16xf32>
    %1718 = math.exp %1717 : vector<2x16xf32>
    %cst_546 = arith.constant 1.000000e+00 : f32
    %1719 = vector.broadcast %cst_546 : f32 to vector<2x16xf32>
    %1720 = arith.addf %1719, %1718 : vector<2x16xf32>
    %1721 = math.log %1720 : vector<2x16xf32>
    %1722 = arith.addf %1714, %1721 : vector<2x16xf32>
    %1723 = tpu.concatenate %1699, %1710, %1711, %1722 in 1 : vector<2x16xf32>, vector<2x16xf32>, vector<2x16xf32>, vector<2x16xf32> -> vector<2x64xf32>
    %c0_547 = arith.constant 0 : index
    %c0_548 = arith.constant 0 : index
    %1724 = vector.load %arg16[%c0_547, %c0_548] : memref<2x64xf32, #tpu.memory_space<vmem>>, vector<2x64xf32>
    tpu.vector_store %arg16[%c0_547, %c0_548], %1723 {strides = array<i32>} : memref<2x64xf32, #tpu.memory_space<vmem>>, vector<2x64xf32>,
    return
  }
  func.func @transform_0(%arg0: i32) -> (i32, i32) {
    %c0_i32 = arith.constant 0 : i32
    %c0_i32_0 = arith.constant 0 : i32
    %c0_i32_1 = arith.constant 0 : i32
    return %c0_i32, %c0_i32_0 : i32, i32
  }
  func.func @transform_1(%arg0: i32) -> (i32, i32) {
    %c0_i32 = arith.constant 0 : i32
    %c0_i32_0 = arith.constant 0 : i32
    %c0_i32_1 = arith.constant 0 : i32
    return %c0_i32, %c0_i32_0 : i32, i32
  }
  func.func @transform_2(%arg0: i32) -> (i32, i32) {
    %c0_i32 = arith.constant 0 : i32
    %c0_i32_0 = arith.constant 0 : i32
    %c0_i32_1 = arith.constant 0 : i32
    return %c0_i32, %c0_i32_0 : i32, i32
  }
  func.func @transform_3(%arg0: i32) -> (i32, i32) {
    %c0_i32 = arith.constant 0 : i32
    %c0_i32_0 = arith.constant 0 : i32
    %c0_i32_1 = arith.constant 0 : i32
    return %c0_i32, %c0_i32_0 : i32, i32
  }
  func.func @transform_4(%arg0: i32) -> (i32, i32) {
    %c0_i32 = arith.constant 0 : i32
    %c0_i32_0 = arith.constant 0 : i32
    %c0_i32_1 = arith.constant 0 : i32
    return %c0_i32, %c0_i32_0 : i32, i32
  }
  func.func @transform_5(%arg0: i32) -> (i32, i32) {
    %c0_i32 = arith.constant 0 : i32
    %c0_i32_0 = arith.constant 0 : i32
    %c0_i32_1 = arith.constant 0 : i32
    return %c0_i32, %c0_i32_0 : i32, i32
  }
  func.func @transform_6(%arg0: i32) -> (i32, i32) {
    %c0_i32 = arith.constant 0 : i32
    %c0_i32_0 = arith.constant 0 : i32
    %c0_i32_1 = arith.constant 0 : i32
    return %c0_i32, %c0_i32_0 : i32, i32
  }
  func.func @transform_7(%arg0: i32) -> (i32, i32) {
    %c0_i32 = arith.constant 0 : i32
    %c0_i32_0 = arith.constant 0 : i32
    %c0_i32_1 = arith.constant 0 : i32
    return %c0_i32, %c0_i32_0 : i32, i32
  }
  func.func @transform_8(%arg0: i32) -> (i32, i32, i32) {
    %c0_i32 = arith.constant 0 : i32
    %c0_i32_0 = arith.constant 0 : i32
    %c0_i32_1 = arith.constant 0 : i32
    %c0_i32_2 = arith.constant 0 : i32
    return %c0_i32, %c0_i32_0, %c0_i32_1 : i32, i32, i32
  }
  func.func @transform_9(%arg0: i32) -> (i32, i32, i32) {
    %c0_i32 = arith.constant 0 : i32
    %c0_i32_0 = arith.constant 0 : i32
    %c0_i32_1 = arith.constant 0 : i32
    %c0_i32_2 = arith.constant 0 : i32
    return %c0_i32, %c0_i32_0, %c0_i32_1 : i32, i32, i32
  }
  func.func @transform_10(%arg0: i32) -> (i32, i32) {
    %c0_i32 = arith.constant 0 : i32
    %c0_i32_0 = arith.constant 0 : i32
    %c0_i32_1 = arith.constant 0 : i32
    return %c0_i32, %c0_i32_0 : i32, i32
  }
  func.func @transform_11(%arg0: i32) -> (i32, i32) {
    %c0_i32 = arith.constant 0 : i32
    %c0_i32_0 = arith.constant 0 : i32
    %c0_i32_1 = arith.constant 0 : i32
    return %c0_i32, %c0_i32_0 : i32, i32
  }
  func.func @transform_12(%arg0: i32) -> (i32, i32) {
    %c0_i32 = arith.constant 0 : i32
    %c0_i32_0 = arith.constant 0 : i32
    %c0_i32_1 = arith.constant 0 : i32
    return %c0_i32, %c0_i32_0 : i32, i32
  }
  func.func @transform_13(%arg0: i32) -> (i32, i32) {
    %c0_i32 = arith.constant 0 : i32
    %c0_i32_0 = arith.constant 0 : i32
    %c0_i32_1 = arith.constant 0 : i32
    return %c0_i32, %c0_i32_0 : i32, i32
  }
  func.func @transform_14(%arg0: i32) -> (i32, i32) {
    %c0_i32 = arith.constant 0 : i32
    %c0_i32_0 = arith.constant 0 : i32
    %c0_i32_1 = arith.constant 0 : i32
    return %c0_i32, %c0_i32_0 : i32, i32
  }
  func.func @transform_15(%arg0: i32) -> (i32, i32) {
    %c0_i32 = arith.constant 0 : i32
    %c0_i32_0 = arith.constant 0 : i32
    %c0_i32_1 = arith.constant 0 : i32
    return %c0_i32, %c0_i32_0 : i32, i32
  }
}

</mosaic_0001>

<llo_original>
// kernel: source_target_inference_forward.1
$region0: #{source_target_inference_forward.1}
  #allocation0 [shape = 'u32[]', space=smem, size = 0x4, offset = 0x4, fixed_abs, tag = 'smem constant byte address 0x4 - core index']
  #allocation1 [shape = 'u32[144,128]{1,0:T(1,128)}', space=vmem, size = 0x12000, scoped, tag = 'internal scratch']
  %s0 = inlined_call_operand.vmem [shape: f32[16,16], index: 0, kind: input, shape index: {}]
  %s1 = inlined_call_operand.vmem [shape: f32[16,16], index: 1, kind: input, shape index: {}]
  %s2 = inlined_call_operand.vmem [shape: s32[2,1], index: 2, kind: input, shape index: {}]
  %s3 = inlined_call_operand.vmem [shape: s32[2,1], index: 3, kind: input, shape index: {}]
  %s4 = inlined_call_operand.vmem [shape: f32[16,192], index: 4, kind: input, shape index: {}]
  %s5 = inlined_call_operand.vmem [shape: f32[1,192], index: 5, kind: input, shape index: {}]
  %s6 = inlined_call_operand.vmem [shape: f32[16,192], index: 6, kind: input, shape index: {}]
  %s7 = inlined_call_operand.vmem [shape: f32[1,192], index: 7, kind: input, shape index: {}]
  %s8 = inlined_call_operand.vmem [shape: f32[4,32,96], index: 8, kind: input, shape index: {}]
  %s9 = inlined_call_operand.vmem [shape: f32[4,1,96], index: 9, kind: input, shape index: {}]
  %s10 = inlined_call_operand.vmem [shape: f32[128,32], index: 10, kind: input, shape index: {}]
  %s11 = inlined_call_operand.vmem [shape: f32[1,32], index: 11, kind: input, shape index: {}]
  %s12 = inlined_call_operand.vmem [shape: f32[64,32], index: 12, kind: input, shape index: {}]
  %s13 = inlined_call_operand.vmem [shape: f32[1,32], index: 13, kind: input, shape index: {}]
  %s14 = inlined_call_operand.hbm [shape: f32[2,128], index: 14, kind: output, shape index: {0}]
  %s15 = inlined_call_operand.vmem [shape: f32[2,64], index: 15, kind: output, shape index: {1}]
  %16 = xla_tuple %s14, %s15
  %s17 = sld [smem:[#allocation0]]
  $region74: #{source_target_inference_forward.1} parent=0
    _
  %s19 = ssub.s32 1, %s17
  %s20 = scalar_select 0, %s19, %s17
  $region1: #{source_target_inference_forward.1} parent=0
    #allocation2 [shape = 'u8[1024]{0}', space=vmem, size = 0x400, scoped, tag = 'output window, operand 0, single buffered']
    #allocation3 [shape = 's32[1]{0}', space=sflag, size = 0x4, scoped, tag = 'scoped memory for source_target_inference_forward.1']
    %21 = vsyncpa [#allocation3], 0
    // Predicated region
    $region2: #{source_target_inference_forward.1} parent=1 // pred_check
      _
    $region3: #{source_target_inference_forward.1} parent=1 // pred_check_branch
      %23 = sbr.rel (0) target = $region5
    $region4: #{source_target_inference_forward.1} parent=1 // pred_region
      _
    $region5: #{source_target_inference_forward.1} parent=1 // pred_fallthru
      _
    // Predicated region
    $region6: #{source_target_inference_forward.1} parent=1 // pred_check
      _
    $region7: #{source_target_inference_forward.1} parent=1 // pred_check_branch
      %25 = sbr.rel (0) target = $region9
    $region8: #{source_target_inference_forward.1} parent=1 // pred_region
      _
    $region9: #{source_target_inference_forward.1} parent=1 // pred_fallthru
      _
    // Predicated region
    $region10: #{source_target_inference_forward.1} parent=1 // pred_check
      _
    $region11: #{source_target_inference_forward.1} parent=1 // pred_check_branch
      %27 = sbr.rel (0) target = $region13
    $region12: #{source_target_inference_forward.1} parent=1 // pred_region
      _
    $region13: #{source_target_inference_forward.1} parent=1 // pred_fallthru
      _
    // Predicated region
    $region14: #{source_target_inference_forward.1} parent=1 // pred_check
      _
    $region15: #{source_target_inference_forward.1} parent=1 // pred_check_branch
      %29 = sbr.rel (0) target = $region17
    $region16: #{source_target_inference_forward.1} parent=1 // pred_region
      _
    $region17: #{source_target_inference_forward.1} parent=1 // pred_fallthru
      _
    // Predicated region
    $region18: #{source_target_inference_forward.1} parent=1 // pred_check
      _
    $region19: #{source_target_inference_forward.1} parent=1 // pred_check_branch
      %31 = sbr.rel (0) target = $region21
    $region20: #{source_target_inference_forward.1} parent=1 // pred_region
      _
    $region21: #{source_target_inference_forward.1} parent=1 // pred_fallthru
      _
    // Predicated region
    $region22: #{source_target_inference_forward.1} parent=1 // pred_check
      _
    $region23: #{source_target_inference_forward.1} parent=1 // pred_check_branch
      %33 = sbr.rel (0) target = $region25
    $region24: #{source_target_inference_forward.1} parent=1 // pred_region
      _
    $region25: #{source_target_inference_forward.1} parent=1 // pred_fallthru
      _
    // Predicated region
    $region26: #{source_target_inference_forward.1} parent=1 // pred_check
      _
    $region27: #{source_target_inference_forward.1} parent=1 // pred_check_branch
      %35 = sbr.rel (0) target = $region29
    $region28: #{source_target_inference_forward.1} parent=1 // pred_region
      _
    $region29: #{source_target_inference_forward.1} parent=1 // pred_fallthru
      _
    // Predicated region
    $region30: #{source_target_inference_forward.1} parent=1 // pred_check
      _
    $region31: #{source_target_inference_forward.1} parent=1 // pred_check_branch
      %37 = sbr.rel (0) target = $region33
    $region32: #{source_target_inference_forward.1} parent=1 // pred_region
      _
    $region33: #{source_target_inference_forward.1} parent=1 // pred_fallthru
      _
    // Predicated region
    $region34: #{source_target_inference_forward.1} parent=1 // pred_check
      _
    $region35: #{source_target_inference_forward.1} parent=1 // pred_check_branch
      %39 = sbr.rel (0) target = $region37
    $region36: #{source_target_inference_forward.1} parent=1 // pred_region
      _
    $region37: #{source_target_inference_forward.1} parent=1 // pred_fallthru
      _
    // Predicated region
    $region38: #{source_target_inference_forward.1} parent=1 // pred_check
      _
    $region39: #{source_target_inference_forward.1} parent=1 // pred_check_branch
      %41 = sbr.rel (0) target = $region41
    $region40: #{source_target_inference_forward.1} parent=1 // pred_region
      _
    $region41: #{source_target_inference_forward.1} parent=1 // pred_fallthru
      _
    // Predicated region
    $region42: #{source_target_inference_forward.1} parent=1 // pred_check
      _
    $region43: #{source_target_inference_forward.1} parent=1 // pred_check_branch
      %43 = sbr.rel (0) target = $region45
    $region44: #{source_target_inference_forward.1} parent=1 // pred_region
      _
    $region45: #{source_target_inference_forward.1} parent=1 // pred_fallthru
      _
    // Predicated region
    $region46: #{source_target_inference_forward.1} parent=1 // pred_check
      _
    $region47: #{source_target_inference_forward.1} parent=1 // pred_check_branch
      %45 = sbr.rel (0) target = $region49
    $region48: #{source_target_inference_forward.1} parent=1 // pred_region
      _
    $region49: #{source_target_inference_forward.1} parent=1 // pred_fallthru
      _
    // Predicated region
    $region50: #{source_target_inference_forward.1} parent=1 // pred_check
      _
    $region51: #{source_target_inference_forward.1} parent=1 // pred_check_branch
      %47 = sbr.rel (0) target = $region53
    $region52: #{source_target_inference_forward.1} parent=1 // pred_region
      _
    $region53: #{source_target_inference_forward.1} parent=1 // pred_fallthru
      _
    // Predicated region
    $region54: #{source_target_inference_forward.1} parent=1 // pred_check
      _
    $region55: #{source_target_inference_forward.1} parent=1 // pred_check_branch
      %49 = sbr.rel (0) target = $region57
    $region56: #{source_target_inference_forward.1} parent=1 // pred_region
      _
    $region57: #{source_target_inference_forward.1} parent=1 // pred_fallthru
      _
    %v50 = vld [vmem:[%s0] sm:$0xff]
    %v51 = vld [vmem:[%s0 + $0x8] sm:$0xff]
    %v52 = vld [vmem:[%s4] sm:$0xff]
    %v53 = vld [vmem:[%s4 + $0x8] sm:$0xff]
    %v54 = vld [vmem:[%s4 + $0x10] sm:$0xff]
    %v55 = vld [vmem:[%s4 + $0x18] sm:$0xff]
    %v56 = vld [vmem:[%s5] sm:$0x3]
    %v58 = vlaneseq
    %v59 = vshrl.u32 %v58, 7
    %v60 = vsub.s32 0, %v59
    %v61 = vrot.slane %v56, %v60
    %v62 = vlaneseq
    %v63 = vshrl.u32 %v62, 7
    %v64 = vsub.s32 1, %v63
    %v65 = vrot.slane %v56, %v64
    %vm68 = vcmask 130048
    %v70 = vsel %vm68, %v50, 0
    %v73 = vsel %vm68, %v51, 0
    %75 = vmatprep.subr.mxu0 %v53
    %76 = vmatpush1.msra.mxu0 %v52
    %77 = vmatprep.subr.mxu0 %v55
    %78 = vmatpush1.msra.mxu0 %v54
    %79 = vmatprep.subr.mxu0 0.0
    %80 = vmatpush1.msra.mxu0 0.0
    %81 = vmatprep.subr.mxu0 0.0
    %82 = vmatpush1.msra.mxu0 0.0
    %83 = vmatprep.subr.mxu0 0.0
    %84 = vmatpush1.msra.mxu0 0.0
    %85 = vmatprep.subr.mxu0 0.0
    %86 = vmatpush1.msra.mxu0 0.0
    %87 = vmatprep.subr.mxu0 0.0
    %88 = vmatpush1.msra.mxu0 0.0
    %89 = vmatprep.subr.mxu0 0.0
    %90 = vmatpush1.msra.mxu0 0.0
    %91 = vmatprep.subr.mxu0 0.0
    %92 = vmatpush1.msra.mxu0 0.0
    %93 = vmatprep.subr.mxu0 0.0
    %94 = vmatpush1.msra.mxu0 0.0
    %95 = vmatprep.subr.mxu0 0.0
    %96 = vmatpush1.msra.mxu0 0.0
    %97 = vmatprep.subr.mxu0 0.0
    %98 = vmatpush1.msra.mxu0 0.0
    %99 = vmatprep.subr.mxu0 0.0
    %100 = vmatpush1.msra.mxu0 0.0
    %101 = vmatprep.subr.mxu0 0.0
    %102 = vmatpush1.msra.mxu0 0.0
    %103 = vmatprep.subr.mxu0 0.0
    %104 = vmatpush1.msra.mxu0 0.0
    %105 = vmatprep.subr.mxu0 0.0
    %106 = vmatpush1.msra.mxu0 0.0
    %107 = vmatprep.subr.mxu0 0.0
    %108 = vmatpush1.msra.mxu0 0.0
    %109 = vmatprep.subr.mxu0 0.0
    %110 = vmatpush1.msra.mxu0 0.0
    %111 = vmatprep.subr.mxu0 0.0
    %112 = vmatpush1.msra.mxu0 0.0
    %113 = vmatprep.subr.mxu0 0.0
    %114 = vmatpush1.msra.mxu0 0.0
    %115 = vmatprep.subr.mxu0 0.0
    %116 = vmatpush1.msra.mxu0 0.0
    %117 = vmatprep.subr.mxu0 0.0
    %118 = vmatpush1.msra.mxu0 0.0
    %119 = vmatprep.subr.mxu0 0.0
    %120 = vmatpush1.msra.mxu0 0.0
    %121 = vmatprep.subr.mxu0 0.0
    %122 = vmatpush1.msra.mxu0 0.0
    %123 = vmatprep.subr.mxu0 0.0
    %124 = vmatpush1.msra.mxu0 0.0
    %125 = vmatprep.subr.mxu0 0.0
    %126 = vmatpush1.msra.mxu0 0.0
    %127 = vmatprep.subr.mxu0 0.0
    %128 = vmatpush1.msra.mxu0 0.0
    %129 = vmatprep.subr.mxu0 0.0
    %130 = vmatpush1.msra.mxu0 0.0
    %131 = vmatprep.subr.mxu0 0.0
    %132 = vmatpush1.msra.mxu0 0.0
    %133 = vmatprep.subr.mxu0 0.0
    %134 = vmatpush1.msra.mxu0 0.0
    %135 = vmatprep.subr.mxu0 0.0
    %136 = vmatpush1.msra.mxu0 0.0
    %137 = vmatprep.subr.mxu0 0.0
    %138 = vmatpush1.msra.mxu0 0.0
    %139 = vmatprep.mubr.f32.mxu0 0.0
    %140 = vmatmul.mubr.f32.gmra.mrb[0].mxu0 %v70
    %v141 = vpop.f32.mrb[0].mxu0
    %v142 = vadd.f32 %v61, %v141
    %v143 = vpop.f32.mrb[0].mxu0
    %v144 = vadd.f32 %v65, %v143
    %145 = vmatprep.mubr.f32.mxu0 0.0
    %146 = vmatmul.mubr.f32.gmra.mrb[0].mxu0 %v73
    %v147 = vpop.f32.mrb[0].mxu0
    %v148 = vadd.f32 %v61, %v147
    %v149 = vpop.f32.mrb[0].mxu0
    %v150 = vadd.f32 %v65, %v149
    %151 = vdwg.mxu0
    %v152 = vld [vmem:[%s1] sm:$0xff]
    %v153 = vld [vmem:[%s1 + $0x8] sm:$0xff]
    %v154 = vld [vmem:[%s6] sm:$0xff]
    %v155 = vld [vmem:[%s6 + $0x8] sm:$0xff]
    %v156 = vld [vmem:[%s6 + $0x10] sm:$0xff]
    %v157 = vld [vmem:[%s6 + $0x18] sm:$0xff]
    %v158 = vld [vmem:[%s7] sm:$0x3]
    %v160 = vlaneseq
    %v161 = vshrl.u32 %v160, 7
    %v162 = vsub.s32 0, %v161
    %v163 = vrot.slane %v158, %v162
    %v164 = vlaneseq
    %v165 = vshrl.u32 %v164, 7
    %v166 = vsub.s32 1, %v165
    %v167 = vrot.slane %v158, %v166
    %v171 = vsel %vm68, %v152, 0
    %v174 = vsel %vm68, %v153, 0
    %176 = vmatprep.subr.mxu0 %v155
    %177 = vmatpush1.msra.mxu0 %v154
    %178 = vmatprep.subr.mxu0 %v157
    %179 = vmatpush1.msra.mxu0 %v156
    %180 = vmatprep.subr.mxu0 0.0
    %181 = vmatpush1.msra.mxu0 0.0
    %182 = vmatprep.subr.mxu0 0.0
    %183 = vmatpush1.msra.mxu0 0.0
    %184 = vmatprep.subr.mxu0 0.0
    %185 = vmatpush1.msra.mxu0 0.0
    %186 = vmatprep.subr.mxu0 0.0
    %187 = vmatpush1.msra.mxu0 0.0
    %188 = vmatprep.subr.mxu0 0.0
    %189 = vmatpush1.msra.mxu0 0.0
    %190 = vmatprep.subr.mxu0 0.0
    %191 = vmatpush1.msra.mxu0 0.0
    %192 = vmatprep.subr.mxu0 0.0
    %193 = vmatpush1.msra.mxu0 0.0
    %194 = vmatprep.subr.mxu0 0.0
    %195 = vmatpush1.msra.mxu0 0.0
    %196 = vmatprep.subr.mxu0 0.0
    %197 = vmatpush1.msra.mxu0 0.0
    %198 = vmatprep.subr.mxu0 0.0
    %199 = vmatpush1.msra.mxu0 0.0
    %200 = vmatprep.subr.mxu0 0.0
    %201 = vmatpush1.msra.mxu0 0.0
    %202 = vmatprep.subr.mxu0 0.0
    %203 = vmatpush1.msra.mxu0 0.0
    %204 = vmatprep.subr.mxu0 0.0
    %205 = vmatpush1.msra.mxu0 0.0
    %206 = vmatprep.subr.mxu0 0.0
    %207 = vmatpush1.msra.mxu0 0.0
    %208 = vmatprep.subr.mxu0 0.0
    %209 = vmatpush1.msra.mxu0 0.0
    %210 = vmatprep.subr.mxu0 0.0
    %211 = vmatpush1.msra.mxu0 0.0
    %212 = vmatprep.subr.mxu0 0.0
    %213 = vmatpush1.msra.mxu0 0.0
    %214 = vmatprep.subr.mxu0 0.0
    %215 = vmatpush1.msra.mxu0 0.0
    %216 = vmatprep.subr.mxu0 0.0
    %217 = vmatpush1.msra.mxu0 0.0
    %218 = vmatprep.subr.mxu0 0.0
    %219 = vmatpush1.msra.mxu0 0.0
    %220 = vmatprep.subr.mxu0 0.0
    %221 = vmatpush1.msra.mxu0 0.0
    %222 = vmatprep.subr.mxu0 0.0
    %223 = vmatpush1.msra.mxu0 0.0
    %224 = vmatprep.subr.mxu0 0.0
    %225 = vmatpush1.msra.mxu0 0.0
    %226 = vmatprep.subr.mxu0 0.0
    %227 = vmatpush1.msra.mxu0 0.0
    %228 = vmatprep.subr.mxu0 0.0
    %229 = vmatpush1.msra.mxu0 0.0
    %230 = vmatprep.subr.mxu0 0.0
    %231 = vmatpush1.msra.mxu0 0.0
    %232 = vmatprep.subr.mxu0 0.0
    %233 = vmatpush1.msra.mxu0 0.0
    %234 = vmatprep.subr.mxu0 0.0
    %235 = vmatpush1.msra.mxu0 0.0
    %236 = vmatprep.subr.mxu0 0.0
    %237 = vmatpush1.msra.mxu0 0.0
    %238 = vmatprep.subr.mxu0 0.0
    %239 = vmatpush1.msra.mxu0 0.0
    %240 = vmatprep.mubr.f32.mxu0 0.0
    %241 = vmatmul.mubr.f32.gmra.mrb[0].mxu0 %v171
    %v242 = vpop.f32.mrb[0].mxu0
    %v243 = vadd.f32 %v163, %v242
    %v244 = vpop.f32.mrb[0].mxu0
    %v245 = vadd.f32 %v167, %v244
    %246 = vmatprep.mubr.f32.mxu0 0.0
    %247 = vmatmul.mubr.f32.gmra.mrb[0].mxu0 %v174
    %v248 = vpop.f32.mrb[0].mxu0
    %v249 = vadd.f32 %v163, %v248
    %v250 = vpop.f32.mrb[0].mxu0
    %v251 = vadd.f32 %v167, %v250
    %252 = vdwg.mxu0
    %v253 = vld [vmem:[%s2] sm:$0x3]
    %v254 = vld [vmem:[%s3] sm:$0x3]
    %vm255 = vcmp.gt.s32.totalorder %v253, 0
    %v256 = vsel %vm255, 1, 0
    %v257 = vcvt.s32.f32 %v256
    %vm258 = vcmp.gt.s32.totalorder %v253, 7
    %v259 = vsel %vm258, 1, 0
    %v260 = vcvt.s32.f32 %v259
    %vm261 = vcmp.gt.s32.totalorder %v254, 0
    %v262 = vsel %vm261, 1, 0
    %v263 = vcvt.s32.f32 %v262
    %vm264 = vcmp.gt.s32.totalorder %v254, 7
    %v265 = vsel %vm264, 1, 0
    %v266 = vcvt.s32.f32 %v265
    %v267 = vld [vmem:[%s8] sm:$0xff]
    %v268 = vld [vmem:[%s8 + $0x8] sm:$0xff]
    %v269 = vld [vmem:[%s8 + $0x10] sm:$0xff]
    %v270 = vld [vmem:[%s8 + $0x18] sm:$0xff]
    %v271 = vld [vmem:[%s9] sm:$0x1]
    %v273 = vlaneseq
    %v274 = vshrl.u32 %v273, 7
    %v275 = vsub.s32 0, %v274
    %v276 = vrot.slane %v271, %v275
    %vm278 = vcmask 261120
    %v280 = vsel %vm278, 0.0, 0
    %282 = vmatprep.subr.mxu0 0.0
    %283 = vmatpush1.msra.mxu0 %v267
    %284 = vmatprep.subr.mxu0 0.0
    %285 = vmatpush1.msra.mxu0 %v268
    %286 = vmatprep.subr.mxu0 0.0
    %287 = vmatpush1.msra.mxu0 %v269
    %288 = vmatprep.subr.mxu0 0.0
    %289 = vmatpush1.msra.mxu0 %v270
    %290 = vmatprep.subr.mxu0 0.0
    %291 = vmatpush1.msra.mxu0 0.0
    %292 = vmatprep.subr.mxu0 0.0
    %293 = vmatpush1.msra.mxu0 0.0
    %294 = vmatprep.subr.mxu0 0.0
    %295 = vmatpush1.msra.mxu0 0.0
    %296 = vmatprep.subr.mxu0 0.0
    %297 = vmatpush1.msra.mxu0 0.0
    %298 = vmatprep.subr.mxu0 0.0
    %299 = vmatpush1.msra.mxu0 0.0
    %300 = vmatprep.subr.mxu0 0.0
    %301 = vmatpush1.msra.mxu0 0.0
    %302 = vmatprep.subr.mxu0 0.0
    %303 = vmatpush1.msra.mxu0 0.0
    %304 = vmatprep.subr.mxu0 0.0
    %305 = vmatpush1.msra.mxu0 0.0
    %306 = vmatprep.subr.mxu0 0.0
    %307 = vmatpush1.msra.mxu0 0.0
    %308 = vmatprep.subr.mxu0 0.0
    %309 = vmatpush1.msra.mxu0 0.0
    %310 = vmatprep.subr.mxu0 0.0
    %311 = vmatpush1.msra.mxu0 0.0
    %312 = vmatprep.subr.mxu0 0.0
    %313 = vmatpush1.msra.mxu0 0.0
    %314 = vmatprep.subr.mxu0 0.0
    %315 = vmatpush1.msra.mxu0 0.0
    %316 = vmatprep.subr.mxu0 0.0
    %317 = vmatpush1.msra.mxu0 0.0
    %318 = vmatprep.subr.mxu0 0.0
    %319 = vmatpush1.msra.mxu0 0.0
    %320 = vmatprep.subr.mxu0 0.0
    %321 = vmatpush1.msra.mxu0 0.0
    %322 = vmatprep.subr.mxu0 0.0
    %323 = vmatpush1.msra.mxu0 0.0
    %324 = vmatprep.subr.mxu0 0.0
    %325 = vmatpush1.msra.mxu0 0.0
    %326 = vmatprep.subr.mxu0 0.0
    %327 = vmatpush1.msra.mxu0 0.0
    %328 = vmatprep.subr.mxu0 0.0
    %329 = vmatpush1.msra.mxu0 0.0
    %330 = vmatprep.subr.mxu0 0.0
    %331 = vmatpush1.msra.mxu0 0.0
    %332 = vmatprep.subr.mxu0 0.0
    %333 = vmatpush1.msra.mxu0 0.0
    %334 = vmatprep.subr.mxu0 0.0
    %335 = vmatpush1.msra.mxu0 0.0
    %336 = vmatprep.subr.mxu0 0.0
    %337 = vmatpush1.msra.mxu0 0.0
    %338 = vmatprep.subr.mxu0 0.0
    %339 = vmatpush1.msra.mxu0 0.0
    %340 = vmatprep.subr.mxu0 0.0
    %341 = vmatpush1.msra.mxu0 0.0
    %342 = vmatprep.subr.mxu0 0.0
    %343 = vmatpush1.msra.mxu0 0.0
    %344 = vmatprep.subr.mxu0 0.0
    %345 = vmatpush1.msra.mxu0 0.0
    %346 = vmatprep.mubr.f32.mxu0 0.0
    %347 = vmatmul.mubr.f32.gmra.mrb[0].mxu0 %v280
    %v348 = vpop.f32.mrb[0].mxu0
    %v349 = vadd.f32 %v276, %v348
    %v350 = vpop.f32.mrb[0].mxu0
    %351 = vdwg.mxu0
    %v352 = vadd.f32 %v142, %v349
    %v353 = vsub.f32 0.0, %v352
    %v354 = vmul.f32 %v353, 1.442695
    %v355 = vpow.pop %v354
    %v356 = vadd.f32 %v355, 1.0
    %v357 = vrcp.pop %v356
    %v358 = vmul.f32 1.0, %v357
    %360 = vrot.lane.b32.xlu0 %v349, 64
    %v361 = vpop.permute.xlu0 %360
    %v363 = vmul.f32 %v358, %v361
    %365 = vrot.lane.b32.xlu0 %v363, 64
    %v366 = vpop.permute.xlu0 %365
    %v368 = vadd.f32 %v142, %v366
    %v369 = vtanh.pop %v368
    %v370 = vsub.f32 1.0, %v358
    %372 = vrot.lane.b32.xlu0 %v369, 96
    %v373 = vpop.permute.xlu0 %372
    %v375 = vmul.f32 %v370, %v373
    %v376 = vmul.f32 %v358, 0.0
    %v377 = vadd.f32 %v375, %v376
    %379 = vset.pattern.permute.xlu0 0
    %380 = vperm.xlu0 %379, %v257
    %v381 = vpop.permute.xlu0 %380
    %v383 = vmul.f32 %v381, %v377
    %v384 = vsub.f32 1.0, %v257
    %386 = vset.pattern.permute.xlu0 0
    %387 = vperm.xlu0 %386, %v384
    %v388 = vpop.permute.xlu0 %387
    %v390 = vmul.f32 %v388, 0.0
    %v391 = vadd.f32 %v383, %v390
    %s392 = scalar_lea.vmem %s8, 32
    %v393 = vld [vmem:[%s392] sm:$0xff]
    %v394 = vld [vmem:[%s392 + $0x8] sm:$0xff]
    %v395 = vld [vmem:[%s392 + $0x10] sm:$0xff]
    %v396 = vld [vmem:[%s392 + $0x18] sm:$0xff]
    %s397 = scalar_lea.vmem %s9, 1
    %v398 = vld [vmem:[%s397] sm:$0x1]
    %v400 = vlaneseq
    %v401 = vshrl.u32 %v400, 7
    %v402 = vsub.s32 0, %v401
    %v403 = vrot.slane %v398, %v402
    %405 = vmatprep.subr.mxu0 0.0
    %406 = vmatpush1.msra.mxu0 %v393
    %407 = vmatprep.subr.mxu0 0.0
    %408 = vmatpush1.msra.mxu0 %v394
    %409 = vmatprep.subr.mxu0 0.0
    %410 = vmatpush1.msra.mxu0 %v395
    %411 = vmatprep.subr.mxu0 0.0
    %412 = vmatpush1.msra.mxu0 %v396
    %413 = vmatprep.subr.mxu0 0.0
    %414 = vmatpush1.msra.mxu0 0.0
    %415 = vmatprep.subr.mxu0 0.0
    %416 = vmatpush1.msra.mxu0 0.0
    %417 = vmatprep.subr.mxu0 0.0
    %418 = vmatpush1.msra.mxu0 0.0
    %419 = vmatprep.subr.mxu0 0.0
    %420 = vmatpush1.msra.mxu0 0.0
    %421 = vmatprep.subr.mxu0 0.0
    %422 = vmatpush1.msra.mxu0 0.0
    %423 = vmatprep.subr.mxu0 0.0
    %424 = vmatpush1.msra.mxu0 0.0
    %425 = vmatprep.subr.mxu0 0.0
    %426 = vmatpush1.msra.mxu0 0.0
    %427 = vmatprep.subr.mxu0 0.0
    %428 = vmatpush1.msra.mxu0 0.0
    %429 = vmatprep.subr.mxu0 0.0
    %430 = vmatpush1.msra.mxu0 0.0
    %431 = vmatprep.subr.mxu0 0.0
    %432 = vmatpush1.msra.mxu0 0.0
    %433 = vmatprep.subr.mxu0 0.0
    %434 = vmatpush1.msra.mxu0 0.0
    %435 = vmatprep.subr.mxu0 0.0
    %436 = vmatpush1.msra.mxu0 0.0
    %437 = vmatprep.subr.mxu0 0.0
    %438 = vmatpush1.msra.mxu0 0.0
    %439 = vmatprep.subr.mxu0 0.0
    %440 = vmatpush1.msra.mxu0 0.0
    %441 = vmatprep.subr.mxu0 0.0
    %442 = vmatpush1.msra.mxu0 0.0
    %443 = vmatprep.subr.mxu0 0.0
    %444 = vmatpush1.msra.mxu0 0.0
    %445 = vmatprep.subr.mxu0 0.0
    %446 = vmatpush1.msra.mxu0 0.0
    %447 = vmatprep.subr.mxu0 0.0
    %448 = vmatpush1.msra.mxu0 0.0
    %449 = vmatprep.subr.mxu0 0.0
    %450 = vmatpush1.msra.mxu0 0.0
    %451 = vmatprep.subr.mxu0 0.0
    %452 = vmatpush1.msra.mxu0 0.0
    %453 = vmatprep.subr.mxu0 0.0
    %454 = vmatpush1.msra.mxu0 0.0
    %455 = vmatprep.subr.mxu0 0.0
    %456 = vmatpush1.msra.mxu0 0.0
    %457 = vmatprep.subr.mxu0 0.0
    %458 = vmatpush1.msra.mxu0 0.0
    %459 = vmatprep.subr.mxu0 0.0
    %460 = vmatpush1.msra.mxu0 0.0
    %461 = vmatprep.subr.mxu0 0.0
    %462 = vmatpush1.msra.mxu0 0.0
    %463 = vmatprep.subr.mxu0 0.0
    %464 = vmatpush1.msra.mxu0 0.0
    %465 = vmatprep.subr.mxu0 0.0
    %466 = vmatpush1.msra.mxu0 0.0
    %467 = vmatprep.subr.mxu0 0.0
    %468 = vmatpush1.msra.mxu0 0.0
    %469 = vmatprep.mubr.f32.mxu0 0.0
    %470 = vmatmul.mubr.f32.gmra.mrb[0].mxu0 %v280
    %v471 = vpop.f32.mrb[0].mxu0
    %v472 = vadd.f32 %v403, %v471
    %v473 = vpop.f32.mrb[0].mxu0
    %474 = vdwg.mxu0
    %v476 = vrot.slane %v472, 2
    %477 = vrot.lane.b32.xlu0 %v476, 96
    %v478 = vpop.permute.xlu0 %477
    %v480 = vadd.f32 %v148, %v478
    %v481 = vsub.f32 0.0, %v480
    %v482 = vmul.f32 %v481, 1.442695
    %v483 = vpow.pop %v482
    %v484 = vadd.f32 %v483, 1.0
    %v485 = vrcp.pop %v484
    %v486 = vmul.f32 1.0, %v485
    %v487 = vadd.f32 %v150, %v478
    %v488 = vsub.f32 0.0, %v487
    %v489 = vmul.f32 %v488, 1.442695
    %v490 = vpow.pop %v489
    %v491 = vadd.f32 %v490, 1.0
    %v492 = vrcp.pop %v491
    %v493 = vmul.f32 1.0, %v492
    %494 = vrot.lane.b32.xlu0 %v476, 32
    %v495 = vpop.permute.xlu0 %494
    %v497 = vmul.f32 %v486, %v495
    %499 = vrot.lane.b32.xlu0 %v497, 64
    %v500 = vpop.permute.xlu0 %499
    %v502 = vadd.f32 %v150, %v500
    %v503 = vtanh.pop %v502
    %v504 = vsub.f32 1.0, %v493
    %506 = vrot.lane.b32.xlu0 %v503, 96
    %v507 = vpop.permute.xlu0 %506
    %v509 = vmul.f32 %v504, %v507
    %v510 = vmul.f32 %v493, 0.0
    %v511 = vadd.f32 %v509, %v510
    %513 = vset.pattern.permute.xlu0 0
    %514 = vperm.xlu0 %513, %v260
    %v515 = vpop.permute.xlu0 %514
    %v518 = vrot.slane %v511, 6
    %v520 = vmul.f32 %v515, %v518
    %v521 = vsub.f32 1.0, %v260
    %523 = vset.pattern.permute.xlu0 0
    %524 = vperm.xlu0 %523, %v521
    %v525 = vpop.permute.xlu0 %524
    %v527 = vmul.f32 %v525, 0.0
    %v528 = vadd.f32 %v520, %v527
    %s529 = scalar_lea.vmem %s8, 64
    %v530 = vld [vmem:[%s529] sm:$0xff]
    %v531 = vld [vmem:[%s529 + $0x8] sm:$0xff]
    %v532 = vld [vmem:[%s529 + $0x10] sm:$0xff]
    %v533 = vld [vmem:[%s529 + $0x18] sm:$0xff]
    %s534 = scalar_lea.vmem %s9, 2
    %v535 = vld [vmem:[%s534] sm:$0x1]
    %v537 = vlaneseq
    %v538 = vshrl.u32 %v537, 7
    %v539 = vsub.s32 0, %v538
    %v540 = vrot.slane %v535, %v539
    %542 = vmatprep.subr.mxu0 0.0
    %543 = vmatpush1.msra.mxu0 %v530
    %544 = vmatprep.subr.mxu0 0.0
    %545 = vmatpush1.msra.mxu0 %v531
    %546 = vmatprep.subr.mxu0 0.0
    %547 = vmatpush1.msra.mxu0 %v532
    %548 = vmatprep.subr.mxu0 0.0
    %549 = vmatpush1.msra.mxu0 %v533
    %550 = vmatprep.subr.mxu0 0.0
    %551 = vmatpush1.msra.mxu0 0.0
    %552 = vmatprep.subr.mxu0 0.0
    %553 = vmatpush1.msra.mxu0 0.0
    %554 = vmatprep.subr.mxu0 0.0
    %555 = vmatpush1.msra.mxu0 0.0
    %556 = vmatprep.subr.mxu0 0.0
    %557 = vmatpush1.msra.mxu0 0.0
    %558 = vmatprep.subr.mxu0 0.0
    %559 = vmatpush1.msra.mxu0 0.0
    %560 = vmatprep.subr.mxu0 0.0
    %561 = vmatpush1.msra.mxu0 0.0
    %562 = vmatprep.subr.mxu0 0.0
    %563 = vmatpush1.msra.mxu0 0.0
    %564 = vmatprep.subr.mxu0 0.0
    %565 = vmatpush1.msra.mxu0 0.0
    %566 = vmatprep.subr.mxu0 0.0
    %567 = vmatpush1.msra.mxu0 0.0
    %568 = vmatprep.subr.mxu0 0.0
    %569 = vmatpush1.msra.mxu0 0.0
    %570 = vmatprep.subr.mxu0 0.0
    %571 = vmatpush1.msra.mxu0 0.0
    %572 = vmatprep.subr.mxu0 0.0
    %573 = vmatpush1.msra.mxu0 0.0
    %574 = vmatprep.subr.mxu0 0.0
    %575 = vmatpush1.msra.mxu0 0.0
    %576 = vmatprep.subr.mxu0 0.0
    %577 = vmatpush1.msra.mxu0 0.0
    %578 = vmatprep.subr.mxu0 0.0
    %579 = vmatpush1.msra.mxu0 0.0
    %580 = vmatprep.subr.mxu0 0.0
    %581 = vmatpush1.msra.mxu0 0.0
    %582 = vmatprep.subr.mxu0 0.0
    %583 = vmatpush1.msra.mxu0 0.0
    %584 = vmatprep.subr.mxu0 0.0
    %585 = vmatpush1.msra.mxu0 0.0
    %586 = vmatprep.subr.mxu0 0.0
    %587 = vmatpush1.msra.mxu0 0.0
    %588 = vmatprep.subr.mxu0 0.0
    %589 = vmatpush1.msra.mxu0 0.0
    %590 = vmatprep.subr.mxu0 0.0
    %591 = vmatpush1.msra.mxu0 0.0
    %592 = vmatprep.subr.mxu0 0.0
    %593 = vmatpush1.msra.mxu0 0.0
    %594 = vmatprep.subr.mxu0 0.0
    %595 = vmatpush1.msra.mxu0 0.0
    %596 = vmatprep.subr.mxu0 0.0
    %597 = vmatpush1.msra.mxu0 0.0
    %598 = vmatprep.subr.mxu0 0.0
    %599 = vmatpush1.msra.mxu0 0.0
    %600 = vmatprep.subr.mxu0 0.0
    %601 = vmatpush1.msra.mxu0 0.0
    %602 = vmatprep.subr.mxu0 0.0
    %603 = vmatpush1.msra.mxu0 0.0
    %604 = vmatprep.subr.mxu0 0.0
    %605 = vmatpush1.msra.mxu0 0.0
    %606 = vmatprep.mubr.f32.mxu0 0.0
    %607 = vmatmul.mubr.f32.gmra.mrb[0].mxu0 %v280
    %v608 = vpop.f32.mrb[0].mxu0
    %v609 = vadd.f32 %v540, %v608
    %v610 = vpop.f32.mrb[0].mxu0
    %611 = vdwg.mxu0
    %v612 = vadd.f32 %v243, %v609
    %v613 = vsub.f32 0.0, %v612
    %v614 = vmul.f32 %v613, 1.442695
    %v615 = vpow.pop %v614
    %v616 = vadd.f32 %v615, 1.0
    %v617 = vrcp.pop %v616
    %v618 = vmul.f32 1.0, %v617
    %620 = vrot.lane.b32.xlu0 %v609, 64
    %v621 = vpop.permute.xlu0 %620
    %v623 = vmul.f32 %v618, %v621
    %625 = vrot.lane.b32.xlu0 %v623, 64
    %v626 = vpop.permute.xlu0 %625
    %v628 = vadd.f32 %v243, %v626
    %v629 = vtanh.pop %v628
    %v630 = vsub.f32 1.0, %v618
    %632 = vrot.lane.b32.xlu0 %v629, 96
    %v633 = vpop.permute.xlu0 %632
    %v635 = vmul.f32 %v630, %v633
    %v636 = vmul.f32 %v618, 0.0
    %v637 = vadd.f32 %v635, %v636
    %v638 = vadd.f32 %v637, 0.0
    %640 = vset.pattern.permute.xlu0 0
    %641 = vperm.xlu0 %640, %v263
    %v642 = vpop.permute.xlu0 %641
    %v644 = vmul.f32 %v642, %v637
    %s645 = scalar_lea.vmem %s8, 96
    %v646 = vld [vmem:[%s645] sm:$0xff]
    %v647 = vld [vmem:[%s645 + $0x8] sm:$0xff]
    %v648 = vld [vmem:[%s645 + $0x10] sm:$0xff]
    %v649 = vld [vmem:[%s645 + $0x18] sm:$0xff]
    %s650 = scalar_lea.vmem %s9, 3
    %v651 = vld [vmem:[%s650] sm:$0x1]
    %v653 = vlaneseq
    %v654 = vshrl.u32 %v653, 7
    %v655 = vsub.s32 0, %v654
    %v656 = vrot.slane %v651, %v655
    %658 = vmatprep.subr.mxu0 0.0
    %659 = vmatpush1.msra.mxu0 %v646
    %660 = vmatprep.subr.mxu0 0.0
    %661 = vmatpush1.msra.mxu0 %v647
    %662 = vmatprep.subr.mxu0 0.0
    %663 = vmatpush1.msra.mxu0 %v648
    %664 = vmatprep.subr.mxu0 0.0
    %665 = vmatpush1.msra.mxu0 %v649
    %666 = vmatprep.subr.mxu0 0.0
    %667 = vmatpush1.msra.mxu0 0.0
    %668 = vmatprep.subr.mxu0 0.0
    %669 = vmatpush1.msra.mxu0 0.0
    %670 = vmatprep.subr.mxu0 0.0
    %671 = vmatpush1.msra.mxu0 0.0
    %672 = vmatprep.subr.mxu0 0.0
    %673 = vmatpush1.msra.mxu0 0.0
    %674 = vmatprep.subr.mxu0 0.0
    %675 = vmatpush1.msra.mxu0 0.0
    %676 = vmatprep.subr.mxu0 0.0
    %677 = vmatpush1.msra.mxu0 0.0
    %678 = vmatprep.subr.mxu0 0.0
    %679 = vmatpush1.msra.mxu0 0.0
    %680 = vmatprep.subr.mxu0 0.0
    %681 = vmatpush1.msra.mxu0 0.0
    %682 = vmatprep.subr.mxu0 0.0
    %683 = vmatpush1.msra.mxu0 0.0
    %684 = vmatprep.subr.mxu0 0.0
    %685 = vmatpush1.msra.mxu0 0.0
    %686 = vmatprep.subr.mxu0 0.0
    %687 = vmatpush1.msra.mxu0 0.0
    %688 = vmatprep.subr.mxu0 0.0
    %689 = vmatpush1.msra.mxu0 0.0
    %690 = vmatprep.subr.mxu0 0.0
    %691 = vmatpush1.msra.mxu0 0.0
    %692 = vmatprep.subr.mxu0 0.0
    %693 = vmatpush1.msra.mxu0 0.0
    %694 = vmatprep.subr.mxu0 0.0
    %695 = vmatpush1.msra.mxu0 0.0
    %696 = vmatprep.subr.mxu0 0.0
    %697 = vmatpush1.msra.mxu0 0.0
    %698 = vmatprep.subr.mxu0 0.0
    %699 = vmatpush1.msra.mxu0 0.0
    %700 = vmatprep.subr.mxu0 0.0
    %701 = vmatpush1.msra.mxu0 0.0
    %702 = vmatprep.subr.mxu0 0.0
    %703 = vmatpush1.msra.mxu0 0.0
    %704 = vmatprep.subr.mxu0 0.0
    %705 = vmatpush1.msra.mxu0 0.0
    %706 = vmatprep.subr.mxu0 0.0
    %707 = vmatpush1.msra.mxu0 0.0
    %708 = vmatprep.subr.mxu0 0.0
    %709 = vmatpush1.msra.mxu0 0.0
    %710 = vmatprep.subr.mxu0 0.0
    %711 = vmatpush1.msra.mxu0 0.0
    %712 = vmatprep.subr.mxu0 0.0
    %713 = vmatpush1.msra.mxu0 0.0
    %714 = vmatprep.subr.mxu0 0.0
    %715 = vmatpush1.msra.mxu0 0.0
    %716 = vmatprep.subr.mxu0 0.0
    %717 = vmatpush1.msra.mxu0 0.0
    %718 = vmatprep.subr.mxu0 0.0
    %719 = vmatpush1.msra.mxu0 0.0
    %720 = vmatprep.subr.mxu0 0.0
    %721 = vmatpush1.msra.mxu0 0.0
    %722 = vmatprep.mubr.f32.mxu0 0.0
    %723 = vmatmul.mubr.f32.gmra.mrb[0].mxu0 %v280
    %v724 = vpop.f32.mrb[0].mxu0
    %v725 = vadd.f32 %v656, %v724
    %v726 = vpop.f32.mrb[0].mxu0
    %727 = vdwg.mxu0
    %v729 = vrot.slane %v725, 2
    %730 = vrot.lane.b32.xlu0 %v729, 96
    %v731 = vpop.permute.xlu0 %730
    %v733 = vadd.f32 %v249, %v731
    %v734 = vsub.f32 0.0, %v733
    %v735 = vmul.f32 %v734, 1.442695
    %v736 = vpow.pop %v735
    %v737 = vadd.f32 %v736, 1.0
    %v738 = vrcp.pop %v737
    %v739 = vmul.f32 1.0, %v738
    %v740 = vadd.f32 %v251, %v731
    %v741 = vsub.f32 0.0, %v740
    %v742 = vmul.f32 %v741, 1.442695
    %v743 = vpow.pop %v742
    %v744 = vadd.f32 %v743, 1.0
    %v745 = vrcp.pop %v744
    %v746 = vmul.f32 1.0, %v745
    %747 = vrot.lane.b32.xlu0 %v729, 32
    %v748 = vpop.permute.xlu0 %747
    %v750 = vmul.f32 %v739, %v748
    %752 = vrot.lane.b32.xlu0 %v750, 64
    %v753 = vpop.permute.xlu0 %752
    %v755 = vadd.f32 %v251, %v753
    %v756 = vtanh.pop %v755
    %v757 = vsub.f32 1.0, %v746
    %759 = vrot.lane.b32.xlu0 %v756, 96
    %v760 = vpop.permute.xlu0 %759
    %v762 = vmul.f32 %v757, %v760
    %v763 = vmul.f32 %v746, 0.0
    %v764 = vadd.f32 %v762, %v763
    %v765 = vadd.f32 %v764, 0.0
    %767 = vset.pattern.permute.xlu0 0
    %768 = vperm.xlu0 %767, %v266
    %v769 = vpop.permute.xlu0 %768
    %v772 = vrot.slane %v764, 6
    %v774 = vmul.f32 %v769, %v772
    %776 = vrot.lane.b32.xlu0 %v391, 96
    %v777 = vpop.permute.xlu0 %776
    %780 = vrot.lane.b32.xlu0 %v528, 32
    %v781 = vpop.permute.xlu0 %780
    %784 = vrot.lane.b32.xlu0 %v638, 32
    %v785 = vpop.permute.xlu0 %784
    %v788 = vrot.slane %v765, 6
    %789 = vrot.lane.b32.xlu0 %v788, 96
    %v790 = vpop.permute.xlu0 %789
    %v792 = vsel %vm278, %v777, %v781
    %vm793 = vcmask 523264
    %v794 = vsel %vm793, %v792, %v785
    %vm795 = vcmask 785408
    %v796 = vsel %vm795, %v794, %v790
    %798 = vrot.lane.b32.xlu0 %v383, 96
    %v799 = vpop.permute.xlu0 %798
    %802 = vrot.lane.b32.xlu0 %v520, 32
    %v803 = vpop.permute.xlu0 %802
    %806 = vrot.lane.b32.xlu0 %v644, 32
    %v807 = vpop.permute.xlu0 %806
    %810 = vrot.lane.b32.xlu0 %v774, 96
    %v811 = vpop.permute.xlu0 %810
    %v813 = vsel %vm278, %v799, %v803
    %v814 = vsel %vm793, %v813, %v807
    %v815 = vsel %vm795, %v814, %v811
    %v816 = vadd.f32 %v815, 0.0
    %vm817 = vcmp.gt.s32.totalorder %v253, 1
    %v818 = vsel %vm817, 1, 0
    %v819 = vcvt.s32.f32 %v818
    %vm820 = vcmp.gt.s32.totalorder %v253, 6
    %v821 = vsel %vm820, 1, 0
    %v822 = vcvt.s32.f32 %v821
    %vm823 = vcmp.gt.s32.totalorder %v254, 1
    %v824 = vsel %vm823, 1, 0
    %v825 = vcvt.s32.f32 %v824
    %vm826 = vcmp.gt.s32.totalorder %v254, 6
    %v827 = vsel %vm826, 1, 0
    %v828 = vcvt.s32.f32 %v827
    %v830 = vsel %vm278, %v796, 0
    %832 = vmatprep.subr.mxu0 0.0
    %833 = vmatpush1.msra.mxu0 %v267
    %834 = vmatprep.subr.mxu0 0.0
    %835 = vmatpush1.msra.mxu0 %v268
    %836 = vmatprep.subr.mxu0 0.0
    %837 = vmatpush1.msra.mxu0 %v269
    %838 = vmatprep.subr.mxu0 0.0
    %839 = vmatpush1.msra.mxu0 %v270
    %840 = vmatprep.subr.mxu0 0.0
    %841 = vmatpush1.msra.mxu0 0.0
    %842 = vmatprep.subr.mxu0 0.0
    %843 = vmatpush1.msra.mxu0 0.0
    %844 = vmatprep.subr.mxu0 0.0
    %845 = vmatpush1.msra.mxu0 0.0
    %846 = vmatprep.subr.mxu0 0.0
    %847 = vmatpush1.msra.mxu0 0.0
    %848 = vmatprep.subr.mxu0 0.0
    %849 = vmatpush1.msra.mxu0 0.0
    %850 = vmatprep.subr.mxu0 0.0
    %851 = vmatpush1.msra.mxu0 0.0
    %852 = vmatprep.subr.mxu0 0.0
    %853 = vmatpush1.msra.mxu0 0.0
    %854 = vmatprep.subr.mxu0 0.0
    %855 = vmatpush1.msra.mxu0 0.0
    %856 = vmatprep.subr.mxu0 0.0
    %857 = vmatpush1.msra.mxu0 0.0
    %858 = vmatprep.subr.mxu0 0.0
    %859 = vmatpush1.msra.mxu0 0.0
    %860 = vmatprep.subr.mxu0 0.0
    %861 = vmatpush1.msra.mxu0 0.0
    %862 = vmatprep.subr.mxu0 0.0
    %863 = vmatpush1.msra.mxu0 0.0
    %864 = vmatprep.subr.mxu0 0.0
    %865 = vmatpush1.msra.mxu0 0.0
    %866 = vmatprep.subr.mxu0 0.0
    %867 = vmatpush1.msra.mxu0 0.0
    %868 = vmatprep.subr.mxu0 0.0
    %869 = vmatpush1.msra.mxu0 0.0
    %870 = vmatprep.subr.mxu0 0.0
    %871 = vmatpush1.msra.mxu0 0.0
    %872 = vmatprep.subr.mxu0 0.0
    %873 = vmatpush1.msra.mxu0 0.0
    %874 = vmatprep.subr.mxu0 0.0
    %875 = vmatpush1.msra.mxu0 0.0
    %876 = vmatprep.subr.mxu0 0.0
    %877 = vmatpush1.msra.mxu0 0.0
    %878 = vmatprep.subr.mxu0 0.0
    %879 = vmatpush1.msra.mxu0 0.0
    %880 = vmatprep.subr.mxu0 0.0
    %881 = vmatpush1.msra.mxu0 0.0
    %882 = vmatprep.subr.mxu0 0.0
    %883 = vmatpush1.msra.mxu0 0.0
    %884 = vmatprep.subr.mxu0 0.0
    %885 = vmatpush1.msra.mxu0 0.0
    %886 = vmatprep.subr.mxu0 0.0
    %887 = vmatpush1.msra.mxu0 0.0
    %888 = vmatprep.subr.mxu0 0.0
    %889 = vmatpush1.msra.mxu0 0.0
    %890 = vmatprep.subr.mxu0 0.0
    %891 = vmatpush1.msra.mxu0 0.0
    %892 = vmatprep.subr.mxu0 0.0
    %893 = vmatpush1.msra.mxu0 0.0
    %894 = vmatprep.subr.mxu0 0.0
    %895 = vmatpush1.msra.mxu0 0.0
    %896 = vmatprep.mubr.f32.mxu0 0.0
    %897 = vmatmul.mubr.f32.gmra.mrb[0].mxu0 %v830
    %v898 = vpop.f32.mrb[0].mxu0
    %v899 = vadd.f32 %v276, %v898
    %v900 = vpop.f32.mrb[0].mxu0
    %901 = vdwg.mxu0
    %v903 = vrot.slane %v899, 6
    %v905 = vadd.f32 %v142, %v903
    %v906 = vsub.f32 0.0, %v905
    %v907 = vmul.f32 %v906, 1.442695
    %v908 = vpow.pop %v907
    %v909 = vadd.f32 %v908, 1.0
    %v910 = vrcp.pop %v909
    %v911 = vmul.f32 1.0, %v910
    %912 = vrot.lane.b32.xlu0 %v903, 64
    %v913 = vpop.permute.xlu0 %912
    %v915 = vmul.f32 %v911, %v913
    %917 = vrot.lane.b32.xlu0 %v915, 64
    %v918 = vpop.permute.xlu0 %917
    %v920 = vadd.f32 %v142, %v918
    %v921 = vtanh.pop %v920
    %v922 = vsub.f32 1.0, %v911
    %924 = vrot.lane.b32.xlu0 %v921, 96
    %v925 = vpop.permute.xlu0 %924
    %v927 = vmul.f32 %v922, %v925
    %v928 = vrot.slane %v796, 6
    %929 = vrot.lane.b32.xlu0 %v928, 32
    %v930 = vpop.permute.xlu0 %929
    %v932 = vmul.f32 %v911, %v930
    %v933 = vadd.f32 %v927, %v932
    %935 = vset.pattern.permute.xlu0 0
    %936 = vperm.xlu0 %935, %v819
    %v937 = vpop.permute.xlu0 %936
    %v940 = vrot.slane %v933, 2
    %941 = vrot.lane.b32.xlu0 %v940, 96
    %v942 = vpop.permute.xlu0 %941
    %v944 = vmul.f32 %v937, %v942
    %v945 = vsub.f32 1.0, %v819
    %947 = vset.pattern.permute.xlu0 0
    %948 = vperm.xlu0 %947, %v945
    %v949 = vpop.permute.xlu0 %948
    %v951 = vmul.f32 %v949, %v796
    %v952 = vadd.f32 %v944, %v951
    %953 = vrot.lane.b32.xlu0 %v796, 96
    %v954 = vpop.permute.xlu0 %953
    %v955 = vsel %vm278, %v954, 0
    %957 = vmatprep.subr.mxu0 0.0
    %958 = vmatpush1.msra.mxu0 %v393
    %959 = vmatprep.subr.mxu0 0.0
    %960 = vmatpush1.msra.mxu0 %v394
    %961 = vmatprep.subr.mxu0 0.0
    %962 = vmatpush1.msra.mxu0 %v395
    %963 = vmatprep.subr.mxu0 0.0
    %964 = vmatpush1.msra.mxu0 %v396
    %965 = vmatprep.subr.mxu0 0.0
    %966 = vmatpush1.msra.mxu0 0.0
    %967 = vmatprep.subr.mxu0 0.0
    %968 = vmatpush1.msra.mxu0 0.0
    %969 = vmatprep.subr.mxu0 0.0
    %970 = vmatpush1.msra.mxu0 0.0
    %971 = vmatprep.subr.mxu0 0.0
    %972 = vmatpush1.msra.mxu0 0.0
    %973 = vmatprep.subr.mxu0 0.0
    %974 = vmatpush1.msra.mxu0 0.0
    %975 = vmatprep.subr.mxu0 0.0
    %976 = vmatpush1.msra.mxu0 0.0
    %977 = vmatprep.subr.mxu0 0.0
    %978 = vmatpush1.msra.mxu0 0.0
    %979 = vmatprep.subr.mxu0 0.0
    %980 = vmatpush1.msra.mxu0 0.0
    %981 = vmatprep.subr.mxu0 0.0
    %982 = vmatpush1.msra.mxu0 0.0
    %983 = vmatprep.subr.mxu0 0.0
    %984 = vmatpush1.msra.mxu0 0.0
    %985 = vmatprep.subr.mxu0 0.0
    %986 = vmatpush1.msra.mxu0 0.0
    %987 = vmatprep.subr.mxu0 0.0
    %988 = vmatpush1.msra.mxu0 0.0
    %989 = vmatprep.subr.mxu0 0.0
    %990 = vmatpush1.msra.mxu0 0.0
    %991 = vmatprep.subr.mxu0 0.0
    %992 = vmatpush1.msra.mxu0 0.0
    %993 = vmatprep.subr.mxu0 0.0
    %994 = vmatpush1.msra.mxu0 0.0
    %995 = vmatprep.subr.mxu0 0.0
    %996 = vmatpush1.msra.mxu0 0.0
    %997 = vmatprep.subr.mxu0 0.0
    %998 = vmatpush1.msra.mxu0 0.0
    %999 = vmatprep.subr.mxu0 0.0
    %1000 = vmatpush1.msra.mxu0 0.0
    %1001 = vmatprep.subr.mxu0 0.0
    %1002 = vmatpush1.msra.mxu0 0.0
    %1003 = vmatprep.subr.mxu0 0.0
    %1004 = vmatpush1.msra.mxu0 0.0
    %1005 = vmatprep.subr.mxu0 0.0
    %1006 = vmatpush1.msra.mxu0 0.0
    %1007 = vmatprep.subr.mxu0 0.0
    %1008 = vmatpush1.msra.mxu0 0.0
    %1009 = vmatprep.subr.mxu0 0.0
    %1010 = vmatpush1.msra.mxu0 0.0
    %1011 = vmatprep.subr.mxu0 0.0
    %1012 = vmatpush1.msra.mxu0 0.0
    %1013 = vmatprep.subr.mxu0 0.0
    %1014 = vmatpush1.msra.mxu0 0.0
    %1015 = vmatprep.subr.mxu0 0.0
    %1016 = vmatpush1.msra.mxu0 0.0
    %1017 = vmatprep.subr.mxu0 0.0
    %1018 = vmatpush1.msra.mxu0 0.0
    %1019 = vmatprep.subr.mxu0 0.0
    %1020 = vmatpush1.msra.mxu0 0.0
    %1021 = vmatprep.mubr.f32.mxu0 0.0
    %1022 = vmatmul.mubr.f32.gmra.mrb[0].mxu0 %v955
    %v1023 = vpop.f32.mrb[0].mxu0
    %v1024 = vadd.f32 %v403, %v1023
    %v1025 = vpop.f32.mrb[0].mxu0
    %1026 = vdwg.mxu0
    %v1028 = vrot.slane %v1024, 4
    %1029 = vrot.lane.b32.xlu0 %v1028, 96
    %v1030 = vpop.permute.xlu0 %1029
    %v1032 = vadd.f32 %v148, %v1030
    %v1033 = vsub.f32 0.0, %v1032
    %v1034 = vmul.f32 %v1033, 1.442695
    %v1035 = vpow.pop %v1034
    %v1036 = vadd.f32 %v1035, 1.0
    %v1037 = vrcp.pop %v1036
    %v1038 = vmul.f32 1.0, %v1037
    %v1039 = vadd.f32 %v150, %v1030
    %v1040 = vsub.f32 0.0, %v1039
    %v1041 = vmul.f32 %v1040, 1.442695
    %v1042 = vpow.pop %v1041
    %v1043 = vadd.f32 %v1042, 1.0
    %v1044 = vrcp.pop %v1043
    %v1045 = vmul.f32 1.0, %v1044
    %1046 = vrot.lane.b32.xlu0 %v1028, 32
    %v1047 = vpop.permute.xlu0 %1046
    %v1049 = vmul.f32 %v1038, %v1047
    %1051 = vrot.lane.b32.xlu0 %v1049, 64
    %v1052 = vpop.permute.xlu0 %1051
    %v1054 = vadd.f32 %v150, %v1052
    %v1055 = vtanh.pop %v1054
    %v1056 = vsub.f32 1.0, %v1045
    %1058 = vrot.lane.b32.xlu0 %v1055, 96
    %v1059 = vpop.permute.xlu0 %1058
    %v1061 = vmul.f32 %v1056, %v1059
    %v1062 = vrot.slane %v796, 4
    %1063 = vrot.lane.b32.xlu0 %v1062, 96
    %v1064 = vpop.permute.xlu0 %1063
    %v1066 = vmul.f32 %v1045, %v1064
    %v1067 = vadd.f32 %v1061, %v1066
    %1069 = vset.pattern.permute.xlu0 0
    %1070 = vperm.xlu0 %1069, %v822
    %v1071 = vpop.permute.xlu0 %1070
    %v1074 = vrot.slane %v1067, 4
    %v1076 = vmul.f32 %v1071, %v1074
    %v1077 = vsub.f32 1.0, %v822
    %1079 = vset.pattern.permute.xlu0 0
    %1080 = vperm.xlu0 %1079, %v1077
    %v1081 = vpop.permute.xlu0 %1080
    %v1083 = vmul.f32 %v1081, %v796
    %1085 = vrot.lane.b32.xlu0 %v1083, 96
    %v1086 = vpop.permute.xlu0 %1085
    %v1088 = vadd.f32 %v1076, %v1086
    %1089 = vrot.lane.b32.xlu0 %v796, 64
    %v1090 = vpop.permute.xlu0 %1089
    %v1091 = vsel %vm278, %v1090, 0
    %1093 = vmatprep.subr.mxu0 0.0
    %1094 = vmatpush1.msra.mxu0 %v530
    %1095 = vmatprep.subr.mxu0 0.0
    %1096 = vmatpush1.msra.mxu0 %v531
    %1097 = vmatprep.subr.mxu0 0.0
    %1098 = vmatpush1.msra.mxu0 %v532
    %1099 = vmatprep.subr.mxu0 0.0
    %1100 = vmatpush1.msra.mxu0 %v533
    %1101 = vmatprep.subr.mxu0 0.0
    %1102 = vmatpush1.msra.mxu0 0.0
    %1103 = vmatprep.subr.mxu0 0.0
    %1104 = vmatpush1.msra.mxu0 0.0
    %1105 = vmatprep.subr.mxu0 0.0
    %1106 = vmatpush1.msra.mxu0 0.0
    %1107 = vmatprep.subr.mxu0 0.0
    %1108 = vmatpush1.msra.mxu0 0.0
    %1109 = vmatprep.subr.mxu0 0.0
    %1110 = vmatpush1.msra.mxu0 0.0
    %1111 = vmatprep.subr.mxu0 0.0
    %1112 = vmatpush1.msra.mxu0 0.0
    %1113 = vmatprep.subr.mxu0 0.0
    %1114 = vmatpush1.msra.mxu0 0.0
    %1115 = vmatprep.subr.mxu0 0.0
    %1116 = vmatpush1.msra.mxu0 0.0
    %1117 = vmatprep.subr.mxu0 0.0
    %1118 = vmatpush1.msra.mxu0 0.0
    %1119 = vmatprep.subr.mxu0 0.0
    %1120 = vmatpush1.msra.mxu0 0.0
    %1121 = vmatprep.subr.mxu0 0.0
    %1122 = vmatpush1.msra.mxu0 0.0
    %1123 = vmatprep.subr.mxu0 0.0
    %1124 = vmatpush1.msra.mxu0 0.0
    %1125 = vmatprep.subr.mxu0 0.0
    %1126 = vmatpush1.msra.mxu0 0.0
    %1127 = vmatprep.subr.mxu0 0.0
    %1128 = vmatpush1.msra.mxu0 0.0
    %1129 = vmatprep.subr.mxu0 0.0
    %1130 = vmatpush1.msra.mxu0 0.0
    %1131 = vmatprep.subr.mxu0 0.0
    %1132 = vmatpush1.msra.mxu0 0.0
    %1133 = vmatprep.subr.mxu0 0.0
    %1134 = vmatpush1.msra.mxu0 0.0
    %1135 = vmatprep.subr.mxu0 0.0
    %1136 = vmatpush1.msra.mxu0 0.0
    %1137 = vmatprep.subr.mxu0 0.0
    %1138 = vmatpush1.msra.mxu0 0.0
    %1139 = vmatprep.subr.mxu0 0.0
    %1140 = vmatpush1.msra.mxu0 0.0
    %1141 = vmatprep.subr.mxu0 0.0
    %1142 = vmatpush1.msra.mxu0 0.0
    %1143 = vmatprep.subr.mxu0 0.0
    %1144 = vmatpush1.msra.mxu0 0.0
    %1145 = vmatprep.subr.mxu0 0.0
    %1146 = vmatpush1.msra.mxu0 0.0
    %1147 = vmatprep.subr.mxu0 0.0
    %1148 = vmatpush1.msra.mxu0 0.0
    %1149 = vmatprep.subr.mxu0 0.0
    %1150 = vmatpush1.msra.mxu0 0.0
    %1151 = vmatprep.subr.mxu0 0.0
    %1152 = vmatpush1.msra.mxu0 0.0
    %1153 = vmatprep.subr.mxu0 0.0
    %1154 = vmatpush1.msra.mxu0 0.0
    %1155 = vmatprep.subr.mxu0 0.0
    %1156 = vmatpush1.msra.mxu0 0.0
    %1157 = vmatprep.mubr.f32.mxu0 0.0
    %1158 = vmatmul.mubr.f32.gmra.mrb[0].mxu0 %v1091
    %v1159 = vpop.f32.mrb[0].mxu0
    %v1160 = vadd.f32 %v540, %v1159
    %v1161 = vpop.f32.mrb[0].mxu0
    %1162 = vdwg.mxu0
    %v1164 = vrot.slane %v1160, 6
    %v1166 = vadd.f32 %v243, %v1164
    %v1167 = vsub.f32 0.0, %v1166
    %v1168 = vmul.f32 %v1167, 1.442695
    %v1169 = vpow.pop %v1168
    %v1170 = vadd.f32 %v1169, 1.0
    %v1171 = vrcp.pop %v1170
    %v1172 = vmul.f32 1.0, %v1171
    %1173 = vrot.lane.b32.xlu0 %v1164, 64
    %v1174 = vpop.permute.xlu0 %1173
    %v1176 = vmul.f32 %v1172, %v1174
    %1178 = vrot.lane.b32.xlu0 %v1176, 64
    %v1179 = vpop.permute.xlu0 %1178
    %v1181 = vadd.f32 %v243, %v1179
    %v1182 = vtanh.pop %v1181
    %v1183 = vsub.f32 1.0, %v1172
    %1185 = vrot.lane.b32.xlu0 %v1182, 96
    %v1186 = vpop.permute.xlu0 %1185
    %v1188 = vmul.f32 %v1183, %v1186
    %1189 = vrot.lane.b32.xlu0 %v928, 96
    %v1190 = vpop.permute.xlu0 %1189
    %v1192 = vmul.f32 %v1172, %v1190
    %v1193 = vadd.f32 %v1188, %v1192
    %v1194 = vmul.f32 %v796, 0.0
    %v1196 = vrot.slane %v1194, 6
    %1197 = vrot.lane.b32.xlu0 %v1196, 96
    %v1198 = vpop.permute.xlu0 %1197
    %v1200 = vadd.f32 %v1193, %v1198
    %1202 = vset.pattern.permute.xlu0 0
    %1203 = vperm.xlu0 %1202, %v825
    %v1204 = vpop.permute.xlu0 %1203
    %v1207 = vrot.slane %v1193, 2
    %1208 = vrot.lane.b32.xlu0 %v1207, 96
    %v1209 = vpop.permute.xlu0 %1208
    %v1211 = vmul.f32 %v1204, %v1209
    %1212 = vrot.lane.b32.xlu0 %v796, 32
    %v1213 = vpop.permute.xlu0 %1212
    %v1214 = vsel %vm278, %v1213, 0
    %1216 = vmatprep.subr.mxu0 0.0
    %1217 = vmatpush1.msra.mxu0 %v646
    %1218 = vmatprep.subr.mxu0 0.0
    %1219 = vmatpush1.msra.mxu0 %v647
    %1220 = vmatprep.subr.mxu0 0.0
    %1221 = vmatpush1.msra.mxu0 %v648
    %1222 = vmatprep.subr.mxu0 0.0
    %1223 = vmatpush1.msra.mxu0 %v649
    %1224 = vmatprep.subr.mxu0 0.0
    %1225 = vmatpush1.msra.mxu0 0.0
    %1226 = vmatprep.subr.mxu0 0.0
    %1227 = vmatpush1.msra.mxu0 0.0
    %1228 = vmatprep.subr.mxu0 0.0
    %1229 = vmatpush1.msra.mxu0 0.0
    %1230 = vmatprep.subr.mxu0 0.0
    %1231 = vmatpush1.msra.mxu0 0.0
    %1232 = vmatprep.subr.mxu0 0.0
    %1233 = vmatpush1.msra.mxu0 0.0
    %1234 = vmatprep.subr.mxu0 0.0
    %1235 = vmatpush1.msra.mxu0 0.0
    %1236 = vmatprep.subr.mxu0 0.0
    %1237 = vmatpush1.msra.mxu0 0.0
    %1238 = vmatprep.subr.mxu0 0.0
    %1239 = vmatpush1.msra.mxu0 0.0
    %1240 = vmatprep.subr.mxu0 0.0
    %1241 = vmatpush1.msra.mxu0 0.0
    %1242 = vmatprep.subr.mxu0 0.0
    %1243 = vmatpush1.msra.mxu0 0.0
    %1244 = vmatprep.subr.mxu0 0.0
    %1245 = vmatpush1.msra.mxu0 0.0
    %1246 = vmatprep.subr.mxu0 0.0
    %1247 = vmatpush1.msra.mxu0 0.0
    %1248 = vmatprep.subr.mxu0 0.0
    %1249 = vmatpush1.msra.mxu0 0.0
    %1250 = vmatprep.subr.mxu0 0.0
    %1251 = vmatpush1.msra.mxu0 0.0
    %1252 = vmatprep.subr.mxu0 0.0
    %1253 = vmatpush1.msra.mxu0 0.0
    %1254 = vmatprep.subr.mxu0 0.0
    %1255 = vmatpush1.msra.mxu0 0.0
    %1256 = vmatprep.subr.mxu0 0.0
    %1257 = vmatpush1.msra.mxu0 0.0
    %1258 = vmatprep.subr.mxu0 0.0
    %1259 = vmatpush1.msra.mxu0 0.0
    %1260 = vmatprep.subr.mxu0 0.0
    %1261 = vmatpush1.msra.mxu0 0.0
    %1262 = vmatprep.subr.mxu0 0.0
    %1263 = vmatpush1.msra.mxu0 0.0
    %1264 = vmatprep.subr.mxu0 0.0
    %1265 = vmatpush1.msra.mxu0 0.0
    %1266 = vmatprep.subr.mxu0 0.0
    %1267 = vmatpush1.msra.mxu0 0.0
    %1268 = vmatprep.subr.mxu0 0.0
    %1269 = vmatpush1.msra.mxu0 0.0
    %1270 = vmatprep.subr.mxu0 0.0
    %1271 = vmatpush1.msra.mxu0 0.0
    %1272 = vmatprep.subr.mxu0 0.0
    %1273 = vmatpush1.msra.mxu0 0.0
    %1274 = vmatprep.subr.mxu0 0.0
    %1275 = vmatpush1.msra.mxu0 0.0
    %1276 = vmatprep.subr.mxu0 0.0
    %1277 = vmatpush1.msra.mxu0 0.0
    %1278 = vmatprep.subr.mxu0 0.0
    %1279 = vmatpush1.msra.mxu0 0.0
    %1280 = vmatprep.mubr.f32.mxu0 0.0
    %1281 = vmatmul.mubr.f32.gmra.mrb[0].mxu0 %v1214
    %v1282 = vpop.f32.mrb[0].mxu0
    %v1283 = vadd.f32 %v656, %v1282
    %v1284 = vpop.f32.mrb[0].mxu0
    %1285 = vdwg.mxu0
    %v1287 = vrot.slane %v1283, 4
    %1288 = vrot.lane.b32.xlu0 %v1287, 96
    %v1289 = vpop.permute.xlu0 %1288
    %v1291 = vadd.f32 %v249, %v1289
    %v1292 = vsub.f32 0.0, %v1291
    %v1293 = vmul.f32 %v1292, 1.442695
    %v1294 = vpow.pop %v1293
    %v1295 = vadd.f32 %v1294, 1.0
    %v1296 = vrcp.pop %v1295
    %v1297 = vmul.f32 1.0, %v1296
    %v1298 = vadd.f32 %v251, %v1289
    %v1299 = vsub.f32 0.0, %v1298
    %v1300 = vmul.f32 %v1299, 1.442695
    %v1301 = vpow.pop %v1300
    %v1302 = vadd.f32 %v1301, 1.0
    %v1303 = vrcp.pop %v1302
    %v1304 = vmul.f32 1.0, %v1303
    %1305 = vrot.lane.b32.xlu0 %v1287, 32
    %v1306 = vpop.permute.xlu0 %1305
    %v1308 = vmul.f32 %v1297, %v1306
    %1310 = vrot.lane.b32.xlu0 %v1308, 64
    %v1311 = vpop.permute.xlu0 %1310
    %v1313 = vadd.f32 %v251, %v1311
    %v1314 = vtanh.pop %v1313
    %v1315 = vsub.f32 1.0, %v1304
    %1317 = vrot.lane.b32.xlu0 %v1314, 96
    %v1318 = vpop.permute.xlu0 %1317
    %v1320 = vmul.f32 %v1315, %v1318
    %1321 = vrot.lane.b32.xlu0 %v1062, 32
    %v1322 = vpop.permute.xlu0 %1321
    %v1324 = vmul.f32 %v1304, %v1322
    %v1325 = vadd.f32 %v1320, %v1324
    %v1326 = vrot.slane %v1194, 4
    %1327 = vrot.lane.b32.xlu0 %v1326, 32
    %v1328 = vpop.permute.xlu0 %1327
    %v1330 = vadd.f32 %v1325, %v1328
    %1332 = vset.pattern.permute.xlu0 0
    %1333 = vperm.xlu0 %1332, %v828
    %v1334 = vpop.permute.xlu0 %1333
    %v1337 = vrot.slane %v1325, 4
    %v1339 = vmul.f32 %v1334, %v1337
    %1341 = vrot.lane.b32.xlu0 %v1088, 32
    %v1342 = vpop.permute.xlu0 %1341
    %v1345 = vrot.slane %v1200, 2
    %1346 = vrot.lane.b32.xlu0 %v1345, 32
    %v1347 = vpop.permute.xlu0 %1346
    %v1350 = vrot.slane %v1330, 4
    %1351 = vrot.lane.b32.xlu0 %v1350, 96
    %v1352 = vpop.permute.xlu0 %1351
    %v1354 = vsel %vm278, %v952, %v1342
    %v1355 = vsel %vm793, %v1354, %v1347
    %v1356 = vsel %vm795, %v1355, %v1352
    %1358 = vrot.lane.b32.xlu0 %v1076, 32
    %v1359 = vpop.permute.xlu0 %1358
    %1362 = vrot.lane.b32.xlu0 %v1211, 64
    %v1363 = vpop.permute.xlu0 %1362
    %1366 = vrot.lane.b32.xlu0 %v1339, 96
    %v1367 = vpop.permute.xlu0 %1366
    %v1369 = vsel %vm278, %v944, %v1359
    %v1370 = vsel %vm793, %v1369, %v1363
    %v1371 = vsel %vm795, %v1370, %v1367
    %v1372 = vadd.f32 %v816, %v1371
    %vm1373 = vcmp.gt.s32.totalorder %v253, 2
    %v1374 = vsel %vm1373, 1, 0
    %v1375 = vcvt.s32.f32 %v1374
    %vm1376 = vcmp.gt.s32.totalorder %v253, 5
    %v1377 = vsel %vm1376, 1, 0
    %v1378 = vcvt.s32.f32 %v1377
    %vm1379 = vcmp.gt.s32.totalorder %v254, 2
    %v1380 = vsel %vm1379, 1, 0
    %v1381 = vcvt.s32.f32 %v1380
    %vm1382 = vcmp.gt.s32.totalorder %v254, 5
    %v1383 = vsel %vm1382, 1, 0
    %v1384 = vcvt.s32.f32 %v1383
    %v1386 = vsel %vm278, %v1356, 0
    %1388 = vmatprep.subr.mxu0 0.0
    %1389 = vmatpush1.msra.mxu0 %v267
    %1390 = vmatprep.subr.mxu0 0.0
    %1391 = vmatpush1.msra.mxu0 %v268
    %1392 = vmatprep.subr.mxu0 0.0
    %1393 = vmatpush1.msra.mxu0 %v269
    %1394 = vmatprep.subr.mxu0 0.0
    %1395 = vmatpush1.msra.mxu0 %v270
    %1396 = vmatprep.subr.mxu0 0.0
    %1397 = vmatpush1.msra.mxu0 0.0
    %1398 = vmatprep.subr.mxu0 0.0
    %1399 = vmatpush1.msra.mxu0 0.0
    %1400 = vmatprep.subr.mxu0 0.0
    %1401 = vmatpush1.msra.mxu0 0.0
    %1402 = vmatprep.subr.mxu0 0.0
    %1403 = vmatpush1.msra.mxu0 0.0
    %1404 = vmatprep.subr.mxu0 0.0
    %1405 = vmatpush1.msra.mxu0 0.0
    %1406 = vmatprep.subr.mxu0 0.0
    %1407 = vmatpush1.msra.mxu0 0.0
    %1408 = vmatprep.subr.mxu0 0.0
    %1409 = vmatpush1.msra.mxu0 0.0
    %1410 = vmatprep.subr.mxu0 0.0
    %1411 = vmatpush1.msra.mxu0 0.0
    %1412 = vmatprep.subr.mxu0 0.0
    %1413 = vmatpush1.msra.mxu0 0.0
    %1414 = vmatprep.subr.mxu0 0.0
    %1415 = vmatpush1.msra.mxu0 0.0
    %1416 = vmatprep.subr.mxu0 0.0
    %1417 = vmatpush1.msra.mxu0 0.0
    %1418 = vmatprep.subr.mxu0 0.0
    %1419 = vmatpush1.msra.mxu0 0.0
    %1420 = vmatprep.subr.mxu0 0.0
    %1421 = vmatpush1.msra.mxu0 0.0
    %1422 = vmatprep.subr.mxu0 0.0
    %1423 = vmatpush1.msra.mxu0 0.0
    %1424 = vmatprep.subr.mxu0 0.0
    %1425 = vmatpush1.msra.mxu0 0.0
    %1426 = vmatprep.subr.mxu0 0.0
    %1427 = vmatpush1.msra.mxu0 0.0
    %1428 = vmatprep.subr.mxu0 0.0
    %1429 = vmatpush1.msra.mxu0 0.0
    %1430 = vmatprep.subr.mxu0 0.0
    %1431 = vmatpush1.msra.mxu0 0.0
    %1432 = vmatprep.subr.mxu0 0.0
    %1433 = vmatpush1.msra.mxu0 0.0
    %1434 = vmatprep.subr.mxu0 0.0
    %1435 = vmatpush1.msra.mxu0 0.0
    %1436 = vmatprep.subr.mxu0 0.0
    %1437 = vmatpush1.msra.mxu0 0.0
    %1438 = vmatprep.subr.mxu0 0.0
    %1439 = vmatpush1.msra.mxu0 0.0
    %1440 = vmatprep.subr.mxu0 0.0
    %1441 = vmatpush1.msra.mxu0 0.0
    %1442 = vmatprep.subr.mxu0 0.0
    %1443 = vmatpush1.msra.mxu0 0.0
    %1444 = vmatprep.subr.mxu0 0.0
    %1445 = vmatpush1.msra.mxu0 0.0
    %1446 = vmatprep.subr.mxu0 0.0
    %1447 = vmatpush1.msra.mxu0 0.0
    %1448 = vmatprep.subr.mxu0 0.0
    %1449 = vmatpush1.msra.mxu0 0.0
    %1450 = vmatprep.subr.mxu0 0.0
    %1451 = vmatpush1.msra.mxu0 0.0
    %1452 = vmatprep.mubr.f32.mxu0 0.0
    %1453 = vmatmul.mubr.f32.gmra.mrb[0].mxu0 %v1386
    %v1454 = vpop.f32.mrb[0].mxu0
    %v1455 = vadd.f32 %v276, %v1454
    %v1456 = vpop.f32.mrb[0].mxu0
    %1457 = vdwg.mxu0
    %v1459 = vrot.slane %v1455, 4
    %v1461 = vadd.f32 %v142, %v1459
    %v1462 = vsub.f32 0.0, %v1461
    %v1463 = vmul.f32 %v1462, 1.442695
    %v1464 = vpow.pop %v1463
    %v1465 = vadd.f32 %v1464, 1.0
    %v1466 = vrcp.pop %v1465
    %v1467 = vmul.f32 1.0, %v1466
    %1468 = vrot.lane.b32.xlu0 %v1459, 64
    %v1469 = vpop.permute.xlu0 %1468
    %v1471 = vmul.f32 %v1467, %v1469
    %1473 = vrot.lane.b32.xlu0 %v1471, 64
    %v1474 = vpop.permute.xlu0 %1473
    %v1476 = vadd.f32 %v142, %v1474
    %v1477 = vtanh.pop %v1476
    %v1478 = vsub.f32 1.0, %v1467
    %1480 = vrot.lane.b32.xlu0 %v1477, 96
    %v1481 = vpop.permute.xlu0 %1480
    %v1483 = vmul.f32 %v1478, %v1481
    %v1484 = vrot.slane %v1356, 4
    %1485 = vrot.lane.b32.xlu0 %v1484, 32
    %v1486 = vpop.permute.xlu0 %1485
    %v1488 = vmul.f32 %v1467, %v1486
    %v1489 = vadd.f32 %v1483, %v1488
    %1491 = vset.pattern.permute.xlu0 0
    %1492 = vperm.xlu0 %1491, %v1375
    %v1493 = vpop.permute.xlu0 %1492
    %v1496 = vrot.slane %v1489, 4
    %1497 = vrot.lane.b32.xlu0 %v1496, 96
    %v1498 = vpop.permute.xlu0 %1497
    %v1500 = vmul.f32 %v1493, %v1498
    %v1501 = vsub.f32 1.0, %v1375
    %1503 = vset.pattern.permute.xlu0 0
    %1504 = vperm.xlu0 %1503, %v1501
    %v1505 = vpop.permute.xlu0 %1504
    %v1507 = vmul.f32 %v1505, %v1356
    %v1508 = vadd.f32 %v1500, %v1507
    %1509 = vrot.lane.b32.xlu0 %v1356, 96
    %v1510 = vpop.permute.xlu0 %1509
    %v1511 = vsel %vm278, %v1510, 0
    %1513 = vmatprep.subr.mxu0 0.0
    %1514 = vmatpush1.msra.mxu0 %v393
    %1515 = vmatprep.subr.mxu0 0.0
    %1516 = vmatpush1.msra.mxu0 %v394
    %1517 = vmatprep.subr.mxu0 0.0
    %1518 = vmatpush1.msra.mxu0 %v395
    %1519 = vmatprep.subr.mxu0 0.0
    %1520 = vmatpush1.msra.mxu0 %v396
    %1521 = vmatprep.subr.mxu0 0.0
    %1522 = vmatpush1.msra.mxu0 0.0
    %1523 = vmatprep.subr.mxu0 0.0
    %1524 = vmatpush1.msra.mxu0 0.0
    %1525 = vmatprep.subr.mxu0 0.0
    %1526 = vmatpush1.msra.mxu0 0.0
    %1527 = vmatprep.subr.mxu0 0.0
    %1528 = vmatpush1.msra.mxu0 0.0
    %1529 = vmatprep.subr.mxu0 0.0
    %1530 = vmatpush1.msra.mxu0 0.0
    %1531 = vmatprep.subr.mxu0 0.0
    %1532 = vmatpush1.msra.mxu0 0.0
    %1533 = vmatprep.subr.mxu0 0.0
    %1534 = vmatpush1.msra.mxu0 0.0
    %1535 = vmatprep.subr.mxu0 0.0
    %1536 = vmatpush1.msra.mxu0 0.0
    %1537 = vmatprep.subr.mxu0 0.0
    %1538 = vmatpush1.msra.mxu0 0.0
    %1539 = vmatprep.subr.mxu0 0.0
    %1540 = vmatpush1.msra.mxu0 0.0
    %1541 = vmatprep.subr.mxu0 0.0
    %1542 = vmatpush1.msra.mxu0 0.0
    %1543 = vmatprep.subr.mxu0 0.0
    %1544 = vmatpush1.msra.mxu0 0.0
    %1545 = vmatprep.subr.mxu0 0.0
    %1546 = vmatpush1.msra.mxu0 0.0
    %1547 = vmatprep.subr.mxu0 0.0
    %1548 = vmatpush1.msra.mxu0 0.0
    %1549 = vmatprep.subr.mxu0 0.0
    %1550 = vmatpush1.msra.mxu0 0.0
    %1551 = vmatprep.subr.mxu0 0.0
    %1552 = vmatpush1.msra.mxu0 0.0
    %1553 = vmatprep.subr.mxu0 0.0
    %1554 = vmatpush1.msra.mxu0 0.0
    %1555 = vmatprep.subr.mxu0 0.0
    %1556 = vmatpush1.msra.mxu0 0.0
    %1557 = vmatprep.subr.mxu0 0.0
    %1558 = vmatpush1.msra.mxu0 0.0
    %1559 = vmatprep.subr.mxu0 0.0
    %1560 = vmatpush1.msra.mxu0 0.0
    %1561 = vmatprep.subr.mxu0 0.0
    %1562 = vmatpush1.msra.mxu0 0.0
    %1563 = vmatprep.subr.mxu0 0.0
    %1564 = vmatpush1.msra.mxu0 0.0
    %1565 = vmatprep.subr.mxu0 0.0
    %1566 = vmatpush1.msra.mxu0 0.0
    %1567 = vmatprep.subr.mxu0 0.0
    %1568 = vmatpush1.msra.mxu0 0.0
    %1569 = vmatprep.subr.mxu0 0.0
    %1570 = vmatpush1.msra.mxu0 0.0
    %1571 = vmatprep.subr.mxu0 0.0
    %1572 = vmatpush1.msra.mxu0 0.0
    %1573 = vmatprep.subr.mxu0 0.0
    %1574 = vmatpush1.msra.mxu0 0.0
    %1575 = vmatprep.subr.mxu0 0.0
    %1576 = vmatpush1.msra.mxu0 0.0
    %1577 = vmatprep.mubr.f32.mxu0 0.0
    %1578 = vmatmul.mubr.f32.gmra.mrb[0].mxu0 %v1511
    %v1579 = vpop.f32.mrb[0].mxu0
    %v1580 = vadd.f32 %v403, %v1579
    %v1581 = vpop.f32.mrb[0].mxu0
    %1582 = vdwg.mxu0
    %v1584 = vrot.slane %v1580, 6
    %1585 = vrot.lane.b32.xlu0 %v1584, 96
    %v1586 = vpop.permute.xlu0 %1585
    %v1588 = vadd.f32 %v148, %v1586
    %v1589 = vsub.f32 0.0, %v1588
    %v1590 = vmul.f32 %v1589, 1.442695
    %v1591 = vpow.pop %v1590
    %v1592 = vadd.f32 %v1591, 1.0
    %v1593 = vrcp.pop %v1592
    %v1594 = vmul.f32 1.0, %v1593
    %v1595 = vadd.f32 %v150, %v1586
    %v1596 = vsub.f32 0.0, %v1595
    %v1597 = vmul.f32 %v1596, 1.442695
    %v1598 = vpow.pop %v1597
    %v1599 = vadd.f32 %v1598, 1.0
    %v1600 = vrcp.pop %v1599
    %v1601 = vmul.f32 1.0, %v1600
    %1602 = vrot.lane.b32.xlu0 %v1584, 32
    %v1603 = vpop.permute.xlu0 %1602
    %v1605 = vmul.f32 %v1594, %v1603
    %1607 = vrot.lane.b32.xlu0 %v1605, 64
    %v1608 = vpop.permute.xlu0 %1607
    %v1610 = vadd.f32 %v150, %v1608
    %v1611 = vtanh.pop %v1610
    %v1612 = vsub.f32 1.0, %v1601
    %1614 = vrot.lane.b32.xlu0 %v1611, 96
    %v1615 = vpop.permute.xlu0 %1614
    %v1617 = vmul.f32 %v1612, %v1615
    %v1618 = vrot.slane %v1356, 6
    %1619 = vrot.lane.b32.xlu0 %v1618, 96
    %v1620 = vpop.permute.xlu0 %1619
    %v1622 = vmul.f32 %v1601, %v1620
    %v1623 = vadd.f32 %v1617, %v1622
    %1625 = vset.pattern.permute.xlu0 0
    %1626 = vperm.xlu0 %1625, %v1378
    %v1627 = vpop.permute.xlu0 %1626
    %v1630 = vrot.slane %v1623, 2
    %v1632 = vmul.f32 %v1627, %v1630
    %v1633 = vsub.f32 1.0, %v1378
    %1635 = vset.pattern.permute.xlu0 0
    %1636 = vperm.xlu0 %1635, %v1633
    %v1637 = vpop.permute.xlu0 %1636
    %v1639 = vmul.f32 %v1637, %v1356
    %1641 = vrot.lane.b32.xlu0 %v1639, 96
    %v1642 = vpop.permute.xlu0 %1641
    %v1644 = vadd.f32 %v1632, %v1642
    %1645 = vrot.lane.b32.xlu0 %v1356, 64
    %v1646 = vpop.permute.xlu0 %1645
    %v1647 = vsel %vm278, %v1646, 0
    %1649 = vmatprep.subr.mxu0 0.0
    %1650 = vmatpush1.msra.mxu0 %v530
    %1651 = vmatprep.subr.mxu0 0.0
    %1652 = vmatpush1.msra.mxu0 %v531
    %1653 = vmatprep.subr.mxu0 0.0
    %1654 = vmatpush1.msra.mxu0 %v532
    %1655 = vmatprep.subr.mxu0 0.0
    %1656 = vmatpush1.msra.mxu0 %v533
    %1657 = vmatprep.subr.mxu0 0.0
    %1658 = vmatpush1.msra.mxu0 0.0
    %1659 = vmatprep.subr.mxu0 0.0
    %1660 = vmatpush1.msra.mxu0 0.0
    %1661 = vmatprep.subr.mxu0 0.0
    %1662 = vmatpush1.msra.mxu0 0.0
    %1663 = vmatprep.subr.mxu0 0.0
    %1664 = vmatpush1.msra.mxu0 0.0
    %1665 = vmatprep.subr.mxu0 0.0
    %1666 = vmatpush1.msra.mxu0 0.0
    %1667 = vmatprep.subr.mxu0 0.0
    %1668 = vmatpush1.msra.mxu0 0.0
    %1669 = vmatprep.subr.mxu0 0.0
    %1670 = vmatpush1.msra.mxu0 0.0
    %1671 = vmatprep.subr.mxu0 0.0
    %1672 = vmatpush1.msra.mxu0 0.0
    %1673 = vmatprep.subr.mxu0 0.0
    %1674 = vmatpush1.msra.mxu0 0.0
    %1675 = vmatprep.subr.mxu0 0.0
    %1676 = vmatpush1.msra.mxu0 0.0
    %1677 = vmatprep.subr.mxu0 0.0
    %1678 = vmatpush1.msra.mxu0 0.0
    %1679 = vmatprep.subr.mxu0 0.0
    %1680 = vmatpush1.msra.mxu0 0.0
    %1681 = vmatprep.subr.mxu0 0.0
    %1682 = vmatpush1.msra.mxu0 0.0
    %1683 = vmatprep.subr.mxu0 0.0
    %1684 = vmatpush1.msra.mxu0 0.0
    %1685 = vmatprep.subr.mxu0 0.0
    %1686 = vmatpush1.msra.mxu0 0.0
    %1687 = vmatprep.subr.mxu0 0.0
    %1688 = vmatpush1.msra.mxu0 0.0
    %1689 = vmatprep.subr.mxu0 0.0
    %1690 = vmatpush1.msra.mxu0 0.0
    %1691 = vmatprep.subr.mxu0 0.0
    %1692 = vmatpush1.msra.mxu0 0.0
    %1693 = vmatprep.subr.mxu0 0.0
    %1694 = vmatpush1.msra.mxu0 0.0
    %1695 = vmatprep.subr.mxu0 0.0
    %1696 = vmatpush1.msra.mxu0 0.0
    %1697 = vmatprep.subr.mxu0 0.0
    %1698 = vmatpush1.msra.mxu0 0.0
    %1699 = vmatprep.subr.mxu0 0.0
    %1700 = vmatpush1.msra.mxu0 0.0
    %1701 = vmatprep.subr.mxu0 0.0
    %1702 = vmatpush1.msra.mxu0 0.0
    %1703 = vmatprep.subr.mxu0 0.0
    %1704 = vmatpush1.msra.mxu0 0.0
    %1705 = vmatprep.subr.mxu0 0.0
    %1706 = vmatpush1.msra.mxu0 0.0
    %1707 = vmatprep.subr.mxu0 0.0
    %1708 = vmatpush1.msra.mxu0 0.0
    %1709 = vmatprep.subr.mxu0 0.0
    %1710 = vmatpush1.msra.mxu0 0.0
    %1711 = vmatprep.subr.mxu0 0.0
    %1712 = vmatpush1.msra.mxu0 0.0
    %1713 = vmatprep.mubr.f32.mxu0 0.0
    %1714 = vmatmul.mubr.f32.gmra.mrb[0].mxu0 %v1647
    %v1715 = vpop.f32.mrb[0].mxu0
    %v1716 = vadd.f32 %v540, %v1715
    %v1717 = vpop.f32.mrb[0].mxu0
    %1718 = vdwg.mxu0
    %v1720 = vrot.slane %v1716, 4
    %v1722 = vadd.f32 %v243, %v1720
    %v1723 = vsub.f32 0.0, %v1722
    %v1724 = vmul.f32 %v1723, 1.442695
    %v1725 = vpow.pop %v1724
    %v1726 = vadd.f32 %v1725, 1.0
    %v1727 = vrcp.pop %v1726
    %v1728 = vmul.f32 1.0, %v1727
    %1729 = vrot.lane.b32.xlu0 %v1720, 64
    %v1730 = vpop.permute.xlu0 %1729
    %v1732 = vmul.f32 %v1728, %v1730
    %1734 = vrot.lane.b32.xlu0 %v1732, 64
    %v1735 = vpop.permute.xlu0 %1734
    %v1737 = vadd.f32 %v243, %v1735
    %v1738 = vtanh.pop %v1737
    %v1739 = vsub.f32 1.0, %v1728
    %1741 = vrot.lane.b32.xlu0 %v1738, 96
    %v1742 = vpop.permute.xlu0 %1741
    %v1744 = vmul.f32 %v1739, %v1742
    %1745 = vrot.lane.b32.xlu0 %v1484, 96
    %v1746 = vpop.permute.xlu0 %1745
    %v1748 = vmul.f32 %v1728, %v1746
    %v1749 = vadd.f32 %v1744, %v1748
    %v1750 = vmul.f32 %v1356, 0.0
    %v1752 = vrot.slane %v1750, 4
    %1753 = vrot.lane.b32.xlu0 %v1752, 96
    %v1754 = vpop.permute.xlu0 %1753
    %v1756 = vadd.f32 %v1749, %v1754
    %1758 = vset.pattern.permute.xlu0 0
    %1759 = vperm.xlu0 %1758, %v1381
    %v1760 = vpop.permute.xlu0 %1759
    %v1763 = vrot.slane %v1749, 4
    %1764 = vrot.lane.b32.xlu0 %v1763, 96
    %v1765 = vpop.permute.xlu0 %1764
    %v1767 = vmul.f32 %v1760, %v1765
    %1768 = vrot.lane.b32.xlu0 %v1356, 32
    %v1769 = vpop.permute.xlu0 %1768
    %v1770 = vsel %vm278, %v1769, 0
    %1772 = vmatprep.subr.mxu0 0.0
    %1773 = vmatpush1.msra.mxu0 %v646
    %1774 = vmatprep.subr.mxu0 0.0
    %1775 = vmatpush1.msra.mxu0 %v647
    %1776 = vmatprep.subr.mxu0 0.0
    %1777 = vmatpush1.msra.mxu0 %v648
    %1778 = vmatprep.subr.mxu0 0.0
    %1779 = vmatpush1.msra.mxu0 %v649
    %1780 = vmatprep.subr.mxu0 0.0
    %1781 = vmatpush1.msra.mxu0 0.0
    %1782 = vmatprep.subr.mxu0 0.0
    %1783 = vmatpush1.msra.mxu0 0.0
    %1784 = vmatprep.subr.mxu0 0.0
    %1785 = vmatpush1.msra.mxu0 0.0
    %1786 = vmatprep.subr.mxu0 0.0
    %1787 = vmatpush1.msra.mxu0 0.0
    %1788 = vmatprep.subr.mxu0 0.0
    %1789 = vmatpush1.msra.mxu0 0.0
    %1790 = vmatprep.subr.mxu0 0.0
    %1791 = vmatpush1.msra.mxu0 0.0
    %1792 = vmatprep.subr.mxu0 0.0
    %1793 = vmatpush1.msra.mxu0 0.0
    %1794 = vmatprep.subr.mxu0 0.0
    %1795 = vmatpush1.msra.mxu0 0.0
    %1796 = vmatprep.subr.mxu0 0.0
    %1797 = vmatpush1.msra.mxu0 0.0
    %1798 = vmatprep.subr.mxu0 0.0
    %1799 = vmatpush1.msra.mxu0 0.0
    %1800 = vmatprep.subr.mxu0 0.0
    %1801 = vmatpush1.msra.mxu0 0.0
    %1802 = vmatprep.subr.mxu0 0.0
    %1803 = vmatpush1.msra.mxu0 0.0
    %1804 = vmatprep.subr.mxu0 0.0
    %1805 = vmatpush1.msra.mxu0 0.0
    %1806 = vmatprep.subr.mxu0 0.0
    %1807 = vmatpush1.msra.mxu0 0.0
    %1808 = vmatprep.subr.mxu0 0.0
    %1809 = vmatpush1.msra.mxu0 0.0
    %1810 = vmatprep.subr.mxu0 0.0
    %1811 = vmatpush1.msra.mxu0 0.0
    %1812 = vmatprep.subr.mxu0 0.0
    %1813 = vmatpush1.msra.mxu0 0.0
    %1814 = vmatprep.subr.mxu0 0.0
    %1815 = vmatpush1.msra.mxu0 0.0
    %1816 = vmatprep.subr.mxu0 0.0
    %1817 = vmatpush1.msra.mxu0 0.0
    %1818 = vmatprep.subr.mxu0 0.0
    %1819 = vmatpush1.msra.mxu0 0.0
    %1820 = vmatprep.subr.mxu0 0.0
    %1821 = vmatpush1.msra.mxu0 0.0
    %1822 = vmatprep.subr.mxu0 0.0
    %1823 = vmatpush1.msra.mxu0 0.0
    %1824 = vmatprep.subr.mxu0 0.0
    %1825 = vmatpush1.msra.mxu0 0.0
    %1826 = vmatprep.subr.mxu0 0.0
    %1827 = vmatpush1.msra.mxu0 0.0
    %1828 = vmatprep.subr.mxu0 0.0
    %1829 = vmatpush1.msra.mxu0 0.0
    %1830 = vmatprep.subr.mxu0 0.0
    %1831 = vmatpush1.msra.mxu0 0.0
    %1832 = vmatprep.subr.mxu0 0.0
    %1833 = vmatpush1.msra.mxu0 0.0
    %1834 = vmatprep.subr.mxu0 0.0
    %1835 = vmatpush1.msra.mxu0 0.0
    %1836 = vmatprep.mubr.f32.mxu0 0.0
    %1837 = vmatmul.mubr.f32.gmra.mrb[0].mxu0 %v1770
    %v1838 = vpop.f32.mrb[0].mxu0
    %v1839 = vadd.f32 %v656, %v1838
    %v1840 = vpop.f32.mrb[0].mxu0
    %1841 = vdwg.mxu0
    %v1843 = vrot.slane %v1839, 6
    %1844 = vrot.lane.b32.xlu0 %v1843, 96
    %v1845 = vpop.permute.xlu0 %1844
    %v1847 = vadd.f32 %v249, %v1845
    %v1848 = vsub.f32 0.0, %v1847
    %v1849 = vmul.f32 %v1848, 1.442695
    %v1850 = vpow.pop %v1849
    %v1851 = vadd.f32 %v1850, 1.0
    %v1852 = vrcp.pop %v1851
    %v1853 = vmul.f32 1.0, %v1852
    %v1854 = vadd.f32 %v251, %v1845
    %v1855 = vsub.f32 0.0, %v1854
    %v1856 = vmul.f32 %v1855, 1.442695
    %v1857 = vpow.pop %v1856
    %v1858 = vadd.f32 %v1857, 1.0
    %v1859 = vrcp.pop %v1858
    %v1860 = vmul.f32 1.0, %v1859
    %1861 = vrot.lane.b32.xlu0 %v1843, 32
    %v1862 = vpop.permute.xlu0 %1861
    %v1864 = vmul.f32 %v1853, %v1862
    %1866 = vrot.lane.b32.xlu0 %v1864, 64
    %v1867 = vpop.permute.xlu0 %1866
    %v1869 = vadd.f32 %v251, %v1867
    %v1870 = vtanh.pop %v1869
    %v1871 = vsub.f32 1.0, %v1860
    %1873 = vrot.lane.b32.xlu0 %v1870, 96
    %v1874 = vpop.permute.xlu0 %1873
    %v1876 = vmul.f32 %v1871, %v1874
    %1877 = vrot.lane.b32.xlu0 %v1618, 32
    %v1878 = vpop.permute.xlu0 %1877
    %v1880 = vmul.f32 %v1860, %v1878
    %v1881 = vadd.f32 %v1876, %v1880
    %v1882 = vrot.slane %v1750, 6
    %1883 = vrot.lane.b32.xlu0 %v1882, 32
    %v1884 = vpop.permute.xlu0 %1883
    %v1886 = vadd.f32 %v1881, %v1884
    %1888 = vset.pattern.permute.xlu0 0
    %1889 = vperm.xlu0 %1888, %v1384
    %v1890 = vpop.permute.xlu0 %1889
    %v1893 = vrot.slane %v1881, 2
    %v1895 = vmul.f32 %v1890, %v1893
    %1897 = vrot.lane.b32.xlu0 %v1644, 32
    %v1898 = vpop.permute.xlu0 %1897
    %v1901 = vrot.slane %v1756, 4
    %1902 = vrot.lane.b32.xlu0 %v1901, 32
    %v1903 = vpop.permute.xlu0 %1902
    %v1906 = vrot.slane %v1886, 2
    %1907 = vrot.lane.b32.xlu0 %v1906, 96
    %v1908 = vpop.permute.xlu0 %1907
    %v1910 = vsel %vm278, %v1508, %v1898
    %v1911 = vsel %vm793, %v1910, %v1903
    %v1912 = vsel %vm795, %v1911, %v1908
    %1914 = vrot.lane.b32.xlu0 %v1632, 32
    %v1915 = vpop.permute.xlu0 %1914
    %1918 = vrot.lane.b32.xlu0 %v1767, 64
    %v1919 = vpop.permute.xlu0 %1918
    %1922 = vrot.lane.b32.xlu0 %v1895, 96
    %v1923 = vpop.permute.xlu0 %1922
    %v1925 = vsel %vm278, %v1500, %v1915
    %v1926 = vsel %vm793, %v1925, %v1919
    %v1927 = vsel %vm795, %v1926, %v1923
    %v1928 = vadd.f32 %v1372, %v1927
    %vm1929 = vcmp.gt.s32.totalorder %v253, 3
    %v1930 = vsel %vm1929, 1, 0
    %v1931 = vcvt.s32.f32 %v1930
    %vm1932 = vcmp.gt.s32.totalorder %v253, 4
    %v1933 = vsel %vm1932, 1, 0
    %v1934 = vcvt.s32.f32 %v1933
    %vm1935 = vcmp.gt.s32.totalorder %v254, 3
    %v1936 = vsel %vm1935, 1, 0
    %v1937 = vcvt.s32.f32 %v1936
    %vm1938 = vcmp.gt.s32.totalorder %v254, 4
    %v1939 = vsel %vm1938, 1, 0
    %v1940 = vcvt.s32.f32 %v1939
    %v1942 = vsel %vm278, %v1912, 0
    %1944 = vmatprep.subr.mxu0 0.0
    %1945 = vmatpush1.msra.mxu0 %v267
    %1946 = vmatprep.subr.mxu0 0.0
    %1947 = vmatpush1.msra.mxu0 %v268
    %1948 = vmatprep.subr.mxu0 0.0
    %1949 = vmatpush1.msra.mxu0 %v269
    %1950 = vmatprep.subr.mxu0 0.0
    %1951 = vmatpush1.msra.mxu0 %v270
    %1952 = vmatprep.subr.mxu0 0.0
    %1953 = vmatpush1.msra.mxu0 0.0
    %1954 = vmatprep.subr.mxu0 0.0
    %1955 = vmatpush1.msra.mxu0 0.0
    %1956 = vmatprep.subr.mxu0 0.0
    %1957 = vmatpush1.msra.mxu0 0.0
    %1958 = vmatprep.subr.mxu0 0.0
    %1959 = vmatpush1.msra.mxu0 0.0
    %1960 = vmatprep.subr.mxu0 0.0
    %1961 = vmatpush1.msra.mxu0 0.0
    %1962 = vmatprep.subr.mxu0 0.0
    %1963 = vmatpush1.msra.mxu0 0.0
    %1964 = vmatprep.subr.mxu0 0.0
    %1965 = vmatpush1.msra.mxu0 0.0
    %1966 = vmatprep.subr.mxu0 0.0
    %1967 = vmatpush1.msra.mxu0 0.0
    %1968 = vmatprep.subr.mxu0 0.0
    %1969 = vmatpush1.msra.mxu0 0.0
    %1970 = vmatprep.subr.mxu0 0.0
    %1971 = vmatpush1.msra.mxu0 0.0
    %1972 = vmatprep.subr.mxu0 0.0
    %1973 = vmatpush1.msra.mxu0 0.0
    %1974 = vmatprep.subr.mxu0 0.0
    %1975 = vmatpush1.msra.mxu0 0.0
    %1976 = vmatprep.subr.mxu0 0.0
    %1977 = vmatpush1.msra.mxu0 0.0
    %1978 = vmatprep.subr.mxu0 0.0
    %1979 = vmatpush1.msra.mxu0 0.0
    %1980 = vmatprep.subr.mxu0 0.0
    %1981 = vmatpush1.msra.mxu0 0.0
    %1982 = vmatprep.subr.mxu0 0.0
    %1983 = vmatpush1.msra.mxu0 0.0
    %1984 = vmatprep.subr.mxu0 0.0
    %1985 = vmatpush1.msra.mxu0 0.0
    %1986 = vmatprep.subr.mxu0 0.0
    %1987 = vmatpush1.msra.mxu0 0.0
    %1988 = vmatprep.subr.mxu0 0.0
    %1989 = vmatpush1.msra.mxu0 0.0
    %1990 = vmatprep.subr.mxu0 0.0
    %1991 = vmatpush1.msra.mxu0 0.0
    %1992 = vmatprep.subr.mxu0 0.0
    %1993 = vmatpush1.msra.mxu0 0.0
    %1994 = vmatprep.subr.mxu0 0.0
    %1995 = vmatpush1.msra.mxu0 0.0
    %1996 = vmatprep.subr.mxu0 0.0
    %1997 = vmatpush1.msra.mxu0 0.0
    %1998 = vmatprep.subr.mxu0 0.0
    %1999 = vmatpush1.msra.mxu0 0.0
    %2000 = vmatprep.subr.mxu0 0.0
    %2001 = vmatpush1.msra.mxu0 0.0
    %2002 = vmatprep.subr.mxu0 0.0
    %2003 = vmatpush1.msra.mxu0 0.0
    %2004 = vmatprep.subr.mxu0 0.0
    %2005 = vmatpush1.msra.mxu0 0.0
    %2006 = vmatprep.subr.mxu0 0.0
    %2007 = vmatpush1.msra.mxu0 0.0
    %2008 = vmatprep.mubr.f32.mxu0 0.0
    %2009 = vmatmul.mubr.f32.gmra.mrb[0].mxu0 %v1942
    %v2010 = vpop.f32.mrb[0].mxu0
    %v2011 = vadd.f32 %v276, %v2010
    %v2012 = vpop.f32.mrb[0].mxu0
    %2013 = vdwg.mxu0
    %v2015 = vrot.slane %v2011, 2
    %v2017 = vadd.f32 %v142, %v2015
    %v2018 = vsub.f32 0.0, %v2017
    %v2019 = vmul.f32 %v2018, 1.442695
    %v2020 = vpow.pop %v2019
    %v2021 = vadd.f32 %v2020, 1.0
    %v2022 = vrcp.pop %v2021
    %v2023 = vmul.f32 1.0, %v2022
    %2024 = vrot.lane.b32.xlu0 %v2015, 64
    %v2025 = vpop.permute.xlu0 %2024
    %v2027 = vmul.f32 %v2023, %v2025
    %2029 = vrot.lane.b32.xlu0 %v2027, 64
    %v2030 = vpop.permute.xlu0 %2029
    %v2032 = vadd.f32 %v142, %v2030
    %v2033 = vtanh.pop %v2032
    %v2034 = vsub.f32 1.0, %v2023
    %2036 = vrot.lane.b32.xlu0 %v2033, 96
    %v2037 = vpop.permute.xlu0 %2036
    %v2039 = vmul.f32 %v2034, %v2037
    %v2040 = vrot.slane %v1912, 2
    %2041 = vrot.lane.b32.xlu0 %v2040, 32
    %v2042 = vpop.permute.xlu0 %2041
    %v2044 = vmul.f32 %v2023, %v2042
    %v2045 = vadd.f32 %v2039, %v2044
    %2047 = vset.pattern.permute.xlu0 0
    %2048 = vperm.xlu0 %2047, %v1931
    %v2049 = vpop.permute.xlu0 %2048
    %v2052 = vrot.slane %v2045, 6
    %2053 = vrot.lane.b32.xlu0 %v2052, 96
    %v2054 = vpop.permute.xlu0 %2053
    %v2056 = vmul.f32 %v2049, %v2054
    %v2057 = vsub.f32 1.0, %v1931
    %2059 = vset.pattern.permute.xlu0 0
    %2060 = vperm.xlu0 %2059, %v2057
    %v2061 = vpop.permute.xlu0 %2060
    %v2063 = vmul.f32 %v2061, %v1912
    %v2064 = vadd.f32 %v2056, %v2063
    %2065 = vrot.lane.b32.xlu0 %v1912, 96
    %v2066 = vpop.permute.xlu0 %2065
    %v2067 = vsel %vm278, %v2066, 0
    %2069 = vmatprep.subr.mxu0 0.0
    %2070 = vmatpush1.msra.mxu0 %v393
    %2071 = vmatprep.subr.mxu0 0.0
    %2072 = vmatpush1.msra.mxu0 %v394
    %2073 = vmatprep.subr.mxu0 0.0
    %2074 = vmatpush1.msra.mxu0 %v395
    %2075 = vmatprep.subr.mxu0 0.0
    %2076 = vmatpush1.msra.mxu0 %v396
    %2077 = vmatprep.subr.mxu0 0.0
    %2078 = vmatpush1.msra.mxu0 0.0
    %2079 = vmatprep.subr.mxu0 0.0
    %2080 = vmatpush1.msra.mxu0 0.0
    %2081 = vmatprep.subr.mxu0 0.0
    %2082 = vmatpush1.msra.mxu0 0.0
    %2083 = vmatprep.subr.mxu0 0.0
    %2084 = vmatpush1.msra.mxu0 0.0
    %2085 = vmatprep.subr.mxu0 0.0
    %2086 = vmatpush1.msra.mxu0 0.0
    %2087 = vmatprep.subr.mxu0 0.0
    %2088 = vmatpush1.msra.mxu0 0.0
    %2089 = vmatprep.subr.mxu0 0.0
    %2090 = vmatpush1.msra.mxu0 0.0
    %2091 = vmatprep.subr.mxu0 0.0
    %2092 = vmatpush1.msra.mxu0 0.0
    %2093 = vmatprep.subr.mxu0 0.0
    %2094 = vmatpush1.msra.mxu0 0.0
    %2095 = vmatprep.subr.mxu0 0.0
    %2096 = vmatpush1.msra.mxu0 0.0
    %2097 = vmatprep.subr.mxu0 0.0
    %2098 = vmatpush1.msra.mxu0 0.0
    %2099 = vmatprep.subr.mxu0 0.0
    %2100 = vmatpush1.msra.mxu0 0.0
    %2101 = vmatprep.subr.mxu0 0.0
    %2102 = vmatpush1.msra.mxu0 0.0
    %2103 = vmatprep.subr.mxu0 0.0
    %2104 = vmatpush1.msra.mxu0 0.0
    %2105 = vmatprep.subr.mxu0 0.0
    %2106 = vmatpush1.msra.mxu0 0.0
    %2107 = vmatprep.subr.mxu0 0.0
    %2108 = vmatpush1.msra.mxu0 0.0
    %2109 = vmatprep.subr.mxu0 0.0
    %2110 = vmatpush1.msra.mxu0 0.0
    %2111 = vmatprep.subr.mxu0 0.0
    %2112 = vmatpush1.msra.mxu0 0.0
    %2113 = vmatprep.subr.mxu0 0.0
    %2114 = vmatpush1.msra.mxu0 0.0
    %2115 = vmatprep.subr.mxu0 0.0
    %2116 = vmatpush1.msra.mxu0 0.0
    %2117 = vmatprep.subr.mxu0 0.0
    %2118 = vmatpush1.msra.mxu0 0.0
    %2119 = vmatprep.subr.mxu0 0.0
    %2120 = vmatpush1.msra.mxu0 0.0
    %2121 = vmatprep.subr.mxu0 0.0
    %2122 = vmatpush1.msra.mxu0 0.0
    %2123 = vmatprep.subr.mxu0 0.0
    %2124 = vmatpush1.msra.mxu0 0.0
    %2125 = vmatprep.subr.mxu0 0.0
    %2126 = vmatpush1.msra.mxu0 0.0
    %2127 = vmatprep.subr.mxu0 0.0
    %2128 = vmatpush1.msra.mxu0 0.0
    %2129 = vmatprep.subr.mxu0 0.0
    %2130 = vmatpush1.msra.mxu0 0.0
    %2131 = vmatprep.subr.mxu0 0.0
    %2132 = vmatpush1.msra.mxu0 0.0
    %2133 = vmatprep.mubr.f32.mxu0 0.0
    %2134 = vmatmul.mubr.f32.gmra.mrb[0].mxu0 %v2067
    %v2135 = vpop.f32.mrb[0].mxu0
    %v2136 = vadd.f32 %v403, %v2135
    %v2137 = vpop.f32.mrb[0].mxu0
    %2138 = vdwg.mxu0
    %2140 = vrot.lane.b32.xlu0 %v2136, 96
    %v2141 = vpop.permute.xlu0 %2140
    %v2143 = vadd.f32 %v148, %v2141
    %v2144 = vsub.f32 0.0, %v2143
    %v2145 = vmul.f32 %v2144, 1.442695
    %v2146 = vpow.pop %v2145
    %v2147 = vadd.f32 %v2146, 1.0
    %v2148 = vrcp.pop %v2147
    %v2149 = vmul.f32 1.0, %v2148
    %v2150 = vadd.f32 %v150, %v2141
    %v2151 = vsub.f32 0.0, %v2150
    %v2152 = vmul.f32 %v2151, 1.442695
    %v2153 = vpow.pop %v2152
    %v2154 = vadd.f32 %v2153, 1.0
    %v2155 = vrcp.pop %v2154
    %v2156 = vmul.f32 1.0, %v2155
    %2157 = vrot.lane.b32.xlu0 %v2136, 32
    %v2158 = vpop.permute.xlu0 %2157
    %v2160 = vmul.f32 %v2149, %v2158
    %2162 = vrot.lane.b32.xlu0 %v2160, 64
    %v2163 = vpop.permute.xlu0 %2162
    %v2165 = vadd.f32 %v150, %v2163
    %v2166 = vtanh.pop %v2165
    %v2167 = vsub.f32 1.0, %v2156
    %2169 = vrot.lane.b32.xlu0 %v2166, 96
    %v2170 = vpop.permute.xlu0 %2169
    %v2172 = vmul.f32 %v2167, %v2170
    %v2174 = vmul.f32 %v2156, %v2066
    %v2175 = vadd.f32 %v2172, %v2174
    %2177 = vset.pattern.permute.xlu0 0
    %2178 = vperm.xlu0 %2177, %v1934
    %v2179 = vpop.permute.xlu0 %2178
    %v2181 = vmul.f32 %v2179, %v2175
    %v2182 = vsub.f32 1.0, %v1934
    %2184 = vset.pattern.permute.xlu0 0
    %2185 = vperm.xlu0 %2184, %v2182
    %v2186 = vpop.permute.xlu0 %2185
    %v2188 = vmul.f32 %v2186, %v1912
    %2190 = vrot.lane.b32.xlu0 %v2188, 96
    %v2191 = vpop.permute.xlu0 %2190
    %v2193 = vadd.f32 %v2181, %v2191
    %2194 = vrot.lane.b32.xlu0 %v1912, 64
    %v2195 = vpop.permute.xlu0 %2194
    %v2196 = vsel %vm278, %v2195, 0
    %2198 = vmatprep.subr.mxu0 0.0
    %2199 = vmatpush1.msra.mxu0 %v530
    %2200 = vmatprep.subr.mxu0 0.0
    %2201 = vmatpush1.msra.mxu0 %v531
    %2202 = vmatprep.subr.mxu0 0.0
    %2203 = vmatpush1.msra.mxu0 %v532
    %2204 = vmatprep.subr.mxu0 0.0
    %2205 = vmatpush1.msra.mxu0 %v533
    %2206 = vmatprep.subr.mxu0 0.0
    %2207 = vmatpush1.msra.mxu0 0.0
    %2208 = vmatprep.subr.mxu0 0.0
    %2209 = vmatpush1.msra.mxu0 0.0
    %2210 = vmatprep.subr.mxu0 0.0
    %2211 = vmatpush1.msra.mxu0 0.0
    %2212 = vmatprep.subr.mxu0 0.0
    %2213 = vmatpush1.msra.mxu0 0.0
    %2214 = vmatprep.subr.mxu0 0.0
    %2215 = vmatpush1.msra.mxu0 0.0
    %2216 = vmatprep.subr.mxu0 0.0
    %2217 = vmatpush1.msra.mxu0 0.0
    %2218 = vmatprep.subr.mxu0 0.0
    %2219 = vmatpush1.msra.mxu0 0.0
    %2220 = vmatprep.subr.mxu0 0.0
    %2221 = vmatpush1.msra.mxu0 0.0
    %2222 = vmatprep.subr.mxu0 0.0
    %2223 = vmatpush1.msra.mxu0 0.0
    %2224 = vmatprep.subr.mxu0 0.0
    %2225 = vmatpush1.msra.mxu0 0.0
    %2226 = vmatprep.subr.mxu0 0.0
    %2227 = vmatpush1.msra.mxu0 0.0
    %2228 = vmatprep.subr.mxu0 0.0
    %2229 = vmatpush1.msra.mxu0 0.0
    %2230 = vmatprep.subr.mxu0 0.0
    %2231 = vmatpush1.msra.mxu0 0.0
    %2232 = vmatprep.subr.mxu0 0.0
    %2233 = vmatpush1.msra.mxu0 0.0
    %2234 = vmatprep.subr.mxu0 0.0
    %2235 = vmatpush1.msra.mxu0 0.0
    %2236 = vmatprep.subr.mxu0 0.0
    %2237 = vmatpush1.msra.mxu0 0.0
    %2238 = vmatprep.subr.mxu0 0.0
    %2239 = vmatpush1.msra.mxu0 0.0
    %2240 = vmatprep.subr.mxu0 0.0
    %2241 = vmatpush1.msra.mxu0 0.0
    %2242 = vmatprep.subr.mxu0 0.0
    %2243 = vmatpush1.msra.mxu0 0.0
    %2244 = vmatprep.subr.mxu0 0.0
    %2245 = vmatpush1.msra.mxu0 0.0
    %2246 = vmatprep.subr.mxu0 0.0
    %2247 = vmatpush1.msra.mxu0 0.0
    %2248 = vmatprep.subr.mxu0 0.0
    %2249 = vmatpush1.msra.mxu0 0.0
    %2250 = vmatprep.subr.mxu0 0.0
    %2251 = vmatpush1.msra.mxu0 0.0
    %2252 = vmatprep.subr.mxu0 0.0
    %2253 = vmatpush1.msra.mxu0 0.0
    %2254 = vmatprep.subr.mxu0 0.0
    %2255 = vmatpush1.msra.mxu0 0.0
    %2256 = vmatprep.subr.mxu0 0.0
    %2257 = vmatpush1.msra.mxu0 0.0
    %2258 = vmatprep.subr.mxu0 0.0
    %2259 = vmatpush1.msra.mxu0 0.0
    %2260 = vmatprep.subr.mxu0 0.0
    %2261 = vmatpush1.msra.mxu0 0.0
    %2262 = vmatprep.mubr.f32.mxu0 0.0
    %2263 = vmatmul.mubr.f32.gmra.mrb[0].mxu0 %v2196
    %v2264 = vpop.f32.mrb[0].mxu0
    %v2265 = vadd.f32 %v540, %v2264
    %v2266 = vpop.f32.mrb[0].mxu0
    %2267 = vdwg.mxu0
    %v2269 = vrot.slane %v2265, 2
    %v2271 = vadd.f32 %v243, %v2269
    %v2272 = vsub.f32 0.0, %v2271
    %v2273 = vmul.f32 %v2272, 1.442695
    %v2274 = vpow.pop %v2273
    %v2275 = vadd.f32 %v2274, 1.0
    %v2276 = vrcp.pop %v2275
    %v2277 = vmul.f32 1.0, %v2276
    %2278 = vrot.lane.b32.xlu0 %v2269, 64
    %v2279 = vpop.permute.xlu0 %2278
    %v2281 = vmul.f32 %v2277, %v2279
    %2283 = vrot.lane.b32.xlu0 %v2281, 64
    %v2284 = vpop.permute.xlu0 %2283
    %v2286 = vadd.f32 %v243, %v2284
    %v2287 = vtanh.pop %v2286
    %v2288 = vsub.f32 1.0, %v2277
    %2290 = vrot.lane.b32.xlu0 %v2287, 96
    %v2291 = vpop.permute.xlu0 %2290
    %v2293 = vmul.f32 %v2288, %v2291
    %2294 = vrot.lane.b32.xlu0 %v2040, 96
    %v2295 = vpop.permute.xlu0 %2294
    %v2297 = vmul.f32 %v2277, %v2295
    %v2298 = vadd.f32 %v2293, %v2297
    %v2299 = vmul.f32 %v1912, 0.0
    %v2301 = vrot.slane %v2299, 2
    %2302 = vrot.lane.b32.xlu0 %v2301, 96
    %v2303 = vpop.permute.xlu0 %2302
    %v2305 = vadd.f32 %v2298, %v2303
    %2307 = vset.pattern.permute.xlu0 0
    %2308 = vperm.xlu0 %2307, %v1937
    %v2309 = vpop.permute.xlu0 %2308
    %v2312 = vrot.slane %v2298, 6
    %2313 = vrot.lane.b32.xlu0 %v2312, 96
    %v2314 = vpop.permute.xlu0 %2313
    %v2316 = vmul.f32 %v2309, %v2314
    %2317 = vrot.lane.b32.xlu0 %v1912, 32
    %v2318 = vpop.permute.xlu0 %2317
    %v2319 = vsel %vm278, %v2318, 0
    %2321 = vmatprep.subr.mxu0 0.0
    %2322 = vmatpush1.msra.mxu0 %v646
    %2323 = vmatprep.subr.mxu0 0.0
    %2324 = vmatpush1.msra.mxu0 %v647
    %2325 = vmatprep.subr.mxu0 0.0
    %2326 = vmatpush1.msra.mxu0 %v648
    %2327 = vmatprep.subr.mxu0 0.0
    %2328 = vmatpush1.msra.mxu0 %v649
    %2329 = vmatprep.subr.mxu0 0.0
    %2330 = vmatpush1.msra.mxu0 0.0
    %2331 = vmatprep.subr.mxu0 0.0
    %2332 = vmatpush1.msra.mxu0 0.0
    %2333 = vmatprep.subr.mxu0 0.0
    %2334 = vmatpush1.msra.mxu0 0.0
    %2335 = vmatprep.subr.mxu0 0.0
    %2336 = vmatpush1.msra.mxu0 0.0
    %2337 = vmatprep.subr.mxu0 0.0
    %2338 = vmatpush1.msra.mxu0 0.0
    %2339 = vmatprep.subr.mxu0 0.0
    %2340 = vmatpush1.msra.mxu0 0.0
    %2341 = vmatprep.subr.mxu0 0.0
    %2342 = vmatpush1.msra.mxu0 0.0
    %2343 = vmatprep.subr.mxu0 0.0
    %2344 = vmatpush1.msra.mxu0 0.0
    %2345 = vmatprep.subr.mxu0 0.0
    %2346 = vmatpush1.msra.mxu0 0.0
    %2347 = vmatprep.subr.mxu0 0.0
    %2348 = vmatpush1.msra.mxu0 0.0
    %2349 = vmatprep.subr.mxu0 0.0
    %2350 = vmatpush1.msra.mxu0 0.0
    %2351 = vmatprep.subr.mxu0 0.0
    %2352 = vmatpush1.msra.mxu0 0.0
    %2353 = vmatprep.subr.mxu0 0.0
    %2354 = vmatpush1.msra.mxu0 0.0
    %2355 = vmatprep.subr.mxu0 0.0
    %2356 = vmatpush1.msra.mxu0 0.0
    %2357 = vmatprep.subr.mxu0 0.0
    %2358 = vmatpush1.msra.mxu0 0.0
    %2359 = vmatprep.subr.mxu0 0.0
    %2360 = vmatpush1.msra.mxu0 0.0
    %2361 = vmatprep.subr.mxu0 0.0
    %2362 = vmatpush1.msra.mxu0 0.0
    %2363 = vmatprep.subr.mxu0 0.0
    %2364 = vmatpush1.msra.mxu0 0.0
    %2365 = vmatprep.subr.mxu0 0.0
    %2366 = vmatpush1.msra.mxu0 0.0
    %2367 = vmatprep.subr.mxu0 0.0
    %2368 = vmatpush1.msra.mxu0 0.0
    %2369 = vmatprep.subr.mxu0 0.0
    %2370 = vmatpush1.msra.mxu0 0.0
    %2371 = vmatprep.subr.mxu0 0.0
    %2372 = vmatpush1.msra.mxu0 0.0
    %2373 = vmatprep.subr.mxu0 0.0
    %2374 = vmatpush1.msra.mxu0 0.0
    %2375 = vmatprep.subr.mxu0 0.0
    %2376 = vmatpush1.msra.mxu0 0.0
    %2377 = vmatprep.subr.mxu0 0.0
    %2378 = vmatpush1.msra.mxu0 0.0
    %2379 = vmatprep.subr.mxu0 0.0
    %2380 = vmatpush1.msra.mxu0 0.0
    %2381 = vmatprep.subr.mxu0 0.0
    %2382 = vmatpush1.msra.mxu0 0.0
    %2383 = vmatprep.subr.mxu0 0.0
    %2384 = vmatpush1.msra.mxu0 0.0
    %2385 = vmatprep.mubr.f32.mxu0 0.0
    %2386 = vmatmul.mubr.f32.gmra.mrb[0].mxu0 %v2319
    %v2387 = vpop.f32.mrb[0].mxu0
    %v2388 = vadd.f32 %v656, %v2387
    %v2389 = vpop.f32.mrb[0].mxu0
    %2390 = vdwg.mxu0
    %2392 = vrot.lane.b32.xlu0 %v2388, 96
    %v2393 = vpop.permute.xlu0 %2392
    %v2395 = vadd.f32 %v249, %v2393
    %v2396 = vsub.f32 0.0, %v2395
    %v2397 = vmul.f32 %v2396, 1.442695
    %v2398 = vpow.pop %v2397
    %v2399 = vadd.f32 %v2398, 1.0
    %v2400 = vrcp.pop %v2399
    %v2401 = vmul.f32 1.0, %v2400
    %v2402 = vadd.f32 %v251, %v2393
    %v2403 = vsub.f32 0.0, %v2402
    %v2404 = vmul.f32 %v2403, 1.442695
    %v2405 = vpow.pop %v2404
    %v2406 = vadd.f32 %v2405, 1.0
    %v2407 = vrcp.pop %v2406
    %v2408 = vmul.f32 1.0, %v2407
    %2409 = vrot.lane.b32.xlu0 %v2388, 32
    %v2410 = vpop.permute.xlu0 %2409
    %v2412 = vmul.f32 %v2401, %v2410
    %2414 = vrot.lane.b32.xlu0 %v2412, 64
    %v2415 = vpop.permute.xlu0 %2414
    %v2417 = vadd.f32 %v251, %v2415
    %v2418 = vtanh.pop %v2417
    %v2419 = vsub.f32 1.0, %v2408
    %2421 = vrot.lane.b32.xlu0 %v2418, 96
    %v2422 = vpop.permute.xlu0 %2421
    %v2424 = vmul.f32 %v2419, %v2422
    %v2426 = vmul.f32 %v2408, %v2318
    %v2427 = vadd.f32 %v2424, %v2426
    %2428 = vrot.lane.b32.xlu0 %v2299, 32
    %v2429 = vpop.permute.xlu0 %2428
    %v2431 = vadd.f32 %v2427, %v2429
    %2433 = vset.pattern.permute.xlu0 0
    %2434 = vperm.xlu0 %2433, %v1940
    %v2435 = vpop.permute.xlu0 %2434
    %v2437 = vmul.f32 %v2435, %v2427
    %2439 = vrot.lane.b32.xlu0 %v2193, 32
    %v2440 = vpop.permute.xlu0 %2439
    %v2443 = vrot.slane %v2305, 6
    %2444 = vrot.lane.b32.xlu0 %v2443, 32
    %v2445 = vpop.permute.xlu0 %2444
    %2448 = vrot.lane.b32.xlu0 %v2431, 96
    %v2449 = vpop.permute.xlu0 %2448
    %v2451 = vsel %vm278, %v2064, %v2440
    %v2452 = vsel %vm793, %v2451, %v2445
    %v2453 = vsel %vm795, %v2452, %v2449
    %2455 = vrot.lane.b32.xlu0 %v2181, 32
    %v2456 = vpop.permute.xlu0 %2455
    %2459 = vrot.lane.b32.xlu0 %v2316, 64
    %v2460 = vpop.permute.xlu0 %2459
    %2463 = vrot.lane.b32.xlu0 %v2437, 96
    %v2464 = vpop.permute.xlu0 %2463
    %v2466 = vsel %vm278, %v2056, %v2456
    %v2467 = vsel %vm793, %v2466, %v2460
    %v2468 = vsel %vm795, %v2467, %v2464
    %v2469 = vadd.f32 %v1928, %v2468
    %v2471 = vsel %vm278, %v2453, 0
    %2473 = vmatprep.subr.mxu0 0.0
    %2474 = vmatpush1.msra.mxu0 %v267
    %2475 = vmatprep.subr.mxu0 0.0
    %2476 = vmatpush1.msra.mxu0 %v268
    %2477 = vmatprep.subr.mxu0 0.0
    %2478 = vmatpush1.msra.mxu0 %v269
    %2479 = vmatprep.subr.mxu0 0.0
    %2480 = vmatpush1.msra.mxu0 %v270
    %2481 = vmatprep.subr.mxu0 0.0
    %2482 = vmatpush1.msra.mxu0 0.0
    %2483 = vmatprep.subr.mxu0 0.0
    %2484 = vmatpush1.msra.mxu0 0.0
    %2485 = vmatprep.subr.mxu0 0.0
    %2486 = vmatpush1.msra.mxu0 0.0
    %2487 = vmatprep.subr.mxu0 0.0
    %2488 = vmatpush1.msra.mxu0 0.0
    %2489 = vmatprep.subr.mxu0 0.0
    %2490 = vmatpush1.msra.mxu0 0.0
    %2491 = vmatprep.subr.mxu0 0.0
    %2492 = vmatpush1.msra.mxu0 0.0
    %2493 = vmatprep.subr.mxu0 0.0
    %2494 = vmatpush1.msra.mxu0 0.0
    %2495 = vmatprep.subr.mxu0 0.0
    %2496 = vmatpush1.msra.mxu0 0.0
    %2497 = vmatprep.subr.mxu0 0.0
    %2498 = vmatpush1.msra.mxu0 0.0
    %2499 = vmatprep.subr.mxu0 0.0
    %2500 = vmatpush1.msra.mxu0 0.0
    %2501 = vmatprep.subr.mxu0 0.0
    %2502 = vmatpush1.msra.mxu0 0.0
    %2503 = vmatprep.subr.mxu0 0.0
    %2504 = vmatpush1.msra.mxu0 0.0
    %2505 = vmatprep.subr.mxu0 0.0
    %2506 = vmatpush1.msra.mxu0 0.0
    %2507 = vmatprep.subr.mxu0 0.0
    %2508 = vmatpush1.msra.mxu0 0.0
    %2509 = vmatprep.subr.mxu0 0.0
    %2510 = vmatpush1.msra.mxu0 0.0
    %2511 = vmatprep.subr.mxu0 0.0
    %2512 = vmatpush1.msra.mxu0 0.0
    %2513 = vmatprep.subr.mxu0 0.0
    %2514 = vmatpush1.msra.mxu0 0.0
    %2515 = vmatprep.subr.mxu0 0.0
    %2516 = vmatpush1.msra.mxu0 0.0
    %2517 = vmatprep.subr.mxu0 0.0
    %2518 = vmatpush1.msra.mxu0 0.0
    %2519 = vmatprep.subr.mxu0 0.0
    %2520 = vmatpush1.msra.mxu0 0.0
    %2521 = vmatprep.subr.mxu0 0.0
    %2522 = vmatpush1.msra.mxu0 0.0
    %2523 = vmatprep.subr.mxu0 0.0
    %2524 = vmatpush1.msra.mxu0 0.0
    %2525 = vmatprep.subr.mxu0 0.0
    %2526 = vmatpush1.msra.mxu0 0.0
    %2527 = vmatprep.subr.mxu0 0.0
    %2528 = vmatpush1.msra.mxu0 0.0
    %2529 = vmatprep.subr.mxu0 0.0
    %2530 = vmatpush1.msra.mxu0 0.0
    %2531 = vmatprep.subr.mxu0 0.0
    %2532 = vmatpush1.msra.mxu0 0.0
    %2533 = vmatprep.subr.mxu0 0.0
    %2534 = vmatpush1.msra.mxu0 0.0
    %2535 = vmatprep.subr.mxu0 0.0
    %2536 = vmatpush1.msra.mxu0 0.0
    %2537 = vmatprep.mubr.f32.mxu0 0.0
    %2538 = vmatmul.mubr.f32.gmra.mrb[0].mxu0 %v2471
    %v2539 = vpop.f32.mrb[0].mxu0
    %v2540 = vadd.f32 %v276, %v2539
    %v2541 = vpop.f32.mrb[0].mxu0
    %2542 = vdwg.mxu0
    %v2543 = vadd.f32 %v148, %v2540
    %v2544 = vsub.f32 0.0, %v2543
    %v2545 = vmul.f32 %v2544, 1.442695
    %v2546 = vpow.pop %v2545
    %v2547 = vadd.f32 %v2546, 1.0
    %v2548 = vrcp.pop %v2547
    %v2549 = vmul.f32 1.0, %v2548
    %2551 = vrot.lane.b32.xlu0 %v2540, 64
    %v2552 = vpop.permute.xlu0 %2551
    %v2554 = vmul.f32 %v2549, %v2552
    %2556 = vrot.lane.b32.xlu0 %v2554, 64
    %v2557 = vpop.permute.xlu0 %2556
    %v2559 = vadd.f32 %v148, %v2557
    %v2560 = vtanh.pop %v2559
    %v2561 = vsub.f32 1.0, %v2549
    %2563 = vrot.lane.b32.xlu0 %v2560, 96
    %v2564 = vpop.permute.xlu0 %2563
    %v2566 = vmul.f32 %v2561, %v2564
    %2567 = vrot.lane.b32.xlu0 %v2453, 32
    %v2568 = vpop.permute.xlu0 %2567
    %v2570 = vmul.f32 %v2549, %v2568
    %v2571 = vadd.f32 %v2566, %v2570
    %v2572 = vmul.f32 %v2179, %v2571
    %v2573 = vmul.f32 %v2186, %v2453
    %2575 = vrot.lane.b32.xlu0 %v2573, 32
    %v2576 = vpop.permute.xlu0 %2575
    %v2578 = vadd.f32 %v2572, %v2576
    %2579 = vrot.lane.b32.xlu0 %v2453, 96
    %v2580 = vpop.permute.xlu0 %2579
    %v2581 = vsel %vm278, %v2580, 0
    %2583 = vmatprep.subr.mxu0 0.0
    %2584 = vmatpush1.msra.mxu0 %v393
    %2585 = vmatprep.subr.mxu0 0.0
    %2586 = vmatpush1.msra.mxu0 %v394
    %2587 = vmatprep.subr.mxu0 0.0
    %2588 = vmatpush1.msra.mxu0 %v395
    %2589 = vmatprep.subr.mxu0 0.0
    %2590 = vmatpush1.msra.mxu0 %v396
    %2591 = vmatprep.subr.mxu0 0.0
    %2592 = vmatpush1.msra.mxu0 0.0
    %2593 = vmatprep.subr.mxu0 0.0
    %2594 = vmatpush1.msra.mxu0 0.0
    %2595 = vmatprep.subr.mxu0 0.0
    %2596 = vmatpush1.msra.mxu0 0.0
    %2597 = vmatprep.subr.mxu0 0.0
    %2598 = vmatpush1.msra.mxu0 0.0
    %2599 = vmatprep.subr.mxu0 0.0
    %2600 = vmatpush1.msra.mxu0 0.0
    %2601 = vmatprep.subr.mxu0 0.0
    %2602 = vmatpush1.msra.mxu0 0.0
    %2603 = vmatprep.subr.mxu0 0.0
    %2604 = vmatpush1.msra.mxu0 0.0
    %2605 = vmatprep.subr.mxu0 0.0
    %2606 = vmatpush1.msra.mxu0 0.0
    %2607 = vmatprep.subr.mxu0 0.0
    %2608 = vmatpush1.msra.mxu0 0.0
    %2609 = vmatprep.subr.mxu0 0.0
    %2610 = vmatpush1.msra.mxu0 0.0
    %2611 = vmatprep.subr.mxu0 0.0
    %2612 = vmatpush1.msra.mxu0 0.0
    %2613 = vmatprep.subr.mxu0 0.0
    %2614 = vmatpush1.msra.mxu0 0.0
    %2615 = vmatprep.subr.mxu0 0.0
    %2616 = vmatpush1.msra.mxu0 0.0
    %2617 = vmatprep.subr.mxu0 0.0
    %2618 = vmatpush1.msra.mxu0 0.0
    %2619 = vmatprep.subr.mxu0 0.0
    %2620 = vmatpush1.msra.mxu0 0.0
    %2621 = vmatprep.subr.mxu0 0.0
    %2622 = vmatpush1.msra.mxu0 0.0
    %2623 = vmatprep.subr.mxu0 0.0
    %2624 = vmatpush1.msra.mxu0 0.0
    %2625 = vmatprep.subr.mxu0 0.0
    %2626 = vmatpush1.msra.mxu0 0.0
    %2627 = vmatprep.subr.mxu0 0.0
    %2628 = vmatpush1.msra.mxu0 0.0
    %2629 = vmatprep.subr.mxu0 0.0
    %2630 = vmatpush1.msra.mxu0 0.0
    %2631 = vmatprep.subr.mxu0 0.0
    %2632 = vmatpush1.msra.mxu0 0.0
    %2633 = vmatprep.subr.mxu0 0.0
    %2634 = vmatpush1.msra.mxu0 0.0
    %2635 = vmatprep.subr.mxu0 0.0
    %2636 = vmatpush1.msra.mxu0 0.0
    %2637 = vmatprep.subr.mxu0 0.0
    %2638 = vmatpush1.msra.mxu0 0.0
    %2639 = vmatprep.subr.mxu0 0.0
    %2640 = vmatpush1.msra.mxu0 0.0
    %2641 = vmatprep.subr.mxu0 0.0
    %2642 = vmatpush1.msra.mxu0 0.0
    %2643 = vmatprep.subr.mxu0 0.0
    %2644 = vmatpush1.msra.mxu0 0.0
    %2645 = vmatprep.subr.mxu0 0.0
    %2646 = vmatpush1.msra.mxu0 0.0
    %2647 = vmatprep.mubr.f32.mxu0 0.0
    %2648 = vmatmul.mubr.f32.gmra.mrb[0].mxu0 %v2581
    %v2649 = vpop.f32.mrb[0].mxu0
    %v2650 = vadd.f32 %v403, %v2649
    %v2651 = vpop.f32.mrb[0].mxu0
    %2652 = vdwg.mxu0
    %v2654 = vrot.slane %v2650, 2
    %2655 = vrot.lane.b32.xlu0 %v2654, 96
    %v2656 = vpop.permute.xlu0 %2655
    %v2658 = vadd.f32 %v142, %v2656
    %v2659 = vsub.f32 0.0, %v2658
    %v2660 = vmul.f32 %v2659, 1.442695
    %v2661 = vpow.pop %v2660
    %v2662 = vadd.f32 %v2661, 1.0
    %v2663 = vrcp.pop %v2662
    %v2664 = vmul.f32 1.0, %v2663
    %v2665 = vadd.f32 %v144, %v2656
    %v2666 = vsub.f32 0.0, %v2665
    %v2667 = vmul.f32 %v2666, 1.442695
    %v2668 = vpow.pop %v2667
    %v2669 = vadd.f32 %v2668, 1.0
    %v2670 = vrcp.pop %v2669
    %v2671 = vmul.f32 1.0, %v2670
    %2672 = vrot.lane.b32.xlu0 %v2654, 32
    %v2673 = vpop.permute.xlu0 %2672
    %v2675 = vmul.f32 %v2664, %v2673
    %2677 = vrot.lane.b32.xlu0 %v2675, 64
    %v2678 = vpop.permute.xlu0 %2677
    %v2680 = vadd.f32 %v144, %v2678
    %v2681 = vtanh.pop %v2680
    %v2682 = vsub.f32 1.0, %v2671
    %2684 = vrot.lane.b32.xlu0 %v2681, 96
    %v2685 = vpop.permute.xlu0 %2684
    %v2687 = vmul.f32 %v2682, %v2685
    %v2688 = vrot.slane %v2453, 2
    %2689 = vrot.lane.b32.xlu0 %v2688, 96
    %v2690 = vpop.permute.xlu0 %2689
    %v2692 = vmul.f32 %v2671, %v2690
    %v2693 = vadd.f32 %v2687, %v2692
    %v2695 = vrot.slane %v2693, 6
    %v2697 = vmul.f32 %v2049, %v2695
    %v2698 = vmul.f32 %v2061, %v2453
    %2700 = vrot.lane.b32.xlu0 %v2698, 96
    %v2701 = vpop.permute.xlu0 %2700
    %v2703 = vadd.f32 %v2697, %v2701
    %2704 = vrot.lane.b32.xlu0 %v2453, 64
    %v2705 = vpop.permute.xlu0 %2704
    %v2706 = vsel %vm278, %v2705, 0
    %2708 = vmatprep.subr.mxu0 0.0
    %2709 = vmatpush1.msra.mxu0 %v530
    %2710 = vmatprep.subr.mxu0 0.0
    %2711 = vmatpush1.msra.mxu0 %v531
    %2712 = vmatprep.subr.mxu0 0.0
    %2713 = vmatpush1.msra.mxu0 %v532
    %2714 = vmatprep.subr.mxu0 0.0
    %2715 = vmatpush1.msra.mxu0 %v533
    %2716 = vmatprep.subr.mxu0 0.0
    %2717 = vmatpush1.msra.mxu0 0.0
    %2718 = vmatprep.subr.mxu0 0.0
    %2719 = vmatpush1.msra.mxu0 0.0
    %2720 = vmatprep.subr.mxu0 0.0
    %2721 = vmatpush1.msra.mxu0 0.0
    %2722 = vmatprep.subr.mxu0 0.0
    %2723 = vmatpush1.msra.mxu0 0.0
    %2724 = vmatprep.subr.mxu0 0.0
    %2725 = vmatpush1.msra.mxu0 0.0
    %2726 = vmatprep.subr.mxu0 0.0
    %2727 = vmatpush1.msra.mxu0 0.0
    %2728 = vmatprep.subr.mxu0 0.0
    %2729 = vmatpush1.msra.mxu0 0.0
    %2730 = vmatprep.subr.mxu0 0.0
    %2731 = vmatpush1.msra.mxu0 0.0
    %2732 = vmatprep.subr.mxu0 0.0
    %2733 = vmatpush1.msra.mxu0 0.0
    %2734 = vmatprep.subr.mxu0 0.0
    %2735 = vmatpush1.msra.mxu0 0.0
    %2736 = vmatprep.subr.mxu0 0.0
    %2737 = vmatpush1.msra.mxu0 0.0
    %2738 = vmatprep.subr.mxu0 0.0
    %2739 = vmatpush1.msra.mxu0 0.0
    %2740 = vmatprep.subr.mxu0 0.0
    %2741 = vmatpush1.msra.mxu0 0.0
    %2742 = vmatprep.subr.mxu0 0.0
    %2743 = vmatpush1.msra.mxu0 0.0
    %2744 = vmatprep.subr.mxu0 0.0
    %2745 = vmatpush1.msra.mxu0 0.0
    %2746 = vmatprep.subr.mxu0 0.0
    %2747 = vmatpush1.msra.mxu0 0.0
    %2748 = vmatprep.subr.mxu0 0.0
    %2749 = vmatpush1.msra.mxu0 0.0
    %2750 = vmatprep.subr.mxu0 0.0
    %2751 = vmatpush1.msra.mxu0 0.0
    %2752 = vmatprep.subr.mxu0 0.0
    %2753 = vmatpush1.msra.mxu0 0.0
    %2754 = vmatprep.subr.mxu0 0.0
    %2755 = vmatpush1.msra.mxu0 0.0
    %2756 = vmatprep.subr.mxu0 0.0
    %2757 = vmatpush1.msra.mxu0 0.0
    %2758 = vmatprep.subr.mxu0 0.0
    %2759 = vmatpush1.msra.mxu0 0.0
    %2760 = vmatprep.subr.mxu0 0.0
    %2761 = vmatpush1.msra.mxu0 0.0
    %2762 = vmatprep.subr.mxu0 0.0
    %2763 = vmatpush1.msra.mxu0 0.0
    %2764 = vmatprep.subr.mxu0 0.0
    %2765 = vmatpush1.msra.mxu0 0.0
    %2766 = vmatprep.subr.mxu0 0.0
    %2767 = vmatpush1.msra.mxu0 0.0
    %2768 = vmatprep.subr.mxu0 0.0
    %2769 = vmatpush1.msra.mxu0 0.0
    %2770 = vmatprep.subr.mxu0 0.0
    %2771 = vmatpush1.msra.mxu0 0.0
    %2772 = vmatprep.mubr.f32.mxu0 0.0
    %2773 = vmatmul.mubr.f32.gmra.mrb[0].mxu0 %v2706
    %v2774 = vpop.f32.mrb[0].mxu0
    %v2775 = vadd.f32 %v540, %v2774
    %v2776 = vpop.f32.mrb[0].mxu0
    %2777 = vdwg.mxu0
    %v2778 = vadd.f32 %v249, %v2775
    %v2779 = vsub.f32 0.0, %v2778
    %v2780 = vmul.f32 %v2779, 1.442695
    %v2781 = vpow.pop %v2780
    %v2782 = vadd.f32 %v2781, 1.0
    %v2783 = vrcp.pop %v2782
    %v2784 = vmul.f32 1.0, %v2783
    %2786 = vrot.lane.b32.xlu0 %v2775, 64
    %v2787 = vpop.permute.xlu0 %2786
    %v2789 = vmul.f32 %v2784, %v2787
    %2791 = vrot.lane.b32.xlu0 %v2789, 64
    %v2792 = vpop.permute.xlu0 %2791
    %v2794 = vadd.f32 %v249, %v2792
    %v2795 = vtanh.pop %v2794
    %v2796 = vsub.f32 1.0, %v2784
    %2798 = vrot.lane.b32.xlu0 %v2795, 96
    %v2799 = vpop.permute.xlu0 %2798
    %v2801 = vmul.f32 %v2796, %v2799
    %v2803 = vmul.f32 %v2784, %v2580
    %v2804 = vadd.f32 %v2801, %v2803
    %v2805 = vmul.f32 %v2453, 0.0
    %2807 = vrot.lane.b32.xlu0 %v2805, 96
    %v2808 = vpop.permute.xlu0 %2807
    %v2810 = vadd.f32 %v2804, %v2808
    %v2811 = vmul.f32 %v2435, %v2804
    %v2812 = vsel %vm278, %v2568, 0
    %2814 = vmatprep.subr.mxu0 0.0
    %2815 = vmatpush1.msra.mxu0 %v646
    %2816 = vmatprep.subr.mxu0 0.0
    %2817 = vmatpush1.msra.mxu0 %v647
    %2818 = vmatprep.subr.mxu0 0.0
    %2819 = vmatpush1.msra.mxu0 %v648
    %2820 = vmatprep.subr.mxu0 0.0
    %2821 = vmatpush1.msra.mxu0 %v649
    %2822 = vmatprep.subr.mxu0 0.0
    %2823 = vmatpush1.msra.mxu0 0.0
    %2824 = vmatprep.subr.mxu0 0.0
    %2825 = vmatpush1.msra.mxu0 0.0
    %2826 = vmatprep.subr.mxu0 0.0
    %2827 = vmatpush1.msra.mxu0 0.0
    %2828 = vmatprep.subr.mxu0 0.0
    %2829 = vmatpush1.msra.mxu0 0.0
    %2830 = vmatprep.subr.mxu0 0.0
    %2831 = vmatpush1.msra.mxu0 0.0
    %2832 = vmatprep.subr.mxu0 0.0
    %2833 = vmatpush1.msra.mxu0 0.0
    %2834 = vmatprep.subr.mxu0 0.0
    %2835 = vmatpush1.msra.mxu0 0.0
    %2836 = vmatprep.subr.mxu0 0.0
    %2837 = vmatpush1.msra.mxu0 0.0
    %2838 = vmatprep.subr.mxu0 0.0
    %2839 = vmatpush1.msra.mxu0 0.0
    %2840 = vmatprep.subr.mxu0 0.0
    %2841 = vmatpush1.msra.mxu0 0.0
    %2842 = vmatprep.subr.mxu0 0.0
    %2843 = vmatpush1.msra.mxu0 0.0
    %2844 = vmatprep.subr.mxu0 0.0
    %2845 = vmatpush1.msra.mxu0 0.0
    %2846 = vmatprep.subr.mxu0 0.0
    %2847 = vmatpush1.msra.mxu0 0.0
    %2848 = vmatprep.subr.mxu0 0.0
    %2849 = vmatpush1.msra.mxu0 0.0
    %2850 = vmatprep.subr.mxu0 0.0
    %2851 = vmatpush1.msra.mxu0 0.0
    %2852 = vmatprep.subr.mxu0 0.0
    %2853 = vmatpush1.msra.mxu0 0.0
    %2854 = vmatprep.subr.mxu0 0.0
    %2855 = vmatpush1.msra.mxu0 0.0
    %2856 = vmatprep.subr.mxu0 0.0
    %2857 = vmatpush1.msra.mxu0 0.0
    %2858 = vmatprep.subr.mxu0 0.0
    %2859 = vmatpush1.msra.mxu0 0.0
    %2860 = vmatprep.subr.mxu0 0.0
    %2861 = vmatpush1.msra.mxu0 0.0
    %2862 = vmatprep.subr.mxu0 0.0
    %2863 = vmatpush1.msra.mxu0 0.0
    %2864 = vmatprep.subr.mxu0 0.0
    %2865 = vmatpush1.msra.mxu0 0.0
    %2866 = vmatprep.subr.mxu0 0.0
    %2867 = vmatpush1.msra.mxu0 0.0
    %2868 = vmatprep.subr.mxu0 0.0
    %2869 = vmatpush1.msra.mxu0 0.0
    %2870 = vmatprep.subr.mxu0 0.0
    %2871 = vmatpush1.msra.mxu0 0.0
    %2872 = vmatprep.subr.mxu0 0.0
    %2873 = vmatpush1.msra.mxu0 0.0
    %2874 = vmatprep.subr.mxu0 0.0
    %2875 = vmatpush1.msra.mxu0 0.0
    %2876 = vmatprep.subr.mxu0 0.0
    %2877 = vmatpush1.msra.mxu0 0.0
    %2878 = vmatprep.mubr.f32.mxu0 0.0
    %2879 = vmatmul.mubr.f32.gmra.mrb[0].mxu0 %v2812
    %v2880 = vpop.f32.mrb[0].mxu0
    %v2881 = vadd.f32 %v656, %v2880
    %v2882 = vpop.f32.mrb[0].mxu0
    %2883 = vdwg.mxu0
    %v2885 = vrot.slane %v2881, 2
    %2886 = vrot.lane.b32.xlu0 %v2885, 96
    %v2887 = vpop.permute.xlu0 %2886
    %v2889 = vadd.f32 %v243, %v2887
    %v2890 = vsub.f32 0.0, %v2889
    %v2891 = vmul.f32 %v2890, 1.442695
    %v2892 = vpow.pop %v2891
    %v2893 = vadd.f32 %v2892, 1.0
    %v2894 = vrcp.pop %v2893
    %v2895 = vmul.f32 1.0, %v2894
    %v2896 = vadd.f32 %v245, %v2887
    %v2897 = vsub.f32 0.0, %v2896
    %v2898 = vmul.f32 %v2897, 1.442695
    %v2899 = vpow.pop %v2898
    %v2900 = vadd.f32 %v2899, 1.0
    %v2901 = vrcp.pop %v2900
    %v2902 = vmul.f32 1.0, %v2901
    %2903 = vrot.lane.b32.xlu0 %v2885, 32
    %v2904 = vpop.permute.xlu0 %2903
    %v2906 = vmul.f32 %v2895, %v2904
    %2908 = vrot.lane.b32.xlu0 %v2906, 64
    %v2909 = vpop.permute.xlu0 %2908
    %v2911 = vadd.f32 %v245, %v2909
    %v2912 = vtanh.pop %v2911
    %v2913 = vsub.f32 1.0, %v2902
    %2915 = vrot.lane.b32.xlu0 %v2912, 96
    %v2916 = vpop.permute.xlu0 %2915
    %v2918 = vmul.f32 %v2913, %v2916
    %2919 = vrot.lane.b32.xlu0 %v2688, 32
    %v2920 = vpop.permute.xlu0 %2919
    %v2922 = vmul.f32 %v2902, %v2920
    %v2923 = vadd.f32 %v2918, %v2922
    %v2924 = vrot.slane %v2805, 2
    %2925 = vrot.lane.b32.xlu0 %v2924, 32
    %v2926 = vpop.permute.xlu0 %2925
    %v2928 = vadd.f32 %v2923, %v2926
    %v2930 = vrot.slane %v2923, 6
    %v2932 = vmul.f32 %v2309, %v2930
    %2934 = vrot.lane.b32.xlu0 %v2578, 96
    %v2935 = vpop.permute.xlu0 %2934
    %2938 = vrot.lane.b32.xlu0 %v2703, 32
    %v2939 = vpop.permute.xlu0 %2938
    %2942 = vrot.lane.b32.xlu0 %v2810, 32
    %v2943 = vpop.permute.xlu0 %2942
    %v2946 = vrot.slane %v2928, 6
    %2947 = vrot.lane.b32.xlu0 %v2946, 96
    %v2948 = vpop.permute.xlu0 %2947
    %v2950 = vsel %vm278, %v2935, %v2939
    %v2951 = vsel %vm793, %v2950, %v2943
    %v2952 = vsel %vm795, %v2951, %v2948
    %2954 = vrot.lane.b32.xlu0 %v2572, 96
    %v2955 = vpop.permute.xlu0 %2954
    %2958 = vrot.lane.b32.xlu0 %v2697, 32
    %v2959 = vpop.permute.xlu0 %2958
    %2962 = vrot.lane.b32.xlu0 %v2811, 32
    %v2963 = vpop.permute.xlu0 %2962
    %2966 = vrot.lane.b32.xlu0 %v2932, 96
    %v2967 = vpop.permute.xlu0 %2966
    %v2969 = vsel %vm278, %v2955, %v2959
    %v2970 = vsel %vm793, %v2969, %v2963
    %v2971 = vsel %vm795, %v2970, %v2967
    %v2972 = vadd.f32 %v2469, %v2971
    %v2974 = vsel %vm278, %v2952, 0
    %2976 = vmatprep.subr.mxu0 0.0
    %2977 = vmatpush1.msra.mxu0 %v267
    %2978 = vmatprep.subr.mxu0 0.0
    %2979 = vmatpush1.msra.mxu0 %v268
    %2980 = vmatprep.subr.mxu0 0.0
    %2981 = vmatpush1.msra.mxu0 %v269
    %2982 = vmatprep.subr.mxu0 0.0
    %2983 = vmatpush1.msra.mxu0 %v270
    %2984 = vmatprep.subr.mxu0 0.0
    %2985 = vmatpush1.msra.mxu0 0.0
    %2986 = vmatprep.subr.mxu0 0.0
    %2987 = vmatpush1.msra.mxu0 0.0
    %2988 = vmatprep.subr.mxu0 0.0
    %2989 = vmatpush1.msra.mxu0 0.0
    %2990 = vmatprep.subr.mxu0 0.0
    %2991 = vmatpush1.msra.mxu0 0.0
    %2992 = vmatprep.subr.mxu0 0.0
    %2993 = vmatpush1.msra.mxu0 0.0
    %2994 = vmatprep.subr.mxu0 0.0
    %2995 = vmatpush1.msra.mxu0 0.0
    %2996 = vmatprep.subr.mxu0 0.0
    %2997 = vmatpush1.msra.mxu0 0.0
    %2998 = vmatprep.subr.mxu0 0.0
    %2999 = vmatpush1.msra.mxu0 0.0
    %3000 = vmatprep.subr.mxu0 0.0
    %3001 = vmatpush1.msra.mxu0 0.0
    %3002 = vmatprep.subr.mxu0 0.0
    %3003 = vmatpush1.msra.mxu0 0.0
    %3004 = vmatprep.subr.mxu0 0.0
    %3005 = vmatpush1.msra.mxu0 0.0
    %3006 = vmatprep.subr.mxu0 0.0
    %3007 = vmatpush1.msra.mxu0 0.0
    %3008 = vmatprep.subr.mxu0 0.0
    %3009 = vmatpush1.msra.mxu0 0.0
    %3010 = vmatprep.subr.mxu0 0.0
    %3011 = vmatpush1.msra.mxu0 0.0
    %3012 = vmatprep.subr.mxu0 0.0
    %3013 = vmatpush1.msra.mxu0 0.0
    %3014 = vmatprep.subr.mxu0 0.0
    %3015 = vmatpush1.msra.mxu0 0.0
    %3016 = vmatprep.subr.mxu0 0.0
    %3017 = vmatpush1.msra.mxu0 0.0
    %3018 = vmatprep.subr.mxu0 0.0
    %3019 = vmatpush1.msra.mxu0 0.0
    %3020 = vmatprep.subr.mxu0 0.0
    %3021 = vmatpush1.msra.mxu0 0.0
    %3022 = vmatprep.subr.mxu0 0.0
    %3023 = vmatpush1.msra.mxu0 0.0
    %3024 = vmatprep.subr.mxu0 0.0
    %3025 = vmatpush1.msra.mxu0 0.0
    %3026 = vmatprep.subr.mxu0 0.0
    %3027 = vmatpush1.msra.mxu0 0.0
    %3028 = vmatprep.subr.mxu0 0.0
    %3029 = vmatpush1.msra.mxu0 0.0
    %3030 = vmatprep.subr.mxu0 0.0
    %3031 = vmatpush1.msra.mxu0 0.0
    %3032 = vmatprep.subr.mxu0 0.0
    %3033 = vmatpush1.msra.mxu0 0.0
    %3034 = vmatprep.subr.mxu0 0.0
    %3035 = vmatpush1.msra.mxu0 0.0
    %3036 = vmatprep.subr.mxu0 0.0
    %3037 = vmatpush1.msra.mxu0 0.0
    %3038 = vmatprep.subr.mxu0 0.0
    %3039 = vmatpush1.msra.mxu0 0.0
    %3040 = vmatprep.mubr.f32.mxu0 0.0
    %3041 = vmatmul.mubr.f32.gmra.mrb[0].mxu0 %v2974
    %v3042 = vpop.f32.mrb[0].mxu0
    %v3043 = vadd.f32 %v276, %v3042
    %v3044 = vpop.f32.mrb[0].mxu0
    %3045 = vdwg.mxu0
    %v3047 = vrot.slane %v3043, 6
    %v3049 = vadd.f32 %v148, %v3047
    %v3050 = vsub.f32 0.0, %v3049
    %v3051 = vmul.f32 %v3050, 1.442695
    %v3052 = vpow.pop %v3051
    %v3053 = vadd.f32 %v3052, 1.0
    %v3054 = vrcp.pop %v3053
    %v3055 = vmul.f32 1.0, %v3054
    %3056 = vrot.lane.b32.xlu0 %v3047, 64
    %v3057 = vpop.permute.xlu0 %3056
    %v3059 = vmul.f32 %v3055, %v3057
    %3061 = vrot.lane.b32.xlu0 %v3059, 64
    %v3062 = vpop.permute.xlu0 %3061
    %v3064 = vadd.f32 %v148, %v3062
    %v3065 = vtanh.pop %v3064
    %v3066 = vsub.f32 1.0, %v3055
    %3068 = vrot.lane.b32.xlu0 %v3065, 96
    %v3069 = vpop.permute.xlu0 %3068
    %v3071 = vmul.f32 %v3066, %v3069
    %v3072 = vrot.slane %v2952, 6
    %3073 = vrot.lane.b32.xlu0 %v3072, 32
    %v3074 = vpop.permute.xlu0 %3073
    %v3076 = vmul.f32 %v3055, %v3074
    %v3077 = vadd.f32 %v3071, %v3076
    %v3079 = vrot.slane %v3077, 2
    %3080 = vrot.lane.b32.xlu0 %v3079, 96
    %v3081 = vpop.permute.xlu0 %3080
    %v3083 = vmul.f32 %v1627, %v3081
    %v3084 = vmul.f32 %v1637, %v2952
    %v3085 = vadd.f32 %v3083, %v3084
    %3086 = vrot.lane.b32.xlu0 %v2952, 96
    %v3087 = vpop.permute.xlu0 %3086
    %v3088 = vsel %vm278, %v3087, 0
    %3090 = vmatprep.subr.mxu0 0.0
    %3091 = vmatpush1.msra.mxu0 %v393
    %3092 = vmatprep.subr.mxu0 0.0
    %3093 = vmatpush1.msra.mxu0 %v394
    %3094 = vmatprep.subr.mxu0 0.0
    %3095 = vmatpush1.msra.mxu0 %v395
    %3096 = vmatprep.subr.mxu0 0.0
    %3097 = vmatpush1.msra.mxu0 %v396
    %3098 = vmatprep.subr.mxu0 0.0
    %3099 = vmatpush1.msra.mxu0 0.0
    %3100 = vmatprep.subr.mxu0 0.0
    %3101 = vmatpush1.msra.mxu0 0.0
    %3102 = vmatprep.subr.mxu0 0.0
    %3103 = vmatpush1.msra.mxu0 0.0
    %3104 = vmatprep.subr.mxu0 0.0
    %3105 = vmatpush1.msra.mxu0 0.0
    %3106 = vmatprep.subr.mxu0 0.0
    %3107 = vmatpush1.msra.mxu0 0.0
    %3108 = vmatprep.subr.mxu0 0.0
    %3109 = vmatpush1.msra.mxu0 0.0
    %3110 = vmatprep.subr.mxu0 0.0
    %3111 = vmatpush1.msra.mxu0 0.0
    %3112 = vmatprep.subr.mxu0 0.0
    %3113 = vmatpush1.msra.mxu0 0.0
    %3114 = vmatprep.subr.mxu0 0.0
    %3115 = vmatpush1.msra.mxu0 0.0
    %3116 = vmatprep.subr.mxu0 0.0
    %3117 = vmatpush1.msra.mxu0 0.0
    %3118 = vmatprep.subr.mxu0 0.0
    %3119 = vmatpush1.msra.mxu0 0.0
    %3120 = vmatprep.subr.mxu0 0.0
    %3121 = vmatpush1.msra.mxu0 0.0
    %3122 = vmatprep.subr.mxu0 0.0
    %3123 = vmatpush1.msra.mxu0 0.0
    %3124 = vmatprep.subr.mxu0 0.0
    %3125 = vmatpush1.msra.mxu0 0.0
    %3126 = vmatprep.subr.mxu0 0.0
    %3127 = vmatpush1.msra.mxu0 0.0
    %3128 = vmatprep.subr.mxu0 0.0
    %3129 = vmatpush1.msra.mxu0 0.0
    %3130 = vmatprep.subr.mxu0 0.0
    %3131 = vmatpush1.msra.mxu0 0.0
    %3132 = vmatprep.subr.mxu0 0.0
    %3133 = vmatpush1.msra.mxu0 0.0
    %3134 = vmatprep.subr.mxu0 0.0
    %3135 = vmatpush1.msra.mxu0 0.0
    %3136 = vmatprep.subr.mxu0 0.0
    %3137 = vmatpush1.msra.mxu0 0.0
    %3138 = vmatprep.subr.mxu0 0.0
    %3139 = vmatpush1.msra.mxu0 0.0
    %3140 = vmatprep.subr.mxu0 0.0
    %3141 = vmatpush1.msra.mxu0 0.0
    %3142 = vmatprep.subr.mxu0 0.0
    %3143 = vmatpush1.msra.mxu0 0.0
    %3144 = vmatprep.subr.mxu0 0.0
    %3145 = vmatpush1.msra.mxu0 0.0
    %3146 = vmatprep.subr.mxu0 0.0
    %3147 = vmatpush1.msra.mxu0 0.0
    %3148 = vmatprep.subr.mxu0 0.0
    %3149 = vmatpush1.msra.mxu0 0.0
    %3150 = vmatprep.subr.mxu0 0.0
    %3151 = vmatpush1.msra.mxu0 0.0
    %3152 = vmatprep.subr.mxu0 0.0
    %3153 = vmatpush1.msra.mxu0 0.0
    %3154 = vmatprep.mubr.f32.mxu0 0.0
    %3155 = vmatmul.mubr.f32.gmra.mrb[0].mxu0 %v3088
    %v3156 = vpop.f32.mrb[0].mxu0
    %v3157 = vadd.f32 %v403, %v3156
    %v3158 = vpop.f32.mrb[0].mxu0
    %3159 = vdwg.mxu0
    %v3161 = vrot.slane %v3157, 4
    %3162 = vrot.lane.b32.xlu0 %v3161, 96
    %v3163 = vpop.permute.xlu0 %3162
    %v3165 = vadd.f32 %v142, %v3163
    %v3166 = vsub.f32 0.0, %v3165
    %v3167 = vmul.f32 %v3166, 1.442695
    %v3168 = vpow.pop %v3167
    %v3169 = vadd.f32 %v3168, 1.0
    %v3170 = vrcp.pop %v3169
    %v3171 = vmul.f32 1.0, %v3170
    %v3172 = vadd.f32 %v144, %v3163
    %v3173 = vsub.f32 0.0, %v3172
    %v3174 = vmul.f32 %v3173, 1.442695
    %v3175 = vpow.pop %v3174
    %v3176 = vadd.f32 %v3175, 1.0
    %v3177 = vrcp.pop %v3176
    %v3178 = vmul.f32 1.0, %v3177
    %3179 = vrot.lane.b32.xlu0 %v3161, 32
    %v3180 = vpop.permute.xlu0 %3179
    %v3182 = vmul.f32 %v3171, %v3180
    %3184 = vrot.lane.b32.xlu0 %v3182, 64
    %v3185 = vpop.permute.xlu0 %3184
    %v3187 = vadd.f32 %v144, %v3185
    %v3188 = vtanh.pop %v3187
    %v3189 = vsub.f32 1.0, %v3178
    %3191 = vrot.lane.b32.xlu0 %v3188, 96
    %v3192 = vpop.permute.xlu0 %3191
    %v3194 = vmul.f32 %v3189, %v3192
    %v3195 = vrot.slane %v2952, 4
    %3196 = vrot.lane.b32.xlu0 %v3195, 96
    %v3197 = vpop.permute.xlu0 %3196
    %v3199 = vmul.f32 %v3178, %v3197
    %v3200 = vadd.f32 %v3194, %v3199
    %v3202 = vrot.slane %v3200, 4
    %v3204 = vmul.f32 %v1493, %v3202
    %v3205 = vmul.f32 %v1505, %v2952
    %3207 = vrot.lane.b32.xlu0 %v3205, 96
    %v3208 = vpop.permute.xlu0 %3207
    %v3210 = vadd.f32 %v3204, %v3208
    %3211 = vrot.lane.b32.xlu0 %v2952, 64
    %v3212 = vpop.permute.xlu0 %3211
    %v3213 = vsel %vm278, %v3212, 0
    %3215 = vmatprep.subr.mxu0 0.0
    %3216 = vmatpush1.msra.mxu0 %v530
    %3217 = vmatprep.subr.mxu0 0.0
    %3218 = vmatpush1.msra.mxu0 %v531
    %3219 = vmatprep.subr.mxu0 0.0
    %3220 = vmatpush1.msra.mxu0 %v532
    %3221 = vmatprep.subr.mxu0 0.0
    %3222 = vmatpush1.msra.mxu0 %v533
    %3223 = vmatprep.subr.mxu0 0.0
    %3224 = vmatpush1.msra.mxu0 0.0
    %3225 = vmatprep.subr.mxu0 0.0
    %3226 = vmatpush1.msra.mxu0 0.0
    %3227 = vmatprep.subr.mxu0 0.0
    %3228 = vmatpush1.msra.mxu0 0.0
    %3229 = vmatprep.subr.mxu0 0.0
    %3230 = vmatpush1.msra.mxu0 0.0
    %3231 = vmatprep.subr.mxu0 0.0
    %3232 = vmatpush1.msra.mxu0 0.0
    %3233 = vmatprep.subr.mxu0 0.0
    %3234 = vmatpush1.msra.mxu0 0.0
    %3235 = vmatprep.subr.mxu0 0.0
    %3236 = vmatpush1.msra.mxu0 0.0
    %3237 = vmatprep.subr.mxu0 0.0
    %3238 = vmatpush1.msra.mxu0 0.0
    %3239 = vmatprep.subr.mxu0 0.0
    %3240 = vmatpush1.msra.mxu0 0.0
    %3241 = vmatprep.subr.mxu0 0.0
    %3242 = vmatpush1.msra.mxu0 0.0
    %3243 = vmatprep.subr.mxu0 0.0
    %3244 = vmatpush1.msra.mxu0 0.0
    %3245 = vmatprep.subr.mxu0 0.0
    %3246 = vmatpush1.msra.mxu0 0.0
    %3247 = vmatprep.subr.mxu0 0.0
    %3248 = vmatpush1.msra.mxu0 0.0
    %3249 = vmatprep.subr.mxu0 0.0
    %3250 = vmatpush1.msra.mxu0 0.0
    %3251 = vmatprep.subr.mxu0 0.0
    %3252 = vmatpush1.msra.mxu0 0.0
    %3253 = vmatprep.subr.mxu0 0.0
    %3254 = vmatpush1.msra.mxu0 0.0
    %3255 = vmatprep.subr.mxu0 0.0
    %3256 = vmatpush1.msra.mxu0 0.0
    %3257 = vmatprep.subr.mxu0 0.0
    %3258 = vmatpush1.msra.mxu0 0.0
    %3259 = vmatprep.subr.mxu0 0.0
    %3260 = vmatpush1.msra.mxu0 0.0
    %3261 = vmatprep.subr.mxu0 0.0
    %3262 = vmatpush1.msra.mxu0 0.0
    %3263 = vmatprep.subr.mxu0 0.0
    %3264 = vmatpush1.msra.mxu0 0.0
    %3265 = vmatprep.subr.mxu0 0.0
    %3266 = vmatpush1.msra.mxu0 0.0
    %3267 = vmatprep.subr.mxu0 0.0
    %3268 = vmatpush1.msra.mxu0 0.0
    %3269 = vmatprep.subr.mxu0 0.0
    %3270 = vmatpush1.msra.mxu0 0.0
    %3271 = vmatprep.subr.mxu0 0.0
    %3272 = vmatpush1.msra.mxu0 0.0
    %3273 = vmatprep.subr.mxu0 0.0
    %3274 = vmatpush1.msra.mxu0 0.0
    %3275 = vmatprep.subr.mxu0 0.0
    %3276 = vmatpush1.msra.mxu0 0.0
    %3277 = vmatprep.subr.mxu0 0.0
    %3278 = vmatpush1.msra.mxu0 0.0
    %3279 = vmatprep.mubr.f32.mxu0 0.0
    %3280 = vmatmul.mubr.f32.gmra.mrb[0].mxu0 %v3213
    %v3281 = vpop.f32.mrb[0].mxu0
    %v3282 = vadd.f32 %v540, %v3281
    %v3283 = vpop.f32.mrb[0].mxu0
    %3284 = vdwg.mxu0
    %v3286 = vrot.slane %v3282, 6
    %v3288 = vadd.f32 %v249, %v3286
    %v3289 = vsub.f32 0.0, %v3288
    %v3290 = vmul.f32 %v3289, 1.442695
    %v3291 = vpow.pop %v3290
    %v3292 = vadd.f32 %v3291, 1.0
    %v3293 = vrcp.pop %v3292
    %v3294 = vmul.f32 1.0, %v3293
    %3295 = vrot.lane.b32.xlu0 %v3286, 64
    %v3296 = vpop.permute.xlu0 %3295
    %v3298 = vmul.f32 %v3294, %v3296
    %3300 = vrot.lane.b32.xlu0 %v3298, 64
    %v3301 = vpop.permute.xlu0 %3300
    %v3303 = vadd.f32 %v249, %v3301
    %v3304 = vtanh.pop %v3303
    %v3305 = vsub.f32 1.0, %v3294
    %3307 = vrot.lane.b32.xlu0 %v3304, 96
    %v3308 = vpop.permute.xlu0 %3307
    %v3310 = vmul.f32 %v3305, %v3308
    %3311 = vrot.lane.b32.xlu0 %v3072, 96
    %v3312 = vpop.permute.xlu0 %3311
    %v3314 = vmul.f32 %v3294, %v3312
    %v3315 = vadd.f32 %v3310, %v3314
    %v3316 = vmul.f32 %v2952, 0.0
    %v3318 = vrot.slane %v3316, 6
    %3319 = vrot.lane.b32.xlu0 %v3318, 96
    %v3320 = vpop.permute.xlu0 %3319
    %v3322 = vadd.f32 %v3315, %v3320
    %v3324 = vrot.slane %v3315, 2
    %3325 = vrot.lane.b32.xlu0 %v3324, 96
    %v3326 = vpop.permute.xlu0 %3325
    %v3328 = vmul.f32 %v1890, %v3326
    %3329 = vrot.lane.b32.xlu0 %v2952, 32
    %v3330 = vpop.permute.xlu0 %3329
    %v3331 = vsel %vm278, %v3330, 0
    %3333 = vmatprep.subr.mxu0 0.0
    %3334 = vmatpush1.msra.mxu0 %v646
    %3335 = vmatprep.subr.mxu0 0.0
    %3336 = vmatpush1.msra.mxu0 %v647
    %3337 = vmatprep.subr.mxu0 0.0
    %3338 = vmatpush1.msra.mxu0 %v648
    %3339 = vmatprep.subr.mxu0 0.0
    %3340 = vmatpush1.msra.mxu0 %v649
    %3341 = vmatprep.subr.mxu0 0.0
    %3342 = vmatpush1.msra.mxu0 0.0
    %3343 = vmatprep.subr.mxu0 0.0
    %3344 = vmatpush1.msra.mxu0 0.0
    %3345 = vmatprep.subr.mxu0 0.0
    %3346 = vmatpush1.msra.mxu0 0.0
    %3347 = vmatprep.subr.mxu0 0.0
    %3348 = vmatpush1.msra.mxu0 0.0
    %3349 = vmatprep.subr.mxu0 0.0
    %3350 = vmatpush1.msra.mxu0 0.0
    %3351 = vmatprep.subr.mxu0 0.0
    %3352 = vmatpush1.msra.mxu0 0.0
    %3353 = vmatprep.subr.mxu0 0.0
    %3354 = vmatpush1.msra.mxu0 0.0
    %3355 = vmatprep.subr.mxu0 0.0
    %3356 = vmatpush1.msra.mxu0 0.0
    %3357 = vmatprep.subr.mxu0 0.0
    %3358 = vmatpush1.msra.mxu0 0.0
    %3359 = vmatprep.subr.mxu0 0.0
    %3360 = vmatpush1.msra.mxu0 0.0
    %3361 = vmatprep.subr.mxu0 0.0
    %3362 = vmatpush1.msra.mxu0 0.0
    %3363 = vmatprep.subr.mxu0 0.0
    %3364 = vmatpush1.msra.mxu0 0.0
    %3365 = vmatprep.subr.mxu0 0.0
    %3366 = vmatpush1.msra.mxu0 0.0
    %3367 = vmatprep.subr.mxu0 0.0
    %3368 = vmatpush1.msra.mxu0 0.0
    %3369 = vmatprep.subr.mxu0 0.0
    %3370 = vmatpush1.msra.mxu0 0.0
    %3371 = vmatprep.subr.mxu0 0.0
    %3372 = vmatpush1.msra.mxu0 0.0
    %3373 = vmatprep.subr.mxu0 0.0
    %3374 = vmatpush1.msra.mxu0 0.0
    %3375 = vmatprep.subr.mxu0 0.0
    %3376 = vmatpush1.msra.mxu0 0.0
    %3377 = vmatprep.subr.mxu0 0.0
    %3378 = vmatpush1.msra.mxu0 0.0
    %3379 = vmatprep.subr.mxu0 0.0
    %3380 = vmatpush1.msra.mxu0 0.0
    %3381 = vmatprep.subr.mxu0 0.0
    %3382 = vmatpush1.msra.mxu0 0.0
    %3383 = vmatprep.subr.mxu0 0.0
    %3384 = vmatpush1.msra.mxu0 0.0
    %3385 = vmatprep.subr.mxu0 0.0
    %3386 = vmatpush1.msra.mxu0 0.0
    %3387 = vmatprep.subr.mxu0 0.0
    %3388 = vmatpush1.msra.mxu0 0.0
    %3389 = vmatprep.subr.mxu0 0.0
    %3390 = vmatpush1.msra.mxu0 0.0
    %3391 = vmatprep.subr.mxu0 0.0
    %3392 = vmatpush1.msra.mxu0 0.0
    %3393 = vmatprep.subr.mxu0 0.0
    %3394 = vmatpush1.msra.mxu0 0.0
    %3395 = vmatprep.subr.mxu0 0.0
    %3396 = vmatpush1.msra.mxu0 0.0
    %3397 = vmatprep.mubr.f32.mxu0 0.0
    %3398 = vmatmul.mubr.f32.gmra.mrb[0].mxu0 %v3331
    %v3399 = vpop.f32.mrb[0].mxu0
    %v3400 = vadd.f32 %v656, %v3399
    %v3401 = vpop.f32.mrb[0].mxu0
    %3402 = vdwg.mxu0
    %v3404 = vrot.slane %v3400, 4
    %3405 = vrot.lane.b32.xlu0 %v3404, 96
    %v3406 = vpop.permute.xlu0 %3405
    %v3408 = vadd.f32 %v243, %v3406
    %v3409 = vsub.f32 0.0, %v3408
    %v3410 = vmul.f32 %v3409, 1.442695
    %v3411 = vpow.pop %v3410
    %v3412 = vadd.f32 %v3411, 1.0
    %v3413 = vrcp.pop %v3412
    %v3414 = vmul.f32 1.0, %v3413
    %v3415 = vadd.f32 %v245, %v3406
    %v3416 = vsub.f32 0.0, %v3415
    %v3417 = vmul.f32 %v3416, 1.442695
    %v3418 = vpow.pop %v3417
    %v3419 = vadd.f32 %v3418, 1.0
    %v3420 = vrcp.pop %v3419
    %v3421 = vmul.f32 1.0, %v3420
    %3422 = vrot.lane.b32.xlu0 %v3404, 32
    %v3423 = vpop.permute.xlu0 %3422
    %v3425 = vmul.f32 %v3414, %v3423
    %3427 = vrot.lane.b32.xlu0 %v3425, 64
    %v3428 = vpop.permute.xlu0 %3427
    %v3430 = vadd.f32 %v245, %v3428
    %v3431 = vtanh.pop %v3430
    %v3432 = vsub.f32 1.0, %v3421
    %3434 = vrot.lane.b32.xlu0 %v3431, 96
    %v3435 = vpop.permute.xlu0 %3434
    %v3437 = vmul.f32 %v3432, %v3435
    %3438 = vrot.lane.b32.xlu0 %v3195, 32
    %v3439 = vpop.permute.xlu0 %3438
    %v3441 = vmul.f32 %v3421, %v3439
    %v3442 = vadd.f32 %v3437, %v3441
    %v3443 = vrot.slane %v3316, 4
    %3444 = vrot.lane.b32.xlu0 %v3443, 32
    %v3445 = vpop.permute.xlu0 %3444
    %v3447 = vadd.f32 %v3442, %v3445
    %v3449 = vrot.slane %v3442, 4
    %v3451 = vmul.f32 %v1760, %v3449
    %3453 = vrot.lane.b32.xlu0 %v3210, 32
    %v3454 = vpop.permute.xlu0 %3453
    %v3457 = vrot.slane %v3322, 2
    %3458 = vrot.lane.b32.xlu0 %v3457, 32
    %v3459 = vpop.permute.xlu0 %3458
    %v3462 = vrot.slane %v3447, 4
    %3463 = vrot.lane.b32.xlu0 %v3462, 96
    %v3464 = vpop.permute.xlu0 %3463
    %v3466 = vsel %vm278, %v3085, %v3454
    %v3467 = vsel %vm793, %v3466, %v3459
    %v3468 = vsel %vm795, %v3467, %v3464
    %3470 = vrot.lane.b32.xlu0 %v3204, 32
    %v3471 = vpop.permute.xlu0 %3470
    %3474 = vrot.lane.b32.xlu0 %v3328, 64
    %v3475 = vpop.permute.xlu0 %3474
    %3478 = vrot.lane.b32.xlu0 %v3451, 96
    %v3479 = vpop.permute.xlu0 %3478
    %v3481 = vsel %vm278, %v3083, %v3471
    %v3482 = vsel %vm793, %v3481, %v3475
    %v3483 = vsel %vm795, %v3482, %v3479
    %v3484 = vadd.f32 %v2972, %v3483
    %v3486 = vsel %vm278, %v3468, 0
    %3488 = vmatprep.subr.mxu0 0.0
    %3489 = vmatpush1.msra.mxu0 %v267
    %3490 = vmatprep.subr.mxu0 0.0
    %3491 = vmatpush1.msra.mxu0 %v268
    %3492 = vmatprep.subr.mxu0 0.0
    %3493 = vmatpush1.msra.mxu0 %v269
    %3494 = vmatprep.subr.mxu0 0.0
    %3495 = vmatpush1.msra.mxu0 %v270
    %3496 = vmatprep.subr.mxu0 0.0
    %3497 = vmatpush1.msra.mxu0 0.0
    %3498 = vmatprep.subr.mxu0 0.0
    %3499 = vmatpush1.msra.mxu0 0.0
    %3500 = vmatprep.subr.mxu0 0.0
    %3501 = vmatpush1.msra.mxu0 0.0
    %3502 = vmatprep.subr.mxu0 0.0
    %3503 = vmatpush1.msra.mxu0 0.0
    %3504 = vmatprep.subr.mxu0 0.0
    %3505 = vmatpush1.msra.mxu0 0.0
    %3506 = vmatprep.subr.mxu0 0.0
    %3507 = vmatpush1.msra.mxu0 0.0
    %3508 = vmatprep.subr.mxu0 0.0
    %3509 = vmatpush1.msra.mxu0 0.0
    %3510 = vmatprep.subr.mxu0 0.0
    %3511 = vmatpush1.msra.mxu0 0.0
    %3512 = vmatprep.subr.mxu0 0.0
    %3513 = vmatpush1.msra.mxu0 0.0
    %3514 = vmatprep.subr.mxu0 0.0
    %3515 = vmatpush1.msra.mxu0 0.0
    %3516 = vmatprep.subr.mxu0 0.0
    %3517 = vmatpush1.msra.mxu0 0.0
    %3518 = vmatprep.subr.mxu0 0.0
    %3519 = vmatpush1.msra.mxu0 0.0
    %3520 = vmatprep.subr.mxu0 0.0
    %3521 = vmatpush1.msra.mxu0 0.0
    %3522 = vmatprep.subr.mxu0 0.0
    %3523 = vmatpush1.msra.mxu0 0.0
    %3524 = vmatprep.subr.mxu0 0.0
    %3525 = vmatpush1.msra.mxu0 0.0
    %3526 = vmatprep.subr.mxu0 0.0
    %3527 = vmatpush1.msra.mxu0 0.0
    %3528 = vmatprep.subr.mxu0 0.0
    %3529 = vmatpush1.msra.mxu0 0.0
    %3530 = vmatprep.subr.mxu0 0.0
    %3531 = vmatpush1.msra.mxu0 0.0
    %3532 = vmatprep.subr.mxu0 0.0
    %3533 = vmatpush1.msra.mxu0 0.0
    %3534 = vmatprep.subr.mxu0 0.0
    %3535 = vmatpush1.msra.mxu0 0.0
    %3536 = vmatprep.subr.mxu0 0.0
    %3537 = vmatpush1.msra.mxu0 0.0
    %3538 = vmatprep.subr.mxu0 0.0
    %3539 = vmatpush1.msra.mxu0 0.0
    %3540 = vmatprep.subr.mxu0 0.0
    %3541 = vmatpush1.msra.mxu0 0.0
    %3542 = vmatprep.subr.mxu0 0.0
    %3543 = vmatpush1.msra.mxu0 0.0
    %3544 = vmatprep.subr.mxu0 0.0
    %3545 = vmatpush1.msra.mxu0 0.0
    %3546 = vmatprep.subr.mxu0 0.0
    %3547 = vmatpush1.msra.mxu0 0.0
    %3548 = vmatprep.subr.mxu0 0.0
    %3549 = vmatpush1.msra.mxu0 0.0
    %3550 = vmatprep.subr.mxu0 0.0
    %3551 = vmatpush1.msra.mxu0 0.0
    %3552 = vmatprep.mubr.f32.mxu0 0.0
    %3553 = vmatmul.mubr.f32.gmra.mrb[0].mxu0 %v3486
    %v3554 = vpop.f32.mrb[0].mxu0
    %v3555 = vadd.f32 %v276, %v3554
    %v3556 = vpop.f32.mrb[0].mxu0
    %3557 = vdwg.mxu0
    %v3559 = vrot.slane %v3555, 4
    %v3561 = vadd.f32 %v148, %v3559
    %v3562 = vsub.f32 0.0, %v3561
    %v3563 = vmul.f32 %v3562, 1.442695
    %v3564 = vpow.pop %v3563
    %v3565 = vadd.f32 %v3564, 1.0
    %v3566 = vrcp.pop %v3565
    %v3567 = vmul.f32 1.0, %v3566
    %3568 = vrot.lane.b32.xlu0 %v3559, 64
    %v3569 = vpop.permute.xlu0 %3568
    %v3571 = vmul.f32 %v3567, %v3569
    %3573 = vrot.lane.b32.xlu0 %v3571, 64
    %v3574 = vpop.permute.xlu0 %3573
    %v3576 = vadd.f32 %v148, %v3574
    %v3577 = vtanh.pop %v3576
    %v3578 = vsub.f32 1.0, %v3567
    %3580 = vrot.lane.b32.xlu0 %v3577, 96
    %v3581 = vpop.permute.xlu0 %3580
    %v3583 = vmul.f32 %v3578, %v3581
    %v3584 = vrot.slane %v3468, 4
    %3585 = vrot.lane.b32.xlu0 %v3584, 32
    %v3586 = vpop.permute.xlu0 %3585
    %v3588 = vmul.f32 %v3567, %v3586
    %v3589 = vadd.f32 %v3583, %v3588
    %v3591 = vrot.slane %v3589, 4
    %3592 = vrot.lane.b32.xlu0 %v3591, 96
    %v3593 = vpop.permute.xlu0 %3592
    %v3595 = vmul.f32 %v1071, %v3593
    %v3596 = vmul.f32 %v1081, %v3468
    %v3597 = vadd.f32 %v3595, %v3596
    %3598 = vrot.lane.b32.xlu0 %v3468, 96
    %v3599 = vpop.permute.xlu0 %3598
    %v3600 = vsel %vm278, %v3599, 0
    %3602 = vmatprep.subr.mxu0 0.0
    %3603 = vmatpush1.msra.mxu0 %v393
    %3604 = vmatprep.subr.mxu0 0.0
    %3605 = vmatpush1.msra.mxu0 %v394
    %3606 = vmatprep.subr.mxu0 0.0
    %3607 = vmatpush1.msra.mxu0 %v395
    %3608 = vmatprep.subr.mxu0 0.0
    %3609 = vmatpush1.msra.mxu0 %v396
    %3610 = vmatprep.subr.mxu0 0.0
    %3611 = vmatpush1.msra.mxu0 0.0
    %3612 = vmatprep.subr.mxu0 0.0
    %3613 = vmatpush1.msra.mxu0 0.0
    %3614 = vmatprep.subr.mxu0 0.0
    %3615 = vmatpush1.msra.mxu0 0.0
    %3616 = vmatprep.subr.mxu0 0.0
    %3617 = vmatpush1.msra.mxu0 0.0
    %3618 = vmatprep.subr.mxu0 0.0
    %3619 = vmatpush1.msra.mxu0 0.0
    %3620 = vmatprep.subr.mxu0 0.0
    %3621 = vmatpush1.msra.mxu0 0.0
    %3622 = vmatprep.subr.mxu0 0.0
    %3623 = vmatpush1.msra.mxu0 0.0
    %3624 = vmatprep.subr.mxu0 0.0
    %3625 = vmatpush1.msra.mxu0 0.0
    %3626 = vmatprep.subr.mxu0 0.0
    %3627 = vmatpush1.msra.mxu0 0.0
    %3628 = vmatprep.subr.mxu0 0.0
    %3629 = vmatpush1.msra.mxu0 0.0
    %3630 = vmatprep.subr.mxu0 0.0
    %3631 = vmatpush1.msra.mxu0 0.0
    %3632 = vmatprep.subr.mxu0 0.0
    %3633 = vmatpush1.msra.mxu0 0.0
    %3634 = vmatprep.subr.mxu0 0.0
    %3635 = vmatpush1.msra.mxu0 0.0
    %3636 = vmatprep.subr.mxu0 0.0
    %3637 = vmatpush1.msra.mxu0 0.0
    %3638 = vmatprep.subr.mxu0 0.0
    %3639 = vmatpush1.msra.mxu0 0.0
    %3640 = vmatprep.subr.mxu0 0.0
    %3641 = vmatpush1.msra.mxu0 0.0
    %3642 = vmatprep.subr.mxu0 0.0
    %3643 = vmatpush1.msra.mxu0 0.0
    %3644 = vmatprep.subr.mxu0 0.0
    %3645 = vmatpush1.msra.mxu0 0.0
    %3646 = vmatprep.subr.mxu0 0.0
    %3647 = vmatpush1.msra.mxu0 0.0
    %3648 = vmatprep.subr.mxu0 0.0
    %3649 = vmatpush1.msra.mxu0 0.0
    %3650 = vmatprep.subr.mxu0 0.0
    %3651 = vmatpush1.msra.mxu0 0.0
    %3652 = vmatprep.subr.mxu0 0.0
    %3653 = vmatpush1.msra.mxu0 0.0
    %3654 = vmatprep.subr.mxu0 0.0
    %3655 = vmatpush1.msra.mxu0 0.0
    %3656 = vmatprep.subr.mxu0 0.0
    %3657 = vmatpush1.msra.mxu0 0.0
    %3658 = vmatprep.subr.mxu0 0.0
    %3659 = vmatpush1.msra.mxu0 0.0
    %3660 = vmatprep.subr.mxu0 0.0
    %3661 = vmatpush1.msra.mxu0 0.0
    %3662 = vmatprep.subr.mxu0 0.0
    %3663 = vmatpush1.msra.mxu0 0.0
    %3664 = vmatprep.subr.mxu0 0.0
    %3665 = vmatpush1.msra.mxu0 0.0
    %3666 = vmatprep.mubr.f32.mxu0 0.0
    %3667 = vmatmul.mubr.f32.gmra.mrb[0].mxu0 %v3600
    %v3668 = vpop.f32.mrb[0].mxu0
    %v3669 = vadd.f32 %v403, %v3668
    %v3670 = vpop.f32.mrb[0].mxu0
    %3671 = vdwg.mxu0
    %v3673 = vrot.slane %v3669, 6
    %3674 = vrot.lane.b32.xlu0 %v3673, 96
    %v3675 = vpop.permute.xlu0 %3674
    %v3677 = vadd.f32 %v142, %v3675
    %v3678 = vsub.f32 0.0, %v3677
    %v3679 = vmul.f32 %v3678, 1.442695
    %v3680 = vpow.pop %v3679
    %v3681 = vadd.f32 %v3680, 1.0
    %v3682 = vrcp.pop %v3681
    %v3683 = vmul.f32 1.0, %v3682
    %v3684 = vadd.f32 %v144, %v3675
    %v3685 = vsub.f32 0.0, %v3684
    %v3686 = vmul.f32 %v3685, 1.442695
    %v3687 = vpow.pop %v3686
    %v3688 = vadd.f32 %v3687, 1.0
    %v3689 = vrcp.pop %v3688
    %v3690 = vmul.f32 1.0, %v3689
    %3691 = vrot.lane.b32.xlu0 %v3673, 32
    %v3692 = vpop.permute.xlu0 %3691
    %v3694 = vmul.f32 %v3683, %v3692
    %3696 = vrot.lane.b32.xlu0 %v3694, 64
    %v3697 = vpop.permute.xlu0 %3696
    %v3699 = vadd.f32 %v144, %v3697
    %v3700 = vtanh.pop %v3699
    %v3701 = vsub.f32 1.0, %v3690
    %3703 = vrot.lane.b32.xlu0 %v3700, 96
    %v3704 = vpop.permute.xlu0 %3703
    %v3706 = vmul.f32 %v3701, %v3704
    %v3707 = vrot.slane %v3468, 6
    %3708 = vrot.lane.b32.xlu0 %v3707, 96
    %v3709 = vpop.permute.xlu0 %3708
    %v3711 = vmul.f32 %v3690, %v3709
    %v3712 = vadd.f32 %v3706, %v3711
    %v3714 = vrot.slane %v3712, 2
    %v3716 = vmul.f32 %v937, %v3714
    %v3717 = vmul.f32 %v949, %v3468
    %3719 = vrot.lane.b32.xlu0 %v3717, 96
    %v3720 = vpop.permute.xlu0 %3719
    %v3722 = vadd.f32 %v3716, %v3720
    %3723 = vrot.lane.b32.xlu0 %v3468, 64
    %v3724 = vpop.permute.xlu0 %3723
    %v3725 = vsel %vm278, %v3724, 0
    %3727 = vmatprep.subr.mxu0 0.0
    %3728 = vmatpush1.msra.mxu0 %v530
    %3729 = vmatprep.subr.mxu0 0.0
    %3730 = vmatpush1.msra.mxu0 %v531
    %3731 = vmatprep.subr.mxu0 0.0
    %3732 = vmatpush1.msra.mxu0 %v532
    %3733 = vmatprep.subr.mxu0 0.0
    %3734 = vmatpush1.msra.mxu0 %v533
    %3735 = vmatprep.subr.mxu0 0.0
    %3736 = vmatpush1.msra.mxu0 0.0
    %3737 = vmatprep.subr.mxu0 0.0
    %3738 = vmatpush1.msra.mxu0 0.0
    %3739 = vmatprep.subr.mxu0 0.0
    %3740 = vmatpush1.msra.mxu0 0.0
    %3741 = vmatprep.subr.mxu0 0.0
    %3742 = vmatpush1.msra.mxu0 0.0
    %3743 = vmatprep.subr.mxu0 0.0
    %3744 = vmatpush1.msra.mxu0 0.0
    %3745 = vmatprep.subr.mxu0 0.0
    %3746 = vmatpush1.msra.mxu0 0.0
    %3747 = vmatprep.subr.mxu0 0.0
    %3748 = vmatpush1.msra.mxu0 0.0
    %3749 = vmatprep.subr.mxu0 0.0
    %3750 = vmatpush1.msra.mxu0 0.0
    %3751 = vmatprep.subr.mxu0 0.0
    %3752 = vmatpush1.msra.mxu0 0.0
    %3753 = vmatprep.subr.mxu0 0.0
    %3754 = vmatpush1.msra.mxu0 0.0
    %3755 = vmatprep.subr.mxu0 0.0
    %3756 = vmatpush1.msra.mxu0 0.0
    %3757 = vmatprep.subr.mxu0 0.0
    %3758 = vmatpush1.msra.mxu0 0.0
    %3759 = vmatprep.subr.mxu0 0.0
    %3760 = vmatpush1.msra.mxu0 0.0
    %3761 = vmatprep.subr.mxu0 0.0
    %3762 = vmatpush1.msra.mxu0 0.0
    %3763 = vmatprep.subr.mxu0 0.0
    %3764 = vmatpush1.msra.mxu0 0.0
    %3765 = vmatprep.subr.mxu0 0.0
    %3766 = vmatpush1.msra.mxu0 0.0
    %3767 = vmatprep.subr.mxu0 0.0
    %3768 = vmatpush1.msra.mxu0 0.0
    %3769 = vmatprep.subr.mxu0 0.0
    %3770 = vmatpush1.msra.mxu0 0.0
    %3771 = vmatprep.subr.mxu0 0.0
    %3772 = vmatpush1.msra.mxu0 0.0
    %3773 = vmatprep.subr.mxu0 0.0
    %3774 = vmatpush1.msra.mxu0 0.0
    %3775 = vmatprep.subr.mxu0 0.0
    %3776 = vmatpush1.msra.mxu0 0.0
    %3777 = vmatprep.subr.mxu0 0.0
    %3778 = vmatpush1.msra.mxu0 0.0
    %3779 = vmatprep.subr.mxu0 0.0
    %3780 = vmatpush1.msra.mxu0 0.0
    %3781 = vmatprep.subr.mxu0 0.0
    %3782 = vmatpush1.msra.mxu0 0.0
    %3783 = vmatprep.subr.mxu0 0.0
    %3784 = vmatpush1.msra.mxu0 0.0
    %3785 = vmatprep.subr.mxu0 0.0
    %3786 = vmatpush1.msra.mxu0 0.0
    %3787 = vmatprep.subr.mxu0 0.0
    %3788 = vmatpush1.msra.mxu0 0.0
    %3789 = vmatprep.subr.mxu0 0.0
    %3790 = vmatpush1.msra.mxu0 0.0
    %3791 = vmatprep.mubr.f32.mxu0 0.0
    %3792 = vmatmul.mubr.f32.gmra.mrb[0].mxu0 %v3725
    %v3793 = vpop.f32.mrb[0].mxu0
    %v3794 = vadd.f32 %v540, %v3793
    %v3795 = vpop.f32.mrb[0].mxu0
    %3796 = vdwg.mxu0
    %v3798 = vrot.slane %v3794, 4
    %v3800 = vadd.f32 %v249, %v3798
    %v3801 = vsub.f32 0.0, %v3800
    %v3802 = vmul.f32 %v3801, 1.442695
    %v3803 = vpow.pop %v3802
    %v3804 = vadd.f32 %v3803, 1.0
    %v3805 = vrcp.pop %v3804
    %v3806 = vmul.f32 1.0, %v3805
    %3807 = vrot.lane.b32.xlu0 %v3798, 64
    %v3808 = vpop.permute.xlu0 %3807
    %v3810 = vmul.f32 %v3806, %v3808
    %3812 = vrot.lane.b32.xlu0 %v3810, 64
    %v3813 = vpop.permute.xlu0 %3812
    %v3815 = vadd.f32 %v249, %v3813
    %v3816 = vtanh.pop %v3815
    %v3817 = vsub.f32 1.0, %v3806
    %3819 = vrot.lane.b32.xlu0 %v3816, 96
    %v3820 = vpop.permute.xlu0 %3819
    %v3822 = vmul.f32 %v3817, %v3820
    %3823 = vrot.lane.b32.xlu0 %v3584, 96
    %v3824 = vpop.permute.xlu0 %3823
    %v3826 = vmul.f32 %v3806, %v3824
    %v3827 = vadd.f32 %v3822, %v3826
    %v3828 = vmul.f32 %v3468, 0.0
    %v3830 = vrot.slane %v3828, 4
    %3831 = vrot.lane.b32.xlu0 %v3830, 96
    %v3832 = vpop.permute.xlu0 %3831
    %v3834 = vadd.f32 %v3827, %v3832
    %v3836 = vrot.slane %v3827, 4
    %3837 = vrot.lane.b32.xlu0 %v3836, 96
    %v3838 = vpop.permute.xlu0 %3837
    %v3840 = vmul.f32 %v1334, %v3838
    %3841 = vrot.lane.b32.xlu0 %v3468, 32
    %v3842 = vpop.permute.xlu0 %3841
    %v3843 = vsel %vm278, %v3842, 0
    %3845 = vmatprep.subr.mxu0 0.0
    %3846 = vmatpush1.msra.mxu0 %v646
    %3847 = vmatprep.subr.mxu0 0.0
    %3848 = vmatpush1.msra.mxu0 %v647
    %3849 = vmatprep.subr.mxu0 0.0
    %3850 = vmatpush1.msra.mxu0 %v648
    %3851 = vmatprep.subr.mxu0 0.0
    %3852 = vmatpush1.msra.mxu0 %v649
    %3853 = vmatprep.subr.mxu0 0.0
    %3854 = vmatpush1.msra.mxu0 0.0
    %3855 = vmatprep.subr.mxu0 0.0
    %3856 = vmatpush1.msra.mxu0 0.0
    %3857 = vmatprep.subr.mxu0 0.0
    %3858 = vmatpush1.msra.mxu0 0.0
    %3859 = vmatprep.subr.mxu0 0.0
    %3860 = vmatpush1.msra.mxu0 0.0
    %3861 = vmatprep.subr.mxu0 0.0
    %3862 = vmatpush1.msra.mxu0 0.0
    %3863 = vmatprep.subr.mxu0 0.0
    %3864 = vmatpush1.msra.mxu0 0.0
    %3865 = vmatprep.subr.mxu0 0.0
    %3866 = vmatpush1.msra.mxu0 0.0
    %3867 = vmatprep.subr.mxu0 0.0
    %3868 = vmatpush1.msra.mxu0 0.0
    %3869 = vmatprep.subr.mxu0 0.0
    %3870 = vmatpush1.msra.mxu0 0.0
    %3871 = vmatprep.subr.mxu0 0.0
    %3872 = vmatpush1.msra.mxu0 0.0
    %3873 = vmatprep.subr.mxu0 0.0
    %3874 = vmatpush1.msra.mxu0 0.0
    %3875 = vmatprep.subr.mxu0 0.0
    %3876 = vmatpush1.msra.mxu0 0.0
    %3877 = vmatprep.subr.mxu0 0.0
    %3878 = vmatpush1.msra.mxu0 0.0
    %3879 = vmatprep.subr.mxu0 0.0
    %3880 = vmatpush1.msra.mxu0 0.0
    %3881 = vmatprep.subr.mxu0 0.0
    %3882 = vmatpush1.msra.mxu0 0.0
    %3883 = vmatprep.subr.mxu0 0.0
    %3884 = vmatpush1.msra.mxu0 0.0
    %3885 = vmatprep.subr.mxu0 0.0
    %3886 = vmatpush1.msra.mxu0 0.0
    %3887 = vmatprep.subr.mxu0 0.0
    %3888 = vmatpush1.msra.mxu0 0.0
    %3889 = vmatprep.subr.mxu0 0.0
    %3890 = vmatpush1.msra.mxu0 0.0
    %3891 = vmatprep.subr.mxu0 0.0
    %3892 = vmatpush1.msra.mxu0 0.0
    %3893 = vmatprep.subr.mxu0 0.0
    %3894 = vmatpush1.msra.mxu0 0.0
    %3895 = vmatprep.subr.mxu0 0.0
    %3896 = vmatpush1.msra.mxu0 0.0
    %3897 = vmatprep.subr.mxu0 0.0
    %3898 = vmatpush1.msra.mxu0 0.0
    %3899 = vmatprep.subr.mxu0 0.0
    %3900 = vmatpush1.msra.mxu0 0.0
    %3901 = vmatprep.subr.mxu0 0.0
    %3902 = vmatpush1.msra.mxu0 0.0
    %3903 = vmatprep.subr.mxu0 0.0
    %3904 = vmatpush1.msra.mxu0 0.0
    %3905 = vmatprep.subr.mxu0 0.0
    %3906 = vmatpush1.msra.mxu0 0.0
    %3907 = vmatprep.subr.mxu0 0.0
    %3908 = vmatpush1.msra.mxu0 0.0
    %3909 = vmatprep.mubr.f32.mxu0 0.0
    %3910 = vmatmul.mubr.f32.gmra.mrb[0].mxu0 %v3843
    %v3911 = vpop.f32.mrb[0].mxu0
    %v3912 = vadd.f32 %v656, %v3911
    %v3913 = vpop.f32.mrb[0].mxu0
    %3914 = vdwg.mxu0
    %v3916 = vrot.slane %v3912, 6
    %3917 = vrot.lane.b32.xlu0 %v3916, 96
    %v3918 = vpop.permute.xlu0 %3917
    %v3920 = vadd.f32 %v243, %v3918
    %v3921 = vsub.f32 0.0, %v3920
    %v3922 = vmul.f32 %v3921, 1.442695
    %v3923 = vpow.pop %v3922
    %v3924 = vadd.f32 %v3923, 1.0
    %v3925 = vrcp.pop %v3924
    %v3926 = vmul.f32 1.0, %v3925
    %v3927 = vadd.f32 %v245, %v3918
    %v3928 = vsub.f32 0.0, %v3927
    %v3929 = vmul.f32 %v3928, 1.442695
    %v3930 = vpow.pop %v3929
    %v3931 = vadd.f32 %v3930, 1.0
    %v3932 = vrcp.pop %v3931
    %v3933 = vmul.f32 1.0, %v3932
    %3934 = vrot.lane.b32.xlu0 %v3916, 32
    %v3935 = vpop.permute.xlu0 %3934
    %v3937 = vmul.f32 %v3926, %v3935
    %3939 = vrot.lane.b32.xlu0 %v3937, 64
    %v3940 = vpop.permute.xlu0 %3939
    %v3942 = vadd.f32 %v245, %v3940
    %v3943 = vtanh.pop %v3942
    %v3944 = vsub.f32 1.0, %v3933
    %3946 = vrot.lane.b32.xlu0 %v3943, 96
    %v3947 = vpop.permute.xlu0 %3946
    %v3949 = vmul.f32 %v3944, %v3947
    %3950 = vrot.lane.b32.xlu0 %v3707, 32
    %v3951 = vpop.permute.xlu0 %3950
    %v3953 = vmul.f32 %v3933, %v3951
    %v3954 = vadd.f32 %v3949, %v3953
    %v3955 = vrot.slane %v3828, 6
    %3956 = vrot.lane.b32.xlu0 %v3955, 32
    %v3957 = vpop.permute.xlu0 %3956
    %v3959 = vadd.f32 %v3954, %v3957
    %v3961 = vrot.slane %v3954, 2
    %v3963 = vmul.f32 %v1204, %v3961
    %3965 = vrot.lane.b32.xlu0 %v3722, 32
    %v3966 = vpop.permute.xlu0 %3965
    %v3969 = vrot.slane %v3834, 4
    %3970 = vrot.lane.b32.xlu0 %v3969, 32
    %v3971 = vpop.permute.xlu0 %3970
    %v3974 = vrot.slane %v3959, 2
    %3975 = vrot.lane.b32.xlu0 %v3974, 96
    %v3976 = vpop.permute.xlu0 %3975
    %v3978 = vsel %vm278, %v3597, %v3966
    %v3979 = vsel %vm793, %v3978, %v3971
    %v3980 = vsel %vm795, %v3979, %v3976
    %3982 = vrot.lane.b32.xlu0 %v3716, 32
    %v3983 = vpop.permute.xlu0 %3982
    %3986 = vrot.lane.b32.xlu0 %v3840, 64
    %v3987 = vpop.permute.xlu0 %3986
    %3990 = vrot.lane.b32.xlu0 %v3963, 96
    %v3991 = vpop.permute.xlu0 %3990
    %v3993 = vsel %vm278, %v3595, %v3983
    %v3994 = vsel %vm793, %v3993, %v3987
    %v3995 = vsel %vm795, %v3994, %v3991
    %v3996 = vadd.f32 %v3484, %v3995
    %v3998 = vsel %vm278, %v3980, 0
    %4000 = vmatprep.subr.mxu0 0.0
    %4001 = vmatpush1.msra.mxu0 %v267
    %4002 = vmatprep.subr.mxu0 0.0
    %4003 = vmatpush1.msra.mxu0 %v268
    %4004 = vmatprep.subr.mxu0 0.0
    %4005 = vmatpush1.msra.mxu0 %v269
    %4006 = vmatprep.subr.mxu0 0.0
    %4007 = vmatpush1.msra.mxu0 %v270
    %4008 = vmatprep.subr.mxu0 0.0
    %4009 = vmatpush1.msra.mxu0 0.0
    %4010 = vmatprep.subr.mxu0 0.0
    %4011 = vmatpush1.msra.mxu0 0.0
    %4012 = vmatprep.subr.mxu0 0.0
    %4013 = vmatpush1.msra.mxu0 0.0
    %4014 = vmatprep.subr.mxu0 0.0
    %4015 = vmatpush1.msra.mxu0 0.0
    %4016 = vmatprep.subr.mxu0 0.0
    %4017 = vmatpush1.msra.mxu0 0.0
    %4018 = vmatprep.subr.mxu0 0.0
    %4019 = vmatpush1.msra.mxu0 0.0
    %4020 = vmatprep.subr.mxu0 0.0
    %4021 = vmatpush1.msra.mxu0 0.0
    %4022 = vmatprep.subr.mxu0 0.0
    %4023 = vmatpush1.msra.mxu0 0.0
    %4024 = vmatprep.subr.mxu0 0.0
    %4025 = vmatpush1.msra.mxu0 0.0
    %4026 = vmatprep.subr.mxu0 0.0
    %4027 = vmatpush1.msra.mxu0 0.0
    %4028 = vmatprep.subr.mxu0 0.0
    %4029 = vmatpush1.msra.mxu0 0.0
    %4030 = vmatprep.subr.mxu0 0.0
    %4031 = vmatpush1.msra.mxu0 0.0
    %4032 = vmatprep.subr.mxu0 0.0
    %4033 = vmatpush1.msra.mxu0 0.0
    %4034 = vmatprep.subr.mxu0 0.0
    %4035 = vmatpush1.msra.mxu0 0.0
    %4036 = vmatprep.subr.mxu0 0.0
    %4037 = vmatpush1.msra.mxu0 0.0
    %4038 = vmatprep.subr.mxu0 0.0
    %4039 = vmatpush1.msra.mxu0 0.0
    %4040 = vmatprep.subr.mxu0 0.0
    %4041 = vmatpush1.msra.mxu0 0.0
    %4042 = vmatprep.subr.mxu0 0.0
    %4043 = vmatpush1.msra.mxu0 0.0
    %4044 = vmatprep.subr.mxu0 0.0
    %4045 = vmatpush1.msra.mxu0 0.0
    %4046 = vmatprep.subr.mxu0 0.0
    %4047 = vmatpush1.msra.mxu0 0.0
    %4048 = vmatprep.subr.mxu0 0.0
    %4049 = vmatpush1.msra.mxu0 0.0
    %4050 = vmatprep.subr.mxu0 0.0
    %4051 = vmatpush1.msra.mxu0 0.0
    %4052 = vmatprep.subr.mxu0 0.0
    %4053 = vmatpush1.msra.mxu0 0.0
    %4054 = vmatprep.subr.mxu0 0.0
    %4055 = vmatpush1.msra.mxu0 0.0
    %4056 = vmatprep.subr.mxu0 0.0
    %4057 = vmatpush1.msra.mxu0 0.0
    %4058 = vmatprep.subr.mxu0 0.0
    %4059 = vmatpush1.msra.mxu0 0.0
    %4060 = vmatprep.subr.mxu0 0.0
    %4061 = vmatpush1.msra.mxu0 0.0
    %4062 = vmatprep.subr.mxu0 0.0
    %4063 = vmatpush1.msra.mxu0 0.0
    %4064 = vmatprep.mubr.f32.mxu0 0.0
    %4065 = vmatmul.mubr.f32.gmra.mrb[0].mxu0 %v3998
    %v4066 = vpop.f32.mrb[0].mxu0
    %v4067 = vadd.f32 %v276, %v4066
    %v4068 = vpop.f32.mrb[0].mxu0
    %4069 = vdwg.mxu0
    %v4071 = vrot.slane %v4067, 2
    %v4073 = vadd.f32 %v148, %v4071
    %v4074 = vsub.f32 0.0, %v4073
    %v4075 = vmul.f32 %v4074, 1.442695
    %v4076 = vpow.pop %v4075
    %v4077 = vadd.f32 %v4076, 1.0
    %v4078 = vrcp.pop %v4077
    %v4079 = vmul.f32 1.0, %v4078
    %4080 = vrot.lane.b32.xlu0 %v4071, 64
    %v4081 = vpop.permute.xlu0 %4080
    %v4083 = vmul.f32 %v4079, %v4081
    %4085 = vrot.lane.b32.xlu0 %v4083, 64
    %v4086 = vpop.permute.xlu0 %4085
    %v4088 = vadd.f32 %v148, %v4086
    %v4089 = vtanh.pop %v4088
    %v4090 = vsub.f32 1.0, %v4079
    %4092 = vrot.lane.b32.xlu0 %v4089, 96
    %v4093 = vpop.permute.xlu0 %4092
    %v4095 = vmul.f32 %v4090, %v4093
    %v4096 = vrot.slane %v3980, 2
    %4097 = vrot.lane.b32.xlu0 %v4096, 32
    %v4098 = vpop.permute.xlu0 %4097
    %v4100 = vmul.f32 %v4079, %v4098
    %v4101 = vadd.f32 %v4095, %v4100
    %v4103 = vrot.slane %v4101, 6
    %4104 = vrot.lane.b32.xlu0 %v4103, 96
    %v4105 = vpop.permute.xlu0 %4104
    %v4107 = vmul.f32 %v515, %v4105
    %4108 = vrot.lane.b32.xlu0 %v3980, 96
    %v4109 = vpop.permute.xlu0 %4108
    %v4110 = vsel %vm278, %v4109, 0
    %4112 = vmatprep.subr.mxu0 0.0
    %4113 = vmatpush1.msra.mxu0 %v393
    %4114 = vmatprep.subr.mxu0 0.0
    %4115 = vmatpush1.msra.mxu0 %v394
    %4116 = vmatprep.subr.mxu0 0.0
    %4117 = vmatpush1.msra.mxu0 %v395
    %4118 = vmatprep.subr.mxu0 0.0
    %4119 = vmatpush1.msra.mxu0 %v396
    %4120 = vmatprep.subr.mxu0 0.0
    %4121 = vmatpush1.msra.mxu0 0.0
    %4122 = vmatprep.subr.mxu0 0.0
    %4123 = vmatpush1.msra.mxu0 0.0
    %4124 = vmatprep.subr.mxu0 0.0
    %4125 = vmatpush1.msra.mxu0 0.0
    %4126 = vmatprep.subr.mxu0 0.0
    %4127 = vmatpush1.msra.mxu0 0.0
    %4128 = vmatprep.subr.mxu0 0.0
    %4129 = vmatpush1.msra.mxu0 0.0
    %4130 = vmatprep.subr.mxu0 0.0
    %4131 = vmatpush1.msra.mxu0 0.0
    %4132 = vmatprep.subr.mxu0 0.0
    %4133 = vmatpush1.msra.mxu0 0.0
    %4134 = vmatprep.subr.mxu0 0.0
    %4135 = vmatpush1.msra.mxu0 0.0
    %4136 = vmatprep.subr.mxu0 0.0
    %4137 = vmatpush1.msra.mxu0 0.0
    %4138 = vmatprep.subr.mxu0 0.0
    %4139 = vmatpush1.msra.mxu0 0.0
    %4140 = vmatprep.subr.mxu0 0.0
    %4141 = vmatpush1.msra.mxu0 0.0
    %4142 = vmatprep.subr.mxu0 0.0
    %4143 = vmatpush1.msra.mxu0 0.0
    %4144 = vmatprep.subr.mxu0 0.0
    %4145 = vmatpush1.msra.mxu0 0.0
    %4146 = vmatprep.subr.mxu0 0.0
    %4147 = vmatpush1.msra.mxu0 0.0
    %4148 = vmatprep.subr.mxu0 0.0
    %4149 = vmatpush1.msra.mxu0 0.0
    %4150 = vmatprep.subr.mxu0 0.0
    %4151 = vmatpush1.msra.mxu0 0.0
    %4152 = vmatprep.subr.mxu0 0.0
    %4153 = vmatpush1.msra.mxu0 0.0
    %4154 = vmatprep.subr.mxu0 0.0
    %4155 = vmatpush1.msra.mxu0 0.0
    %4156 = vmatprep.subr.mxu0 0.0
    %4157 = vmatpush1.msra.mxu0 0.0
    %4158 = vmatprep.subr.mxu0 0.0
    %4159 = vmatpush1.msra.mxu0 0.0
    %4160 = vmatprep.subr.mxu0 0.0
    %4161 = vmatpush1.msra.mxu0 0.0
    %4162 = vmatprep.subr.mxu0 0.0
    %4163 = vmatpush1.msra.mxu0 0.0
    %4164 = vmatprep.subr.mxu0 0.0
    %4165 = vmatpush1.msra.mxu0 0.0
    %4166 = vmatprep.subr.mxu0 0.0
    %4167 = vmatpush1.msra.mxu0 0.0
    %4168 = vmatprep.subr.mxu0 0.0
    %4169 = vmatpush1.msra.mxu0 0.0
    %4170 = vmatprep.subr.mxu0 0.0
    %4171 = vmatpush1.msra.mxu0 0.0
    %4172 = vmatprep.subr.mxu0 0.0
    %4173 = vmatpush1.msra.mxu0 0.0
    %4174 = vmatprep.subr.mxu0 0.0
    %4175 = vmatpush1.msra.mxu0 0.0
    %4176 = vmatprep.mubr.f32.mxu0 0.0
    %4177 = vmatmul.mubr.f32.gmra.mrb[0].mxu0 %v4110
    %v4178 = vpop.f32.mrb[0].mxu0
    %v4179 = vadd.f32 %v403, %v4178
    %v4180 = vpop.f32.mrb[0].mxu0
    %4181 = vdwg.mxu0
    %4183 = vrot.lane.b32.xlu0 %v4179, 96
    %v4184 = vpop.permute.xlu0 %4183
    %v4186 = vadd.f32 %v142, %v4184
    %v4187 = vsub.f32 0.0, %v4186
    %v4188 = vmul.f32 %v4187, 1.442695
    %v4189 = vpow.pop %v4188
    %v4190 = vadd.f32 %v4189, 1.0
    %v4191 = vrcp.pop %v4190
    %v4192 = vmul.f32 1.0, %v4191
    %v4193 = vadd.f32 %v144, %v4184
    %v4194 = vsub.f32 0.0, %v4193
    %v4195 = vmul.f32 %v4194, 1.442695
    %v4196 = vpow.pop %v4195
    %v4197 = vadd.f32 %v4196, 1.0
    %v4198 = vrcp.pop %v4197
    %v4199 = vmul.f32 1.0, %v4198
    %4200 = vrot.lane.b32.xlu0 %v4179, 32
    %v4201 = vpop.permute.xlu0 %4200
    %v4203 = vmul.f32 %v4192, %v4201
    %4205 = vrot.lane.b32.xlu0 %v4203, 64
    %v4206 = vpop.permute.xlu0 %4205
    %v4208 = vadd.f32 %v144, %v4206
    %v4209 = vtanh.pop %v4208
    %v4210 = vsub.f32 1.0, %v4199
    %4212 = vrot.lane.b32.xlu0 %v4209, 96
    %v4213 = vpop.permute.xlu0 %4212
    %v4215 = vmul.f32 %v4210, %v4213
    %v4217 = vmul.f32 %v4199, %v4109
    %v4218 = vadd.f32 %v4215, %v4217
    %v4219 = vmul.f32 %v381, %v4218
    %4220 = vrot.lane.b32.xlu0 %v3980, 64
    %v4221 = vpop.permute.xlu0 %4220
    %v4222 = vsel %vm278, %v4221, 0
    %4224 = vmatprep.subr.mxu0 0.0
    %4225 = vmatpush1.msra.mxu0 %v530
    %4226 = vmatprep.subr.mxu0 0.0
    %4227 = vmatpush1.msra.mxu0 %v531
    %4228 = vmatprep.subr.mxu0 0.0
    %4229 = vmatpush1.msra.mxu0 %v532
    %4230 = vmatprep.subr.mxu0 0.0
    %4231 = vmatpush1.msra.mxu0 %v533
    %4232 = vmatprep.subr.mxu0 0.0
    %4233 = vmatpush1.msra.mxu0 0.0
    %4234 = vmatprep.subr.mxu0 0.0
    %4235 = vmatpush1.msra.mxu0 0.0
    %4236 = vmatprep.subr.mxu0 0.0
    %4237 = vmatpush1.msra.mxu0 0.0
    %4238 = vmatprep.subr.mxu0 0.0
    %4239 = vmatpush1.msra.mxu0 0.0
    %4240 = vmatprep.subr.mxu0 0.0
    %4241 = vmatpush1.msra.mxu0 0.0
    %4242 = vmatprep.subr.mxu0 0.0
    %4243 = vmatpush1.msra.mxu0 0.0
    %4244 = vmatprep.subr.mxu0 0.0
    %4245 = vmatpush1.msra.mxu0 0.0
    %4246 = vmatprep.subr.mxu0 0.0
    %4247 = vmatpush1.msra.mxu0 0.0
    %4248 = vmatprep.subr.mxu0 0.0
    %4249 = vmatpush1.msra.mxu0 0.0
    %4250 = vmatprep.subr.mxu0 0.0
    %4251 = vmatpush1.msra.mxu0 0.0
    %4252 = vmatprep.subr.mxu0 0.0
    %4253 = vmatpush1.msra.mxu0 0.0
    %4254 = vmatprep.subr.mxu0 0.0
    %4255 = vmatpush1.msra.mxu0 0.0
    %4256 = vmatprep.subr.mxu0 0.0
    %4257 = vmatpush1.msra.mxu0 0.0
    %4258 = vmatprep.subr.mxu0 0.0
    %4259 = vmatpush1.msra.mxu0 0.0
    %4260 = vmatprep.subr.mxu0 0.0
    %4261 = vmatpush1.msra.mxu0 0.0
    %4262 = vmatprep.subr.mxu0 0.0
    %4263 = vmatpush1.msra.mxu0 0.0
    %4264 = vmatprep.subr.mxu0 0.0
    %4265 = vmatpush1.msra.mxu0 0.0
    %4266 = vmatprep.subr.mxu0 0.0
    %4267 = vmatpush1.msra.mxu0 0.0
    %4268 = vmatprep.subr.mxu0 0.0
    %4269 = vmatpush1.msra.mxu0 0.0
    %4270 = vmatprep.subr.mxu0 0.0
    %4271 = vmatpush1.msra.mxu0 0.0
    %4272 = vmatprep.subr.mxu0 0.0
    %4273 = vmatpush1.msra.mxu0 0.0
    %4274 = vmatprep.subr.mxu0 0.0
    %4275 = vmatpush1.msra.mxu0 0.0
    %4276 = vmatprep.subr.mxu0 0.0
    %4277 = vmatpush1.msra.mxu0 0.0
    %4278 = vmatprep.subr.mxu0 0.0
    %4279 = vmatpush1.msra.mxu0 0.0
    %4280 = vmatprep.subr.mxu0 0.0
    %4281 = vmatpush1.msra.mxu0 0.0
    %4282 = vmatprep.subr.mxu0 0.0
    %4283 = vmatpush1.msra.mxu0 0.0
    %4284 = vmatprep.subr.mxu0 0.0
    %4285 = vmatpush1.msra.mxu0 0.0
    %4286 = vmatprep.subr.mxu0 0.0
    %4287 = vmatpush1.msra.mxu0 0.0
    %4288 = vmatprep.mubr.f32.mxu0 0.0
    %4289 = vmatmul.mubr.f32.gmra.mrb[0].mxu0 %v4222
    %v4290 = vpop.f32.mrb[0].mxu0
    %v4291 = vadd.f32 %v540, %v4290
    %v4292 = vpop.f32.mrb[0].mxu0
    %4293 = vdwg.mxu0
    %v4295 = vrot.slane %v4291, 2
    %v4297 = vadd.f32 %v249, %v4295
    %v4298 = vsub.f32 0.0, %v4297
    %v4299 = vmul.f32 %v4298, 1.442695
    %v4300 = vpow.pop %v4299
    %v4301 = vadd.f32 %v4300, 1.0
    %v4302 = vrcp.pop %v4301
    %v4303 = vmul.f32 1.0, %v4302
    %4304 = vrot.lane.b32.xlu0 %v4295, 64
    %v4305 = vpop.permute.xlu0 %4304
    %v4307 = vmul.f32 %v4303, %v4305
    %4309 = vrot.lane.b32.xlu0 %v4307, 64
    %v4310 = vpop.permute.xlu0 %4309
    %v4312 = vadd.f32 %v249, %v4310
    %v4313 = vtanh.pop %v4312
    %v4314 = vsub.f32 1.0, %v4303
    %4316 = vrot.lane.b32.xlu0 %v4313, 96
    %v4317 = vpop.permute.xlu0 %4316
    %v4319 = vmul.f32 %v4314, %v4317
    %4320 = vrot.lane.b32.xlu0 %v4096, 96
    %v4321 = vpop.permute.xlu0 %4320
    %v4323 = vmul.f32 %v4303, %v4321
    %v4324 = vadd.f32 %v4319, %v4323
    %v4326 = vrot.slane %v4324, 6
    %4327 = vrot.lane.b32.xlu0 %v4326, 96
    %v4328 = vpop.permute.xlu0 %4327
    %v4330 = vmul.f32 %v769, %v4328
    %4331 = vrot.lane.b32.xlu0 %v3980, 32
    %v4332 = vpop.permute.xlu0 %4331
    %v4333 = vsel %vm278, %v4332, 0
    %4335 = vmatprep.subr.mxu0 0.0
    %4336 = vmatpush1.msra.mxu0 %v646
    %4337 = vmatprep.subr.mxu0 0.0
    %4338 = vmatpush1.msra.mxu0 %v647
    %4339 = vmatprep.subr.mxu0 0.0
    %4340 = vmatpush1.msra.mxu0 %v648
    %4341 = vmatprep.subr.mxu0 0.0
    %4342 = vmatpush1.msra.mxu0 %v649
    %4343 = vmatprep.subr.mxu0 0.0
    %4344 = vmatpush1.msra.mxu0 0.0
    %4345 = vmatprep.subr.mxu0 0.0
    %4346 = vmatpush1.msra.mxu0 0.0
    %4347 = vmatprep.subr.mxu0 0.0
    %4348 = vmatpush1.msra.mxu0 0.0
    %4349 = vmatprep.subr.mxu0 0.0
    %4350 = vmatpush1.msra.mxu0 0.0
    %4351 = vmatprep.subr.mxu0 0.0
    %4352 = vmatpush1.msra.mxu0 0.0
    %4353 = vmatprep.subr.mxu0 0.0
    %4354 = vmatpush1.msra.mxu0 0.0
    %4355 = vmatprep.subr.mxu0 0.0
    %4356 = vmatpush1.msra.mxu0 0.0
    %4357 = vmatprep.subr.mxu0 0.0
    %4358 = vmatpush1.msra.mxu0 0.0
    %4359 = vmatprep.subr.mxu0 0.0
    %4360 = vmatpush1.msra.mxu0 0.0
    %4361 = vmatprep.subr.mxu0 0.0
    %4362 = vmatpush1.msra.mxu0 0.0
    %4363 = vmatprep.subr.mxu0 0.0
    %4364 = vmatpush1.msra.mxu0 0.0
    %4365 = vmatprep.subr.mxu0 0.0
    %4366 = vmatpush1.msra.mxu0 0.0
    %4367 = vmatprep.subr.mxu0 0.0
    %4368 = vmatpush1.msra.mxu0 0.0
    %4369 = vmatprep.subr.mxu0 0.0
    %4370 = vmatpush1.msra.mxu0 0.0
    %4371 = vmatprep.subr.mxu0 0.0
    %4372 = vmatpush1.msra.mxu0 0.0
    %4373 = vmatprep.subr.mxu0 0.0
    %4374 = vmatpush1.msra.mxu0 0.0
    %4375 = vmatprep.subr.mxu0 0.0
    %4376 = vmatpush1.msra.mxu0 0.0
    %4377 = vmatprep.subr.mxu0 0.0
    %4378 = vmatpush1.msra.mxu0 0.0
    %4379 = vmatprep.subr.mxu0 0.0
    %4380 = vmatpush1.msra.mxu0 0.0
    %4381 = vmatprep.subr.mxu0 0.0
    %4382 = vmatpush1.msra.mxu0 0.0
    %4383 = vmatprep.subr.mxu0 0.0
    %4384 = vmatpush1.msra.mxu0 0.0
    %4385 = vmatprep.subr.mxu0 0.0
    %4386 = vmatpush1.msra.mxu0 0.0
    %4387 = vmatprep.subr.mxu0 0.0
    %4388 = vmatpush1.msra.mxu0 0.0
    %4389 = vmatprep.subr.mxu0 0.0
    %4390 = vmatpush1.msra.mxu0 0.0
    %4391 = vmatprep.subr.mxu0 0.0
    %4392 = vmatpush1.msra.mxu0 0.0
    %4393 = vmatprep.subr.mxu0 0.0
    %4394 = vmatpush1.msra.mxu0 0.0
    %4395 = vmatprep.subr.mxu0 0.0
    %4396 = vmatpush1.msra.mxu0 0.0
    %4397 = vmatprep.subr.mxu0 0.0
    %4398 = vmatpush1.msra.mxu0 0.0
    %4399 = vmatprep.mubr.f32.mxu0 0.0
    %4400 = vmatmul.mubr.f32.gmra.mrb[0].mxu0 %v4333
    %v4401 = vpop.f32.mrb[0].mxu0
    %v4402 = vadd.f32 %v656, %v4401
    %v4403 = vpop.f32.mrb[0].mxu0
    %4404 = vdwg.mxu0
    %4406 = vrot.lane.b32.xlu0 %v4402, 96
    %v4407 = vpop.permute.xlu0 %4406
    %v4409 = vadd.f32 %v243, %v4407
    %v4410 = vsub.f32 0.0, %v4409
    %v4411 = vmul.f32 %v4410, 1.442695
    %v4412 = vpow.pop %v4411
    %v4413 = vadd.f32 %v4412, 1.0
    %v4414 = vrcp.pop %v4413
    %v4415 = vmul.f32 1.0, %v4414
    %v4416 = vadd.f32 %v245, %v4407
    %v4417 = vsub.f32 0.0, %v4416
    %v4418 = vmul.f32 %v4417, 1.442695
    %v4419 = vpow.pop %v4418
    %v4420 = vadd.f32 %v4419, 1.0
    %v4421 = vrcp.pop %v4420
    %v4422 = vmul.f32 1.0, %v4421
    %4423 = vrot.lane.b32.xlu0 %v4402, 32
    %v4424 = vpop.permute.xlu0 %4423
    %v4426 = vmul.f32 %v4415, %v4424
    %4428 = vrot.lane.b32.xlu0 %v4426, 64
    %v4429 = vpop.permute.xlu0 %4428
    %v4431 = vadd.f32 %v245, %v4429
    %v4432 = vtanh.pop %v4431
    %v4433 = vsub.f32 1.0, %v4422
    %4435 = vrot.lane.b32.xlu0 %v4432, 96
    %v4436 = vpop.permute.xlu0 %4435
    %v4438 = vmul.f32 %v4433, %v4436
    %v4440 = vmul.f32 %v4422, %v4332
    %v4441 = vadd.f32 %v4438, %v4440
    %v4442 = vmul.f32 %v642, %v4441
    %4444 = vrot.lane.b32.xlu0 %v4219, 32
    %v4445 = vpop.permute.xlu0 %4444
    %4448 = vrot.lane.b32.xlu0 %v4330, 64
    %v4449 = vpop.permute.xlu0 %4448
    %4452 = vrot.lane.b32.xlu0 %v4442, 96
    %v4453 = vpop.permute.xlu0 %4452
    %v4455 = vsel %vm278, %v4107, %v4445
    %v4456 = vsel %vm793, %v4455, %v4449
    %v4457 = vsel %vm795, %v4456, %v4453
    %v4458 = vadd.f32 %v3996, %v4457
    %v4459 = vcvt.s32.f32 %v253
    %v4460 = vcvt.s32.f32 %v254
    %4462 = vset.pattern.permute.xlu0 0
    %4463 = vperm.xlu0 %4462, %v4459
    %v4464 = vpop.permute.xlu0 %4463
    %v4466 = vrcp.pop %v4464
    %v4467 = vmul.f32 %v4458, %v4466
    %4469 = vset.pattern.permute.xlu0 0
    %4470 = vperm.xlu0 %4469, %v4460
    %v4471 = vpop.permute.xlu0 %4470
    %v4473 = vrcp.pop %v4471
    %v4474 = vmul.f32 %v4458, %v4473
    %v4475 = vsel %vm793, %v4467, %v4474
    %4476 = vst [vmem:[#allocation2] sm:$0x3] %v4475
    %v4477 = vld [vmem:[%s10] sm:$0xff]
    %v4478 = vld [vmem:[%s10 + $0x8] sm:$0xff]
    %v4479 = vld [vmem:[%s10 + $0x10] sm:$0xff]
    %v4480 = vld [vmem:[%s10 + $0x18] sm:$0xff]
    %v4481 = vld [vmem:[%s10 + $0x20] sm:$0xff]
    %v4482 = vld [vmem:[%s10 + $0x28] sm:$0xff]
    %v4483 = vld [vmem:[%s10 + $0x30] sm:$0xff]
    %v4484 = vld [vmem:[%s10 + $0x38] sm:$0xff]
    %v4485 = vld [vmem:[%s10 + $0x40] sm:$0xff]
    %v4486 = vld [vmem:[%s10 + $0x48] sm:$0xff]
    %v4487 = vld [vmem:[%s10 + $0x50] sm:$0xff]
    %v4488 = vld [vmem:[%s10 + $0x58] sm:$0xff]
    %v4489 = vld [vmem:[%s10 + $0x60] sm:$0xff]
    %v4490 = vld [vmem:[%s10 + $0x68] sm:$0xff]
    %v4491 = vld [vmem:[%s10 + $0x70] sm:$0xff]
    %v4492 = vld [vmem:[%s10 + $0x78] sm:$0xff]
    %v4493 = vld [vmem:[%s11] sm:$0x1]
    %v4495 = vlaneseq
    %v4496 = vshrl.u32 %v4495, 7
    %v4497 = vsub.s32 0, %v4496
    %v4498 = vrot.slane %v4493, %v4497
    %4500 = vmatprep.subr.mxu0 0.0
    %4501 = vmatpush1.msra.mxu0 %v4477
    %4502 = vmatprep.subr.mxu0 0.0
    %4503 = vmatpush1.msra.mxu0 %v4478
    %4504 = vmatprep.subr.mxu0 0.0
    %4505 = vmatpush1.msra.mxu0 %v4479
    %4506 = vmatprep.subr.mxu0 0.0
    %4507 = vmatpush1.msra.mxu0 %v4480
    %4508 = vmatprep.subr.mxu0 0.0
    %4509 = vmatpush1.msra.mxu0 %v4481
    %4510 = vmatprep.subr.mxu0 0.0
    %4511 = vmatpush1.msra.mxu0 %v4482
    %4512 = vmatprep.subr.mxu0 0.0
    %4513 = vmatpush1.msra.mxu0 %v4483
    %4514 = vmatprep.subr.mxu0 0.0
    %4515 = vmatpush1.msra.mxu0 %v4484
    %4516 = vmatprep.subr.mxu0 0.0
    %4517 = vmatpush1.msra.mxu0 %v4485
    %4518 = vmatprep.subr.mxu0 0.0
    %4519 = vmatpush1.msra.mxu0 %v4486
    %4520 = vmatprep.subr.mxu0 0.0
    %4521 = vmatpush1.msra.mxu0 %v4487
    %4522 = vmatprep.subr.mxu0 0.0
    %4523 = vmatpush1.msra.mxu0 %v4488
    %4524 = vmatprep.subr.mxu0 0.0
    %4525 = vmatpush1.msra.mxu0 %v4489
    %4526 = vmatprep.subr.mxu0 0.0
    %4527 = vmatpush1.msra.mxu0 %v4490
    %4528 = vmatprep.subr.mxu0 0.0
    %4529 = vmatpush1.msra.mxu0 %v4491
    %4530 = vmatprep.subr.mxu0 0.0
    %4531 = vmatpush1.msra.mxu0 %v4492
    %4532 = vmatprep.subr.mxu0 0.0
    %4533 = vmatpush1.msra.mxu0 0.0
    %4534 = vmatprep.subr.mxu0 0.0
    %4535 = vmatpush1.msra.mxu0 0.0
    %4536 = vmatprep.subr.mxu0 0.0
    %4537 = vmatpush1.msra.mxu0 0.0
    %4538 = vmatprep.subr.mxu0 0.0
    %4539 = vmatpush1.msra.mxu0 0.0
    %4540 = vmatprep.subr.mxu0 0.0
    %4541 = vmatpush1.msra.mxu0 0.0
    %4542 = vmatprep.subr.mxu0 0.0
    %4543 = vmatpush1.msra.mxu0 0.0
    %4544 = vmatprep.subr.mxu0 0.0
    %4545 = vmatpush1.msra.mxu0 0.0
    %4546 = vmatprep.subr.mxu0 0.0
    %4547 = vmatpush1.msra.mxu0 0.0
    %4548 = vmatprep.subr.mxu0 0.0
    %4549 = vmatpush1.msra.mxu0 0.0
    %4550 = vmatprep.subr.mxu0 0.0
    %4551 = vmatpush1.msra.mxu0 0.0
    %4552 = vmatprep.subr.mxu0 0.0
    %4553 = vmatpush1.msra.mxu0 0.0
    %4554 = vmatprep.subr.mxu0 0.0
    %4555 = vmatpush1.msra.mxu0 0.0
    %4556 = vmatprep.subr.mxu0 0.0
    %4557 = vmatpush1.msra.mxu0 0.0
    %4558 = vmatprep.subr.mxu0 0.0
    %4559 = vmatpush1.msra.mxu0 0.0
    %4560 = vmatprep.subr.mxu0 0.0
    %4561 = vmatpush1.msra.mxu0 0.0
    %4562 = vmatprep.subr.mxu0 0.0
    %4563 = vmatpush1.msra.mxu0 0.0
    %4564 = vmatprep.mubr.f32.mxu0 0.0
    %4565 = vmatmul.mubr.f32.gmra.mrb[0].mxu0 %v4475
    %v4566 = vpop.f32.mrb[0].mxu0
    %v4567 = vadd.f32 %v4498, %v4566
    %v4568 = vpop.f32.mrb[0].mxu0
    %4569 = vdwg.mxu0
    %v4570 = vld [vmem:[%s12] sm:$0xff]
    %v4571 = vld [vmem:[%s12 + $0x8] sm:$0xff]
    %v4572 = vld [vmem:[%s12 + $0x10] sm:$0xff]
    %v4573 = vld [vmem:[%s12 + $0x18] sm:$0xff]
    %v4574 = vld [vmem:[%s12 + $0x20] sm:$0xff]
    %v4575 = vld [vmem:[%s12 + $0x28] sm:$0xff]
    %v4576 = vld [vmem:[%s12 + $0x30] sm:$0xff]
    %v4577 = vld [vmem:[%s12 + $0x38] sm:$0xff]
    %v4578 = vld [vmem:[%s13] sm:$0x1]
    %v4580 = vlaneseq
    %v4581 = vshrl.u32 %v4580, 7
    %v4582 = vsub.s32 0, %v4581
    %v4583 = vrot.slane %v4578, %v4582
    %v4586 = vsel %vm793, %v4467, 0
    %4588 = vmatprep.subr.mxu0 0.0
    %4589 = vmatpush1.msra.mxu0 %v4570
    %4590 = vmatprep.subr.mxu0 0.0
    %4591 = vmatpush1.msra.mxu0 %v4571
    %4592 = vmatprep.subr.mxu0 0.0
    %4593 = vmatpush1.msra.mxu0 %v4572
    %4594 = vmatprep.subr.mxu0 0.0
    %4595 = vmatpush1.msra.mxu0 %v4573
    %4596 = vmatprep.subr.mxu0 0.0
    %4597 = vmatpush1.msra.mxu0 %v4574
    %4598 = vmatprep.subr.mxu0 0.0
    %4599 = vmatpush1.msra.mxu0 %v4575
    %4600 = vmatprep.subr.mxu0 0.0
    %4601 = vmatpush1.msra.mxu0 %v4576
    %4602 = vmatprep.subr.mxu0 0.0
    %4603 = vmatpush1.msra.mxu0 %v4577
    %4604 = vmatprep.subr.mxu0 0.0
    %4605 = vmatpush1.msra.mxu0 0.0
    %4606 = vmatprep.subr.mxu0 0.0
    %4607 = vmatpush1.msra.mxu0 0.0
    %4608 = vmatprep.subr.mxu0 0.0
    %4609 = vmatpush1.msra.mxu0 0.0
    %4610 = vmatprep.subr.mxu0 0.0
    %4611 = vmatpush1.msra.mxu0 0.0
    %4612 = vmatprep.subr.mxu0 0.0
    %4613 = vmatpush1.msra.mxu0 0.0
    %4614 = vmatprep.subr.mxu0 0.0
    %4615 = vmatpush1.msra.mxu0 0.0
    %4616 = vmatprep.subr.mxu0 0.0
    %4617 = vmatpush1.msra.mxu0 0.0
    %4618 = vmatprep.subr.mxu0 0.0
    %4619 = vmatpush1.msra.mxu0 0.0
    %4620 = vmatprep.subr.mxu0 0.0
    %4621 = vmatpush1.msra.mxu0 0.0
    %4622 = vmatprep.subr.mxu0 0.0
    %4623 = vmatpush1.msra.mxu0 0.0
    %4624 = vmatprep.subr.mxu0 0.0
    %4625 = vmatpush1.msra.mxu0 0.0
    %4626 = vmatprep.subr.mxu0 0.0
    %4627 = vmatpush1.msra.mxu0 0.0
    %4628 = vmatprep.subr.mxu0 0.0
    %4629 = vmatpush1.msra.mxu0 0.0
    %4630 = vmatprep.subr.mxu0 0.0
    %4631 = vmatpush1.msra.mxu0 0.0
    %4632 = vmatprep.subr.mxu0 0.0
    %4633 = vmatpush1.msra.mxu0 0.0
    %4634 = vmatprep.subr.mxu0 0.0
    %4635 = vmatpush1.msra.mxu0 0.0
    %4636 = vmatprep.subr.mxu0 0.0
    %4637 = vmatpush1.msra.mxu0 0.0
    %4638 = vmatprep.subr.mxu0 0.0
    %4639 = vmatpush1.msra.mxu0 0.0
    %4640 = vmatprep.subr.mxu0 0.0
    %4641 = vmatpush1.msra.mxu0 0.0
    %4642 = vmatprep.subr.mxu0 0.0
    %4643 = vmatpush1.msra.mxu0 0.0
    %4644 = vmatprep.subr.mxu0 0.0
    %4645 = vmatpush1.msra.mxu0 0.0
    %4646 = vmatprep.subr.mxu0 0.0
    %4647 = vmatpush1.msra.mxu0 0.0
    %4648 = vmatprep.subr.mxu0 0.0
    %4649 = vmatpush1.msra.mxu0 0.0
    %4650 = vmatprep.subr.mxu0 0.0
    %4651 = vmatpush1.msra.mxu0 0.0
    %4652 = vmatprep.mubr.f32.mxu0 0.0
    %4653 = vmatmul.mubr.f32.gmra.mrb[0].mxu0 %v4586
    %v4654 = vpop.f32.mrb[0].mxu0
    %v4655 = vadd.f32 %v4583, %v4654
    %v4656 = vpop.f32.mrb[0].mxu0
    %4657 = vdwg.mxu0
    %v4658 = vmax.f32 %v4567, 0.0
    %v4659 = vand.u32 2147483647, %v4567
    %v4660 = vsub.f32 0.0, %v4659
    %v4661 = vmul.f32 %v4660, 1.442695
    %v4662 = vpow.pop %v4661
    %v4663 = vadd.f32 %v4662, 1.0
    %v4664 = vlog2.pop %v4663
    %v4665 = vmul.f32 %v4664, 0.6931472
    %v4666 = vadd.f32 %v4658, %v4665
    %v4667 = vmax.f32 %v4655, 0.0
    %v4668 = vand.u32 2147483647, %v4655
    %v4669 = vsub.f32 0.0, %v4668
    %v4670 = vmul.f32 %v4669, 1.442695
    %v4671 = vpow.pop %v4670
    %v4672 = vadd.f32 %v4671, 1.0
    %v4673 = vlog2.pop %v4672
    %v4674 = vmul.f32 %v4673, 0.6931472
    %v4675 = vadd.f32 %v4667, %v4674
    %4677 = vrot.lane.b32.xlu0 %v4655, 32
    %v4678 = vpop.permute.xlu0 %4677
    %4681 = vrot.lane.b32.xlu0 %v4675, 32
    %v4682 = vpop.permute.xlu0 %4681
    %v4684 = vsel %vm68, %v4567, %v4666
    %v4685 = vsel %vm278, %v4684, %v4678
    %vm4686 = vcmask 392192
    %v4687 = vsel %vm4686, %v4685, %v4682
    %vm4688 = vcmask 517120
    %4689 = vst.msk [vmem:[%s15] sm:$0x3] %vm4688, %v4687
    // Predicated region
    $region58: #{source_target_inference_forward.1} parent=1 // pred_check
      _
    $region59: #{source_target_inference_forward.1} parent=1 // pred_check_branch
      %4691 = sbr.rel (0) target = $region61
    $region60: #{source_target_inference_forward.1} parent=1 // pred_region
      %s4693 = ssub.s32 32, 32
      %4694 = vsyncadd [#allocation3], %s4693
      %s4696 = sshll.u32 [#allocation2], 4
      %s4697 = int_to_ptr.vmem [resolvable:$true] %s4696
      %4699 = dma.vmem_to_hbm [thread:$0]  %s4697, 32, %s14, [#allocation3]
    $region61: #{source_target_inference_forward.1} parent=1 // pred_fallthru
      _
    // Predicated region
    $region62: #{source_target_inference_forward.1} parent=1 // pred_check
      _
    $region63: #{source_target_inference_forward.1} parent=1 // pred_check_branch
      %4701 = sbr.rel (0) target = $region65
    $region64: #{source_target_inference_forward.1} parent=1 // pred_region
      _
    $region65: #{source_target_inference_forward.1} parent=1 // pred_fallthru
      _
    // Predicated region
    $region66: #{source_target_inference_forward.1} parent=1 // pred_check
      _
    $region67: #{source_target_inference_forward.1} parent=1 // pred_check_branch
      %4703 = sbr.rel (0) target = $region69
    $region68: #{source_target_inference_forward.1} parent=1 // pred_region
      %4704 = dma.done [#allocation3], 32
    $region69: #{source_target_inference_forward.1} parent=1 // pred_fallthru
      _
    // Predicated region
    $region70: #{source_target_inference_forward.1} parent=1 // pred_check
      _
    $region71: #{source_target_inference_forward.1} parent=1 // pred_check_branch
      %4706 = sbr.rel (0) target = $region73
    $region72: #{source_target_inference_forward.1} parent=1 // pred_region
      _
    $region73: #{source_target_inference_forward.1} parent=1 // pred_fallthru
      _
    %4707 = vsyncpa [#allocation3], 1

</llo_original>
